<compile_context>
chip_gen: v7x
topology: tpu7x:2x2x1
jax: 0.10.0
libtpu: 0.0.40
codegen_flags: <defaults>
</compile_context>

<pallas_src>
import functools
import math

import jax
import jax.numpy as jnp
from jax import lax
from jax.experimental import pallas as pl
from jax.experimental.pallas import tpu as pltpu

# Synthetic stand-in for EE_settings.role_types (FewFC).
ROLE_TYPES = [f"role_{i}" for i in range(19)]
NUM_ROLES = len(ROLE_TYPES)


def _pick_tile(m, target=512):
    """Largest 8-aligned divisor of m that is <= target (or m itself)."""
    if m <= target:
        return m
    for t in (1024, 512, 256, 128, 64, 32, 16, 8):
        if t <= target and m % t == 0:
            return t
    return m


def _round_up(x, mult):
    return ((x + mult - 1) // mult) * mult


# ----------------------------------------------------------------------------
# Kernel 1: tiled linear (matmul + bias, optional sigmoid), grid over M rows
# ----------------------------------------------------------------------------
def _linear_kernel(x_ref, w_ref, b_ref, o_ref, *, apply_sigmoid):
    y = jnp.dot(x_ref[...], w_ref[...], preferred_element_type=jnp.float32)
    y = y + b_ref[...]
    if apply_sigmoid:
        y = jax.nn.sigmoid(y)
    o_ref[...] = y.astype(o_ref.dtype)


def linear_pallas(x2d, w_t, b, apply_sigmoid=False, tm_target=512):
    """x2d: (M, K), w_t: (K, N), b: (N,) -> (M, N)."""
    M, K = x2d.shape
    N = w_t.shape[1]
    tm = _pick_tile(M, tm_target)
    return pl.pallas_call(
        functools.partial(_linear_kernel, apply_sigmoid=apply_sigmoid),
        out_shape=jax.ShapeDtypeStruct((M, N), jnp.float32),
        grid=(M // tm,),
        in_specs=[pl.BlockSpec((tm, K), lambda i: (i, 0)),
                  pl.BlockSpec((K, N), lambda i: (0, 0)),
                  pl.BlockSpec((1, N), lambda i: (0, 0))],
        out_specs=pl.BlockSpec((tm, N), lambda i: (i, 0)),
        compiler_params=pltpu.CompilerParams(
            dimension_semantics=("parallel",)),
    )(x2d, w_t, b.reshape(1, N))


# ----------------------------------------------------------------------------
# Kernel 2: attention core, G heads per grid step (batched einsum inside)
# ----------------------------------------------------------------------------
def _attn_kernel(q_ref, k_ref, v_ref, o_ref, *, scale):
    q = q_ref[...]                     # (G, L, dh)
    k = k_ref[...]
    v = v_ref[...]
    s = jnp.einsum('hqd,hkd->hqk', q, k,
                   preferred_element_type=jnp.float32) * scale
    s = s - jnp.max(s, axis=-1, keepdims=True)
    p = jnp.exp(s)
    denom = jnp.sum(p, axis=-1, keepdims=True)
    inv = pl.reciprocal(denom, approx=True)
    inv = inv * (2.0 - denom * inv)    # one Newton step -> f32 accuracy, stays on EUP
    p = p * inv
    o_ref[...] = jnp.einsum('hqk,hkd->hqd', p, v,
                            preferred_element_type=jnp.float32)


def attention_core_pallas(q, k, v, scale, heads_per_block):
    """q, k, v: (NB, L, dh) -> (NB, L, dh); NB = mha_batch * n_head."""
    NB, L, DH = q.shape
    G = heads_per_block
    spec = pl.BlockSpec((G, L, DH), lambda b: (b, 0, 0))
    return pl.pallas_call(
        functools.partial(_attn_kernel, scale=scale),
        out_shape=jax.ShapeDtypeStruct((NB, L, DH), jnp.float32),
        grid=(NB // G,),
        in_specs=[spec, spec, spec],
        out_specs=spec,
        compiler_params=pltpu.CompilerParams(
            dimension_semantics=("parallel",)),
    )(q, k, v)


# ----------------------------------------------------------------------------
# Kernel 3: fused LSTM input projection (both directions, concat folded in):
#   gates_x = cln @ W1 + attn @ W2 + rpe * w3 + b       (tiled over rows)
# ----------------------------------------------------------------------------
def _gates_kernel(cln_ref, attn_ref, rpe_ref, w1_ref, w2_ref, w3_ref, b_ref,
                  o_ref):
    y = jnp.dot(cln_ref[...], w1_ref[...], preferred_element_type=jnp.float32)
    y = y + jnp.dot(attn_ref[...], w2_ref[...],
                    preferred_element_type=jnp.float32)
    y = y + rpe_ref[...] * w3_ref[...]
    y = y + b_ref[...]
    o_ref[...] = y


def lstm_input_gates_pallas(cln2, attn2, rpe2, w1, w2, w3, b, tm_target=512):
    """cln2/attn2: (M, H), rpe2: (M, 1), w1/w2: (H, 8*hid), w3/b: (1, 8*hid)."""
    M, H = cln2.shape
    G8 = w1.shape[1]
    tm = _pick_tile(M, tm_target)
    return pl.pallas_call(
        _gates_kernel,
        out_shape=jax.ShapeDtypeStruct((M, G8), jnp.float32),
        grid=(M // tm,),
        in_specs=[pl.BlockSpec((tm, H), lambda i: (i, 0)),
                  pl.BlockSpec((tm, H), lambda i: (i, 0)),
                  pl.BlockSpec((tm, 1), lambda i: (i, 0)),
                  pl.BlockSpec((H, G8), lambda i: (0, 0)),
                  pl.BlockSpec((H, G8), lambda i: (0, 0)),
                  pl.BlockSpec((1, G8), lambda i: (0, 0)),
                  pl.BlockSpec((1, G8), lambda i: (0, 0))],
        out_specs=pl.BlockSpec((tm, G8), lambda i: (i, 0)),
        compiler_params=pltpu.CompilerParams(
            dimension_semantics=("parallel",)),
    )(cln2, attn2, rpe2, w1, w2, w3, b)


# ----------------------------------------------------------------------------
# Kernel 4: BiLSTM recurrence only. Both directions run as one batched cell per
# timestep; the input projection (gates_x) was precomputed by kernel 3.
#   gates_x: (S, 2, B, 4*hid)  [dir 0 = fwd at time t, dir 1 = bwd, time-rev]
#   whh    : (2, hid, 4*hid)   [stacked W_hh^T for fwd/bwd]
# ----------------------------------------------------------------------------
def _bilstm_kernel(gx_ref, whh_ref, out_ref):
    S = gx_ref.shape[0]
    B = gx_ref.shape[2]
    hid = whh_ref.shape[1]

    h0 = jnp.zeros((2, B, hid), jnp.float32)
    c0 = jnp.zeros((2, B, hid), jnp.float32)

    def body(t, carry):
        h, c = carry
        gates = gx_ref[t] + jnp.einsum('dbh,dhg->dbg', h, whh_ref[...],
                                       preferred_element_type=jnp.float32)
        i = jax.nn.sigmoid(gates[..., 0 * hid:1 * hid])
        f = jax.nn.sigmoid(gates[..., 1 * hid:2 * hid])
        g = jnp.tanh(gates[..., 2 * hid:3 * hid])
        o = jax.nn.sigmoid(gates[..., 3 * hid:4 * hid])
        c_new = f * c + i * g
        h_new = o * jnp.tanh(c_new)
        out_ref[t] = h_new
        return (h_new, c_new)

    lax.fori_loop(0, S, body, (h0, c0))


def bilstm_pallas(gates_x, whh_stacked):
    """gates_x: (S, 2, B, 4*hid), whh_stacked: (2, hid, 4*hid) -> (S, 2, B, hid)."""
    S, D, B, G4 = gates_x.shape
    hid = G4 // 4
    # TODO(synk): for long sequences stream gates_x/output in time chunks via
    # memory_space=pl.ANY + double-buffered DMA instead of one VMEM block.
    return pl.pallas_call(
        _bilstm_kernel,
        out_shape=jax.ShapeDtypeStruct((S, D, B, hid), jnp.float32),
    )(gates_x, whh_stacked)


# ----------------------------------------------------------------------------
# Full forward pass (glue reshapes/transposes are plain JAX)
# ----------------------------------------------------------------------------
def argument_extraction_forward(cln_embeds, rpe, params, *, n_head):
    B, S, H = cln_embeds.shape
    dh = H // n_head
    hid = H // 2
    L, N = B, S        # MHA attends over axis 0 (batch_first=False quirk)

    # --- multi-head self-attention (Q=K=V=cln_embeds) ---
    x2 = cln_embeds.reshape(L * N, H)
    qkv = linear_pallas(x2, params['in_proj_weight'].T, params['in_proj_bias'])
    q, k, v = jnp.split(qkv, 3, axis=-1)

    def split_heads(t):
        return (t.reshape(L, N, n_head, dh)
                 .transpose(1, 2, 0, 3)
                 .reshape(N * n_head, L, dh))

    NB = N * n_head
    G = _pick_tile(NB, 64)             # heads per attention grid step
    ctx = attention_core_pallas(split_heads(q), split_heads(k), split_heads(v),
                                1.0 / math.sqrt(dh), G)
    ctx = (ctx.reshape(N, n_head, L, dh)
              .transpose(2, 0, 1, 3)
              .reshape(L * N, H))
    attn2 = linear_pallas(ctx, params['out_proj_weight'].T,
                          params['out_proj_bias'])            # (B*S, H)

    # --- hoisted LSTM input projection, fused over both directions and the
    #     [cln_embeds | attn_out | rpe] concat (final_repr never materialized)
    wih_t = jnp.concatenate([params['lstm_w_ih_f'].T,
                             params['lstm_w_ih_b'].T], axis=1)  # (2H+1, 8*hid)
    w1 = wih_t[0:H]
    w2 = wih_t[H:2 * H]
    w3 = wih_t[2 * H:2 * H + 1]
    b_gates = jnp.concatenate(
        [params['lstm_b_ih_f'] + params['lstm_b_hh_f'],
         params['lstm_b_ih_b'] + params['lstm_b_hh_b']], axis=0).reshape(1, -1)

    rpe2 = rpe.reshape(B * S, 1)
    gx = lstm_input_gates_pallas(x2, attn2, rpe2, w1, w2, w3, b_gates)  # (B*S, 8*hid)

    gx = gx.reshape(B, S, 2, 4 * hid)
    gxf = jnp.transpose(gx[:, :, 0], (1, 0, 2))            # (S, B, 4*hid)
    gxb = jnp.transpose(gx[:, ::-1, 1], (1, 0, 2))         # bwd, time-reversed
    gates_x = jnp.stack([gxf, gxb], axis=1)                # (S, 2, B, 4*hid)

    whh_stacked = jnp.stack([params['lstm_w_hh_f'].T,
                             params['lstm_w_hh_b'].T], axis=0)  # (2, hid, 4*hid)
    out = bilstm_pallas(gates_x, whh_stacked)              # (S, 2, B, hid)
    out_f = out[:, 0]                                      # (S, B, hid)
    out_b = out[::-1, 1]                                   # back to original time order
    lstm_out = jnp.concatenate([out_f, out_b], axis=-1)    # (S, B, H)
    lstm_out2 = jnp.transpose(lstm_out, (1, 0, 2)).reshape(B * S, H)

    # --- fused start/end heads, zero-padded to a 128-lane multiple ---
    R = params['fcn_start_w'].shape[0]
    w_heads = jnp.concatenate([params['fcn_start_w'].T,
                               params['fcn_end_w'].T], axis=1)   # (H, 2R)
    b_heads = jnp.concatenate([params['fcn_start_b'],
                               params['fcn_end_b']], axis=0)
    n_pad = _round_up(2 * R, 128)
    w_heads = jnp.pad(w_heads, ((0, 0), (0, n_pad - 2 * R)))
    b_heads = jnp.pad(b_heads, (0, n_pad - 2 * R))
    se = linear_pallas(lstm_out2, w_heads, b_heads, apply_sigmoid=True)  # (B*S, n_pad)
    starts = se[:, :R].reshape(B, S, R)
    ends = se[:, R:2 * R].reshape(B, S, R)
    return starts, ends


# ----------------------------------------------------------------------------
# Pure-JAX reference (mirrors the PyTorch forward) for a correctness check
# ----------------------------------------------------------------------------
def reference_forward(cln_embeds, rpe, params, n_head):
    B, S, H = cln_embeds.shape
    dh = H // n_head
    L, N = B, S
    x2 = cln_embeds.reshape(L * N, H)
    qkv = x2 @ params['in_proj_weight'].T + params['in_proj_bias']
    q, k, v = jnp.split(qkv, 3, axis=-1)
    sh = lambda t: (t.reshape(L, N, n_head, dh).transpose(1, 2, 0, 3)
                     .reshape(N * n_head, L, dh))
    qh, kh, vh = sh(q), sh(k), sh(v)
    s = jnp.einsum('bld,bmd->blm', qh, kh) / jnp.sqrt(dh)
    p = jax.nn.softmax(s, axis=-1)
    ctx = jnp.einsum('blm,bmd->bld', p, vh)
    ctx = ctx.reshape(N, n_head, L, dh).transpose(2, 0, 1, 3).reshape(L * N, H)
    attn_out = (ctx @ params['out_proj_weight'].T
                + params['out_proj_bias']).reshape(L, N, H)
    final_repr = jnp.concatenate([cln_embeds, attn_out, rpe], axis=-1)

    hid = H // 2

    def lstm_dir(xs, wih, whh, bih, bhh):
        def step(carry, x_t):
            h, c = carry
            g = x_t @ wih.T + h @ whh.T + bih + bhh
            i = jax.nn.sigmoid(g[:, 0 * hid:1 * hid])
            f = jax.nn.sigmoid(g[:, 1 * hid:2 * hid])
            gg = jnp.tanh(g[:, 2 * hid:3 * hid])
            o = jax.nn.sigmoid(g[:, 3 * hid:4 * hid])
            c = f * c + i * gg
            h = o * jnp.tanh(c)
            return (h, c), h
        h0 = jnp.zeros((B, hid), jnp.float32)
        c0 = jnp.zeros((B, hid), jnp.float32)
        _, hs = lax.scan(step, (h0, c0), xs)
        return hs

    x_sbd = jnp.transpose(final_repr, (1, 0, 2))
    hs_f = lstm_dir(x_sbd, params['lstm_w_ih_f'], params['lstm_w_hh_f'],
                    params['lstm_b_ih_f'], params['lstm_b_hh_f'])
    hs_b = lstm_dir(x_sbd[::-1], params['lstm_w_ih_b'], params['lstm_w_hh_b'],
                    params['lstm_b_ih_b'], params['lstm_b_hh_b'])[::-1]
    lstm_out = jnp.concatenate([hs_f, hs_b], axis=-1).transpose(1, 0, 2)
    starts = jax.nn.sigmoid(lstm_out @ params['fcn_start_w'].T + params['fcn_start_b'])
    ends = jax.nn.sigmoid(lstm_out @ params['fcn_end_w'].T + params['fcn_end_b'])
    return starts, ends


if __name__ == "__main__":
    B, S, H, n_head = 2, 8, 32, 4      # d_head (unused by forward) implied H//n_head
    hid = H // 2
    IN = 2 * H + 1
    R = NUM_ROLES

    key = jax.random.PRNGKey(0)
    keys = jax.random.split(key, 20)

    def init(k, shape, scale=0.1):
        return jax.random.normal(k, shape, jnp.float32) * scale

    params = {
        'in_proj_weight':  init(keys[0], (3 * H, H)),
        'in_proj_bias':    init(keys[1], (3 * H,)),
        'out_proj_weight': init(keys[2], (H, H)),
        'out_proj_bias':   init(keys[3], (H,)),
        'lstm_w_ih_f':     init(keys[4], (4 * hid, IN)),
        'lstm_w_hh_f':     init(keys[5], (4 * hid, hid)),
        'lstm_b_ih_f':     init(keys[6], (4 * hid,)),
        'lstm_b_hh_f':     init(keys[7], (4 * hid,)),
        'lstm_w_ih_b':     init(keys[8], (4 * hid, IN)),
        'lstm_w_hh_b':     init(keys[9], (4 * hid, hid)),
        'lstm_b_ih_b':     init(keys[10], (4 * hid,)),
        'lstm_b_hh_b':     init(keys[11], (4 * hid,)),
        'fcn_start_w':     init(keys[12], (R, H)),
        'fcn_start_b':     jnp.zeros((R,), jnp.float32),   # init_weights fills bias with 0
        'fcn_end_w':       init(keys[13], (R, H)),
        'fcn_end_b':       jnp.zeros((R,), jnp.float32),
    }

    cln_embeds = jax.random.normal(keys[14], (B, S, H), jnp.float32)
    rpe = jax.random.normal(keys[15], (B, S, 1), jnp.float32)

    fwd = jax.jit(functools.partial(argument_extraction_forward, n_head=n_head))
    starts, ends = fwd(cln_embeds, rpe, params)
    jax.block_until_ready((starts, ends))

    ref_s, ref_e = reference_forward(cln_embeds, rpe, params, n_head)
    assert starts.shape == (B, S, R) and ends.shape == (B, S, R)
    assert jnp.allclose(starts, ref_s, atol=5e-4, rtol=5e-4)
    assert jnp.allclose(ends, ref_e, atol=5e-4, rtol=5e-4)

    print("KERNEL_OK")
</pallas_src>

<mosaic_0001>
module attributes {stable_mosaic.version = 11 : i64} {
  func.func @_linear_kernel(%arg0: i32, %arg1: memref<16x32xf32, #tpu.memory_space<vmem>>, %arg2: memref<32x96xf32, #tpu.memory_space<vmem>>, %arg3: memref<1x96xf32, #tpu.memory_space<vmem>>, %arg4: memref<16x96xf32, #tpu.memory_space<vmem>>) attributes {dimension_semantics = [#tpu.dimension_semantics<parallel>], iteration_bounds = array<i64: 1>, scalar_prefetch = 0 : i64, scratch_operands = 0 : i64, tpu.core_type = #tpu.core_type<tc>, window_params = [{transform_indices = @transform_0, window_bounds = array<i64: 16, 32>}, {pipeline_mode = #tpu.pipeline_mode<synchronous>, transform_indices = @transform_1, window_bounds = array<i64: 32, 96>}, {pipeline_mode = #tpu.pipeline_mode<synchronous>, transform_indices = @transform_2, window_bounds = array<i64: 1, 96>}, {transform_indices = @transform_3, window_bounds = array<i64: 16, 96>}]} {
    %c0 = arith.constant 0 : index
    %c0_0 = arith.constant 0 : index
    %0 = vector.load %arg1[%c0, %c0_0] : memref<16x32xf32, #tpu.memory_space<vmem>>, vector<16x32xf32>
    %c0_1 = arith.constant 0 : index
    %c0_2 = arith.constant 0 : index
    %1 = vector.load %arg2[%c0_1, %c0_2] : memref<32x96xf32, #tpu.memory_space<vmem>>, vector<32x96xf32>
    %cst = arith.constant dense<0.000000e+00> : vector<16x96xf32>
    %2 = tpu.matmul %0, %1, %cst {dimension_numbers = #tpu.dot_dimension_numbers<[1], [0], [0], [1], [0, 0, 1, 1], [], []>} : vector<16x32xf32>, vector<32x96xf32>, vector<16x96xf32> -> vector<16x96xf32>
    %c0_3 = arith.constant 0 : index
    %c0_4 = arith.constant 0 : index
    %3 = vector.load %arg3[%c0_3, %c0_4] : memref<1x96xf32, #tpu.memory_space<vmem>>, vector<1x96xf32>
    %4 = vector.broadcast %3 : vector<1x96xf32> to vector<16x96xf32>
    %5 = arith.addf %2, %4 : vector<16x96xf32>
    %c0_5 = arith.constant 0 : index
    %c0_6 = arith.constant 0 : index
    %6 = vector.load %arg4[%c0_5, %c0_6] : memref<16x96xf32, #tpu.memory_space<vmem>>, vector<16x96xf32>
    tpu.vector_store %arg4[%c0_5, %c0_6], %5 {strides = array<i32>} : memref<16x96xf32, #tpu.memory_space<vmem>>, vector<16x96xf32>,
    return
  }
  func.func @transform_0(%arg0: i32) -> (i32, i32) {
    %c0_i32 = arith.constant 0 : i32
    %c0_i32_0 = arith.constant 0 : i32
    return %arg0, %c0_i32 : i32, i32
  }
  func.func @transform_1(%arg0: i32) -> (i32, i32) {
    %c0_i32 = arith.constant 0 : i32
    %c0_i32_0 = arith.constant 0 : i32
    %c0_i32_1 = arith.constant 0 : i32
    return %c0_i32, %c0_i32_0 : i32, i32
  }
  func.func @transform_2(%arg0: i32) -> (i32, i32) {
    %c0_i32 = arith.constant 0 : i32
    %c0_i32_0 = arith.constant 0 : i32
    %c0_i32_1 = arith.constant 0 : i32
    return %c0_i32, %c0_i32_0 : i32, i32
  }
  func.func @transform_3(%arg0: i32) -> (i32, i32) {
    %c0_i32 = arith.constant 0 : i32
    %c0_i32_0 = arith.constant 0 : i32
    return %arg0, %c0_i32 : i32, i32
  }
}

module attributes {stable_mosaic.version = 11 : i64} {
  func.func @_attn_kernel(%arg0: i32, %arg1: memref<32x2x8xf32, #tpu.memory_space<vmem>>, %arg2: memref<32x2x8xf32, #tpu.memory_space<vmem>>, %arg3: memref<32x2x8xf32, #tpu.memory_space<vmem>>, %arg4: memref<32x2x8xf32, #tpu.memory_space<vmem>>) attributes {dimension_semantics = [#tpu.dimension_semantics<parallel>], iteration_bounds = array<i64: 1>, scalar_prefetch = 0 : i64, scratch_operands = 0 : i64, tpu.core_type = #tpu.core_type<tc>, window_params = [{transform_indices = @transform_0, window_bounds = array<i64: 32, 2, 8>}, {transform_indices = @transform_1, window_bounds = array<i64: 32, 2, 8>}, {transform_indices = @transform_2, window_bounds = array<i64: 32, 2, 8>}, {transform_indices = @transform_3, window_bounds = array<i64: 32, 2, 8>}]} {
    %c0 = arith.constant 0 : index
    %c0_0 = arith.constant 0 : index
    %c0_1 = arith.constant 0 : index
    %0 = vector.load %arg1[%c0, %c0_0, %c0_1] : memref<32x2x8xf32, #tpu.memory_space<vmem>>, vector<32x2x8xf32>
    %c0_2 = arith.constant 0 : index
    %c0_3 = arith.constant 0 : index
    %c0_4 = arith.constant 0 : index
    %1 = vector.load %arg2[%c0_2, %c0_3, %c0_4] : memref<32x2x8xf32, #tpu.memory_space<vmem>>, vector<32x2x8xf32>
    %c0_5 = arith.constant 0 : index
    %c0_6 = arith.constant 0 : index
    %c0_7 = arith.constant 0 : index
    %2 = vector.load %arg3[%c0_5, %c0_6, %c0_7] : memref<32x2x8xf32, #tpu.memory_space<vmem>>, vector<32x2x8xf32>
    "tpu.trace_start"() <{level = 10 : i32, message = "hqd,hkd->hqk"}> : () -> ()
    %cst = arith.constant dense<0.000000e+00> : vector<32x2x2xf32>
    %3 = tpu.matmul %0, %1, %cst {dimension_numbers = #tpu.dot_dimension_numbers<[2], [2], [1], [1], [0, 0, 0, 1, 1, 1], [0], [0]>} : vector<32x2x8xf32>, vector<32x2x8xf32>, vector<32x2x2xf32> -> vector<32x2x2xf32>
    "tpu.trace_stop"() : () -> ()
    %cst_8 = arith.constant 0.353553385 : f32
    %4 = vector.broadcast %cst_8 : f32 to vector<32x2x2xf32>
    %5 = arith.mulf %3, %4 : vector<32x2x2xf32>
    %cst_9 = arith.constant dense<0xFF800000> : vector<32x2xf32>
    %6 = vector.multi_reduction <maximumf>, %5, %cst_9 [2] : vector<32x2x2xf32> to vector<32x2xf32>
    %7 = vector.shape_cast %6 : vector<32x2xf32> to vector<32x2x1xf32>
    %8 = vector.broadcast %7 : vector<32x2x1xf32> to vector<32x2x2xf32>
    %9 = arith.subf %5, %8 : vector<32x2x2xf32>
    %10 = math.exp %9 : vector<32x2x2xf32>
    %cst_10 = arith.constant dense<0.000000e+00> : vector<32x2xf32>
    %11 = vector.multi_reduction <add>, %10, %cst_10 [2] : vector<32x2x2xf32> to vector<32x2xf32>
    %12 = vector.shape_cast %11 : vector<32x2xf32> to vector<32x2x1xf32>
    %13 = tpu.reciprocal %12 {approx = true} : vector<32x2x1xf32> -> vector<32x2x1xf32>
    %14 = arith.mulf %12, %13 : vector<32x2x1xf32>
    %cst_11 = arith.constant 2.000000e+00 : f32
    %15 = vector.broadcast %cst_11 : f32 to vector<32x2x1xf32>
    %16 = arith.subf %15, %14 : vector<32x2x1xf32>
    %17 = arith.mulf %13, %16 : vector<32x2x1xf32>
    %18 = vector.broadcast %17 : vector<32x2x1xf32> to vector<32x2x2xf32>
    %19 = arith.mulf %10, %18 : vector<32x2x2xf32>
    "tpu.trace_start"() <{level = 10 : i32, message = "hqk,hkd->hqd"}> : () -> ()
    %cst_12 = arith.constant dense<0.000000e+00> : vector<32x2x8xf32>
    %20 = tpu.matmul %19, %2, %cst_12 {dimension_numbers = #tpu.dot_dimension_numbers<[2], [1], [1], [2], [0, 0, 0, 1, 1, 2], [0], [0]>} : vector<32x2x2xf32>, vector<32x2x8xf32>, vector<32x2x8xf32> -> vector<32x2x8xf32>
    "tpu.trace_stop"() : () -> ()
    %c0_13 = arith.constant 0 : index
    %c0_14 = arith.constant 0 : index
    %c0_15 = arith.constant 0 : index
    %21 = vector.load %arg4[%c0_13, %c0_14, %c0_15] : memref<32x2x8xf32, #tpu.memory_space<vmem>>, vector<32x2x8xf32>
    tpu.vector_store %arg4[%c0_13, %c0_14, %c0_15], %20 {strides = array<i32>} : memref<32x2x8xf32, #tpu.memory_space<vmem>>, vector<32x2x8xf32>,
    return
  }
  func.func @transform_0(%arg0: i32) -> (i32, i32, i32) {
    %c0_i32 = arith.constant 0 : i32
    %c0_i32_0 = arith.constant 0 : i32
    %c0_i32_1 = arith.constant 0 : i32
    return %arg0, %c0_i32, %c0_i32_0 : i32, i32, i32
  }
  func.func @transform_1(%arg0: i32) -> (i32, i32, i32) {
    %c0_i32 = arith.constant 0 : i32
    %c0_i32_0 = arith.constant 0 : i32
    %c0_i32_1 = arith.constant 0 : i32
    return %arg0, %c0_i32, %c0_i32_0 : i32, i32, i32
  }
  func.func @transform_2(%arg0: i32) -> (i32, i32, i32) {
    %c0_i32 = arith.constant 0 : i32
    %c0_i32_0 = arith.constant 0 : i32
    %c0_i32_1 = arith.constant 0 : i32
    return %arg0, %c0_i32, %c0_i32_0 : i32, i32, i32
  }
  func.func @transform_3(%arg0: i32) -> (i32, i32, i32) {
    %c0_i32 = arith.constant 0 : i32
    %c0_i32_0 = arith.constant 0 : i32
    %c0_i32_1 = arith.constant 0 : i32
    return %arg0, %c0_i32, %c0_i32_0 : i32, i32, i32
  }
}

module attributes {stable_mosaic.version = 11 : i64} {
  func.func @_linear_kernel(%arg0: i32, %arg1: memref<16x32xf32, #tpu.memory_space<vmem>>, %arg2: memref<32x32xf32, #tpu.memory_space<vmem>>, %arg3: memref<1x32xf32, #tpu.memory_space<vmem>>, %arg4: memref<16x32xf32, #tpu.memory_space<vmem>>) attributes {dimension_semantics = [#tpu.dimension_semantics<parallel>], iteration_bounds = array<i64: 1>, scalar_prefetch = 0 : i64, scratch_operands = 0 : i64, tpu.core_type = #tpu.core_type<tc>, window_params = [{transform_indices = @transform_0, window_bounds = array<i64: 16, 32>}, {pipeline_mode = #tpu.pipeline_mode<synchronous>, transform_indices = @transform_1, window_bounds = array<i64: 32, 32>}, {pipeline_mode = #tpu.pipeline_mode<synchronous>, transform_indices = @transform_2, window_bounds = array<i64: 1, 32>}, {transform_indices = @transform_3, window_bounds = array<i64: 16, 32>}]} {
    %c0 = arith.constant 0 : index
    %c0_0 = arith.constant 0 : index
    %0 = vector.load %arg1[%c0, %c0_0] : memref<16x32xf32, #tpu.memory_space<vmem>>, vector<16x32xf32>
    %c0_1 = arith.constant 0 : index
    %c0_2 = arith.constant 0 : index
    %1 = vector.load %arg2[%c0_1, %c0_2] : memref<32x32xf32, #tpu.memory_space<vmem>>, vector<32x32xf32>
    %cst = arith.constant dense<0.000000e+00> : vector<16x32xf32>
    %2 = tpu.matmul %0, %1, %cst {dimension_numbers = #tpu.dot_dimension_numbers<[1], [0], [0], [1], [0, 0, 1, 1], [], []>} : vector<16x32xf32>, vector<32x32xf32>, vector<16x32xf32> -> vector<16x32xf32>
    %c0_3 = arith.constant 0 : index
    %c0_4 = arith.constant 0 : index
    %3 = vector.load %arg3[%c0_3, %c0_4] : memref<1x32xf32, #tpu.memory_space<vmem>>, vector<1x32xf32>
    %4 = vector.broadcast %3 : vector<1x32xf32> to vector<16x32xf32>
    %5 = arith.addf %2, %4 : vector<16x32xf32>
    %c0_5 = arith.constant 0 : index
    %c0_6 = arith.constant 0 : index
    %6 = vector.load %arg4[%c0_5, %c0_6] : memref<16x32xf32, #tpu.memory_space<vmem>>, vector<16x32xf32>
    tpu.vector_store %arg4[%c0_5, %c0_6], %5 {strides = array<i32>} : memref<16x32xf32, #tpu.memory_space<vmem>>, vector<16x32xf32>,
    return
  }
  func.func @transform_0(%arg0: i32) -> (i32, i32) {
    %c0_i32 = arith.constant 0 : i32
    %c0_i32_0 = arith.constant 0 : i32
    return %arg0, %c0_i32 : i32, i32
  }
  func.func @transform_1(%arg0: i32) -> (i32, i32) {
    %c0_i32 = arith.constant 0 : i32
    %c0_i32_0 = arith.constant 0 : i32
    %c0_i32_1 = arith.constant 0 : i32
    return %c0_i32, %c0_i32_0 : i32, i32
  }
  func.func @transform_2(%arg0: i32) -> (i32, i32) {
    %c0_i32 = arith.constant 0 : i32
    %c0_i32_0 = arith.constant 0 : i32
    %c0_i32_1 = arith.constant 0 : i32
    return %c0_i32, %c0_i32_0 : i32, i32
  }
  func.func @transform_3(%arg0: i32) -> (i32, i32) {
    %c0_i32 = arith.constant 0 : i32
    %c0_i32_0 = arith.constant 0 : i32
    return %arg0, %c0_i32 : i32, i32
  }
}

module attributes {stable_mosaic.version = 11 : i64} {
  func.func @_gates_kernel(%arg0: i32, %arg1: memref<16x32xf32, #tpu.memory_space<vmem>>, %arg2: memref<16x32xf32, #tpu.memory_space<vmem>>, %arg3: memref<16x1xf32, #tpu.memory_space<vmem>>, %arg4: memref<32x128xf32, #tpu.memory_space<vmem>>, %arg5: memref<32x128xf32, #tpu.memory_space<vmem>>, %arg6: memref<1x128xf32, #tpu.memory_space<vmem>>, %arg7: memref<1x128xf32, #tpu.memory_space<vmem>>, %arg8: memref<16x128xf32, #tpu.memory_space<vmem>>) attributes {dimension_semantics = [#tpu.dimension_semantics<parallel>], iteration_bounds = array<i64: 1>, scalar_prefetch = 0 : i64, scratch_operands = 0 : i64, tpu.core_type = #tpu.core_type<tc>, window_params = [{transform_indices = @transform_0, window_bounds = array<i64: 16, 32>}, {transform_indices = @transform_1, window_bounds = array<i64: 16, 32>}, {transform_indices = @transform_2, window_bounds = array<i64: 16, 1>}, {pipeline_mode = #tpu.pipeline_mode<synchronous>, transform_indices = @transform_3, window_bounds = array<i64: 32, 128>}, {pipeline_mode = #tpu.pipeline_mode<synchronous>, transform_indices = @transform_4, window_bounds = array<i64: 32, 128>}, {pipeline_mode = #tpu.pipeline_mode<synchronous>, transform_indices = @transform_5, window_bounds = array<i64: 1, 128>}, {pipeline_mode = #tpu.pipeline_mode<synchronous>, transform_indices = @transform_6, window_bounds = array<i64: 1, 128>}, {transform_indices = @transform_7, window_bounds = array<i64: 16, 128>}]} {
    %c0 = arith.constant 0 : index
    %c0_0 = arith.constant 0 : index
    %0 = vector.load %arg1[%c0, %c0_0] : memref<16x32xf32, #tpu.memory_space<vmem>>, vector<16x32xf32>
    %c0_1 = arith.constant 0 : index
    %c0_2 = arith.constant 0 : index
    %1 = vector.load %arg4[%c0_1, %c0_2] : memref<32x128xf32, #tpu.memory_space<vmem>>, vector<32x128xf32>
    %cst = arith.constant dense<0.000000e+00> : vector<16x128xf32>
    %2 = tpu.matmul %0, %1, %cst {dimension_numbers = #tpu.dot_dimension_numbers<[1], [0], [0], [1], [0, 0, 1, 1], [], []>} : vector<16x32xf32>, vector<32x128xf32>, vector<16x128xf32> -> vector<16x128xf32>
    %c0_3 = arith.constant 0 : index
    %c0_4 = arith.constant 0 : index
    %3 = vector.load %arg2[%c0_3, %c0_4] : memref<16x32xf32, #tpu.memory_space<vmem>>, vector<16x32xf32>
    %c0_5 = arith.constant 0 : index
    %c0_6 = arith.constant 0 : index
    %4 = vector.load %arg5[%c0_5, %c0_6] : memref<32x128xf32, #tpu.memory_space<vmem>>, vector<32x128xf32>
    %cst_7 = arith.constant dense<0.000000e+00> : vector<16x128xf32>
    %5 = tpu.matmul %3, %4, %cst_7 {dimension_numbers = #tpu.dot_dimension_numbers<[1], [0], [0], [1], [0, 0, 1, 1], [], []>} : vector<16x32xf32>, vector<32x128xf32>, vector<16x128xf32> -> vector<16x128xf32>
    %6 = arith.addf %2, %5 : vector<16x128xf32>
    %c0_8 = arith.constant 0 : index
    %c0_9 = arith.constant 0 : index
    %7 = vector.load %arg3[%c0_8, %c0_9] : memref<16x1xf32, #tpu.memory_space<vmem>>, vector<16x1xf32>
    %c0_10 = arith.constant 0 : index
    %c0_11 = arith.constant 0 : index
    %8 = vector.load %arg6[%c0_10, %c0_11] : memref<1x128xf32, #tpu.memory_space<vmem>>, vector<1x128xf32>
    %9 = vector.broadcast %7 : vector<16x1xf32> to vector<16x128xf32>
    %10 = vector.broadcast %8 : vector<1x128xf32> to vector<16x128xf32>
    %11 = arith.mulf %9, %10 : vector<16x128xf32>
    %12 = arith.addf %6, %11 : vector<16x128xf32>
    %c0_12 = arith.constant 0 : index
    %c0_13 = arith.constant 0 : index
    %13 = vector.load %arg7[%c0_12, %c0_13] : memref<1x128xf32, #tpu.memory_space<vmem>>, vector<1x128xf32>
    %14 = vector.broadcast %13 : vector<1x128xf32> to vector<16x128xf32>
    %15 = arith.addf %12, %14 : vector<16x128xf32>
    %c0_14 = arith.constant 0 : index
    %c0_15 = arith.constant 0 : index
    %16 = vector.load %arg8[%c0_14, %c0_15] : memref<16x128xf32, #tpu.memory_space<vmem>>, vector<16x128xf32>
    tpu.vector_store %arg8[%c0_14, %c0_15], %15 {strides = array<i32>} : memref<16x128xf32, #tpu.memory_space<vmem>>, vector<16x128xf32>,
    return
  }
  func.func @transform_0(%arg0: i32) -> (i32, i32) {
    %c0_i32 = arith.constant 0 : i32
    %c0_i32_0 = arith.constant 0 : i32
    return %arg0, %c0_i32 : i32, i32
  }
  func.func @transform_1(%arg0: i32) -> (i32, i32) {
    %c0_i32 = arith.constant 0 : i32
    %c0_i32_0 = arith.constant 0 : i32
    return %arg0, %c0_i32 : i32, i32
  }
  func.func @transform_2(%arg0: i32) -> (i32, i32) {
    %c0_i32 = arith.constant 0 : i32
    %c0_i32_0 = arith.constant 0 : i32
    return %arg0, %c0_i32 : i32, i32
  }
  func.func @transform_3(%arg0: i32) -> (i32, i32) {
    %c0_i32 = arith.constant 0 : i32
    %c0_i32_0 = arith.constant 0 : i32
    %c0_i32_1 = arith.constant 0 : i32
    return %c0_i32, %c0_i32_0 : i32, i32
  }
  func.func @transform_4(%arg0: i32) -> (i32, i32) {
    %c0_i32 = arith.constant 0 : i32
    %c0_i32_0 = arith.constant 0 : i32
    %c0_i32_1 = arith.constant 0 : i32
    return %c0_i32, %c0_i32_0 : i32, i32
  }
  func.func @transform_5(%arg0: i32) -> (i32, i32) {
    %c0_i32 = arith.constant 0 : i32
    %c0_i32_0 = arith.constant 0 : i32
    %c0_i32_1 = arith.constant 0 : i32
    return %c0_i32, %c0_i32_0 : i32, i32
  }
  func.func @transform_6(%arg0: i32) -> (i32, i32) {
    %c0_i32 = arith.constant 0 : i32
    %c0_i32_0 = arith.constant 0 : i32
    %c0_i32_1 = arith.constant 0 : i32
    return %c0_i32, %c0_i32_0 : i32, i32
  }
  func.func @transform_7(%arg0: i32) -> (i32, i32) {
    %c0_i32 = arith.constant 0 : i32
    %c0_i32_0 = arith.constant 0 : i32
    return %arg0, %c0_i32 : i32, i32
  }
}

module attributes {stable_mosaic.version = 11 : i64} {
  func.func @_bilstm_kernel(%arg0: memref<8x2x2x64xf32, #tpu.memory_space<vmem>>, %arg1: memref<2x16x64xf32, #tpu.memory_space<vmem>>, %arg2: memref<8x2x2x16xf32, #tpu.memory_space<vmem>>) attributes {dimension_semantics = [], scalar_prefetch = 0 : i64, scratch_operands = 0 : i64, tpu.core_type = #tpu.core_type<tc>} {
    %cst = arith.constant 0.000000e+00 : f32
    %0 = vector.broadcast %cst : f32 to vector<2x2x16xf32>
    %cst_0 = arith.constant 0.000000e+00 : f32
    %1 = vector.broadcast %cst_0 : f32 to vector<2x2x16xf32>
    %c0_i32 = arith.constant 0 : i32
    %c8_i32 = arith.constant 8 : i32
    %2 = arith.addi %c0_i32, %c8_i32 : i32
    %c1_i32 = arith.constant 1 : i32
    %3:2 = scf.for %arg3 = %c0_i32 to %2 step %c1_i32 iter_args(%arg4 = %0, %arg5 = %1) -> (vector<2x2x16xf32>, vector<2x2x16xf32>)  : i32 {
      %4 = arith.index_cast %arg3 : i32 to index
      %c0 = arith.constant 0 : index
      %c0_2 = arith.constant 0 : index
      %c0_3 = arith.constant 0 : index
      %5 = vector.load %arg0[%4, %c0, %c0_2, %c0_3] : memref<8x2x2x64xf32, #tpu.memory_space<vmem>>, vector<1x2x2x64xf32>
      %6 = vector.shape_cast %5 : vector<1x2x2x64xf32> to vector<2x2x64xf32>
      %c0_4 = arith.constant 0 : index
      %c0_5 = arith.constant 0 : index
      %c0_6 = arith.constant 0 : index
      %7 = vector.load %arg1[%c0_4, %c0_5, %c0_6] : memref<2x16x64xf32, #tpu.memory_space<vmem>>, vector<2x16x64xf32>
      "tpu.trace_start"() <{level = 10 : i32, message = "dbh,dhg->dbg"}> : () -> ()
      %cst_7 = arith.constant dense<0.000000e+00> : vector<2x2x64xf32>
      %8 = tpu.matmul %arg4, %7, %cst_7 {dimension_numbers = #tpu.dot_dimension_numbers<[2], [1], [1], [2], [0, 0, 0, 1, 1, 2], [0], [0]>} : vector<2x2x16xf32>, vector<2x16x64xf32>, vector<2x2x64xf32> -> vector<2x2x64xf32>
      "tpu.trace_stop"() : () -> ()
      %9 = arith.addf %6, %8 : vector<2x2x64xf32>
      %10 = vector.extract_strided_slice %9 {offsets = [0, 0, 0], sizes = [2, 2, 16], strides = [1, 1, 1]} : vector<2x2x64xf32> to vector<2x2x16xf32>
      %11 = arith.negf %10 : vector<2x2x16xf32>
      %12 = math.exp %11 : vector<2x2x16xf32>
      %cst_8 = arith.constant 1.000000e+00 : f32
      %13 = vector.broadcast %cst_8 : f32 to vector<2x2x16xf32>
      %14 = arith.addf %13, %12 : vector<2x2x16xf32>
      %15 = arith.divf %13, %14 : vector<2x2x16xf32>
      %16 = vector.extract_strided_slice %9 {offsets = [0, 0, 16], sizes = [2, 2, 16], strides = [1, 1, 1]} : vector<2x2x64xf32> to vector<2x2x16xf32>
      %17 = arith.negf %16 : vector<2x2x16xf32>
      %18 = math.exp %17 : vector<2x2x16xf32>
      %cst_9 = arith.constant 1.000000e+00 : f32
      %19 = vector.broadcast %cst_9 : f32 to vector<2x2x16xf32>
      %20 = arith.addf %19, %18 : vector<2x2x16xf32>
      %21 = arith.divf %19, %20 : vector<2x2x16xf32>
      %22 = vector.extract_strided_slice %9 {offsets = [0, 0, 32], sizes = [2, 2, 16], strides = [1, 1, 1]} : vector<2x2x64xf32> to vector<2x2x16xf32>
      %23 = math.tanh %22 : vector<2x2x16xf32>
      %24 = vector.extract_strided_slice %9 {offsets = [0, 0, 48], sizes = [2, 2, 16], strides = [1, 1, 1]} : vector<2x2x64xf32> to vector<2x2x16xf32>
      %25 = arith.negf %24 : vector<2x2x16xf32>
      %26 = math.exp %25 : vector<2x2x16xf32>
      %cst_10 = arith.constant 1.000000e+00 : f32
      %27 = vector.broadcast %cst_10 : f32 to vector<2x2x16xf32>
      %28 = arith.addf %27, %26 : vector<2x2x16xf32>
      %29 = arith.divf %27, %28 : vector<2x2x16xf32>
      %30 = arith.mulf %21, %arg5 : vector<2x2x16xf32>
      %31 = arith.mulf %15, %23 : vector<2x2x16xf32>
      %32 = arith.addf %30, %31 : vector<2x2x16xf32>
      %33 = math.tanh %32 : vector<2x2x16xf32>
      %34 = arith.mulf %29, %33 : vector<2x2x16xf32>
      %35 = arith.index_cast %arg3 : i32 to index
      %c0_11 = arith.constant 0 : index
      %c0_12 = arith.constant 0 : index
      %c0_13 = arith.constant 0 : index
      %36 = vector.load %arg2[%35, %c0_11, %c0_12, %c0_13] : memref<8x2x2x16xf32, #tpu.memory_space<vmem>>, vector<1x2x2x16xf32>
      %37 = vector.shape_cast %36 : vector<1x2x2x16xf32> to vector<2x2x16xf32>
      %38 = vector.shape_cast %34 : vector<2x2x16xf32> to vector<1x2x2x16xf32>
      tpu.vector_store %arg2[%35, %c0_11, %c0_12, %c0_13], %38 {strides = array<i32>} : memref<8x2x2x16xf32, #tpu.memory_space<vmem>>, vector<1x2x2x16xf32>,
      scf.yield %34, %32 : vector<2x2x16xf32>, vector<2x2x16xf32>
    }
    %c8_i32_1 = arith.constant 8 : i32
    return
  }
}

module attributes {stable_mosaic.version = 11 : i64} {
  func.func @_linear_kernel(%arg0: i32, %arg1: memref<16x32xf32, #tpu.memory_space<vmem>>, %arg2: memref<32x128xf32, #tpu.memory_space<vmem>>, %arg3: memref<1x128xf32, #tpu.memory_space<vmem>>, %arg4: memref<16x128xf32, #tpu.memory_space<vmem>>) attributes {dimension_semantics = [#tpu.dimension_semantics<parallel>], iteration_bounds = array<i64: 1>, scalar_prefetch = 0 : i64, scratch_operands = 0 : i64, tpu.core_type = #tpu.core_type<tc>, window_params = [{transform_indices = @transform_0, window_bounds = array<i64: 16, 32>}, {pipeline_mode = #tpu.pipeline_mode<synchronous>, transform_indices = @transform_1, window_bounds = array<i64: 32, 128>}, {pipeline_mode = #tpu.pipeline_mode<synchronous>, transform_indices = @transform_2, window_bounds = array<i64: 1, 128>}, {transform_indices = @transform_3, window_bounds = array<i64: 16, 128>}]} {
    %c0 = arith.constant 0 : index
    %c0_0 = arith.constant 0 : index
    %0 = vector.load %arg1[%c0, %c0_0] : memref<16x32xf32, #tpu.memory_space<vmem>>, vector<16x32xf32>
    %c0_1 = arith.constant 0 : index
    %c0_2 = arith.constant 0 : index
    %1 = vector.load %arg2[%c0_1, %c0_2] : memref<32x128xf32, #tpu.memory_space<vmem>>, vector<32x128xf32>
    %cst = arith.constant dense<0.000000e+00> : vector<16x128xf32>
    %2 = tpu.matmul %0, %1, %cst {dimension_numbers = #tpu.dot_dimension_numbers<[1], [0], [0], [1], [0, 0, 1, 1], [], []>} : vector<16x32xf32>, vector<32x128xf32>, vector<16x128xf32> -> vector<16x128xf32>
    %c0_3 = arith.constant 0 : index
    %c0_4 = arith.constant 0 : index
    %3 = vector.load %arg3[%c0_3, %c0_4] : memref<1x128xf32, #tpu.memory_space<vmem>>, vector<1x128xf32>
    %4 = vector.broadcast %3 : vector<1x128xf32> to vector<16x128xf32>
    %5 = arith.addf %2, %4 : vector<16x128xf32>
    %6 = arith.negf %5 : vector<16x128xf32>
    %7 = math.exp %6 : vector<16x128xf32>
    %cst_5 = arith.constant 1.000000e+00 : f32
    %8 = vector.broadcast %cst_5 : f32 to vector<16x128xf32>
    %9 = arith.addf %8, %7 : vector<16x128xf32>
    %10 = arith.divf %8, %9 : vector<16x128xf32>
    %c0_6 = arith.constant 0 : index
    %c0_7 = arith.constant 0 : index
    %11 = vector.load %arg4[%c0_6, %c0_7] : memref<16x128xf32, #tpu.memory_space<vmem>>, vector<16x128xf32>
    tpu.vector_store %arg4[%c0_6, %c0_7], %10 {strides = array<i32>} : memref<16x128xf32, #tpu.memory_space<vmem>>, vector<16x128xf32>,
    return
  }
  func.func @transform_0(%arg0: i32) -> (i32, i32) {
    %c0_i32 = arith.constant 0 : i32
    %c0_i32_0 = arith.constant 0 : i32
    return %arg0, %c0_i32 : i32, i32
  }
  func.func @transform_1(%arg0: i32) -> (i32, i32) {
    %c0_i32 = arith.constant 0 : i32
    %c0_i32_0 = arith.constant 0 : i32
    %c0_i32_1 = arith.constant 0 : i32
    return %c0_i32, %c0_i32_0 : i32, i32
  }
  func.func @transform_2(%arg0: i32) -> (i32, i32) {
    %c0_i32 = arith.constant 0 : i32
    %c0_i32_0 = arith.constant 0 : i32
    %c0_i32_1 = arith.constant 0 : i32
    return %c0_i32, %c0_i32_0 : i32, i32
  }
  func.func @transform_3(%arg0: i32) -> (i32, i32) {
    %c0_i32 = arith.constant 0 : i32
    %c0_i32_0 = arith.constant 0 : i32
    return %arg0, %c0_i32 : i32, i32
  }
}

</mosaic_0001>

<llo_original>
// kernel: argument_extraction_forward.6
$region0: #{argument_extraction_forward.6}
  #allocation0 [shape = 'u32[]', space=smem, size = 0x4, offset = 0x4, fixed_abs, tag = 'smem constant byte address 0x4 - core index']
  #allocation1 [shape = 'u32[144,128]{1,0:T(1,128)}', space=vmem, size = 0x12000, scoped, tag = 'internal scratch']
  %s0 = inlined_call_operand.vmem [shape: f32[16,32], index: 0, kind: input, shape index: {}]
  %s1 = inlined_call_operand.vmem [shape: f32[32,96], index: 1, kind: input, shape index: {}]
  %s2 = inlined_call_operand.vmem [shape: f32[1,96], index: 2, kind: input, shape index: {}]
  %s3 = inlined_call_operand.vmem [shape: f32[16,96], index: 3, kind: output, shape index: {}]
  %s4 = sld [smem:[#allocation0]]
  $region22: #{argument_extraction_forward.6} parent=0
    _
  %s6 = ssub.s32 1, %s4
  %s7 = scalar_select 0, %s6, %s4
  // Predicated region
  $region2: #{argument_extraction_forward.6} parent=0 // pred_check
    _
  $region3: #{argument_extraction_forward.6} parent=0 // pred_check_branch
    %9 = sbr.rel (0) target = $region5
  $region4: #{argument_extraction_forward.6} parent=0 // pred_region
    _
  $region5: #{argument_extraction_forward.6} parent=0 // pred_fallthru
    _
  // Predicated region
  $region6: #{argument_extraction_forward.6} parent=0 // pred_check
    _
  $region7: #{argument_extraction_forward.6} parent=0 // pred_check_branch
    %11 = sbr.rel (0) target = $region9
  $region8: #{argument_extraction_forward.6} parent=0 // pred_region
    _
  $region9: #{argument_extraction_forward.6} parent=0 // pred_fallthru
    _
  // Predicated region
  $region10: #{argument_extraction_forward.6} parent=0 // pred_check
    _
  $region11: #{argument_extraction_forward.6} parent=0 // pred_check_branch
    %13 = sbr.rel (0) target = $region13
  $region12: #{argument_extraction_forward.6} parent=0 // pred_region
    _
  $region13: #{argument_extraction_forward.6} parent=0 // pred_fallthru
    _
  %v14 = vld [vmem:[%s0] sm:$0xff]
  %v15 = vld [vmem:[%s0 + $0x8] sm:$0xff]
  %v16 = vld [vmem:[%s1] sm:$0xff]
  %v17 = vld [vmem:[%s1 + $0x8] sm:$0xff]
  %v18 = vld [vmem:[%s1 + $0x10] sm:$0xff]
  %v19 = vld [vmem:[%s1 + $0x18] sm:$0xff]
  %v20 = vld [vmem:[%s2] sm:$0x1]
  %v22 = vlaneseq
  %v23 = vshrl.u32 %v22, 7
  %v24 = vsub.s32 0, %v23
  %v25 = vrot.slane %v20, %v24
  %vm27 = vcmask 261120
  %v29 = vsel %vm27, %v14, 0
  %v32 = vsel %vm27, %v15, 0
  %34 = vmatprep.subr.mxu0 0.0
  %35 = vmatpush1.msra.mxu0 %v16
  %36 = vmatprep.subr.mxu0 0.0
  %37 = vmatpush1.msra.mxu0 %v17
  %38 = vmatprep.subr.mxu0 0.0
  %39 = vmatpush1.msra.mxu0 %v18
  %40 = vmatprep.subr.mxu0 0.0
  %41 = vmatpush1.msra.mxu0 %v19
  %42 = vmatprep.subr.mxu0 0.0
  %43 = vmatpush1.msra.mxu0 0.0
  %44 = vmatprep.subr.mxu0 0.0
  %45 = vmatpush1.msra.mxu0 0.0
  %46 = vmatprep.subr.mxu0 0.0
  %47 = vmatpush1.msra.mxu0 0.0
  %48 = vmatprep.subr.mxu0 0.0
  %49 = vmatpush1.msra.mxu0 0.0
  %50 = vmatprep.subr.mxu0 0.0
  %51 = vmatpush1.msra.mxu0 0.0
  %52 = vmatprep.subr.mxu0 0.0
  %53 = vmatpush1.msra.mxu0 0.0
  %54 = vmatprep.subr.mxu0 0.0
  %55 = vmatpush1.msra.mxu0 0.0
  %56 = vmatprep.subr.mxu0 0.0
  %57 = vmatpush1.msra.mxu0 0.0
  %58 = vmatprep.subr.mxu0 0.0
  %59 = vmatpush1.msra.mxu0 0.0
  %60 = vmatprep.subr.mxu0 0.0
  %61 = vmatpush1.msra.mxu0 0.0
  %62 = vmatprep.subr.mxu0 0.0
  %63 = vmatpush1.msra.mxu0 0.0
  %64 = vmatprep.subr.mxu0 0.0
  %65 = vmatpush1.msra.mxu0 0.0
  %66 = vmatprep.subr.mxu0 0.0
  %67 = vmatpush1.msra.mxu0 0.0
  %68 = vmatprep.subr.mxu0 0.0
  %69 = vmatpush1.msra.mxu0 0.0
  %70 = vmatprep.subr.mxu0 0.0
  %71 = vmatpush1.msra.mxu0 0.0
  %72 = vmatprep.subr.mxu0 0.0
  %73 = vmatpush1.msra.mxu0 0.0
  %74 = vmatprep.subr.mxu0 0.0
  %75 = vmatpush1.msra.mxu0 0.0
  %76 = vmatprep.subr.mxu0 0.0
  %77 = vmatpush1.msra.mxu0 0.0
  %78 = vmatprep.subr.mxu0 0.0
  %79 = vmatpush1.msra.mxu0 0.0
  %80 = vmatprep.subr.mxu0 0.0
  %81 = vmatpush1.msra.mxu0 0.0
  %82 = vmatprep.subr.mxu0 0.0
  %83 = vmatpush1.msra.mxu0 0.0
  %84 = vmatprep.subr.mxu0 0.0
  %85 = vmatpush1.msra.mxu0 0.0
  %86 = vmatprep.subr.mxu0 0.0
  %87 = vmatpush1.msra.mxu0 0.0
  %88 = vmatprep.subr.mxu0 0.0
  %89 = vmatpush1.msra.mxu0 0.0
  %90 = vmatprep.subr.mxu0 0.0
  %91 = vmatpush1.msra.mxu0 0.0
  %92 = vmatprep.subr.mxu0 0.0
  %93 = vmatpush1.msra.mxu0 0.0
  %94 = vmatprep.subr.mxu0 0.0
  %95 = vmatpush1.msra.mxu0 0.0
  %96 = vmatprep.subr.mxu0 0.0
  %97 = vmatpush1.msra.mxu0 0.0
  %98 = vmatprep.mubr.f32.mxu0 0.0
  %99 = vmatmul.mubr.f32.gmra.mrb[0].mxu0 %v29
  %v100 = vpop.f32.mrb[0].mxu0
  %v101 = vadd.f32 %v25, %v100
  %v102 = vpop.f32.mrb[0].mxu0
  %103 = vmatprep.mubr.f32.mxu0 0.0
  %104 = vmatmul.mubr.f32.gmra.mrb[0].mxu0 %v32
  %v105 = vpop.f32.mrb[0].mxu0
  %v106 = vadd.f32 %v25, %v105
  %v107 = vpop.f32.mrb[0].mxu0
  %108 = vdwg.mxu0
  %vm109 = vcmask 785408
  %110 = vst.msk [vmem:[%s3] sm:$0xff] %vm109, %v101
  %111 = vst.msk [vmem:[%s3 + $0x8] sm:$0xff] %vm109, %v106
  // Predicated region
  $region14: #{argument_extraction_forward.6} parent=0 // pred_check
    _
  $region15: #{argument_extraction_forward.6} parent=0 // pred_check_branch
    %113 = sbr.rel (0) target = $region17
  $region16: #{argument_extraction_forward.6} parent=0 // pred_region
    _
  $region17: #{argument_extraction_forward.6} parent=0 // pred_fallthru
    _
  // Predicated region
  $region18: #{argument_extraction_forward.6} parent=0 // pred_check
    _
  $region19: #{argument_extraction_forward.6} parent=0 // pred_check_branch
    %115 = sbr.rel (0) target = $region21
  $region20: #{argument_extraction_forward.6} parent=0 // pred_region
    _
  $region21: #{argument_extraction_forward.6} parent=0 // pred_fallthru
    _

// kernel: argument_extraction_forward.8
$region0: #{argument_extraction_forward.8}
  #allocation0 [shape = 'u32[]', space=smem, size = 0x4, offset = 0x4, fixed_abs, tag = 'smem constant byte address 0x4 - core index']
  #allocation1 [shape = 'u32[144,128]{1,0:T(1,128)}', space=vmem, size = 0x12000, scoped, tag = 'internal scratch']
  %s0 = inlined_call_operand.vmem [shape: f32[16,32], index: 0, kind: input, shape index: {}]
  %s1 = inlined_call_operand.vmem [shape: f32[32,32], index: 1, kind: input, shape index: {}]
  %s2 = inlined_call_operand.vmem [shape: f32[1,32], index: 2, kind: input, shape index: {}]
  %s3 = inlined_call_operand.vmem [shape: f32[16,32], index: 3, kind: output, shape index: {}]
  %s4 = sld [smem:[#allocation0]]
  $region22: #{argument_extraction_forward.8} parent=0
    _
  %s6 = ssub.s32 1, %s4
  %s7 = scalar_select 0, %s6, %s4
  // Predicated region
  $region2: #{argument_extraction_forward.8} parent=0 // pred_check
    _
  $region3: #{argument_extraction_forward.8} parent=0 // pred_check_branch
    %9 = sbr.rel (0) target = $region5
  $region4: #{argument_extraction_forward.8} parent=0 // pred_region
    _
  $region5: #{argument_extraction_forward.8} parent=0 // pred_fallthru
    _
  // Predicated region
  $region6: #{argument_extraction_forward.8} parent=0 // pred_check
    _
  $region7: #{argument_extraction_forward.8} parent=0 // pred_check_branch
    %11 = sbr.rel (0) target = $region9
  $region8: #{argument_extraction_forward.8} parent=0 // pred_region
    _
  $region9: #{argument_extraction_forward.8} parent=0 // pred_fallthru
    _
  // Predicated region
  $region10: #{argument_extraction_forward.8} parent=0 // pred_check
    _
  $region11: #{argument_extraction_forward.8} parent=0 // pred_check_branch
    %13 = sbr.rel (0) target = $region13
  $region12: #{argument_extraction_forward.8} parent=0 // pred_region
    _
  $region13: #{argument_extraction_forward.8} parent=0 // pred_fallthru
    _
  %v14 = vld [vmem:[%s0] sm:$0xff]
  %v15 = vld [vmem:[%s0 + $0x8] sm:$0xff]
  %v16 = vld [vmem:[%s1] sm:$0xff]
  %v17 = vld [vmem:[%s1 + $0x8] sm:$0xff]
  %v18 = vld [vmem:[%s1 + $0x10] sm:$0xff]
  %v19 = vld [vmem:[%s1 + $0x18] sm:$0xff]
  %v20 = vld [vmem:[%s2] sm:$0x1]
  %v22 = vlaneseq
  %v23 = vshrl.u32 %v22, 7
  %v24 = vsub.s32 0, %v23
  %v25 = vrot.slane %v20, %v24
  %vm27 = vcmask 261120
  %v29 = vsel %vm27, %v14, 0
  %v32 = vsel %vm27, %v15, 0
  %34 = vmatprep.subr.mxu0 0.0
  %35 = vmatpush1.msra.mxu0 %v16
  %36 = vmatprep.subr.mxu0 0.0
  %37 = vmatpush1.msra.mxu0 %v17
  %38 = vmatprep.subr.mxu0 0.0
  %39 = vmatpush1.msra.mxu0 %v18
  %40 = vmatprep.subr.mxu0 0.0
  %41 = vmatpush1.msra.mxu0 %v19
  %42 = vmatprep.subr.mxu0 0.0
  %43 = vmatpush1.msra.mxu0 0.0
  %44 = vmatprep.subr.mxu0 0.0
  %45 = vmatpush1.msra.mxu0 0.0
  %46 = vmatprep.subr.mxu0 0.0
  %47 = vmatpush1.msra.mxu0 0.0
  %48 = vmatprep.subr.mxu0 0.0
  %49 = vmatpush1.msra.mxu0 0.0
  %50 = vmatprep.subr.mxu0 0.0
  %51 = vmatpush1.msra.mxu0 0.0
  %52 = vmatprep.subr.mxu0 0.0
  %53 = vmatpush1.msra.mxu0 0.0
  %54 = vmatprep.subr.mxu0 0.0
  %55 = vmatpush1.msra.mxu0 0.0
  %56 = vmatprep.subr.mxu0 0.0
  %57 = vmatpush1.msra.mxu0 0.0
  %58 = vmatprep.subr.mxu0 0.0
  %59 = vmatpush1.msra.mxu0 0.0
  %60 = vmatprep.subr.mxu0 0.0
  %61 = vmatpush1.msra.mxu0 0.0
  %62 = vmatprep.subr.mxu0 0.0
  %63 = vmatpush1.msra.mxu0 0.0
  %64 = vmatprep.subr.mxu0 0.0
  %65 = vmatpush1.msra.mxu0 0.0
  %66 = vmatprep.subr.mxu0 0.0
  %67 = vmatpush1.msra.mxu0 0.0
  %68 = vmatprep.subr.mxu0 0.0
  %69 = vmatpush1.msra.mxu0 0.0
  %70 = vmatprep.subr.mxu0 0.0
  %71 = vmatpush1.msra.mxu0 0.0
  %72 = vmatprep.subr.mxu0 0.0
  %73 = vmatpush1.msra.mxu0 0.0
  %74 = vmatprep.subr.mxu0 0.0
  %75 = vmatpush1.msra.mxu0 0.0
  %76 = vmatprep.subr.mxu0 0.0
  %77 = vmatpush1.msra.mxu0 0.0
  %78 = vmatprep.subr.mxu0 0.0
  %79 = vmatpush1.msra.mxu0 0.0
  %80 = vmatprep.subr.mxu0 0.0
  %81 = vmatpush1.msra.mxu0 0.0
  %82 = vmatprep.subr.mxu0 0.0
  %83 = vmatpush1.msra.mxu0 0.0
  %84 = vmatprep.subr.mxu0 0.0
  %85 = vmatpush1.msra.mxu0 0.0
  %86 = vmatprep.subr.mxu0 0.0
  %87 = vmatpush1.msra.mxu0 0.0
  %88 = vmatprep.subr.mxu0 0.0
  %89 = vmatpush1.msra.mxu0 0.0
  %90 = vmatprep.subr.mxu0 0.0
  %91 = vmatpush1.msra.mxu0 0.0
  %92 = vmatprep.subr.mxu0 0.0
  %93 = vmatpush1.msra.mxu0 0.0
  %94 = vmatprep.subr.mxu0 0.0
  %95 = vmatpush1.msra.mxu0 0.0
  %96 = vmatprep.subr.mxu0 0.0
  %97 = vmatpush1.msra.mxu0 0.0
  %98 = vmatprep.mubr.f32.mxu0 0.0
  %99 = vmatmul.mubr.f32.gmra.mrb[0].mxu0 %v29
  %v100 = vpop.f32.mrb[0].mxu0
  %v101 = vadd.f32 %v25, %v100
  %v102 = vpop.f32.mrb[0].mxu0
  %103 = vmatprep.mubr.f32.mxu0 0.0
  %104 = vmatmul.mubr.f32.gmra.mrb[0].mxu0 %v32
  %v105 = vpop.f32.mrb[0].mxu0
  %v106 = vadd.f32 %v25, %v105
  %v107 = vpop.f32.mrb[0].mxu0
  %108 = vdwg.mxu0
  %109 = vst.msk [vmem:[%s3] sm:$0xff] %vm27, %v101
  %110 = vst.msk [vmem:[%s3 + $0x8] sm:$0xff] %vm27, %v106
  // Predicated region
  $region14: #{argument_extraction_forward.8} parent=0 // pred_check
    _
  $region15: #{argument_extraction_forward.8} parent=0 // pred_check_branch
    %112 = sbr.rel (0) target = $region17
  $region16: #{argument_extraction_forward.8} parent=0 // pred_region
    _
  $region17: #{argument_extraction_forward.8} parent=0 // pred_fallthru
    _
  // Predicated region
  $region18: #{argument_extraction_forward.8} parent=0 // pred_check
    _
  $region19: #{argument_extraction_forward.8} parent=0 // pred_check_branch
    %114 = sbr.rel (0) target = $region21
  $region20: #{argument_extraction_forward.8} parent=0 // pred_region
    _
  $region21: #{argument_extraction_forward.8} parent=0 // pred_fallthru
    _

// kernel: argument_extraction_forward.9
$region0: #{argument_extraction_forward.9}
  #allocation0 [shape = 'u32[]', space=smem, size = 0x4, offset = 0x4, fixed_abs, tag = 'smem constant byte address 0x4 - core index']
  #allocation1 [shape = 'u32[144,128]{1,0:T(1,128)}', space=vmem, size = 0x12000, scoped, tag = 'internal scratch']
  %s0 = inlined_call_operand.vmem [shape: f32[16,32], index: 0, kind: input, shape index: {}]
  %s1 = inlined_call_operand.vmem [shape: f32[16,32], index: 1, kind: input, shape index: {}]
  %s2 = inlined_call_operand.vmem [shape: f32[16,1], index: 2, kind: input, shape index: {}]
  %s3 = inlined_call_operand.vmem [shape: f32[32,128], index: 3, kind: input, shape index: {}]
  %s4 = inlined_call_operand.vmem [shape: f32[32,128], index: 4, kind: input, shape index: {}]
  %s5 = inlined_call_operand.vmem [shape: f32[1,128], index: 5, kind: input, shape index: {}]
  %s6 = inlined_call_operand.vmem [shape: f32[1,128], index: 6, kind: input, shape index: {}]
  %s7 = inlined_call_operand.vmem [shape: f32[16,128], index: 7, kind: output, shape index: {}]
  %s8 = sld [smem:[#allocation0]]
  $region38: #{argument_extraction_forward.9} parent=0
    _
  %s10 = ssub.s32 1, %s8
  %s11 = scalar_select 0, %s10, %s8
  // Predicated region
  $region2: #{argument_extraction_forward.9} parent=0 // pred_check
    _
  $region3: #{argument_extraction_forward.9} parent=0 // pred_check_branch
    %13 = sbr.rel (0) target = $region5
  $region4: #{argument_extraction_forward.9} parent=0 // pred_region
    _
  $region5: #{argument_extraction_forward.9} parent=0 // pred_fallthru
    _
  // Predicated region
  $region6: #{argument_extraction_forward.9} parent=0 // pred_check
    _
  $region7: #{argument_extraction_forward.9} parent=0 // pred_check_branch
    %15 = sbr.rel (0) target = $region9
  $region8: #{argument_extraction_forward.9} parent=0 // pred_region
    _
  $region9: #{argument_extraction_forward.9} parent=0 // pred_fallthru
    _
  // Predicated region
  $region10: #{argument_extraction_forward.9} parent=0 // pred_check
    _
  $region11: #{argument_extraction_forward.9} parent=0 // pred_check_branch
    %17 = sbr.rel (0) target = $region13
  $region12: #{argument_extraction_forward.9} parent=0 // pred_region
    _
  $region13: #{argument_extraction_forward.9} parent=0 // pred_fallthru
    _
  // Predicated region
  $region14: #{argument_extraction_forward.9} parent=0 // pred_check
    _
  $region15: #{argument_extraction_forward.9} parent=0 // pred_check_branch
    %19 = sbr.rel (0) target = $region17
  $region16: #{argument_extraction_forward.9} parent=0 // pred_region
    _
  $region17: #{argument_extraction_forward.9} parent=0 // pred_fallthru
    _
  // Predicated region
  $region18: #{argument_extraction_forward.9} parent=0 // pred_check
    _
  $region19: #{argument_extraction_forward.9} parent=0 // pred_check_branch
    %21 = sbr.rel (0) target = $region21
  $region20: #{argument_extraction_forward.9} parent=0 // pred_region
    _
  $region21: #{argument_extraction_forward.9} parent=0 // pred_fallthru
    _
  // Predicated region
  $region22: #{argument_extraction_forward.9} parent=0 // pred_check
    _
  $region23: #{argument_extraction_forward.9} parent=0 // pred_check_branch
    %23 = sbr.rel (0) target = $region25
  $region24: #{argument_extraction_forward.9} parent=0 // pred_region
    _
  $region25: #{argument_extraction_forward.9} parent=0 // pred_fallthru
    _
  // Predicated region
  $region26: #{argument_extraction_forward.9} parent=0 // pred_check
    _
  $region27: #{argument_extraction_forward.9} parent=0 // pred_check_branch
    %25 = sbr.rel (0) target = $region29
  $region28: #{argument_extraction_forward.9} parent=0 // pred_region
    _
  $region29: #{argument_extraction_forward.9} parent=0 // pred_fallthru
    _
  %v26 = vld [vmem:[%s0] sm:$0xff]
  %v27 = vld [vmem:[%s0 + $0x8] sm:$0xff]
  %v28 = vld [vmem:[%s3] sm:$0xff]
  %v29 = vld [vmem:[%s3 + $0x8] sm:$0xff]
  %v30 = vld [vmem:[%s3 + $0x10] sm:$0xff]
  %v31 = vld [vmem:[%s3 + $0x18] sm:$0xff]
  %v32 = vld [vmem:[%s1] sm:$0xff]
  %v33 = vld [vmem:[%s1 + $0x8] sm:$0xff]
  %v34 = vld [vmem:[%s4] sm:$0xff]
  %v35 = vld [vmem:[%s4 + $0x8] sm:$0xff]
  %v36 = vld [vmem:[%s4 + $0x10] sm:$0xff]
  %v37 = vld [vmem:[%s4 + $0x18] sm:$0xff]
  %vm38 = vcmask 261120
  %v40 = vsel %vm38, %v32, 0
  %v43 = vsel %vm38, %v33, 0
  %45 = vmatprep.subr.mxu0 0.0
  %46 = vmatpush1.msra.mxu0 %v34
  %47 = vmatprep.subr.mxu0 0.0
  %48 = vmatpush1.msra.mxu0 %v35
  %49 = vmatprep.subr.mxu0 0.0
  %50 = vmatpush1.msra.mxu0 %v36
  %51 = vmatprep.subr.mxu0 0.0
  %52 = vmatpush1.msra.mxu0 %v37
  %53 = vmatprep.subr.mxu0 0.0
  %54 = vmatpush1.msra.mxu0 0.0
  %55 = vmatprep.subr.mxu0 0.0
  %56 = vmatpush1.msra.mxu0 0.0
  %57 = vmatprep.subr.mxu0 0.0
  %58 = vmatpush1.msra.mxu0 0.0
  %59 = vmatprep.subr.mxu0 0.0
  %60 = vmatpush1.msra.mxu0 0.0
  %61 = vmatprep.subr.mxu0 0.0
  %62 = vmatpush1.msra.mxu0 0.0
  %63 = vmatprep.subr.mxu0 0.0
  %64 = vmatpush1.msra.mxu0 0.0
  %65 = vmatprep.subr.mxu0 0.0
  %66 = vmatpush1.msra.mxu0 0.0
  %67 = vmatprep.subr.mxu0 0.0
  %68 = vmatpush1.msra.mxu0 0.0
  %69 = vmatprep.subr.mxu0 0.0
  %70 = vmatpush1.msra.mxu0 0.0
  %71 = vmatprep.subr.mxu0 0.0
  %72 = vmatpush1.msra.mxu0 0.0
  %73 = vmatprep.subr.mxu0 0.0
  %74 = vmatpush1.msra.mxu0 0.0
  %75 = vmatprep.subr.mxu0 0.0
  %76 = vmatpush1.msra.mxu0 0.0
  %77 = vmatprep.subr.mxu0 0.0
  %78 = vmatpush1.msra.mxu0 0.0
  %79 = vmatprep.subr.mxu0 0.0
  %80 = vmatpush1.msra.mxu0 0.0
  %81 = vmatprep.subr.mxu0 0.0
  %82 = vmatpush1.msra.mxu0 0.0
  %83 = vmatprep.subr.mxu0 0.0
  %84 = vmatpush1.msra.mxu0 0.0
  %85 = vmatprep.subr.mxu0 0.0
  %86 = vmatpush1.msra.mxu0 0.0
  %87 = vmatprep.subr.mxu0 0.0
  %88 = vmatpush1.msra.mxu0 0.0
  %89 = vmatprep.subr.mxu0 0.0
  %90 = vmatpush1.msra.mxu0 0.0
  %91 = vmatprep.subr.mxu0 0.0
  %92 = vmatpush1.msra.mxu0 0.0
  %93 = vmatprep.subr.mxu0 0.0
  %94 = vmatpush1.msra.mxu0 0.0
  %95 = vmatprep.subr.mxu0 0.0
  %96 = vmatpush1.msra.mxu0 0.0
  %97 = vmatprep.subr.mxu0 0.0
  %98 = vmatpush1.msra.mxu0 0.0
  %99 = vmatprep.subr.mxu0 0.0
  %100 = vmatpush1.msra.mxu0 0.0
  %101 = vmatprep.subr.mxu0 0.0
  %102 = vmatpush1.msra.mxu0 0.0
  %103 = vmatprep.subr.mxu0 0.0
  %104 = vmatpush1.msra.mxu0 0.0
  %105 = vmatprep.subr.mxu0 0.0
  %106 = vmatpush1.msra.mxu0 0.0
  %107 = vmatprep.subr.mxu0 0.0
  %108 = vmatpush1.msra.mxu0 0.0
  %109 = vmatprep.mubr.f32.mxu0 0.0
  %110 = vmatmul.mubr.f32.gmra.mrb[0].mxu0 %v40
  %v111 = vpop.f32.mrb[0].mxu0
  %v112 = vadd.f32 0.0, %v111
  %v113 = vpop.f32.mrb[0].mxu0
  %114 = vmatprep.mubr.f32.mxu0 0.0
  %115 = vmatmul.mubr.f32.gmra.mrb[0].mxu0 %v43
  %v116 = vpop.f32.mrb[0].mxu0
  %v117 = vadd.f32 0.0, %v116
  %v118 = vpop.f32.mrb[0].mxu0
  %119 = vdwg.mxu0
  %v121 = vsel %vm38, %v26, 0
  %v124 = vsel %vm38, %v27, 0
  %126 = vmatprep.subr.mxu0 0.0
  %127 = vmatpush1.msra.mxu0 %v28
  %128 = vmatprep.subr.mxu0 0.0
  %129 = vmatpush1.msra.mxu0 %v29
  %130 = vmatprep.subr.mxu0 0.0
  %131 = vmatpush1.msra.mxu0 %v30
  %132 = vmatprep.subr.mxu0 0.0
  %133 = vmatpush1.msra.mxu0 %v31
  %134 = vmatprep.subr.mxu0 0.0
  %135 = vmatpush1.msra.mxu0 0.0
  %136 = vmatprep.subr.mxu0 0.0
  %137 = vmatpush1.msra.mxu0 0.0
  %138 = vmatprep.subr.mxu0 0.0
  %139 = vmatpush1.msra.mxu0 0.0
  %140 = vmatprep.subr.mxu0 0.0
  %141 = vmatpush1.msra.mxu0 0.0
  %142 = vmatprep.subr.mxu0 0.0
  %143 = vmatpush1.msra.mxu0 0.0
  %144 = vmatprep.subr.mxu0 0.0
  %145 = vmatpush1.msra.mxu0 0.0
  %146 = vmatprep.subr.mxu0 0.0
  %147 = vmatpush1.msra.mxu0 0.0
  %148 = vmatprep.subr.mxu0 0.0
  %149 = vmatpush1.msra.mxu0 0.0
  %150 = vmatprep.subr.mxu0 0.0
  %151 = vmatpush1.msra.mxu0 0.0
  %152 = vmatprep.subr.mxu0 0.0
  %153 = vmatpush1.msra.mxu0 0.0
  %154 = vmatprep.subr.mxu0 0.0
  %155 = vmatpush1.msra.mxu0 0.0
  %156 = vmatprep.subr.mxu0 0.0
  %157 = vmatpush1.msra.mxu0 0.0
  %158 = vmatprep.subr.mxu0 0.0
  %159 = vmatpush1.msra.mxu0 0.0
  %160 = vmatprep.subr.mxu0 0.0
  %161 = vmatpush1.msra.mxu0 0.0
  %162 = vmatprep.subr.mxu0 0.0
  %163 = vmatpush1.msra.mxu0 0.0
  %164 = vmatprep.subr.mxu0 0.0
  %165 = vmatpush1.msra.mxu0 0.0
  %166 = vmatprep.subr.mxu0 0.0
  %167 = vmatpush1.msra.mxu0 0.0
  %168 = vmatprep.subr.mxu0 0.0
  %169 = vmatpush1.msra.mxu0 0.0
  %170 = vmatprep.subr.mxu0 0.0
  %171 = vmatpush1.msra.mxu0 0.0
  %172 = vmatprep.subr.mxu0 0.0
  %173 = vmatpush1.msra.mxu0 0.0
  %174 = vmatprep.subr.mxu0 0.0
  %175 = vmatpush1.msra.mxu0 0.0
  %176 = vmatprep.subr.mxu0 0.0
  %177 = vmatpush1.msra.mxu0 0.0
  %178 = vmatprep.subr.mxu0 0.0
  %179 = vmatpush1.msra.mxu0 0.0
  %180 = vmatprep.subr.mxu0 0.0
  %181 = vmatpush1.msra.mxu0 0.0
  %182 = vmatprep.subr.mxu0 0.0
  %183 = vmatpush1.msra.mxu0 0.0
  %184 = vmatprep.subr.mxu0 0.0
  %185 = vmatpush1.msra.mxu0 0.0
  %186 = vmatprep.subr.mxu0 0.0
  %187 = vmatpush1.msra.mxu0 0.0
  %188 = vmatprep.subr.mxu0 0.0
  %189 = vmatpush1.msra.mxu0 0.0
  %190 = vmatprep.mubr.f32.mxu0 0.0
  %191 = vmatmul.mubr.f32.gmra.mrb[0].mxu0 %v121
  %v192 = vpop.f32.mrb[0].mxu0
  %v193 = vadd.f32 %v112, %v192
  %v194 = vpop.f32.mrb[0].mxu0
  %195 = vmatprep.mubr.f32.mxu0 0.0
  %196 = vmatmul.mubr.f32.gmra.mrb[0].mxu0 %v124
  %v197 = vpop.f32.mrb[0].mxu0
  %v198 = vadd.f32 %v117, %v197
  %v199 = vpop.f32.mrb[0].mxu0
  %200 = vdwg.mxu0
  %v201 = vld [vmem:[%s2] sm:$0xff]
  %v202 = vld [vmem:[%s2 + $0x8] sm:$0xff]
  %v203 = vld [vmem:[%s5] sm:$0x1]
  %205 = vset.pattern.permute.xlu0 0
  %206 = vperm.xlu0 %205, %v201
  %v207 = vpop.permute.xlu0 %206
  %210 = vset.pattern.permute.xlu0 0
  %211 = vperm.xlu0 %210, %v202
  %v212 = vpop.permute.xlu0 %211
  %v215 = vlaneseq
  %v216 = vshrl.u32 %v215, 7
  %v217 = vsub.s32 0, %v216
  %v218 = vrot.slane %v203, %v217
  %v220 = vmul.f32 %v207, %v218
  %v221 = vmul.f32 %v212, %v218
  %v222 = vadd.f32 %v193, %v220
  %v223 = vadd.f32 %v198, %v221
  %v224 = vld [vmem:[%s6] sm:$0x1]
  %v226 = vlaneseq
  %v227 = vshrl.u32 %v226, 7
  %v228 = vsub.s32 0, %v227
  %v229 = vrot.slane %v224, %v228
  %v231 = vadd.f32 %v222, %v229
  %v232 = vadd.f32 %v223, %v229
  %233 = vst [vmem:[%s7] sm:$0xff] %v231
  %234 = vst [vmem:[%s7 + $0x8] sm:$0xff] %v232
  // Predicated region
  $region30: #{argument_extraction_forward.9} parent=0 // pred_check
    _
  $region31: #{argument_extraction_forward.9} parent=0 // pred_check_branch
    %236 = sbr.rel (0) target = $region33
  $region32: #{argument_extraction_forward.9} parent=0 // pred_region
    _
  $region33: #{argument_extraction_forward.9} parent=0 // pred_fallthru
    _
  // Predicated region
  $region34: #{argument_extraction_forward.9} parent=0 // pred_check
    _
  $region35: #{argument_extraction_forward.9} parent=0 // pred_check_branch
    %238 = sbr.rel (0) target = $region37
  $region36: #{argument_extraction_forward.9} parent=0 // pred_region
    _
  $region37: #{argument_extraction_forward.9} parent=0 // pred_fallthru
    _

// kernel: argument_extraction_forward.11
$region0: #{argument_extraction_forward.11}
  #allocation0 [shape = 'u32[]', space=smem, size = 0x4, offset = 0x4, fixed_abs, tag = 'smem constant byte address 0x4 - core index']
  #allocation1 [shape = 'u32[144,128]{1,0:T(1,128)}', space=vmem, size = 0x12000, scoped, tag = 'internal scratch']
  %s0 = inlined_call_operand.vmem [shape: f32[16,32], index: 0, kind: input, shape index: {}]
  %s1 = inlined_call_operand.vmem [shape: f32[32,128], index: 1, kind: input, shape index: {}]
  %s2 = inlined_call_operand.vmem [shape: f32[1,128], index: 2, kind: input, shape index: {}]
  %s3 = inlined_call_operand.vmem [shape: f32[16,128], index: 3, kind: output, shape index: {}]
  %s4 = sld [smem:[#allocation0]]
  $region22: #{argument_extraction_forward.11} parent=0
    _
  %s6 = ssub.s32 1, %s4
  %s7 = scalar_select 0, %s6, %s4
  // Predicated region
  $region2: #{argument_extraction_forward.11} parent=0 // pred_check
    _
  $region3: #{argument_extraction_forward.11} parent=0 // pred_check_branch
    %9 = sbr.rel (0) target = $region5
  $region4: #{argument_extraction_forward.11} parent=0 // pred_region
    _
  $region5: #{argument_extraction_forward.11} parent=0 // pred_fallthru
    _
  // Predicated region
  $region6: #{argument_extraction_forward.11} parent=0 // pred_check
    _
  $region7: #{argument_extraction_forward.11} parent=0 // pred_check_branch
    %11 = sbr.rel (0) target = $region9
  $region8: #{argument_extraction_forward.11} parent=0 // pred_region
    _
  $region9: #{argument_extraction_forward.11} parent=0 // pred_fallthru
    _
  // Predicated region
  $region10: #{argument_extraction_forward.11} parent=0 // pred_check
    _
  $region11: #{argument_extraction_forward.11} parent=0 // pred_check_branch
    %13 = sbr.rel (0) target = $region13
  $region12: #{argument_extraction_forward.11} parent=0 // pred_region
    _
  $region13: #{argument_extraction_forward.11} parent=0 // pred_fallthru
    _
  %v14 = vld [vmem:[%s0] sm:$0xff]
  %v15 = vld [vmem:[%s0 + $0x8] sm:$0xff]
  %v16 = vld [vmem:[%s1] sm:$0xff]
  %v17 = vld [vmem:[%s1 + $0x8] sm:$0xff]
  %v18 = vld [vmem:[%s1 + $0x10] sm:$0xff]
  %v19 = vld [vmem:[%s1 + $0x18] sm:$0xff]
  %v20 = vld [vmem:[%s2] sm:$0x1]
  %v22 = vlaneseq
  %v23 = vshrl.u32 %v22, 7
  %v24 = vsub.s32 0, %v23
  %v25 = vrot.slane %v20, %v24
  %vm27 = vcmask 261120
  %v29 = vsel %vm27, %v14, 0
  %v32 = vsel %vm27, %v15, 0
  %34 = vmatprep.subr.mxu0 0.0
  %35 = vmatpush1.msra.mxu0 %v16
  %36 = vmatprep.subr.mxu0 0.0
  %37 = vmatpush1.msra.mxu0 %v17
  %38 = vmatprep.subr.mxu0 0.0
  %39 = vmatpush1.msra.mxu0 %v18
  %40 = vmatprep.subr.mxu0 0.0
  %41 = vmatpush1.msra.mxu0 %v19
  %42 = vmatprep.subr.mxu0 0.0
  %43 = vmatpush1.msra.mxu0 0.0
  %44 = vmatprep.subr.mxu0 0.0
  %45 = vmatpush1.msra.mxu0 0.0
  %46 = vmatprep.subr.mxu0 0.0
  %47 = vmatpush1.msra.mxu0 0.0
  %48 = vmatprep.subr.mxu0 0.0
  %49 = vmatpush1.msra.mxu0 0.0
  %50 = vmatprep.subr.mxu0 0.0
  %51 = vmatpush1.msra.mxu0 0.0
  %52 = vmatprep.subr.mxu0 0.0
  %53 = vmatpush1.msra.mxu0 0.0
  %54 = vmatprep.subr.mxu0 0.0
  %55 = vmatpush1.msra.mxu0 0.0
  %56 = vmatprep.subr.mxu0 0.0
  %57 = vmatpush1.msra.mxu0 0.0
  %58 = vmatprep.subr.mxu0 0.0
  %59 = vmatpush1.msra.mxu0 0.0
  %60 = vmatprep.subr.mxu0 0.0
  %61 = vmatpush1.msra.mxu0 0.0
  %62 = vmatprep.subr.mxu0 0.0
  %63 = vmatpush1.msra.mxu0 0.0
  %64 = vmatprep.subr.mxu0 0.0
  %65 = vmatpush1.msra.mxu0 0.0
  %66 = vmatprep.subr.mxu0 0.0
  %67 = vmatpush1.msra.mxu0 0.0
  %68 = vmatprep.subr.mxu0 0.0
  %69 = vmatpush1.msra.mxu0 0.0
  %70 = vmatprep.subr.mxu0 0.0
  %71 = vmatpush1.msra.mxu0 0.0
  %72 = vmatprep.subr.mxu0 0.0
  %73 = vmatpush1.msra.mxu0 0.0
  %74 = vmatprep.subr.mxu0 0.0
  %75 = vmatpush1.msra.mxu0 0.0
  %76 = vmatprep.subr.mxu0 0.0
  %77 = vmatpush1.msra.mxu0 0.0
  %78 = vmatprep.subr.mxu0 0.0
  %79 = vmatpush1.msra.mxu0 0.0
  %80 = vmatprep.subr.mxu0 0.0
  %81 = vmatpush1.msra.mxu0 0.0
  %82 = vmatprep.subr.mxu0 0.0
  %83 = vmatpush1.msra.mxu0 0.0
  %84 = vmatprep.subr.mxu0 0.0
  %85 = vmatpush1.msra.mxu0 0.0
  %86 = vmatprep.subr.mxu0 0.0
  %87 = vmatpush1.msra.mxu0 0.0
  %88 = vmatprep.subr.mxu0 0.0
  %89 = vmatpush1.msra.mxu0 0.0
  %90 = vmatprep.subr.mxu0 0.0
  %91 = vmatpush1.msra.mxu0 0.0
  %92 = vmatprep.subr.mxu0 0.0
  %93 = vmatpush1.msra.mxu0 0.0
  %94 = vmatprep.subr.mxu0 0.0
  %95 = vmatpush1.msra.mxu0 0.0
  %96 = vmatprep.subr.mxu0 0.0
  %97 = vmatpush1.msra.mxu0 0.0
  %98 = vmatprep.mubr.f32.mxu0 0.0
  %99 = vmatmul.mubr.f32.gmra.mrb[0].mxu0 %v29
  %v100 = vpop.f32.mrb[0].mxu0
  %v101 = vadd.f32 %v25, %v100
  %v102 = vpop.f32.mrb[0].mxu0
  %103 = vmatprep.mubr.f32.mxu0 0.0
  %104 = vmatmul.mubr.f32.gmra.mrb[0].mxu0 %v32
  %v105 = vpop.f32.mrb[0].mxu0
  %v106 = vadd.f32 %v25, %v105
  %v107 = vpop.f32.mrb[0].mxu0
  %108 = vdwg.mxu0
  %v109 = vxor.u32 %v101, 2147483648
  %v110 = vxor.u32 %v106, 2147483648
  %v111 = vmul.f32 %v109, 1.442695
  %v112 = vpow.pop %v111
  %v113 = vmul.f32 %v110, 1.442695
  %v114 = vpow.pop %v113
  %v115 = vadd.f32 %v112, 1.0
  %v116 = vadd.f32 %v114, 1.0
  %v117 = vrcp.pop %v115
  %v118 = vmul.f32 1.0, %v117
  %v119 = vrcp.pop %v116
  %v120 = vmul.f32 1.0, %v119
  %121 = vst [vmem:[%s3] sm:$0xff] %v118
  %122 = vst [vmem:[%s3 + $0x8] sm:$0xff] %v120
  // Predicated region
  $region14: #{argument_extraction_forward.11} parent=0 // pred_check
    _
  $region15: #{argument_extraction_forward.11} parent=0 // pred_check_branch
    %124 = sbr.rel (0) target = $region17
  $region16: #{argument_extraction_forward.11} parent=0 // pred_region
    _
  $region17: #{argument_extraction_forward.11} parent=0 // pred_fallthru
    _
  // Predicated region
  $region18: #{argument_extraction_forward.11} parent=0 // pred_check
    _
  $region19: #{argument_extraction_forward.11} parent=0 // pred_check_branch
    %126 = sbr.rel (0) target = $region21
  $region20: #{argument_extraction_forward.11} parent=0 // pred_region
    _
  $region21: #{argument_extraction_forward.11} parent=0 // pred_fallthru
    _

// kernel: argument_extraction_forward.10
$region0: #{argument_extraction_forward.10}
  #allocation0 [shape = 'u32[]', space=smem, size = 0x4, offset = 0x4, fixed_abs, tag = 'smem constant byte address 0x4 - core index']
  #allocation1 [shape = 'u32[144,128]{1,0:T(1,128)}', space=vmem, size = 0x12000, scoped, tag = 'internal scratch']
  %s0 = inlined_call_operand.vmem [shape: f32[8,2,2,64], index: 0, kind: input, shape index: {}]
  %s1 = inlined_call_operand.vmem [shape: f32[2,16,64], index: 1, kind: input, shape index: {}]
  %s2 = inlined_call_operand.vmem [shape: f32[8,2,2,16], index: 2, kind: output, shape index: {}]
  %s3 = sld [smem:[#allocation0]]
  $region25: #{argument_extraction_forward.10} parent=0
    _
  %s5 = ssub.s32 1, %s3
  %s6 = scalar_select 0, %s5, %s3
  // Predicated region
  $region2: #{argument_extraction_forward.10} parent=0 // pred_check
    _
  $region3: #{argument_extraction_forward.10} parent=0 // pred_check_branch
    %8 = sbr.rel (0) target = $region5
  $region4: #{argument_extraction_forward.10} parent=0 // pred_region
    _
  $region5: #{argument_extraction_forward.10} parent=0 // pred_fallthru
    _
  // Predicated region
  $region6: #{argument_extraction_forward.10} parent=0 // pred_check
    _
  $region7: #{argument_extraction_forward.10} parent=0 // pred_check_branch
    %10 = sbr.rel (0) target = $region9
  $region8: #{argument_extraction_forward.10} parent=0 // pred_region
    _
  $region9: #{argument_extraction_forward.10} parent=0 // pred_fallthru
    _
  loop: start=0, step=1, limit=8
  $region10: #{argument_extraction_forward.10} parent=0 // loop_pre_header
    _
  $region11: #{argument_extraction_forward.10} parent=0 // loop_header
    %s12 = sphi 0, %s16
    %p13 = scmp.ge.s32.totalorder %s12, 8
    %v17 = vphi 0.0, %v228
    %v18 = vphi 0.0, %v229
    %v19 = vphi 0.0, %v216
    %v20 = vphi 0.0, %v217
  $region12: #{argument_extraction_forward.10} parent=0 // loop_header_branch
    %15 = sbr.rel (%p13) target = $region16
  $region13: #{argument_extraction_forward.10} parent=0 // loop_body
    %s21 = smul.u32 %s12, 4
    %s22 = scalar_lea.vmem %s0, %s21
    %v23 = vld [vmem:[%s22] sm:$0x3]
    %v24 = vld [vmem:[%s22 + $0x2] sm:$0x3]
    %v25 = vld [vmem:[%s1] sm:$0xff]
    %v26 = vld [vmem:[%s1 + $0x8] sm:$0xff]
    %v27 = vld [vmem:[%s1 + $0x10] sm:$0xff]
    %v28 = vld [vmem:[%s1 + $0x18] sm:$0xff]
    %30 = vrot.lane.b32.xlu0 %v17, 80
    %v31 = vpop.permute.xlu0 %30
    %vm32 = vcmask 130048
    %v33 = vsel %vm32, %v31, 0
    %35 = vmatprep.subr.mxu0 0.0
    %36 = vmatpush1.msra.mxu0 %v25
    %37 = vmatprep.subr.mxu0 0.0
    %38 = vmatpush1.msra.mxu0 %v26
    %39 = vmatprep.subr.mxu0 0.0
    %40 = vmatpush1.msra.mxu0 0.0
    %41 = vmatprep.subr.mxu0 0.0
    %42 = vmatpush1.msra.mxu0 0.0
    %43 = vmatprep.subr.mxu0 0.0
    %44 = vmatpush1.msra.mxu0 0.0
    %45 = vmatprep.subr.mxu0 0.0
    %46 = vmatpush1.msra.mxu0 0.0
    %47 = vmatprep.subr.mxu0 0.0
    %48 = vmatpush1.msra.mxu0 0.0
    %49 = vmatprep.subr.mxu0 0.0
    %50 = vmatpush1.msra.mxu0 0.0
    %51 = vmatprep.subr.mxu0 0.0
    %52 = vmatpush1.msra.mxu0 0.0
    %53 = vmatprep.subr.mxu0 0.0
    %54 = vmatpush1.msra.mxu0 0.0
    %55 = vmatprep.subr.mxu0 0.0
    %56 = vmatpush1.msra.mxu0 0.0
    %57 = vmatprep.subr.mxu0 0.0
    %58 = vmatpush1.msra.mxu0 0.0
    %59 = vmatprep.subr.mxu0 0.0
    %60 = vmatpush1.msra.mxu0 0.0
    %61 = vmatprep.subr.mxu0 0.0
    %62 = vmatpush1.msra.mxu0 0.0
    %63 = vmatprep.subr.mxu0 0.0
    %64 = vmatpush1.msra.mxu0 0.0
    %65 = vmatprep.subr.mxu0 0.0
    %66 = vmatpush1.msra.mxu0 0.0
    %67 = vmatprep.subr.mxu0 0.0
    %68 = vmatpush1.msra.mxu0 0.0
    %69 = vmatprep.subr.mxu0 0.0
    %70 = vmatpush1.msra.mxu0 0.0
    %71 = vmatprep.subr.mxu0 0.0
    %72 = vmatpush1.msra.mxu0 0.0
    %73 = vmatprep.subr.mxu0 0.0
    %74 = vmatpush1.msra.mxu0 0.0
    %75 = vmatprep.subr.mxu0 0.0
    %76 = vmatpush1.msra.mxu0 0.0
    %77 = vmatprep.subr.mxu0 0.0
    %78 = vmatpush1.msra.mxu0 0.0
    %79 = vmatprep.subr.mxu0 0.0
    %80 = vmatpush1.msra.mxu0 0.0
    %81 = vmatprep.subr.mxu0 0.0
    %82 = vmatpush1.msra.mxu0 0.0
    %83 = vmatprep.subr.mxu0 0.0
    %84 = vmatpush1.msra.mxu0 0.0
    %85 = vmatprep.subr.mxu0 0.0
    %86 = vmatpush1.msra.mxu0 0.0
    %87 = vmatprep.subr.mxu0 0.0
    %88 = vmatpush1.msra.mxu0 0.0
    %89 = vmatprep.subr.mxu0 0.0
    %90 = vmatpush1.msra.mxu0 0.0
    %91 = vmatprep.subr.mxu0 0.0
    %92 = vmatpush1.msra.mxu0 0.0
    %93 = vmatprep.subr.mxu0 0.0
    %94 = vmatpush1.msra.mxu0 0.0
    %95 = vmatprep.subr.mxu0 0.0
    %96 = vmatpush1.msra.mxu0 0.0
    %97 = vmatprep.subr.mxu0 0.0
    %98 = vmatpush1.msra.mxu0 0.0
    %99 = vmatprep.mubr.f32.mxu0 0.0
    %100 = vmatmul.mubr.f32.gmra.mrb[0].mxu0 %v33
    %v101 = vpop.f32.mrb[0].mxu0
    %v102 = vadd.f32 0.0, %v101
    %v103 = vpop.f32.mrb[0].mxu0
    %104 = vdwg.mxu0
    %106 = vrot.lane.b32.xlu0 %v18, 80
    %v107 = vpop.permute.xlu0 %106
    %v108 = vsel %vm32, %v107, 0
    %110 = vmatprep.subr.mxu0 0.0
    %111 = vmatpush1.msra.mxu0 %v27
    %112 = vmatprep.subr.mxu0 0.0
    %113 = vmatpush1.msra.mxu0 %v28
    %114 = vmatprep.subr.mxu0 0.0
    %115 = vmatpush1.msra.mxu0 0.0
    %116 = vmatprep.subr.mxu0 0.0
    %117 = vmatpush1.msra.mxu0 0.0
    %118 = vmatprep.subr.mxu0 0.0
    %119 = vmatpush1.msra.mxu0 0.0
    %120 = vmatprep.subr.mxu0 0.0
    %121 = vmatpush1.msra.mxu0 0.0
    %122 = vmatprep.subr.mxu0 0.0
    %123 = vmatpush1.msra.mxu0 0.0
    %124 = vmatprep.subr.mxu0 0.0
    %125 = vmatpush1.msra.mxu0 0.0
    %126 = vmatprep.subr.mxu0 0.0
    %127 = vmatpush1.msra.mxu0 0.0
    %128 = vmatprep.subr.mxu0 0.0
    %129 = vmatpush1.msra.mxu0 0.0
    %130 = vmatprep.subr.mxu0 0.0
    %131 = vmatpush1.msra.mxu0 0.0
    %132 = vmatprep.subr.mxu0 0.0
    %133 = vmatpush1.msra.mxu0 0.0
    %134 = vmatprep.subr.mxu0 0.0
    %135 = vmatpush1.msra.mxu0 0.0
    %136 = vmatprep.subr.mxu0 0.0
    %137 = vmatpush1.msra.mxu0 0.0
    %138 = vmatprep.subr.mxu0 0.0
    %139 = vmatpush1.msra.mxu0 0.0
    %140 = vmatprep.subr.mxu0 0.0
    %141 = vmatpush1.msra.mxu0 0.0
    %142 = vmatprep.subr.mxu0 0.0
    %143 = vmatpush1.msra.mxu0 0.0
    %144 = vmatprep.subr.mxu0 0.0
    %145 = vmatpush1.msra.mxu0 0.0
    %146 = vmatprep.subr.mxu0 0.0
    %147 = vmatpush1.msra.mxu0 0.0
    %148 = vmatprep.subr.mxu0 0.0
    %149 = vmatpush1.msra.mxu0 0.0
    %150 = vmatprep.subr.mxu0 0.0
    %151 = vmatpush1.msra.mxu0 0.0
    %152 = vmatprep.subr.mxu0 0.0
    %153 = vmatpush1.msra.mxu0 0.0
    %154 = vmatprep.subr.mxu0 0.0
    %155 = vmatpush1.msra.mxu0 0.0
    %156 = vmatprep.subr.mxu0 0.0
    %157 = vmatpush1.msra.mxu0 0.0
    %158 = vmatprep.subr.mxu0 0.0
    %159 = vmatpush1.msra.mxu0 0.0
    %160 = vmatprep.subr.mxu0 0.0
    %161 = vmatpush1.msra.mxu0 0.0
    %162 = vmatprep.subr.mxu0 0.0
    %163 = vmatpush1.msra.mxu0 0.0
    %164 = vmatprep.subr.mxu0 0.0
    %165 = vmatpush1.msra.mxu0 0.0
    %166 = vmatprep.subr.mxu0 0.0
    %167 = vmatpush1.msra.mxu0 0.0
    %168 = vmatprep.subr.mxu0 0.0
    %169 = vmatpush1.msra.mxu0 0.0
    %170 = vmatprep.subr.mxu0 0.0
    %171 = vmatpush1.msra.mxu0 0.0
    %172 = vmatprep.subr.mxu0 0.0
    %173 = vmatpush1.msra.mxu0 0.0
    %174 = vmatprep.mubr.f32.mxu0 0.0
    %175 = vmatmul.mubr.f32.gmra.mrb[0].mxu0 %v108
    %v176 = vpop.f32.mrb[0].mxu0
    %v177 = vadd.f32 0.0, %v176
    %v178 = vpop.f32.mrb[0].mxu0
    %179 = vdwg.mxu0
    %v180 = vadd.f32 %v23, %v102
    %v181 = vadd.f32 %v24, %v177
    %v182 = vxor.u32 %v180, 2147483648
    %v183 = vxor.u32 %v181, 2147483648
    %v184 = vmul.f32 %v182, 1.442695
    %v185 = vpow.pop %v184
    %v186 = vmul.f32 %v183, 1.442695
    %v187 = vpow.pop %v186
    %v188 = vadd.f32 %v185, 1.0
    %v189 = vadd.f32 %v187, 1.0
    %v190 = vrcp.pop %v188
    %v191 = vmul.f32 1.0, %v190
    %v192 = vrcp.pop %v189
    %v193 = vmul.f32 1.0, %v192
    %v194 = vtanh.pop %v180
    %v195 = vtanh.pop %v181
    %v196 = vmul.f32 %v191, %v19
    %v197 = vmul.f32 %v193, %v20
    %200 = vrot.lane.b32.xlu0 %v194, 96
    %v201 = vpop.permute.xlu0 %200
    %202 = vrot.lane.b32.xlu0 %v195, 96
    %v203 = vpop.permute.xlu0 %202
    %v206 = vmul.f32 %v191, %v201
    %v207 = vmul.f32 %v193, %v203
    %210 = vrot.lane.b32.xlu0 %v206, 16
    %v211 = vpop.permute.xlu0 %210
    %212 = vrot.lane.b32.xlu0 %v207, 16
    %v213 = vpop.permute.xlu0 %212
    %v216 = vadd.f32 %v196, %v211
    %v217 = vadd.f32 %v197, %v213
    %v218 = vtanh.pop %v216
    %v219 = vtanh.pop %v217
    %222 = vrot.lane.b32.xlu0 %v218, 32
    %v223 = vpop.permute.xlu0 %222
    %224 = vrot.lane.b32.xlu0 %v219, 32
    %v225 = vpop.permute.xlu0 %224
    %v228 = vmul.f32 %v191, %v223
    %v229 = vmul.f32 %v193, %v225
    %232 = vrot.lane.b32.xlu0 %v228, 80
    %v233 = vpop.permute.xlu0 %232
    %234 = vrot.lane.b32.xlu0 %v229, 80
    %v235 = vpop.permute.xlu0 %234
    %s238 = scalar_lea.vmem %s2, %s21
    %vm239 = vcmask 123904
    %240 = vst.msk [vmem:[%s238] sm:$0x3] %vm239, %v233
    %241 = vst.msk [vmem:[%s238 + $0x2] sm:$0x3] %vm239, %v235
  $region14: #{argument_extraction_forward.10} parent=0 // loop_footer
    %s16 = sadd.s32 1, %s12
  $region15: #{argument_extraction_forward.10} parent=0 // loop_footer_branch
    %11 = sbr.rel target = $region11
  $region16: #{argument_extraction_forward.10} parent=0 // loop_exit
    _
  // Predicated region
  $region17: #{argument_extraction_forward.10} parent=0 // pred_check
    _
  $region18: #{argument_extraction_forward.10} parent=0 // pred_check_branch
    %243 = sbr.rel (0) target = $region20
  $region19: #{argument_extraction_forward.10} parent=0 // pred_region
    _
  $region20: #{argument_extraction_forward.10} parent=0 // pred_fallthru
    _
  // Predicated region
  $region21: #{argument_extraction_forward.10} parent=0 // pred_check
    _
  $region22: #{argument_extraction_forward.10} parent=0 // pred_check_branch
    %245 = sbr.rel (0) target = $region24
  $region23: #{argument_extraction_forward.10} parent=0 // pred_region
    _
  $region24: #{argument_extraction_forward.10} parent=0 // pred_fallthru
    _

// kernel: argument_extraction_forward.7
$region0: #{argument_extraction_forward.7}
  #allocation0 [shape = 'u32[]', space=smem, size = 0x4, offset = 0x4, fixed_abs, tag = 'smem constant byte address 0x4 - core index']
  #allocation1 [shape = 'u32[144,128]{1,0:T(1,128)}', space=vmem, size = 0x12000, scoped, tag = 'internal scratch']
  %s0 = inlined_call_operand.vmem [shape: f32[32,2,8], index: 0, kind: input, shape index: {}]
  %s1 = inlined_call_operand.vmem [shape: f32[32,2,8], index: 1, kind: input, shape index: {}]
  %s2 = inlined_call_operand.vmem [shape: f32[32,2,8], index: 2, kind: input, shape index: {}]
  %s3 = inlined_call_operand.vmem [shape: f32[32,2,8], index: 3, kind: output, shape index: {}]
  %s4 = sld [smem:[#allocation0]]
  $region22: #{argument_extraction_forward.7} parent=0
    _
  %s6 = ssub.s32 1, %s4
  %s7 = scalar_select 0, %s6, %s4
  // Predicated region
  $region2: #{argument_extraction_forward.7} parent=0 // pred_check
    _
  $region3: #{argument_extraction_forward.7} parent=0 // pred_check_branch
    %9 = sbr.rel (0) target = $region5
  $region4: #{argument_extraction_forward.7} parent=0 // pred_region
    _
  $region5: #{argument_extraction_forward.7} parent=0 // pred_fallthru
    _
  // Predicated region
  $region6: #{argument_extraction_forward.7} parent=0 // pred_check
    _
  $region7: #{argument_extraction_forward.7} parent=0 // pred_check_branch
    %11 = sbr.rel (0) target = $region9
  $region8: #{argument_extraction_forward.7} parent=0 // pred_region
    _
  $region9: #{argument_extraction_forward.7} parent=0 // pred_fallthru
    _
  // Predicated region
  $region10: #{argument_extraction_forward.7} parent=0 // pred_check
    _
  $region11: #{argument_extraction_forward.7} parent=0 // pred_check_branch
    %13 = sbr.rel (0) target = $region13
  $region12: #{argument_extraction_forward.7} parent=0 // pred_region
    _
  $region13: #{argument_extraction_forward.7} parent=0 // pred_fallthru
    _
  %v14 = vld [vmem:[%s0] sm:$0x3]
  %v15 = vld [vmem:[%s0 + $0x2] sm:$0x3]
  %v16 = vld [vmem:[%s0 + $0x4] sm:$0x3]
  %v17 = vld [vmem:[%s0 + $0x6] sm:$0x3]
  %v18 = vld [vmem:[%s0 + $0x8] sm:$0x3]
  %v19 = vld [vmem:[%s0 + $0xa] sm:$0x3]
  %v20 = vld [vmem:[%s0 + $0xc] sm:$0x3]
  %v21 = vld [vmem:[%s0 + $0xe] sm:$0x3]
  %v22 = vld [vmem:[%s0 + $0x10] sm:$0x3]
  %v23 = vld [vmem:[%s0 + $0x12] sm:$0x3]
  %v24 = vld [vmem:[%s0 + $0x14] sm:$0x3]
  %v25 = vld [vmem:[%s0 + $0x16] sm:$0x3]
  %v26 = vld [vmem:[%s0 + $0x18] sm:$0x3]
  %v27 = vld [vmem:[%s0 + $0x1a] sm:$0x3]
  %v28 = vld [vmem:[%s0 + $0x1c] sm:$0x3]
  %v29 = vld [vmem:[%s0 + $0x1e] sm:$0x3]
  %v30 = vld [vmem:[%s0 + $0x20] sm:$0x3]
  %v31 = vld [vmem:[%s0 + $0x22] sm:$0x3]
  %v32 = vld [vmem:[%s0 + $0x24] sm:$0x3]
  %v33 = vld [vmem:[%s0 + $0x26] sm:$0x3]
  %v34 = vld [vmem:[%s0 + $0x28] sm:$0x3]
  %v35 = vld [vmem:[%s0 + $0x2a] sm:$0x3]
  %v36 = vld [vmem:[%s0 + $0x2c] sm:$0x3]
  %v37 = vld [vmem:[%s0 + $0x2e] sm:$0x3]
  %v38 = vld [vmem:[%s0 + $0x30] sm:$0x3]
  %v39 = vld [vmem:[%s0 + $0x32] sm:$0x3]
  %v40 = vld [vmem:[%s0 + $0x34] sm:$0x3]
  %v41 = vld [vmem:[%s0 + $0x36] sm:$0x3]
  %v42 = vld [vmem:[%s0 + $0x38] sm:$0x3]
  %v43 = vld [vmem:[%s0 + $0x3a] sm:$0x3]
  %v44 = vld [vmem:[%s0 + $0x3c] sm:$0x3]
  %v45 = vld [vmem:[%s0 + $0x3e] sm:$0x3]
  %v46 = vld [vmem:[%s1] sm:$0x3]
  %v47 = vld [vmem:[%s1 + $0x2] sm:$0x3]
  %v48 = vld [vmem:[%s1 + $0x4] sm:$0x3]
  %v49 = vld [vmem:[%s1 + $0x6] sm:$0x3]
  %v50 = vld [vmem:[%s1 + $0x8] sm:$0x3]
  %v51 = vld [vmem:[%s1 + $0xa] sm:$0x3]
  %v52 = vld [vmem:[%s1 + $0xc] sm:$0x3]
  %v53 = vld [vmem:[%s1 + $0xe] sm:$0x3]
  %v54 = vld [vmem:[%s1 + $0x10] sm:$0x3]
  %v55 = vld [vmem:[%s1 + $0x12] sm:$0x3]
  %v56 = vld [vmem:[%s1 + $0x14] sm:$0x3]
  %v57 = vld [vmem:[%s1 + $0x16] sm:$0x3]
  %v58 = vld [vmem:[%s1 + $0x18] sm:$0x3]
  %v59 = vld [vmem:[%s1 + $0x1a] sm:$0x3]
  %v60 = vld [vmem:[%s1 + $0x1c] sm:$0x3]
  %v61 = vld [vmem:[%s1 + $0x1e] sm:$0x3]
  %v62 = vld [vmem:[%s1 + $0x20] sm:$0x3]
  %v63 = vld [vmem:[%s1 + $0x22] sm:$0x3]
  %v64 = vld [vmem:[%s1 + $0x24] sm:$0x3]
  %v65 = vld [vmem:[%s1 + $0x26] sm:$0x3]
  %v66 = vld [vmem:[%s1 + $0x28] sm:$0x3]
  %v67 = vld [vmem:[%s1 + $0x2a] sm:$0x3]
  %v68 = vld [vmem:[%s1 + $0x2c] sm:$0x3]
  %v69 = vld [vmem:[%s1 + $0x2e] sm:$0x3]
  %v70 = vld [vmem:[%s1 + $0x30] sm:$0x3]
  %v71 = vld [vmem:[%s1 + $0x32] sm:$0x3]
  %v72 = vld [vmem:[%s1 + $0x34] sm:$0x3]
  %v73 = vld [vmem:[%s1 + $0x36] sm:$0x3]
  %v74 = vld [vmem:[%s1 + $0x38] sm:$0x3]
  %v75 = vld [vmem:[%s1 + $0x3a] sm:$0x3]
  %v76 = vld [vmem:[%s1 + $0x3c] sm:$0x3]
  %v77 = vld [vmem:[%s1 + $0x3e] sm:$0x3]
  %v78 = vld [vmem:[%s2] sm:$0x3]
  %v79 = vld [vmem:[%s2 + $0x2] sm:$0x3]
  %v80 = vld [vmem:[%s2 + $0x4] sm:$0x3]
  %v81 = vld [vmem:[%s2 + $0x6] sm:$0x3]
  %v82 = vld [vmem:[%s2 + $0x8] sm:$0x3]
  %v83 = vld [vmem:[%s2 + $0xa] sm:$0x3]
  %v84 = vld [vmem:[%s2 + $0xc] sm:$0x3]
  %v85 = vld [vmem:[%s2 + $0xe] sm:$0x3]
  %v86 = vld [vmem:[%s2 + $0x10] sm:$0x3]
  %v87 = vld [vmem:[%s2 + $0x12] sm:$0x3]
  %v88 = vld [vmem:[%s2 + $0x14] sm:$0x3]
  %v89 = vld [vmem:[%s2 + $0x16] sm:$0x3]
  %v90 = vld [vmem:[%s2 + $0x18] sm:$0x3]
  %v91 = vld [vmem:[%s2 + $0x1a] sm:$0x3]
  %v92 = vld [vmem:[%s2 + $0x1c] sm:$0x3]
  %v93 = vld [vmem:[%s2 + $0x1e] sm:$0x3]
  %v94 = vld [vmem:[%s2 + $0x20] sm:$0x3]
  %v95 = vld [vmem:[%s2 + $0x22] sm:$0x3]
  %v96 = vld [vmem:[%s2 + $0x24] sm:$0x3]
  %v97 = vld [vmem:[%s2 + $0x26] sm:$0x3]
  %v98 = vld [vmem:[%s2 + $0x28] sm:$0x3]
  %v99 = vld [vmem:[%s2 + $0x2a] sm:$0x3]
  %v100 = vld [vmem:[%s2 + $0x2c] sm:$0x3]
  %v101 = vld [vmem:[%s2 + $0x2e] sm:$0x3]
  %v102 = vld [vmem:[%s2 + $0x30] sm:$0x3]
  %v103 = vld [vmem:[%s2 + $0x32] sm:$0x3]
  %v104 = vld [vmem:[%s2 + $0x34] sm:$0x3]
  %v105 = vld [vmem:[%s2 + $0x36] sm:$0x3]
  %v106 = vld [vmem:[%s2 + $0x38] sm:$0x3]
  %v107 = vld [vmem:[%s2 + $0x3a] sm:$0x3]
  %v108 = vld [vmem:[%s2 + $0x3c] sm:$0x3]
  %v109 = vld [vmem:[%s2 + $0x3e] sm:$0x3]
  %vm110 = vcmask 64512
  %v112 = vsel %vm110, %v14, 0
  %v115 = vsel %vm110, %v46, 0
  %117 = vmatprep.subr.mxu0 0.0
  %118 = vmatpush1.xpose.msra.mxu0 %v115
  %119 = vmatprep.subr.mxu0 0.0
  %120 = vmatpush1.xpose.msra.mxu0 0.0
  %121 = vmatprep.subr.mxu0 0.0
  %122 = vmatpush1.xpose.msra.mxu0 0.0
  %123 = vmatprep.subr.mxu0 0.0
  %124 = vmatpush1.xpose.msra.mxu0 0.0
  %125 = vmatprep.subr.mxu0 0.0
  %126 = vmatpush1.xpose.msra.mxu0 0.0
  %127 = vmatprep.subr.mxu0 0.0
  %128 = vmatpush1.xpose.msra.mxu0 0.0
  %129 = vmatprep.subr.mxu0 0.0
  %130 = vmatpush1.xpose.msra.mxu0 0.0
  %131 = vmatprep.subr.mxu0 0.0
  %132 = vmatpush1.xpose.msra.mxu0 0.0
  %133 = vmatprep.subr.mxu0 0.0
  %134 = vmatpush1.xpose.msra.mxu0 0.0
  %135 = vmatprep.subr.mxu0 0.0
  %136 = vmatpush1.xpose.msra.mxu0 0.0
  %137 = vmatprep.subr.mxu0 0.0
  %138 = vmatpush1.xpose.msra.mxu0 0.0
  %139 = vmatprep.subr.mxu0 0.0
  %140 = vmatpush1.xpose.msra.mxu0 0.0
  %141 = vmatprep.subr.mxu0 0.0
  %142 = vmatpush1.xpose.msra.mxu0 0.0
  %143 = vmatprep.subr.mxu0 0.0
  %144 = vmatpush1.xpose.msra.mxu0 0.0
  %145 = vmatprep.subr.mxu0 0.0
  %146 = vmatpush1.xpose.msra.mxu0 0.0
  %147 = vmatprep.subr.mxu0 0.0
  %148 = vmatpush1.xpose.msra.mxu0 0.0
  %149 = vmatprep.subr.mxu0 0.0
  %150 = vmatpush1.xpose.msra.mxu0 0.0
  %151 = vmatprep.subr.mxu0 0.0
  %152 = vmatpush1.xpose.msra.mxu0 0.0
  %153 = vmatprep.subr.mxu0 0.0
  %154 = vmatpush1.xpose.msra.mxu0 0.0
  %155 = vmatprep.subr.mxu0 0.0
  %156 = vmatpush1.xpose.msra.mxu0 0.0
  %157 = vmatprep.subr.mxu0 0.0
  %158 = vmatpush1.xpose.msra.mxu0 0.0
  %159 = vmatprep.subr.mxu0 0.0
  %160 = vmatpush1.xpose.msra.mxu0 0.0
  %161 = vmatprep.subr.mxu0 0.0
  %162 = vmatpush1.xpose.msra.mxu0 0.0
  %163 = vmatprep.subr.mxu0 0.0
  %164 = vmatpush1.xpose.msra.mxu0 0.0
  %165 = vmatprep.subr.mxu0 0.0
  %166 = vmatpush1.xpose.msra.mxu0 0.0
  %167 = vmatprep.subr.mxu0 0.0
  %168 = vmatpush1.xpose.msra.mxu0 0.0
  %169 = vmatprep.subr.mxu0 0.0
  %170 = vmatpush1.xpose.msra.mxu0 0.0
  %171 = vmatprep.subr.mxu0 0.0
  %172 = vmatpush1.xpose.msra.mxu0 0.0
  %173 = vmatprep.subr.mxu0 0.0
  %174 = vmatpush1.xpose.msra.mxu0 0.0
  %175 = vmatprep.subr.mxu0 0.0
  %176 = vmatpush1.xpose.msra.mxu0 0.0
  %177 = vmatprep.subr.mxu0 0.0
  %178 = vmatpush1.xpose.msra.mxu0 0.0
  %179 = vmatprep.subr.mxu0 0.0
  %180 = vmatpush1.xpose.msra.mxu0 0.0
  %181 = vmatprep.mubr.f32.mxu0 0.0
  %182 = vmatmul.mubr.f32.gmra.mrb[0].mxu0 %v112
  %v183 = vpop.f32.mrb[0].mxu0
  %v184 = vadd.f32 0.0, %v183
  %v185 = vpop.f32.mrb[0].mxu0
  %186 = vdwg.mxu0
  %v188 = vsel %vm110, %v15, 0
  %v191 = vsel %vm110, %v47, 0
  %193 = vmatprep.subr.mxu0 0.0
  %194 = vmatpush1.xpose.msra.mxu0 %v191
  %195 = vmatprep.subr.mxu0 0.0
  %196 = vmatpush1.xpose.msra.mxu0 0.0
  %197 = vmatprep.subr.mxu0 0.0
  %198 = vmatpush1.xpose.msra.mxu0 0.0
  %199 = vmatprep.subr.mxu0 0.0
  %200 = vmatpush1.xpose.msra.mxu0 0.0
  %201 = vmatprep.subr.mxu0 0.0
  %202 = vmatpush1.xpose.msra.mxu0 0.0
  %203 = vmatprep.subr.mxu0 0.0
  %204 = vmatpush1.xpose.msra.mxu0 0.0
  %205 = vmatprep.subr.mxu0 0.0
  %206 = vmatpush1.xpose.msra.mxu0 0.0
  %207 = vmatprep.subr.mxu0 0.0
  %208 = vmatpush1.xpose.msra.mxu0 0.0
  %209 = vmatprep.subr.mxu0 0.0
  %210 = vmatpush1.xpose.msra.mxu0 0.0
  %211 = vmatprep.subr.mxu0 0.0
  %212 = vmatpush1.xpose.msra.mxu0 0.0
  %213 = vmatprep.subr.mxu0 0.0
  %214 = vmatpush1.xpose.msra.mxu0 0.0
  %215 = vmatprep.subr.mxu0 0.0
  %216 = vmatpush1.xpose.msra.mxu0 0.0
  %217 = vmatprep.subr.mxu0 0.0
  %218 = vmatpush1.xpose.msra.mxu0 0.0
  %219 = vmatprep.subr.mxu0 0.0
  %220 = vmatpush1.xpose.msra.mxu0 0.0
  %221 = vmatprep.subr.mxu0 0.0
  %222 = vmatpush1.xpose.msra.mxu0 0.0
  %223 = vmatprep.subr.mxu0 0.0
  %224 = vmatpush1.xpose.msra.mxu0 0.0
  %225 = vmatprep.subr.mxu0 0.0
  %226 = vmatpush1.xpose.msra.mxu0 0.0
  %227 = vmatprep.subr.mxu0 0.0
  %228 = vmatpush1.xpose.msra.mxu0 0.0
  %229 = vmatprep.subr.mxu0 0.0
  %230 = vmatpush1.xpose.msra.mxu0 0.0
  %231 = vmatprep.subr.mxu0 0.0
  %232 = vmatpush1.xpose.msra.mxu0 0.0
  %233 = vmatprep.subr.mxu0 0.0
  %234 = vmatpush1.xpose.msra.mxu0 0.0
  %235 = vmatprep.subr.mxu0 0.0
  %236 = vmatpush1.xpose.msra.mxu0 0.0
  %237 = vmatprep.subr.mxu0 0.0
  %238 = vmatpush1.xpose.msra.mxu0 0.0
  %239 = vmatprep.subr.mxu0 0.0
  %240 = vmatpush1.xpose.msra.mxu0 0.0
  %241 = vmatprep.subr.mxu0 0.0
  %242 = vmatpush1.xpose.msra.mxu0 0.0
  %243 = vmatprep.subr.mxu0 0.0
  %244 = vmatpush1.xpose.msra.mxu0 0.0
  %245 = vmatprep.subr.mxu0 0.0
  %246 = vmatpush1.xpose.msra.mxu0 0.0
  %247 = vmatprep.subr.mxu0 0.0
  %248 = vmatpush1.xpose.msra.mxu0 0.0
  %249 = vmatprep.subr.mxu0 0.0
  %250 = vmatpush1.xpose.msra.mxu0 0.0
  %251 = vmatprep.subr.mxu0 0.0
  %252 = vmatpush1.xpose.msra.mxu0 0.0
  %253 = vmatprep.subr.mxu0 0.0
  %254 = vmatpush1.xpose.msra.mxu0 0.0
  %255 = vmatprep.subr.mxu0 0.0
  %256 = vmatpush1.xpose.msra.mxu0 0.0
  %257 = vmatprep.mubr.f32.mxu0 0.0
  %258 = vmatmul.mubr.f32.gmra.mrb[0].mxu0 %v188
  %v259 = vpop.f32.mrb[0].mxu0
  %v260 = vadd.f32 0.0, %v259
  %v261 = vpop.f32.mrb[0].mxu0
  %262 = vdwg.mxu0
  %v264 = vsel %vm110, %v16, 0
  %v267 = vsel %vm110, %v48, 0
  %269 = vmatprep.subr.mxu0 0.0
  %270 = vmatpush1.xpose.msra.mxu0 %v267
  %271 = vmatprep.subr.mxu0 0.0
  %272 = vmatpush1.xpose.msra.mxu0 0.0
  %273 = vmatprep.subr.mxu0 0.0
  %274 = vmatpush1.xpose.msra.mxu0 0.0
  %275 = vmatprep.subr.mxu0 0.0
  %276 = vmatpush1.xpose.msra.mxu0 0.0
  %277 = vmatprep.subr.mxu0 0.0
  %278 = vmatpush1.xpose.msra.mxu0 0.0
  %279 = vmatprep.subr.mxu0 0.0
  %280 = vmatpush1.xpose.msra.mxu0 0.0
  %281 = vmatprep.subr.mxu0 0.0
  %282 = vmatpush1.xpose.msra.mxu0 0.0
  %283 = vmatprep.subr.mxu0 0.0
  %284 = vmatpush1.xpose.msra.mxu0 0.0
  %285 = vmatprep.subr.mxu0 0.0
  %286 = vmatpush1.xpose.msra.mxu0 0.0
  %287 = vmatprep.subr.mxu0 0.0
  %288 = vmatpush1.xpose.msra.mxu0 0.0
  %289 = vmatprep.subr.mxu0 0.0
  %290 = vmatpush1.xpose.msra.mxu0 0.0
  %291 = vmatprep.subr.mxu0 0.0
  %292 = vmatpush1.xpose.msra.mxu0 0.0
  %293 = vmatprep.subr.mxu0 0.0
  %294 = vmatpush1.xpose.msra.mxu0 0.0
  %295 = vmatprep.subr.mxu0 0.0
  %296 = vmatpush1.xpose.msra.mxu0 0.0
  %297 = vmatprep.subr.mxu0 0.0
  %298 = vmatpush1.xpose.msra.mxu0 0.0
  %299 = vmatprep.subr.mxu0 0.0
  %300 = vmatpush1.xpose.msra.mxu0 0.0
  %301 = vmatprep.subr.mxu0 0.0
  %302 = vmatpush1.xpose.msra.mxu0 0.0
  %303 = vmatprep.subr.mxu0 0.0
  %304 = vmatpush1.xpose.msra.mxu0 0.0
  %305 = vmatprep.subr.mxu0 0.0
  %306 = vmatpush1.xpose.msra.mxu0 0.0
  %307 = vmatprep.subr.mxu0 0.0
  %308 = vmatpush1.xpose.msra.mxu0 0.0
  %309 = vmatprep.subr.mxu0 0.0
  %310 = vmatpush1.xpose.msra.mxu0 0.0
  %311 = vmatprep.subr.mxu0 0.0
  %312 = vmatpush1.xpose.msra.mxu0 0.0
  %313 = vmatprep.subr.mxu0 0.0
  %314 = vmatpush1.xpose.msra.mxu0 0.0
  %315 = vmatprep.subr.mxu0 0.0
  %316 = vmatpush1.xpose.msra.mxu0 0.0
  %317 = vmatprep.subr.mxu0 0.0
  %318 = vmatpush1.xpose.msra.mxu0 0.0
  %319 = vmatprep.subr.mxu0 0.0
  %320 = vmatpush1.xpose.msra.mxu0 0.0
  %321 = vmatprep.subr.mxu0 0.0
  %322 = vmatpush1.xpose.msra.mxu0 0.0
  %323 = vmatprep.subr.mxu0 0.0
  %324 = vmatpush1.xpose.msra.mxu0 0.0
  %325 = vmatprep.subr.mxu0 0.0
  %326 = vmatpush1.xpose.msra.mxu0 0.0
  %327 = vmatprep.subr.mxu0 0.0
  %328 = vmatpush1.xpose.msra.mxu0 0.0
  %329 = vmatprep.subr.mxu0 0.0
  %330 = vmatpush1.xpose.msra.mxu0 0.0
  %331 = vmatprep.subr.mxu0 0.0
  %332 = vmatpush1.xpose.msra.mxu0 0.0
  %333 = vmatprep.mubr.f32.mxu0 0.0
  %334 = vmatmul.mubr.f32.gmra.mrb[0].mxu0 %v264
  %v335 = vpop.f32.mrb[0].mxu0
  %v336 = vadd.f32 0.0, %v335
  %v337 = vpop.f32.mrb[0].mxu0
  %338 = vdwg.mxu0
  %v340 = vsel %vm110, %v17, 0
  %v343 = vsel %vm110, %v49, 0
  %345 = vmatprep.subr.mxu0 0.0
  %346 = vmatpush1.xpose.msra.mxu0 %v343
  %347 = vmatprep.subr.mxu0 0.0
  %348 = vmatpush1.xpose.msra.mxu0 0.0
  %349 = vmatprep.subr.mxu0 0.0
  %350 = vmatpush1.xpose.msra.mxu0 0.0
  %351 = vmatprep.subr.mxu0 0.0
  %352 = vmatpush1.xpose.msra.mxu0 0.0
  %353 = vmatprep.subr.mxu0 0.0
  %354 = vmatpush1.xpose.msra.mxu0 0.0
  %355 = vmatprep.subr.mxu0 0.0
  %356 = vmatpush1.xpose.msra.mxu0 0.0
  %357 = vmatprep.subr.mxu0 0.0
  %358 = vmatpush1.xpose.msra.mxu0 0.0
  %359 = vmatprep.subr.mxu0 0.0
  %360 = vmatpush1.xpose.msra.mxu0 0.0
  %361 = vmatprep.subr.mxu0 0.0
  %362 = vmatpush1.xpose.msra.mxu0 0.0
  %363 = vmatprep.subr.mxu0 0.0
  %364 = vmatpush1.xpose.msra.mxu0 0.0
  %365 = vmatprep.subr.mxu0 0.0
  %366 = vmatpush1.xpose.msra.mxu0 0.0
  %367 = vmatprep.subr.mxu0 0.0
  %368 = vmatpush1.xpose.msra.mxu0 0.0
  %369 = vmatprep.subr.mxu0 0.0
  %370 = vmatpush1.xpose.msra.mxu0 0.0
  %371 = vmatprep.subr.mxu0 0.0
  %372 = vmatpush1.xpose.msra.mxu0 0.0
  %373 = vmatprep.subr.mxu0 0.0
  %374 = vmatpush1.xpose.msra.mxu0 0.0
  %375 = vmatprep.subr.mxu0 0.0
  %376 = vmatpush1.xpose.msra.mxu0 0.0
  %377 = vmatprep.subr.mxu0 0.0
  %378 = vmatpush1.xpose.msra.mxu0 0.0
  %379 = vmatprep.subr.mxu0 0.0
  %380 = vmatpush1.xpose.msra.mxu0 0.0
  %381 = vmatprep.subr.mxu0 0.0
  %382 = vmatpush1.xpose.msra.mxu0 0.0
  %383 = vmatprep.subr.mxu0 0.0
  %384 = vmatpush1.xpose.msra.mxu0 0.0
  %385 = vmatprep.subr.mxu0 0.0
  %386 = vmatpush1.xpose.msra.mxu0 0.0
  %387 = vmatprep.subr.mxu0 0.0
  %388 = vmatpush1.xpose.msra.mxu0 0.0
  %389 = vmatprep.subr.mxu0 0.0
  %390 = vmatpush1.xpose.msra.mxu0 0.0
  %391 = vmatprep.subr.mxu0 0.0
  %392 = vmatpush1.xpose.msra.mxu0 0.0
  %393 = vmatprep.subr.mxu0 0.0
  %394 = vmatpush1.xpose.msra.mxu0 0.0
  %395 = vmatprep.subr.mxu0 0.0
  %396 = vmatpush1.xpose.msra.mxu0 0.0
  %397 = vmatprep.subr.mxu0 0.0
  %398 = vmatpush1.xpose.msra.mxu0 0.0
  %399 = vmatprep.subr.mxu0 0.0
  %400 = vmatpush1.xpose.msra.mxu0 0.0
  %401 = vmatprep.subr.mxu0 0.0
  %402 = vmatpush1.xpose.msra.mxu0 0.0
  %403 = vmatprep.subr.mxu0 0.0
  %404 = vmatpush1.xpose.msra.mxu0 0.0
  %405 = vmatprep.subr.mxu0 0.0
  %406 = vmatpush1.xpose.msra.mxu0 0.0
  %407 = vmatprep.subr.mxu0 0.0
  %408 = vmatpush1.xpose.msra.mxu0 0.0
  %409 = vmatprep.mubr.f32.mxu0 0.0
  %410 = vmatmul.mubr.f32.gmra.mrb[0].mxu0 %v340
  %v411 = vpop.f32.mrb[0].mxu0
  %v412 = vadd.f32 0.0, %v411
  %v413 = vpop.f32.mrb[0].mxu0
  %414 = vdwg.mxu0
  %v416 = vsel %vm110, %v18, 0
  %v419 = vsel %vm110, %v50, 0
  %421 = vmatprep.subr.mxu0 0.0
  %422 = vmatpush1.xpose.msra.mxu0 %v419
  %423 = vmatprep.subr.mxu0 0.0
  %424 = vmatpush1.xpose.msra.mxu0 0.0
  %425 = vmatprep.subr.mxu0 0.0
  %426 = vmatpush1.xpose.msra.mxu0 0.0
  %427 = vmatprep.subr.mxu0 0.0
  %428 = vmatpush1.xpose.msra.mxu0 0.0
  %429 = vmatprep.subr.mxu0 0.0
  %430 = vmatpush1.xpose.msra.mxu0 0.0
  %431 = vmatprep.subr.mxu0 0.0
  %432 = vmatpush1.xpose.msra.mxu0 0.0
  %433 = vmatprep.subr.mxu0 0.0
  %434 = vmatpush1.xpose.msra.mxu0 0.0
  %435 = vmatprep.subr.mxu0 0.0
  %436 = vmatpush1.xpose.msra.mxu0 0.0
  %437 = vmatprep.subr.mxu0 0.0
  %438 = vmatpush1.xpose.msra.mxu0 0.0
  %439 = vmatprep.subr.mxu0 0.0
  %440 = vmatpush1.xpose.msra.mxu0 0.0
  %441 = vmatprep.subr.mxu0 0.0
  %442 = vmatpush1.xpose.msra.mxu0 0.0
  %443 = vmatprep.subr.mxu0 0.0
  %444 = vmatpush1.xpose.msra.mxu0 0.0
  %445 = vmatprep.subr.mxu0 0.0
  %446 = vmatpush1.xpose.msra.mxu0 0.0
  %447 = vmatprep.subr.mxu0 0.0
  %448 = vmatpush1.xpose.msra.mxu0 0.0
  %449 = vmatprep.subr.mxu0 0.0
  %450 = vmatpush1.xpose.msra.mxu0 0.0
  %451 = vmatprep.subr.mxu0 0.0
  %452 = vmatpush1.xpose.msra.mxu0 0.0
  %453 = vmatprep.subr.mxu0 0.0
  %454 = vmatpush1.xpose.msra.mxu0 0.0
  %455 = vmatprep.subr.mxu0 0.0
  %456 = vmatpush1.xpose.msra.mxu0 0.0
  %457 = vmatprep.subr.mxu0 0.0
  %458 = vmatpush1.xpose.msra.mxu0 0.0
  %459 = vmatprep.subr.mxu0 0.0
  %460 = vmatpush1.xpose.msra.mxu0 0.0
  %461 = vmatprep.subr.mxu0 0.0
  %462 = vmatpush1.xpose.msra.mxu0 0.0
  %463 = vmatprep.subr.mxu0 0.0
  %464 = vmatpush1.xpose.msra.mxu0 0.0
  %465 = vmatprep.subr.mxu0 0.0
  %466 = vmatpush1.xpose.msra.mxu0 0.0
  %467 = vmatprep.subr.mxu0 0.0
  %468 = vmatpush1.xpose.msra.mxu0 0.0
  %469 = vmatprep.subr.mxu0 0.0
  %470 = vmatpush1.xpose.msra.mxu0 0.0
  %471 = vmatprep.subr.mxu0 0.0
  %472 = vmatpush1.xpose.msra.mxu0 0.0
  %473 = vmatprep.subr.mxu0 0.0
  %474 = vmatpush1.xpose.msra.mxu0 0.0
  %475 = vmatprep.subr.mxu0 0.0
  %476 = vmatpush1.xpose.msra.mxu0 0.0
  %477 = vmatprep.subr.mxu0 0.0
  %478 = vmatpush1.xpose.msra.mxu0 0.0
  %479 = vmatprep.subr.mxu0 0.0
  %480 = vmatpush1.xpose.msra.mxu0 0.0
  %481 = vmatprep.subr.mxu0 0.0
  %482 = vmatpush1.xpose.msra.mxu0 0.0
  %483 = vmatprep.subr.mxu0 0.0
  %484 = vmatpush1.xpose.msra.mxu0 0.0
  %485 = vmatprep.mubr.f32.mxu0 0.0
  %486 = vmatmul.mubr.f32.gmra.mrb[0].mxu0 %v416
  %v487 = vpop.f32.mrb[0].mxu0
  %v488 = vadd.f32 0.0, %v487
  %v489 = vpop.f32.mrb[0].mxu0
  %490 = vdwg.mxu0
  %v492 = vsel %vm110, %v19, 0
  %v495 = vsel %vm110, %v51, 0
  %497 = vmatprep.subr.mxu0 0.0
  %498 = vmatpush1.xpose.msra.mxu0 %v495
  %499 = vmatprep.subr.mxu0 0.0
  %500 = vmatpush1.xpose.msra.mxu0 0.0
  %501 = vmatprep.subr.mxu0 0.0
  %502 = vmatpush1.xpose.msra.mxu0 0.0
  %503 = vmatprep.subr.mxu0 0.0
  %504 = vmatpush1.xpose.msra.mxu0 0.0
  %505 = vmatprep.subr.mxu0 0.0
  %506 = vmatpush1.xpose.msra.mxu0 0.0
  %507 = vmatprep.subr.mxu0 0.0
  %508 = vmatpush1.xpose.msra.mxu0 0.0
  %509 = vmatprep.subr.mxu0 0.0
  %510 = vmatpush1.xpose.msra.mxu0 0.0
  %511 = vmatprep.subr.mxu0 0.0
  %512 = vmatpush1.xpose.msra.mxu0 0.0
  %513 = vmatprep.subr.mxu0 0.0
  %514 = vmatpush1.xpose.msra.mxu0 0.0
  %515 = vmatprep.subr.mxu0 0.0
  %516 = vmatpush1.xpose.msra.mxu0 0.0
  %517 = vmatprep.subr.mxu0 0.0
  %518 = vmatpush1.xpose.msra.mxu0 0.0
  %519 = vmatprep.subr.mxu0 0.0
  %520 = vmatpush1.xpose.msra.mxu0 0.0
  %521 = vmatprep.subr.mxu0 0.0
  %522 = vmatpush1.xpose.msra.mxu0 0.0
  %523 = vmatprep.subr.mxu0 0.0
  %524 = vmatpush1.xpose.msra.mxu0 0.0
  %525 = vmatprep.subr.mxu0 0.0
  %526 = vmatpush1.xpose.msra.mxu0 0.0
  %527 = vmatprep.subr.mxu0 0.0
  %528 = vmatpush1.xpose.msra.mxu0 0.0
  %529 = vmatprep.subr.mxu0 0.0
  %530 = vmatpush1.xpose.msra.mxu0 0.0
  %531 = vmatprep.subr.mxu0 0.0
  %532 = vmatpush1.xpose.msra.mxu0 0.0
  %533 = vmatprep.subr.mxu0 0.0
  %534 = vmatpush1.xpose.msra.mxu0 0.0
  %535 = vmatprep.subr.mxu0 0.0
  %536 = vmatpush1.xpose.msra.mxu0 0.0
  %537 = vmatprep.subr.mxu0 0.0
  %538 = vmatpush1.xpose.msra.mxu0 0.0
  %539 = vmatprep.subr.mxu0 0.0
  %540 = vmatpush1.xpose.msra.mxu0 0.0
  %541 = vmatprep.subr.mxu0 0.0
  %542 = vmatpush1.xpose.msra.mxu0 0.0
  %543 = vmatprep.subr.mxu0 0.0
  %544 = vmatpush1.xpose.msra.mxu0 0.0
  %545 = vmatprep.subr.mxu0 0.0
  %546 = vmatpush1.xpose.msra.mxu0 0.0
  %547 = vmatprep.subr.mxu0 0.0
  %548 = vmatpush1.xpose.msra.mxu0 0.0
  %549 = vmatprep.subr.mxu0 0.0
  %550 = vmatpush1.xpose.msra.mxu0 0.0
  %551 = vmatprep.subr.mxu0 0.0
  %552 = vmatpush1.xpose.msra.mxu0 0.0
  %553 = vmatprep.subr.mxu0 0.0
  %554 = vmatpush1.xpose.msra.mxu0 0.0
  %555 = vmatprep.subr.mxu0 0.0
  %556 = vmatpush1.xpose.msra.mxu0 0.0
  %557 = vmatprep.subr.mxu0 0.0
  %558 = vmatpush1.xpose.msra.mxu0 0.0
  %559 = vmatprep.subr.mxu0 0.0
  %560 = vmatpush1.xpose.msra.mxu0 0.0
  %561 = vmatprep.mubr.f32.mxu0 0.0
  %562 = vmatmul.mubr.f32.gmra.mrb[0].mxu0 %v492
  %v563 = vpop.f32.mrb[0].mxu0
  %v564 = vadd.f32 0.0, %v563
  %v565 = vpop.f32.mrb[0].mxu0
  %566 = vdwg.mxu0
  %v568 = vsel %vm110, %v20, 0
  %v571 = vsel %vm110, %v52, 0
  %573 = vmatprep.subr.mxu0 0.0
  %574 = vmatpush1.xpose.msra.mxu0 %v571
  %575 = vmatprep.subr.mxu0 0.0
  %576 = vmatpush1.xpose.msra.mxu0 0.0
  %577 = vmatprep.subr.mxu0 0.0
  %578 = vmatpush1.xpose.msra.mxu0 0.0
  %579 = vmatprep.subr.mxu0 0.0
  %580 = vmatpush1.xpose.msra.mxu0 0.0
  %581 = vmatprep.subr.mxu0 0.0
  %582 = vmatpush1.xpose.msra.mxu0 0.0
  %583 = vmatprep.subr.mxu0 0.0
  %584 = vmatpush1.xpose.msra.mxu0 0.0
  %585 = vmatprep.subr.mxu0 0.0
  %586 = vmatpush1.xpose.msra.mxu0 0.0
  %587 = vmatprep.subr.mxu0 0.0
  %588 = vmatpush1.xpose.msra.mxu0 0.0
  %589 = vmatprep.subr.mxu0 0.0
  %590 = vmatpush1.xpose.msra.mxu0 0.0
  %591 = vmatprep.subr.mxu0 0.0
  %592 = vmatpush1.xpose.msra.mxu0 0.0
  %593 = vmatprep.subr.mxu0 0.0
  %594 = vmatpush1.xpose.msra.mxu0 0.0
  %595 = vmatprep.subr.mxu0 0.0
  %596 = vmatpush1.xpose.msra.mxu0 0.0
  %597 = vmatprep.subr.mxu0 0.0
  %598 = vmatpush1.xpose.msra.mxu0 0.0
  %599 = vmatprep.subr.mxu0 0.0
  %600 = vmatpush1.xpose.msra.mxu0 0.0
  %601 = vmatprep.subr.mxu0 0.0
  %602 = vmatpush1.xpose.msra.mxu0 0.0
  %603 = vmatprep.subr.mxu0 0.0
  %604 = vmatpush1.xpose.msra.mxu0 0.0
  %605 = vmatprep.subr.mxu0 0.0
  %606 = vmatpush1.xpose.msra.mxu0 0.0
  %607 = vmatprep.subr.mxu0 0.0
  %608 = vmatpush1.xpose.msra.mxu0 0.0
  %609 = vmatprep.subr.mxu0 0.0
  %610 = vmatpush1.xpose.msra.mxu0 0.0
  %611 = vmatprep.subr.mxu0 0.0
  %612 = vmatpush1.xpose.msra.mxu0 0.0
  %613 = vmatprep.subr.mxu0 0.0
  %614 = vmatpush1.xpose.msra.mxu0 0.0
  %615 = vmatprep.subr.mxu0 0.0
  %616 = vmatpush1.xpose.msra.mxu0 0.0
  %617 = vmatprep.subr.mxu0 0.0
  %618 = vmatpush1.xpose.msra.mxu0 0.0
  %619 = vmatprep.subr.mxu0 0.0
  %620 = vmatpush1.xpose.msra.mxu0 0.0
  %621 = vmatprep.subr.mxu0 0.0
  %622 = vmatpush1.xpose.msra.mxu0 0.0
  %623 = vmatprep.subr.mxu0 0.0
  %624 = vmatpush1.xpose.msra.mxu0 0.0
  %625 = vmatprep.subr.mxu0 0.0
  %626 = vmatpush1.xpose.msra.mxu0 0.0
  %627 = vmatprep.subr.mxu0 0.0
  %628 = vmatpush1.xpose.msra.mxu0 0.0
  %629 = vmatprep.subr.mxu0 0.0
  %630 = vmatpush1.xpose.msra.mxu0 0.0
  %631 = vmatprep.subr.mxu0 0.0
  %632 = vmatpush1.xpose.msra.mxu0 0.0
  %633 = vmatprep.subr.mxu0 0.0
  %634 = vmatpush1.xpose.msra.mxu0 0.0
  %635 = vmatprep.subr.mxu0 0.0
  %636 = vmatpush1.xpose.msra.mxu0 0.0
  %637 = vmatprep.mubr.f32.mxu0 0.0
  %638 = vmatmul.mubr.f32.gmra.mrb[0].mxu0 %v568
  %v639 = vpop.f32.mrb[0].mxu0
  %v640 = vadd.f32 0.0, %v639
  %v641 = vpop.f32.mrb[0].mxu0
  %642 = vdwg.mxu0
  %v644 = vsel %vm110, %v21, 0
  %v647 = vsel %vm110, %v53, 0
  %649 = vmatprep.subr.mxu0 0.0
  %650 = vmatpush1.xpose.msra.mxu0 %v647
  %651 = vmatprep.subr.mxu0 0.0
  %652 = vmatpush1.xpose.msra.mxu0 0.0
  %653 = vmatprep.subr.mxu0 0.0
  %654 = vmatpush1.xpose.msra.mxu0 0.0
  %655 = vmatprep.subr.mxu0 0.0
  %656 = vmatpush1.xpose.msra.mxu0 0.0
  %657 = vmatprep.subr.mxu0 0.0
  %658 = vmatpush1.xpose.msra.mxu0 0.0
  %659 = vmatprep.subr.mxu0 0.0
  %660 = vmatpush1.xpose.msra.mxu0 0.0
  %661 = vmatprep.subr.mxu0 0.0
  %662 = vmatpush1.xpose.msra.mxu0 0.0
  %663 = vmatprep.subr.mxu0 0.0
  %664 = vmatpush1.xpose.msra.mxu0 0.0
  %665 = vmatprep.subr.mxu0 0.0
  %666 = vmatpush1.xpose.msra.mxu0 0.0
  %667 = vmatprep.subr.mxu0 0.0
  %668 = vmatpush1.xpose.msra.mxu0 0.0
  %669 = vmatprep.subr.mxu0 0.0
  %670 = vmatpush1.xpose.msra.mxu0 0.0
  %671 = vmatprep.subr.mxu0 0.0
  %672 = vmatpush1.xpose.msra.mxu0 0.0
  %673 = vmatprep.subr.mxu0 0.0
  %674 = vmatpush1.xpose.msra.mxu0 0.0
  %675 = vmatprep.subr.mxu0 0.0
  %676 = vmatpush1.xpose.msra.mxu0 0.0
  %677 = vmatprep.subr.mxu0 0.0
  %678 = vmatpush1.xpose.msra.mxu0 0.0
  %679 = vmatprep.subr.mxu0 0.0
  %680 = vmatpush1.xpose.msra.mxu0 0.0
  %681 = vmatprep.subr.mxu0 0.0
  %682 = vmatpush1.xpose.msra.mxu0 0.0
  %683 = vmatprep.subr.mxu0 0.0
  %684 = vmatpush1.xpose.msra.mxu0 0.0
  %685 = vmatprep.subr.mxu0 0.0
  %686 = vmatpush1.xpose.msra.mxu0 0.0
  %687 = vmatprep.subr.mxu0 0.0
  %688 = vmatpush1.xpose.msra.mxu0 0.0
  %689 = vmatprep.subr.mxu0 0.0
  %690 = vmatpush1.xpose.msra.mxu0 0.0
  %691 = vmatprep.subr.mxu0 0.0
  %692 = vmatpush1.xpose.msra.mxu0 0.0
  %693 = vmatprep.subr.mxu0 0.0
  %694 = vmatpush1.xpose.msra.mxu0 0.0
  %695 = vmatprep.subr.mxu0 0.0
  %696 = vmatpush1.xpose.msra.mxu0 0.0
  %697 = vmatprep.subr.mxu0 0.0
  %698 = vmatpush1.xpose.msra.mxu0 0.0
  %699 = vmatprep.subr.mxu0 0.0
  %700 = vmatpush1.xpose.msra.mxu0 0.0
  %701 = vmatprep.subr.mxu0 0.0
  %702 = vmatpush1.xpose.msra.mxu0 0.0
  %703 = vmatprep.subr.mxu0 0.0
  %704 = vmatpush1.xpose.msra.mxu0 0.0
  %705 = vmatprep.subr.mxu0 0.0
  %706 = vmatpush1.xpose.msra.mxu0 0.0
  %707 = vmatprep.subr.mxu0 0.0
  %708 = vmatpush1.xpose.msra.mxu0 0.0
  %709 = vmatprep.subr.mxu0 0.0
  %710 = vmatpush1.xpose.msra.mxu0 0.0
  %711 = vmatprep.subr.mxu0 0.0
  %712 = vmatpush1.xpose.msra.mxu0 0.0
  %713 = vmatprep.mubr.f32.mxu0 0.0
  %714 = vmatmul.mubr.f32.gmra.mrb[0].mxu0 %v644
  %v715 = vpop.f32.mrb[0].mxu0
  %v716 = vadd.f32 0.0, %v715
  %v717 = vpop.f32.mrb[0].mxu0
  %718 = vdwg.mxu0
  %v720 = vsel %vm110, %v22, 0
  %v723 = vsel %vm110, %v54, 0
  %725 = vmatprep.subr.mxu0 0.0
  %726 = vmatpush1.xpose.msra.mxu0 %v723
  %727 = vmatprep.subr.mxu0 0.0
  %728 = vmatpush1.xpose.msra.mxu0 0.0
  %729 = vmatprep.subr.mxu0 0.0
  %730 = vmatpush1.xpose.msra.mxu0 0.0
  %731 = vmatprep.subr.mxu0 0.0
  %732 = vmatpush1.xpose.msra.mxu0 0.0
  %733 = vmatprep.subr.mxu0 0.0
  %734 = vmatpush1.xpose.msra.mxu0 0.0
  %735 = vmatprep.subr.mxu0 0.0
  %736 = vmatpush1.xpose.msra.mxu0 0.0
  %737 = vmatprep.subr.mxu0 0.0
  %738 = vmatpush1.xpose.msra.mxu0 0.0
  %739 = vmatprep.subr.mxu0 0.0
  %740 = vmatpush1.xpose.msra.mxu0 0.0
  %741 = vmatprep.subr.mxu0 0.0
  %742 = vmatpush1.xpose.msra.mxu0 0.0
  %743 = vmatprep.subr.mxu0 0.0
  %744 = vmatpush1.xpose.msra.mxu0 0.0
  %745 = vmatprep.subr.mxu0 0.0
  %746 = vmatpush1.xpose.msra.mxu0 0.0
  %747 = vmatprep.subr.mxu0 0.0
  %748 = vmatpush1.xpose.msra.mxu0 0.0
  %749 = vmatprep.subr.mxu0 0.0
  %750 = vmatpush1.xpose.msra.mxu0 0.0
  %751 = vmatprep.subr.mxu0 0.0
  %752 = vmatpush1.xpose.msra.mxu0 0.0
  %753 = vmatprep.subr.mxu0 0.0
  %754 = vmatpush1.xpose.msra.mxu0 0.0
  %755 = vmatprep.subr.mxu0 0.0
  %756 = vmatpush1.xpose.msra.mxu0 0.0
  %757 = vmatprep.subr.mxu0 0.0
  %758 = vmatpush1.xpose.msra.mxu0 0.0
  %759 = vmatprep.subr.mxu0 0.0
  %760 = vmatpush1.xpose.msra.mxu0 0.0
  %761 = vmatprep.subr.mxu0 0.0
  %762 = vmatpush1.xpose.msra.mxu0 0.0
  %763 = vmatprep.subr.mxu0 0.0
  %764 = vmatpush1.xpose.msra.mxu0 0.0
  %765 = vmatprep.subr.mxu0 0.0
  %766 = vmatpush1.xpose.msra.mxu0 0.0
  %767 = vmatprep.subr.mxu0 0.0
  %768 = vmatpush1.xpose.msra.mxu0 0.0
  %769 = vmatprep.subr.mxu0 0.0
  %770 = vmatpush1.xpose.msra.mxu0 0.0
  %771 = vmatprep.subr.mxu0 0.0
  %772 = vmatpush1.xpose.msra.mxu0 0.0
  %773 = vmatprep.subr.mxu0 0.0
  %774 = vmatpush1.xpose.msra.mxu0 0.0
  %775 = vmatprep.subr.mxu0 0.0
  %776 = vmatpush1.xpose.msra.mxu0 0.0
  %777 = vmatprep.subr.mxu0 0.0
  %778 = vmatpush1.xpose.msra.mxu0 0.0
  %779 = vmatprep.subr.mxu0 0.0
  %780 = vmatpush1.xpose.msra.mxu0 0.0
  %781 = vmatprep.subr.mxu0 0.0
  %782 = vmatpush1.xpose.msra.mxu0 0.0
  %783 = vmatprep.subr.mxu0 0.0
  %784 = vmatpush1.xpose.msra.mxu0 0.0
  %785 = vmatprep.subr.mxu0 0.0
  %786 = vmatpush1.xpose.msra.mxu0 0.0
  %787 = vmatprep.subr.mxu0 0.0
  %788 = vmatpush1.xpose.msra.mxu0 0.0
  %789 = vmatprep.mubr.f32.mxu0 0.0
  %790 = vmatmul.mubr.f32.gmra.mrb[0].mxu0 %v720
  %v791 = vpop.f32.mrb[0].mxu0
  %v792 = vadd.f32 0.0, %v791
  %v793 = vpop.f32.mrb[0].mxu0
  %794 = vdwg.mxu0
  %v796 = vsel %vm110, %v23, 0
  %v799 = vsel %vm110, %v55, 0
  %801 = vmatprep.subr.mxu0 0.0
  %802 = vmatpush1.xpose.msra.mxu0 %v799
  %803 = vmatprep.subr.mxu0 0.0
  %804 = vmatpush1.xpose.msra.mxu0 0.0
  %805 = vmatprep.subr.mxu0 0.0
  %806 = vmatpush1.xpose.msra.mxu0 0.0
  %807 = vmatprep.subr.mxu0 0.0
  %808 = vmatpush1.xpose.msra.mxu0 0.0
  %809 = vmatprep.subr.mxu0 0.0
  %810 = vmatpush1.xpose.msra.mxu0 0.0
  %811 = vmatprep.subr.mxu0 0.0
  %812 = vmatpush1.xpose.msra.mxu0 0.0
  %813 = vmatprep.subr.mxu0 0.0
  %814 = vmatpush1.xpose.msra.mxu0 0.0
  %815 = vmatprep.subr.mxu0 0.0
  %816 = vmatpush1.xpose.msra.mxu0 0.0
  %817 = vmatprep.subr.mxu0 0.0
  %818 = vmatpush1.xpose.msra.mxu0 0.0
  %819 = vmatprep.subr.mxu0 0.0
  %820 = vmatpush1.xpose.msra.mxu0 0.0
  %821 = vmatprep.subr.mxu0 0.0
  %822 = vmatpush1.xpose.msra.mxu0 0.0
  %823 = vmatprep.subr.mxu0 0.0
  %824 = vmatpush1.xpose.msra.mxu0 0.0
  %825 = vmatprep.subr.mxu0 0.0
  %826 = vmatpush1.xpose.msra.mxu0 0.0
  %827 = vmatprep.subr.mxu0 0.0
  %828 = vmatpush1.xpose.msra.mxu0 0.0
  %829 = vmatprep.subr.mxu0 0.0
  %830 = vmatpush1.xpose.msra.mxu0 0.0
  %831 = vmatprep.subr.mxu0 0.0
  %832 = vmatpush1.xpose.msra.mxu0 0.0
  %833 = vmatprep.subr.mxu0 0.0
  %834 = vmatpush1.xpose.msra.mxu0 0.0
  %835 = vmatprep.subr.mxu0 0.0
  %836 = vmatpush1.xpose.msra.mxu0 0.0
  %837 = vmatprep.subr.mxu0 0.0
  %838 = vmatpush1.xpose.msra.mxu0 0.0
  %839 = vmatprep.subr.mxu0 0.0
  %840 = vmatpush1.xpose.msra.mxu0 0.0
  %841 = vmatprep.subr.mxu0 0.0
  %842 = vmatpush1.xpose.msra.mxu0 0.0
  %843 = vmatprep.subr.mxu0 0.0
  %844 = vmatpush1.xpose.msra.mxu0 0.0
  %845 = vmatprep.subr.mxu0 0.0
  %846 = vmatpush1.xpose.msra.mxu0 0.0
  %847 = vmatprep.subr.mxu0 0.0
  %848 = vmatpush1.xpose.msra.mxu0 0.0
  %849 = vmatprep.subr.mxu0 0.0
  %850 = vmatpush1.xpose.msra.mxu0 0.0
  %851 = vmatprep.subr.mxu0 0.0
  %852 = vmatpush1.xpose.msra.mxu0 0.0
  %853 = vmatprep.subr.mxu0 0.0
  %854 = vmatpush1.xpose.msra.mxu0 0.0
  %855 = vmatprep.subr.mxu0 0.0
  %856 = vmatpush1.xpose.msra.mxu0 0.0
  %857 = vmatprep.subr.mxu0 0.0
  %858 = vmatpush1.xpose.msra.mxu0 0.0
  %859 = vmatprep.subr.mxu0 0.0
  %860 = vmatpush1.xpose.msra.mxu0 0.0
  %861 = vmatprep.subr.mxu0 0.0
  %862 = vmatpush1.xpose.msra.mxu0 0.0
  %863 = vmatprep.subr.mxu0 0.0
  %864 = vmatpush1.xpose.msra.mxu0 0.0
  %865 = vmatprep.mubr.f32.mxu0 0.0
  %866 = vmatmul.mubr.f32.gmra.mrb[0].mxu0 %v796
  %v867 = vpop.f32.mrb[0].mxu0
  %v868 = vadd.f32 0.0, %v867
  %v869 = vpop.f32.mrb[0].mxu0
  %870 = vdwg.mxu0
  %v872 = vsel %vm110, %v24, 0
  %v875 = vsel %vm110, %v56, 0
  %877 = vmatprep.subr.mxu0 0.0
  %878 = vmatpush1.xpose.msra.mxu0 %v875
  %879 = vmatprep.subr.mxu0 0.0
  %880 = vmatpush1.xpose.msra.mxu0 0.0
  %881 = vmatprep.subr.mxu0 0.0
  %882 = vmatpush1.xpose.msra.mxu0 0.0
  %883 = vmatprep.subr.mxu0 0.0
  %884 = vmatpush1.xpose.msra.mxu0 0.0
  %885 = vmatprep.subr.mxu0 0.0
  %886 = vmatpush1.xpose.msra.mxu0 0.0
  %887 = vmatprep.subr.mxu0 0.0
  %888 = vmatpush1.xpose.msra.mxu0 0.0
  %889 = vmatprep.subr.mxu0 0.0
  %890 = vmatpush1.xpose.msra.mxu0 0.0
  %891 = vmatprep.subr.mxu0 0.0
  %892 = vmatpush1.xpose.msra.mxu0 0.0
  %893 = vmatprep.subr.mxu0 0.0
  %894 = vmatpush1.xpose.msra.mxu0 0.0
  %895 = vmatprep.subr.mxu0 0.0
  %896 = vmatpush1.xpose.msra.mxu0 0.0
  %897 = vmatprep.subr.mxu0 0.0
  %898 = vmatpush1.xpose.msra.mxu0 0.0
  %899 = vmatprep.subr.mxu0 0.0
  %900 = vmatpush1.xpose.msra.mxu0 0.0
  %901 = vmatprep.subr.mxu0 0.0
  %902 = vmatpush1.xpose.msra.mxu0 0.0
  %903 = vmatprep.subr.mxu0 0.0
  %904 = vmatpush1.xpose.msra.mxu0 0.0
  %905 = vmatprep.subr.mxu0 0.0
  %906 = vmatpush1.xpose.msra.mxu0 0.0
  %907 = vmatprep.subr.mxu0 0.0
  %908 = vmatpush1.xpose.msra.mxu0 0.0
  %909 = vmatprep.subr.mxu0 0.0
  %910 = vmatpush1.xpose.msra.mxu0 0.0
  %911 = vmatprep.subr.mxu0 0.0
  %912 = vmatpush1.xpose.msra.mxu0 0.0
  %913 = vmatprep.subr.mxu0 0.0
  %914 = vmatpush1.xpose.msra.mxu0 0.0
  %915 = vmatprep.subr.mxu0 0.0
  %916 = vmatpush1.xpose.msra.mxu0 0.0
  %917 = vmatprep.subr.mxu0 0.0
  %918 = vmatpush1.xpose.msra.mxu0 0.0
  %919 = vmatprep.subr.mxu0 0.0
  %920 = vmatpush1.xpose.msra.mxu0 0.0
  %921 = vmatprep.subr.mxu0 0.0
  %922 = vmatpush1.xpose.msra.mxu0 0.0
  %923 = vmatprep.subr.mxu0 0.0
  %924 = vmatpush1.xpose.msra.mxu0 0.0
  %925 = vmatprep.subr.mxu0 0.0
  %926 = vmatpush1.xpose.msra.mxu0 0.0
  %927 = vmatprep.subr.mxu0 0.0
  %928 = vmatpush1.xpose.msra.mxu0 0.0
  %929 = vmatprep.subr.mxu0 0.0
  %930 = vmatpush1.xpose.msra.mxu0 0.0
  %931 = vmatprep.subr.mxu0 0.0
  %932 = vmatpush1.xpose.msra.mxu0 0.0
  %933 = vmatprep.subr.mxu0 0.0
  %934 = vmatpush1.xpose.msra.mxu0 0.0
  %935 = vmatprep.subr.mxu0 0.0
  %936 = vmatpush1.xpose.msra.mxu0 0.0
  %937 = vmatprep.subr.mxu0 0.0
  %938 = vmatpush1.xpose.msra.mxu0 0.0
  %939 = vmatprep.subr.mxu0 0.0
  %940 = vmatpush1.xpose.msra.mxu0 0.0
  %941 = vmatprep.mubr.f32.mxu0 0.0
  %942 = vmatmul.mubr.f32.gmra.mrb[0].mxu0 %v872
  %v943 = vpop.f32.mrb[0].mxu0
  %v944 = vadd.f32 0.0, %v943
  %v945 = vpop.f32.mrb[0].mxu0
  %946 = vdwg.mxu0
  %v948 = vsel %vm110, %v25, 0
  %v951 = vsel %vm110, %v57, 0
  %953 = vmatprep.subr.mxu0 0.0
  %954 = vmatpush1.xpose.msra.mxu0 %v951
  %955 = vmatprep.subr.mxu0 0.0
  %956 = vmatpush1.xpose.msra.mxu0 0.0
  %957 = vmatprep.subr.mxu0 0.0
  %958 = vmatpush1.xpose.msra.mxu0 0.0
  %959 = vmatprep.subr.mxu0 0.0
  %960 = vmatpush1.xpose.msra.mxu0 0.0
  %961 = vmatprep.subr.mxu0 0.0
  %962 = vmatpush1.xpose.msra.mxu0 0.0
  %963 = vmatprep.subr.mxu0 0.0
  %964 = vmatpush1.xpose.msra.mxu0 0.0
  %965 = vmatprep.subr.mxu0 0.0
  %966 = vmatpush1.xpose.msra.mxu0 0.0
  %967 = vmatprep.subr.mxu0 0.0
  %968 = vmatpush1.xpose.msra.mxu0 0.0
  %969 = vmatprep.subr.mxu0 0.0
  %970 = vmatpush1.xpose.msra.mxu0 0.0
  %971 = vmatprep.subr.mxu0 0.0
  %972 = vmatpush1.xpose.msra.mxu0 0.0
  %973 = vmatprep.subr.mxu0 0.0
  %974 = vmatpush1.xpose.msra.mxu0 0.0
  %975 = vmatprep.subr.mxu0 0.0
  %976 = vmatpush1.xpose.msra.mxu0 0.0
  %977 = vmatprep.subr.mxu0 0.0
  %978 = vmatpush1.xpose.msra.mxu0 0.0
  %979 = vmatprep.subr.mxu0 0.0
  %980 = vmatpush1.xpose.msra.mxu0 0.0
  %981 = vmatprep.subr.mxu0 0.0
  %982 = vmatpush1.xpose.msra.mxu0 0.0
  %983 = vmatprep.subr.mxu0 0.0
  %984 = vmatpush1.xpose.msra.mxu0 0.0
  %985 = vmatprep.subr.mxu0 0.0
  %986 = vmatpush1.xpose.msra.mxu0 0.0
  %987 = vmatprep.subr.mxu0 0.0
  %988 = vmatpush1.xpose.msra.mxu0 0.0
  %989 = vmatprep.subr.mxu0 0.0
  %990 = vmatpush1.xpose.msra.mxu0 0.0
  %991 = vmatprep.subr.mxu0 0.0
  %992 = vmatpush1.xpose.msra.mxu0 0.0
  %993 = vmatprep.subr.mxu0 0.0
  %994 = vmatpush1.xpose.msra.mxu0 0.0
  %995 = vmatprep.subr.mxu0 0.0
  %996 = vmatpush1.xpose.msra.mxu0 0.0
  %997 = vmatprep.subr.mxu0 0.0
  %998 = vmatpush1.xpose.msra.mxu0 0.0
  %999 = vmatprep.subr.mxu0 0.0
  %1000 = vmatpush1.xpose.msra.mxu0 0.0
  %1001 = vmatprep.subr.mxu0 0.0
  %1002 = vmatpush1.xpose.msra.mxu0 0.0
  %1003 = vmatprep.subr.mxu0 0.0
  %1004 = vmatpush1.xpose.msra.mxu0 0.0
  %1005 = vmatprep.subr.mxu0 0.0
  %1006 = vmatpush1.xpose.msra.mxu0 0.0
  %1007 = vmatprep.subr.mxu0 0.0
  %1008 = vmatpush1.xpose.msra.mxu0 0.0
  %1009 = vmatprep.subr.mxu0 0.0
  %1010 = vmatpush1.xpose.msra.mxu0 0.0
  %1011 = vmatprep.subr.mxu0 0.0
  %1012 = vmatpush1.xpose.msra.mxu0 0.0
  %1013 = vmatprep.subr.mxu0 0.0
  %1014 = vmatpush1.xpose.msra.mxu0 0.0
  %1015 = vmatprep.subr.mxu0 0.0
  %1016 = vmatpush1.xpose.msra.mxu0 0.0
  %1017 = vmatprep.mubr.f32.mxu0 0.0
  %1018 = vmatmul.mubr.f32.gmra.mrb[0].mxu0 %v948
  %v1019 = vpop.f32.mrb[0].mxu0
  %v1020 = vadd.f32 0.0, %v1019
  %v1021 = vpop.f32.mrb[0].mxu0
  %1022 = vdwg.mxu0
  %v1024 = vsel %vm110, %v26, 0
  %v1027 = vsel %vm110, %v58, 0
  %1029 = vmatprep.subr.mxu0 0.0
  %1030 = vmatpush1.xpose.msra.mxu0 %v1027
  %1031 = vmatprep.subr.mxu0 0.0
  %1032 = vmatpush1.xpose.msra.mxu0 0.0
  %1033 = vmatprep.subr.mxu0 0.0
  %1034 = vmatpush1.xpose.msra.mxu0 0.0
  %1035 = vmatprep.subr.mxu0 0.0
  %1036 = vmatpush1.xpose.msra.mxu0 0.0
  %1037 = vmatprep.subr.mxu0 0.0
  %1038 = vmatpush1.xpose.msra.mxu0 0.0
  %1039 = vmatprep.subr.mxu0 0.0
  %1040 = vmatpush1.xpose.msra.mxu0 0.0
  %1041 = vmatprep.subr.mxu0 0.0
  %1042 = vmatpush1.xpose.msra.mxu0 0.0
  %1043 = vmatprep.subr.mxu0 0.0
  %1044 = vmatpush1.xpose.msra.mxu0 0.0
  %1045 = vmatprep.subr.mxu0 0.0
  %1046 = vmatpush1.xpose.msra.mxu0 0.0
  %1047 = vmatprep.subr.mxu0 0.0
  %1048 = vmatpush1.xpose.msra.mxu0 0.0
  %1049 = vmatprep.subr.mxu0 0.0
  %1050 = vmatpush1.xpose.msra.mxu0 0.0
  %1051 = vmatprep.subr.mxu0 0.0
  %1052 = vmatpush1.xpose.msra.mxu0 0.0
  %1053 = vmatprep.subr.mxu0 0.0
  %1054 = vmatpush1.xpose.msra.mxu0 0.0
  %1055 = vmatprep.subr.mxu0 0.0
  %1056 = vmatpush1.xpose.msra.mxu0 0.0
  %1057 = vmatprep.subr.mxu0 0.0
  %1058 = vmatpush1.xpose.msra.mxu0 0.0
  %1059 = vmatprep.subr.mxu0 0.0
  %1060 = vmatpush1.xpose.msra.mxu0 0.0
  %1061 = vmatprep.subr.mxu0 0.0
  %1062 = vmatpush1.xpose.msra.mxu0 0.0
  %1063 = vmatprep.subr.mxu0 0.0
  %1064 = vmatpush1.xpose.msra.mxu0 0.0
  %1065 = vmatprep.subr.mxu0 0.0
  %1066 = vmatpush1.xpose.msra.mxu0 0.0
  %1067 = vmatprep.subr.mxu0 0.0
  %1068 = vmatpush1.xpose.msra.mxu0 0.0
  %1069 = vmatprep.subr.mxu0 0.0
  %1070 = vmatpush1.xpose.msra.mxu0 0.0
  %1071 = vmatprep.subr.mxu0 0.0
  %1072 = vmatpush1.xpose.msra.mxu0 0.0
  %1073 = vmatprep.subr.mxu0 0.0
  %1074 = vmatpush1.xpose.msra.mxu0 0.0
  %1075 = vmatprep.subr.mxu0 0.0
  %1076 = vmatpush1.xpose.msra.mxu0 0.0
  %1077 = vmatprep.subr.mxu0 0.0
  %1078 = vmatpush1.xpose.msra.mxu0 0.0
  %1079 = vmatprep.subr.mxu0 0.0
  %1080 = vmatpush1.xpose.msra.mxu0 0.0
  %1081 = vmatprep.subr.mxu0 0.0
  %1082 = vmatpush1.xpose.msra.mxu0 0.0
  %1083 = vmatprep.subr.mxu0 0.0
  %1084 = vmatpush1.xpose.msra.mxu0 0.0
  %1085 = vmatprep.subr.mxu0 0.0
  %1086 = vmatpush1.xpose.msra.mxu0 0.0
  %1087 = vmatprep.subr.mxu0 0.0
  %1088 = vmatpush1.xpose.msra.mxu0 0.0
  %1089 = vmatprep.subr.mxu0 0.0
  %1090 = vmatpush1.xpose.msra.mxu0 0.0
  %1091 = vmatprep.subr.mxu0 0.0
  %1092 = vmatpush1.xpose.msra.mxu0 0.0
  %1093 = vmatprep.mubr.f32.mxu0 0.0
  %1094 = vmatmul.mubr.f32.gmra.mrb[0].mxu0 %v1024
  %v1095 = vpop.f32.mrb[0].mxu0
  %v1096 = vadd.f32 0.0, %v1095
  %v1097 = vpop.f32.mrb[0].mxu0
  %1098 = vdwg.mxu0
  %v1100 = vsel %vm110, %v27, 0
  %v1103 = vsel %vm110, %v59, 0
  %1105 = vmatprep.subr.mxu0 0.0
  %1106 = vmatpush1.xpose.msra.mxu0 %v1103
  %1107 = vmatprep.subr.mxu0 0.0
  %1108 = vmatpush1.xpose.msra.mxu0 0.0
  %1109 = vmatprep.subr.mxu0 0.0
  %1110 = vmatpush1.xpose.msra.mxu0 0.0
  %1111 = vmatprep.subr.mxu0 0.0
  %1112 = vmatpush1.xpose.msra.mxu0 0.0
  %1113 = vmatprep.subr.mxu0 0.0
  %1114 = vmatpush1.xpose.msra.mxu0 0.0
  %1115 = vmatprep.subr.mxu0 0.0
  %1116 = vmatpush1.xpose.msra.mxu0 0.0
  %1117 = vmatprep.subr.mxu0 0.0
  %1118 = vmatpush1.xpose.msra.mxu0 0.0
  %1119 = vmatprep.subr.mxu0 0.0
  %1120 = vmatpush1.xpose.msra.mxu0 0.0
  %1121 = vmatprep.subr.mxu0 0.0
  %1122 = vmatpush1.xpose.msra.mxu0 0.0
  %1123 = vmatprep.subr.mxu0 0.0
  %1124 = vmatpush1.xpose.msra.mxu0 0.0
  %1125 = vmatprep.subr.mxu0 0.0
  %1126 = vmatpush1.xpose.msra.mxu0 0.0
  %1127 = vmatprep.subr.mxu0 0.0
  %1128 = vmatpush1.xpose.msra.mxu0 0.0
  %1129 = vmatprep.subr.mxu0 0.0
  %1130 = vmatpush1.xpose.msra.mxu0 0.0
  %1131 = vmatprep.subr.mxu0 0.0
  %1132 = vmatpush1.xpose.msra.mxu0 0.0
  %1133 = vmatprep.subr.mxu0 0.0
  %1134 = vmatpush1.xpose.msra.mxu0 0.0
  %1135 = vmatprep.subr.mxu0 0.0
  %1136 = vmatpush1.xpose.msra.mxu0 0.0
  %1137 = vmatprep.subr.mxu0 0.0
  %1138 = vmatpush1.xpose.msra.mxu0 0.0
  %1139 = vmatprep.subr.mxu0 0.0
  %1140 = vmatpush1.xpose.msra.mxu0 0.0
  %1141 = vmatprep.subr.mxu0 0.0
  %1142 = vmatpush1.xpose.msra.mxu0 0.0
  %1143 = vmatprep.subr.mxu0 0.0
  %1144 = vmatpush1.xpose.msra.mxu0 0.0
  %1145 = vmatprep.subr.mxu0 0.0
  %1146 = vmatpush1.xpose.msra.mxu0 0.0
  %1147 = vmatprep.subr.mxu0 0.0
  %1148 = vmatpush1.xpose.msra.mxu0 0.0
  %1149 = vmatprep.subr.mxu0 0.0
  %1150 = vmatpush1.xpose.msra.mxu0 0.0
  %1151 = vmatprep.subr.mxu0 0.0
  %1152 = vmatpush1.xpose.msra.mxu0 0.0
  %1153 = vmatprep.subr.mxu0 0.0
  %1154 = vmatpush1.xpose.msra.mxu0 0.0
  %1155 = vmatprep.subr.mxu0 0.0
  %1156 = vmatpush1.xpose.msra.mxu0 0.0
  %1157 = vmatprep.subr.mxu0 0.0
  %1158 = vmatpush1.xpose.msra.mxu0 0.0
  %1159 = vmatprep.subr.mxu0 0.0
  %1160 = vmatpush1.xpose.msra.mxu0 0.0
  %1161 = vmatprep.subr.mxu0 0.0
  %1162 = vmatpush1.xpose.msra.mxu0 0.0
  %1163 = vmatprep.subr.mxu0 0.0
  %1164 = vmatpush1.xpose.msra.mxu0 0.0
  %1165 = vmatprep.subr.mxu0 0.0
  %1166 = vmatpush1.xpose.msra.mxu0 0.0
  %1167 = vmatprep.subr.mxu0 0.0
  %1168 = vmatpush1.xpose.msra.mxu0 0.0
  %1169 = vmatprep.mubr.f32.mxu0 0.0
  %1170 = vmatmul.mubr.f32.gmra.mrb[0].mxu0 %v1100
  %v1171 = vpop.f32.mrb[0].mxu0
  %v1172 = vadd.f32 0.0, %v1171
  %v1173 = vpop.f32.mrb[0].mxu0
  %1174 = vdwg.mxu0
  %v1176 = vsel %vm110, %v28, 0
  %v1179 = vsel %vm110, %v60, 0
  %1181 = vmatprep.subr.mxu0 0.0
  %1182 = vmatpush1.xpose.msra.mxu0 %v1179
  %1183 = vmatprep.subr.mxu0 0.0
  %1184 = vmatpush1.xpose.msra.mxu0 0.0
  %1185 = vmatprep.subr.mxu0 0.0
  %1186 = vmatpush1.xpose.msra.mxu0 0.0
  %1187 = vmatprep.subr.mxu0 0.0
  %1188 = vmatpush1.xpose.msra.mxu0 0.0
  %1189 = vmatprep.subr.mxu0 0.0
  %1190 = vmatpush1.xpose.msra.mxu0 0.0
  %1191 = vmatprep.subr.mxu0 0.0
  %1192 = vmatpush1.xpose.msra.mxu0 0.0
  %1193 = vmatprep.subr.mxu0 0.0
  %1194 = vmatpush1.xpose.msra.mxu0 0.0
  %1195 = vmatprep.subr.mxu0 0.0
  %1196 = vmatpush1.xpose.msra.mxu0 0.0
  %1197 = vmatprep.subr.mxu0 0.0
  %1198 = vmatpush1.xpose.msra.mxu0 0.0
  %1199 = vmatprep.subr.mxu0 0.0
  %1200 = vmatpush1.xpose.msra.mxu0 0.0
  %1201 = vmatprep.subr.mxu0 0.0
  %1202 = vmatpush1.xpose.msra.mxu0 0.0
  %1203 = vmatprep.subr.mxu0 0.0
  %1204 = vmatpush1.xpose.msra.mxu0 0.0
  %1205 = vmatprep.subr.mxu0 0.0
  %1206 = vmatpush1.xpose.msra.mxu0 0.0
  %1207 = vmatprep.subr.mxu0 0.0
  %1208 = vmatpush1.xpose.msra.mxu0 0.0
  %1209 = vmatprep.subr.mxu0 0.0
  %1210 = vmatpush1.xpose.msra.mxu0 0.0
  %1211 = vmatprep.subr.mxu0 0.0
  %1212 = vmatpush1.xpose.msra.mxu0 0.0
  %1213 = vmatprep.subr.mxu0 0.0
  %1214 = vmatpush1.xpose.msra.mxu0 0.0
  %1215 = vmatprep.subr.mxu0 0.0
  %1216 = vmatpush1.xpose.msra.mxu0 0.0
  %1217 = vmatprep.subr.mxu0 0.0
  %1218 = vmatpush1.xpose.msra.mxu0 0.0
  %1219 = vmatprep.subr.mxu0 0.0
  %1220 = vmatpush1.xpose.msra.mxu0 0.0
  %1221 = vmatprep.subr.mxu0 0.0
  %1222 = vmatpush1.xpose.msra.mxu0 0.0
  %1223 = vmatprep.subr.mxu0 0.0
  %1224 = vmatpush1.xpose.msra.mxu0 0.0
  %1225 = vmatprep.subr.mxu0 0.0
  %1226 = vmatpush1.xpose.msra.mxu0 0.0
  %1227 = vmatprep.subr.mxu0 0.0
  %1228 = vmatpush1.xpose.msra.mxu0 0.0
  %1229 = vmatprep.subr.mxu0 0.0
  %1230 = vmatpush1.xpose.msra.mxu0 0.0
  %1231 = vmatprep.subr.mxu0 0.0
  %1232 = vmatpush1.xpose.msra.mxu0 0.0
  %1233 = vmatprep.subr.mxu0 0.0
  %1234 = vmatpush1.xpose.msra.mxu0 0.0
  %1235 = vmatprep.subr.mxu0 0.0
  %1236 = vmatpush1.xpose.msra.mxu0 0.0
  %1237 = vmatprep.subr.mxu0 0.0
  %1238 = vmatpush1.xpose.msra.mxu0 0.0
  %1239 = vmatprep.subr.mxu0 0.0
  %1240 = vmatpush1.xpose.msra.mxu0 0.0
  %1241 = vmatprep.subr.mxu0 0.0
  %1242 = vmatpush1.xpose.msra.mxu0 0.0
  %1243 = vmatprep.subr.mxu0 0.0
  %1244 = vmatpush1.xpose.msra.mxu0 0.0
  %1245 = vmatprep.mubr.f32.mxu0 0.0
  %1246 = vmatmul.mubr.f32.gmra.mrb[0].mxu0 %v1176
  %v1247 = vpop.f32.mrb[0].mxu0
  %v1248 = vadd.f32 0.0, %v1247
  %v1249 = vpop.f32.mrb[0].mxu0
  %1250 = vdwg.mxu0
  %v1252 = vsel %vm110, %v29, 0
  %v1255 = vsel %vm110, %v61, 0
  %1257 = vmatprep.subr.mxu0 0.0
  %1258 = vmatpush1.xpose.msra.mxu0 %v1255
  %1259 = vmatprep.subr.mxu0 0.0
  %1260 = vmatpush1.xpose.msra.mxu0 0.0
  %1261 = vmatprep.subr.mxu0 0.0
  %1262 = vmatpush1.xpose.msra.mxu0 0.0
  %1263 = vmatprep.subr.mxu0 0.0
  %1264 = vmatpush1.xpose.msra.mxu0 0.0
  %1265 = vmatprep.subr.mxu0 0.0
  %1266 = vmatpush1.xpose.msra.mxu0 0.0
  %1267 = vmatprep.subr.mxu0 0.0
  %1268 = vmatpush1.xpose.msra.mxu0 0.0
  %1269 = vmatprep.subr.mxu0 0.0
  %1270 = vmatpush1.xpose.msra.mxu0 0.0
  %1271 = vmatprep.subr.mxu0 0.0
  %1272 = vmatpush1.xpose.msra.mxu0 0.0
  %1273 = vmatprep.subr.mxu0 0.0
  %1274 = vmatpush1.xpose.msra.mxu0 0.0
  %1275 = vmatprep.subr.mxu0 0.0
  %1276 = vmatpush1.xpose.msra.mxu0 0.0
  %1277 = vmatprep.subr.mxu0 0.0
  %1278 = vmatpush1.xpose.msra.mxu0 0.0
  %1279 = vmatprep.subr.mxu0 0.0
  %1280 = vmatpush1.xpose.msra.mxu0 0.0
  %1281 = vmatprep.subr.mxu0 0.0
  %1282 = vmatpush1.xpose.msra.mxu0 0.0
  %1283 = vmatprep.subr.mxu0 0.0
  %1284 = vmatpush1.xpose.msra.mxu0 0.0
  %1285 = vmatprep.subr.mxu0 0.0
  %1286 = vmatpush1.xpose.msra.mxu0 0.0
  %1287 = vmatprep.subr.mxu0 0.0
  %1288 = vmatpush1.xpose.msra.mxu0 0.0
  %1289 = vmatprep.subr.mxu0 0.0
  %1290 = vmatpush1.xpose.msra.mxu0 0.0
  %1291 = vmatprep.subr.mxu0 0.0
  %1292 = vmatpush1.xpose.msra.mxu0 0.0
  %1293 = vmatprep.subr.mxu0 0.0
  %1294 = vmatpush1.xpose.msra.mxu0 0.0
  %1295 = vmatprep.subr.mxu0 0.0
  %1296 = vmatpush1.xpose.msra.mxu0 0.0
  %1297 = vmatprep.subr.mxu0 0.0
  %1298 = vmatpush1.xpose.msra.mxu0 0.0
  %1299 = vmatprep.subr.mxu0 0.0
  %1300 = vmatpush1.xpose.msra.mxu0 0.0
  %1301 = vmatprep.subr.mxu0 0.0
  %1302 = vmatpush1.xpose.msra.mxu0 0.0
  %1303 = vmatprep.subr.mxu0 0.0
  %1304 = vmatpush1.xpose.msra.mxu0 0.0
  %1305 = vmatprep.subr.mxu0 0.0
  %1306 = vmatpush1.xpose.msra.mxu0 0.0
  %1307 = vmatprep.subr.mxu0 0.0
  %1308 = vmatpush1.xpose.msra.mxu0 0.0
  %1309 = vmatprep.subr.mxu0 0.0
  %1310 = vmatpush1.xpose.msra.mxu0 0.0
  %1311 = vmatprep.subr.mxu0 0.0
  %1312 = vmatpush1.xpose.msra.mxu0 0.0
  %1313 = vmatprep.subr.mxu0 0.0
  %1314 = vmatpush1.xpose.msra.mxu0 0.0
  %1315 = vmatprep.subr.mxu0 0.0
  %1316 = vmatpush1.xpose.msra.mxu0 0.0
  %1317 = vmatprep.subr.mxu0 0.0
  %1318 = vmatpush1.xpose.msra.mxu0 0.0
  %1319 = vmatprep.subr.mxu0 0.0
  %1320 = vmatpush1.xpose.msra.mxu0 0.0
  %1321 = vmatprep.mubr.f32.mxu0 0.0
  %1322 = vmatmul.mubr.f32.gmra.mrb[0].mxu0 %v1252
  %v1323 = vpop.f32.mrb[0].mxu0
  %v1324 = vadd.f32 0.0, %v1323
  %v1325 = vpop.f32.mrb[0].mxu0
  %1326 = vdwg.mxu0
  %v1328 = vsel %vm110, %v30, 0
  %v1331 = vsel %vm110, %v62, 0
  %1333 = vmatprep.subr.mxu0 0.0
  %1334 = vmatpush1.xpose.msra.mxu0 %v1331
  %1335 = vmatprep.subr.mxu0 0.0
  %1336 = vmatpush1.xpose.msra.mxu0 0.0
  %1337 = vmatprep.subr.mxu0 0.0
  %1338 = vmatpush1.xpose.msra.mxu0 0.0
  %1339 = vmatprep.subr.mxu0 0.0
  %1340 = vmatpush1.xpose.msra.mxu0 0.0
  %1341 = vmatprep.subr.mxu0 0.0
  %1342 = vmatpush1.xpose.msra.mxu0 0.0
  %1343 = vmatprep.subr.mxu0 0.0
  %1344 = vmatpush1.xpose.msra.mxu0 0.0
  %1345 = vmatprep.subr.mxu0 0.0
  %1346 = vmatpush1.xpose.msra.mxu0 0.0
  %1347 = vmatprep.subr.mxu0 0.0
  %1348 = vmatpush1.xpose.msra.mxu0 0.0
  %1349 = vmatprep.subr.mxu0 0.0
  %1350 = vmatpush1.xpose.msra.mxu0 0.0
  %1351 = vmatprep.subr.mxu0 0.0
  %1352 = vmatpush1.xpose.msra.mxu0 0.0
  %1353 = vmatprep.subr.mxu0 0.0
  %1354 = vmatpush1.xpose.msra.mxu0 0.0
  %1355 = vmatprep.subr.mxu0 0.0
  %1356 = vmatpush1.xpose.msra.mxu0 0.0
  %1357 = vmatprep.subr.mxu0 0.0
  %1358 = vmatpush1.xpose.msra.mxu0 0.0
  %1359 = vmatprep.subr.mxu0 0.0
  %1360 = vmatpush1.xpose.msra.mxu0 0.0
  %1361 = vmatprep.subr.mxu0 0.0
  %1362 = vmatpush1.xpose.msra.mxu0 0.0
  %1363 = vmatprep.subr.mxu0 0.0
  %1364 = vmatpush1.xpose.msra.mxu0 0.0
  %1365 = vmatprep.subr.mxu0 0.0
  %1366 = vmatpush1.xpose.msra.mxu0 0.0
  %1367 = vmatprep.subr.mxu0 0.0
  %1368 = vmatpush1.xpose.msra.mxu0 0.0
  %1369 = vmatprep.subr.mxu0 0.0
  %1370 = vmatpush1.xpose.msra.mxu0 0.0
  %1371 = vmatprep.subr.mxu0 0.0
  %1372 = vmatpush1.xpose.msra.mxu0 0.0
  %1373 = vmatprep.subr.mxu0 0.0
  %1374 = vmatpush1.xpose.msra.mxu0 0.0
  %1375 = vmatprep.subr.mxu0 0.0
  %1376 = vmatpush1.xpose.msra.mxu0 0.0
  %1377 = vmatprep.subr.mxu0 0.0
  %1378 = vmatpush1.xpose.msra.mxu0 0.0
  %1379 = vmatprep.subr.mxu0 0.0
  %1380 = vmatpush1.xpose.msra.mxu0 0.0
  %1381 = vmatprep.subr.mxu0 0.0
  %1382 = vmatpush1.xpose.msra.mxu0 0.0
  %1383 = vmatprep.subr.mxu0 0.0
  %1384 = vmatpush1.xpose.msra.mxu0 0.0
  %1385 = vmatprep.subr.mxu0 0.0
  %1386 = vmatpush1.xpose.msra.mxu0 0.0
  %1387 = vmatprep.subr.mxu0 0.0
  %1388 = vmatpush1.xpose.msra.mxu0 0.0
  %1389 = vmatprep.subr.mxu0 0.0
  %1390 = vmatpush1.xpose.msra.mxu0 0.0
  %1391 = vmatprep.subr.mxu0 0.0
  %1392 = vmatpush1.xpose.msra.mxu0 0.0
  %1393 = vmatprep.subr.mxu0 0.0
  %1394 = vmatpush1.xpose.msra.mxu0 0.0
  %1395 = vmatprep.subr.mxu0 0.0
  %1396 = vmatpush1.xpose.msra.mxu0 0.0
  %1397 = vmatprep.mubr.f32.mxu0 0.0
  %1398 = vmatmul.mubr.f32.gmra.mrb[0].mxu0 %v1328
  %v1399 = vpop.f32.mrb[0].mxu0
  %v1400 = vadd.f32 0.0, %v1399
  %v1401 = vpop.f32.mrb[0].mxu0
  %1402 = vdwg.mxu0
  %v1404 = vsel %vm110, %v31, 0
  %v1407 = vsel %vm110, %v63, 0
  %1409 = vmatprep.subr.mxu0 0.0
  %1410 = vmatpush1.xpose.msra.mxu0 %v1407
  %1411 = vmatprep.subr.mxu0 0.0
  %1412 = vmatpush1.xpose.msra.mxu0 0.0
  %1413 = vmatprep.subr.mxu0 0.0
  %1414 = vmatpush1.xpose.msra.mxu0 0.0
  %1415 = vmatprep.subr.mxu0 0.0
  %1416 = vmatpush1.xpose.msra.mxu0 0.0
  %1417 = vmatprep.subr.mxu0 0.0
  %1418 = vmatpush1.xpose.msra.mxu0 0.0
  %1419 = vmatprep.subr.mxu0 0.0
  %1420 = vmatpush1.xpose.msra.mxu0 0.0
  %1421 = vmatprep.subr.mxu0 0.0
  %1422 = vmatpush1.xpose.msra.mxu0 0.0
  %1423 = vmatprep.subr.mxu0 0.0
  %1424 = vmatpush1.xpose.msra.mxu0 0.0
  %1425 = vmatprep.subr.mxu0 0.0
  %1426 = vmatpush1.xpose.msra.mxu0 0.0
  %1427 = vmatprep.subr.mxu0 0.0
  %1428 = vmatpush1.xpose.msra.mxu0 0.0
  %1429 = vmatprep.subr.mxu0 0.0
  %1430 = vmatpush1.xpose.msra.mxu0 0.0
  %1431 = vmatprep.subr.mxu0 0.0
  %1432 = vmatpush1.xpose.msra.mxu0 0.0
  %1433 = vmatprep.subr.mxu0 0.0
  %1434 = vmatpush1.xpose.msra.mxu0 0.0
  %1435 = vmatprep.subr.mxu0 0.0
  %1436 = vmatpush1.xpose.msra.mxu0 0.0
  %1437 = vmatprep.subr.mxu0 0.0
  %1438 = vmatpush1.xpose.msra.mxu0 0.0
  %1439 = vmatprep.subr.mxu0 0.0
  %1440 = vmatpush1.xpose.msra.mxu0 0.0
  %1441 = vmatprep.subr.mxu0 0.0
  %1442 = vmatpush1.xpose.msra.mxu0 0.0
  %1443 = vmatprep.subr.mxu0 0.0
  %1444 = vmatpush1.xpose.msra.mxu0 0.0
  %1445 = vmatprep.subr.mxu0 0.0
  %1446 = vmatpush1.xpose.msra.mxu0 0.0
  %1447 = vmatprep.subr.mxu0 0.0
  %1448 = vmatpush1.xpose.msra.mxu0 0.0
  %1449 = vmatprep.subr.mxu0 0.0
  %1450 = vmatpush1.xpose.msra.mxu0 0.0
  %1451 = vmatprep.subr.mxu0 0.0
  %1452 = vmatpush1.xpose.msra.mxu0 0.0
  %1453 = vmatprep.subr.mxu0 0.0
  %1454 = vmatpush1.xpose.msra.mxu0 0.0
  %1455 = vmatprep.subr.mxu0 0.0
  %1456 = vmatpush1.xpose.msra.mxu0 0.0
  %1457 = vmatprep.subr.mxu0 0.0
  %1458 = vmatpush1.xpose.msra.mxu0 0.0
  %1459 = vmatprep.subr.mxu0 0.0
  %1460 = vmatpush1.xpose.msra.mxu0 0.0
  %1461 = vmatprep.subr.mxu0 0.0
  %1462 = vmatpush1.xpose.msra.mxu0 0.0
  %1463 = vmatprep.subr.mxu0 0.0
  %1464 = vmatpush1.xpose.msra.mxu0 0.0
  %1465 = vmatprep.subr.mxu0 0.0
  %1466 = vmatpush1.xpose.msra.mxu0 0.0
  %1467 = vmatprep.subr.mxu0 0.0
  %1468 = vmatpush1.xpose.msra.mxu0 0.0
  %1469 = vmatprep.subr.mxu0 0.0
  %1470 = vmatpush1.xpose.msra.mxu0 0.0
  %1471 = vmatprep.subr.mxu0 0.0
  %1472 = vmatpush1.xpose.msra.mxu0 0.0
  %1473 = vmatprep.mubr.f32.mxu0 0.0
  %1474 = vmatmul.mubr.f32.gmra.mrb[0].mxu0 %v1404
  %v1475 = vpop.f32.mrb[0].mxu0
  %v1476 = vadd.f32 0.0, %v1475
  %v1477 = vpop.f32.mrb[0].mxu0
  %1478 = vdwg.mxu0
  %v1480 = vsel %vm110, %v32, 0
  %v1483 = vsel %vm110, %v64, 0
  %1485 = vmatprep.subr.mxu0 0.0
  %1486 = vmatpush1.xpose.msra.mxu0 %v1483
  %1487 = vmatprep.subr.mxu0 0.0
  %1488 = vmatpush1.xpose.msra.mxu0 0.0
  %1489 = vmatprep.subr.mxu0 0.0
  %1490 = vmatpush1.xpose.msra.mxu0 0.0
  %1491 = vmatprep.subr.mxu0 0.0
  %1492 = vmatpush1.xpose.msra.mxu0 0.0
  %1493 = vmatprep.subr.mxu0 0.0
  %1494 = vmatpush1.xpose.msra.mxu0 0.0
  %1495 = vmatprep.subr.mxu0 0.0
  %1496 = vmatpush1.xpose.msra.mxu0 0.0
  %1497 = vmatprep.subr.mxu0 0.0
  %1498 = vmatpush1.xpose.msra.mxu0 0.0
  %1499 = vmatprep.subr.mxu0 0.0
  %1500 = vmatpush1.xpose.msra.mxu0 0.0
  %1501 = vmatprep.subr.mxu0 0.0
  %1502 = vmatpush1.xpose.msra.mxu0 0.0
  %1503 = vmatprep.subr.mxu0 0.0
  %1504 = vmatpush1.xpose.msra.mxu0 0.0
  %1505 = vmatprep.subr.mxu0 0.0
  %1506 = vmatpush1.xpose.msra.mxu0 0.0
  %1507 = vmatprep.subr.mxu0 0.0
  %1508 = vmatpush1.xpose.msra.mxu0 0.0
  %1509 = vmatprep.subr.mxu0 0.0
  %1510 = vmatpush1.xpose.msra.mxu0 0.0
  %1511 = vmatprep.subr.mxu0 0.0
  %1512 = vmatpush1.xpose.msra.mxu0 0.0
  %1513 = vmatprep.subr.mxu0 0.0
  %1514 = vmatpush1.xpose.msra.mxu0 0.0
  %1515 = vmatprep.subr.mxu0 0.0
  %1516 = vmatpush1.xpose.msra.mxu0 0.0
  %1517 = vmatprep.subr.mxu0 0.0
  %1518 = vmatpush1.xpose.msra.mxu0 0.0
  %1519 = vmatprep.subr.mxu0 0.0
  %1520 = vmatpush1.xpose.msra.mxu0 0.0
  %1521 = vmatprep.subr.mxu0 0.0
  %1522 = vmatpush1.xpose.msra.mxu0 0.0
  %1523 = vmatprep.subr.mxu0 0.0
  %1524 = vmatpush1.xpose.msra.mxu0 0.0
  %1525 = vmatprep.subr.mxu0 0.0
  %1526 = vmatpush1.xpose.msra.mxu0 0.0
  %1527 = vmatprep.subr.mxu0 0.0
  %1528 = vmatpush1.xpose.msra.mxu0 0.0
  %1529 = vmatprep.subr.mxu0 0.0
  %1530 = vmatpush1.xpose.msra.mxu0 0.0
  %1531 = vmatprep.subr.mxu0 0.0
  %1532 = vmatpush1.xpose.msra.mxu0 0.0
  %1533 = vmatprep.subr.mxu0 0.0
  %1534 = vmatpush1.xpose.msra.mxu0 0.0
  %1535 = vmatprep.subr.mxu0 0.0
  %1536 = vmatpush1.xpose.msra.mxu0 0.0
  %1537 = vmatprep.subr.mxu0 0.0
  %1538 = vmatpush1.xpose.msra.mxu0 0.0
  %1539 = vmatprep.subr.mxu0 0.0
  %1540 = vmatpush1.xpose.msra.mxu0 0.0
  %1541 = vmatprep.subr.mxu0 0.0
  %1542 = vmatpush1.xpose.msra.mxu0 0.0
  %1543 = vmatprep.subr.mxu0 0.0
  %1544 = vmatpush1.xpose.msra.mxu0 0.0
  %1545 = vmatprep.subr.mxu0 0.0
  %1546 = vmatpush1.xpose.msra.mxu0 0.0
  %1547 = vmatprep.subr.mxu0 0.0
  %1548 = vmatpush1.xpose.msra.mxu0 0.0
  %1549 = vmatprep.mubr.f32.mxu0 0.0
  %1550 = vmatmul.mubr.f32.gmra.mrb[0].mxu0 %v1480
  %v1551 = vpop.f32.mrb[0].mxu0
  %v1552 = vadd.f32 0.0, %v1551
  %v1553 = vpop.f32.mrb[0].mxu0
  %1554 = vdwg.mxu0
  %v1556 = vsel %vm110, %v33, 0
  %v1559 = vsel %vm110, %v65, 0
  %1561 = vmatprep.subr.mxu0 0.0
  %1562 = vmatpush1.xpose.msra.mxu0 %v1559
  %1563 = vmatprep.subr.mxu0 0.0
  %1564 = vmatpush1.xpose.msra.mxu0 0.0
  %1565 = vmatprep.subr.mxu0 0.0
  %1566 = vmatpush1.xpose.msra.mxu0 0.0
  %1567 = vmatprep.subr.mxu0 0.0
  %1568 = vmatpush1.xpose.msra.mxu0 0.0
  %1569 = vmatprep.subr.mxu0 0.0
  %1570 = vmatpush1.xpose.msra.mxu0 0.0
  %1571 = vmatprep.subr.mxu0 0.0
  %1572 = vmatpush1.xpose.msra.mxu0 0.0
  %1573 = vmatprep.subr.mxu0 0.0
  %1574 = vmatpush1.xpose.msra.mxu0 0.0
  %1575 = vmatprep.subr.mxu0 0.0
  %1576 = vmatpush1.xpose.msra.mxu0 0.0
  %1577 = vmatprep.subr.mxu0 0.0
  %1578 = vmatpush1.xpose.msra.mxu0 0.0
  %1579 = vmatprep.subr.mxu0 0.0
  %1580 = vmatpush1.xpose.msra.mxu0 0.0
  %1581 = vmatprep.subr.mxu0 0.0
  %1582 = vmatpush1.xpose.msra.mxu0 0.0
  %1583 = vmatprep.subr.mxu0 0.0
  %1584 = vmatpush1.xpose.msra.mxu0 0.0
  %1585 = vmatprep.subr.mxu0 0.0
  %1586 = vmatpush1.xpose.msra.mxu0 0.0
  %1587 = vmatprep.subr.mxu0 0.0
  %1588 = vmatpush1.xpose.msra.mxu0 0.0
  %1589 = vmatprep.subr.mxu0 0.0
  %1590 = vmatpush1.xpose.msra.mxu0 0.0
  %1591 = vmatprep.subr.mxu0 0.0
  %1592 = vmatpush1.xpose.msra.mxu0 0.0
  %1593 = vmatprep.subr.mxu0 0.0
  %1594 = vmatpush1.xpose.msra.mxu0 0.0
  %1595 = vmatprep.subr.mxu0 0.0
  %1596 = vmatpush1.xpose.msra.mxu0 0.0
  %1597 = vmatprep.subr.mxu0 0.0
  %1598 = vmatpush1.xpose.msra.mxu0 0.0
  %1599 = vmatprep.subr.mxu0 0.0
  %1600 = vmatpush1.xpose.msra.mxu0 0.0
  %1601 = vmatprep.subr.mxu0 0.0
  %1602 = vmatpush1.xpose.msra.mxu0 0.0
  %1603 = vmatprep.subr.mxu0 0.0
  %1604 = vmatpush1.xpose.msra.mxu0 0.0
  %1605 = vmatprep.subr.mxu0 0.0
  %1606 = vmatpush1.xpose.msra.mxu0 0.0
  %1607 = vmatprep.subr.mxu0 0.0
  %1608 = vmatpush1.xpose.msra.mxu0 0.0
  %1609 = vmatprep.subr.mxu0 0.0
  %1610 = vmatpush1.xpose.msra.mxu0 0.0
  %1611 = vmatprep.subr.mxu0 0.0
  %1612 = vmatpush1.xpose.msra.mxu0 0.0
  %1613 = vmatprep.subr.mxu0 0.0
  %1614 = vmatpush1.xpose.msra.mxu0 0.0
  %1615 = vmatprep.subr.mxu0 0.0
  %1616 = vmatpush1.xpose.msra.mxu0 0.0
  %1617 = vmatprep.subr.mxu0 0.0
  %1618 = vmatpush1.xpose.msra.mxu0 0.0
  %1619 = vmatprep.subr.mxu0 0.0
  %1620 = vmatpush1.xpose.msra.mxu0 0.0
  %1621 = vmatprep.subr.mxu0 0.0
  %1622 = vmatpush1.xpose.msra.mxu0 0.0
  %1623 = vmatprep.subr.mxu0 0.0
  %1624 = vmatpush1.xpose.msra.mxu0 0.0
  %1625 = vmatprep.mubr.f32.mxu0 0.0
  %1626 = vmatmul.mubr.f32.gmra.mrb[0].mxu0 %v1556
  %v1627 = vpop.f32.mrb[0].mxu0
  %v1628 = vadd.f32 0.0, %v1627
  %v1629 = vpop.f32.mrb[0].mxu0
  %1630 = vdwg.mxu0
  %v1632 = vsel %vm110, %v34, 0
  %v1635 = vsel %vm110, %v66, 0
  %1637 = vmatprep.subr.mxu0 0.0
  %1638 = vmatpush1.xpose.msra.mxu0 %v1635
  %1639 = vmatprep.subr.mxu0 0.0
  %1640 = vmatpush1.xpose.msra.mxu0 0.0
  %1641 = vmatprep.subr.mxu0 0.0
  %1642 = vmatpush1.xpose.msra.mxu0 0.0
  %1643 = vmatprep.subr.mxu0 0.0
  %1644 = vmatpush1.xpose.msra.mxu0 0.0
  %1645 = vmatprep.subr.mxu0 0.0
  %1646 = vmatpush1.xpose.msra.mxu0 0.0
  %1647 = vmatprep.subr.mxu0 0.0
  %1648 = vmatpush1.xpose.msra.mxu0 0.0
  %1649 = vmatprep.subr.mxu0 0.0
  %1650 = vmatpush1.xpose.msra.mxu0 0.0
  %1651 = vmatprep.subr.mxu0 0.0
  %1652 = vmatpush1.xpose.msra.mxu0 0.0
  %1653 = vmatprep.subr.mxu0 0.0
  %1654 = vmatpush1.xpose.msra.mxu0 0.0
  %1655 = vmatprep.subr.mxu0 0.0
  %1656 = vmatpush1.xpose.msra.mxu0 0.0
  %1657 = vmatprep.subr.mxu0 0.0
  %1658 = vmatpush1.xpose.msra.mxu0 0.0
  %1659 = vmatprep.subr.mxu0 0.0
  %1660 = vmatpush1.xpose.msra.mxu0 0.0
  %1661 = vmatprep.subr.mxu0 0.0
  %1662 = vmatpush1.xpose.msra.mxu0 0.0
  %1663 = vmatprep.subr.mxu0 0.0
  %1664 = vmatpush1.xpose.msra.mxu0 0.0
  %1665 = vmatprep.subr.mxu0 0.0
  %1666 = vmatpush1.xpose.msra.mxu0 0.0
  %1667 = vmatprep.subr.mxu0 0.0
  %1668 = vmatpush1.xpose.msra.mxu0 0.0
  %1669 = vmatprep.subr.mxu0 0.0
  %1670 = vmatpush1.xpose.msra.mxu0 0.0
  %1671 = vmatprep.subr.mxu0 0.0
  %1672 = vmatpush1.xpose.msra.mxu0 0.0
  %1673 = vmatprep.subr.mxu0 0.0
  %1674 = vmatpush1.xpose.msra.mxu0 0.0
  %1675 = vmatprep.subr.mxu0 0.0
  %1676 = vmatpush1.xpose.msra.mxu0 0.0
  %1677 = vmatprep.subr.mxu0 0.0
  %1678 = vmatpush1.xpose.msra.mxu0 0.0
  %1679 = vmatprep.subr.mxu0 0.0
  %1680 = vmatpush1.xpose.msra.mxu0 0.0
  %1681 = vmatprep.subr.mxu0 0.0
  %1682 = vmatpush1.xpose.msra.mxu0 0.0
  %1683 = vmatprep.subr.mxu0 0.0
  %1684 = vmatpush1.xpose.msra.mxu0 0.0
  %1685 = vmatprep.subr.mxu0 0.0
  %1686 = vmatpush1.xpose.msra.mxu0 0.0
  %1687 = vmatprep.subr.mxu0 0.0
  %1688 = vmatpush1.xpose.msra.mxu0 0.0
  %1689 = vmatprep.subr.mxu0 0.0
  %1690 = vmatpush1.xpose.msra.mxu0 0.0
  %1691 = vmatprep.subr.mxu0 0.0
  %1692 = vmatpush1.xpose.msra.mxu0 0.0
  %1693 = vmatprep.subr.mxu0 0.0
  %1694 = vmatpush1.xpose.msra.mxu0 0.0
  %1695 = vmatprep.subr.mxu0 0.0
  %1696 = vmatpush1.xpose.msra.mxu0 0.0
  %1697 = vmatprep.subr.mxu0 0.0
  %1698 = vmatpush1.xpose.msra.mxu0 0.0
  %1699 = vmatprep.subr.mxu0 0.0
  %1700 = vmatpush1.xpose.msra.mxu0 0.0
  %1701 = vmatprep.mubr.f32.mxu0 0.0
  %1702 = vmatmul.mubr.f32.gmra.mrb[0].mxu0 %v1632
  %v1703 = vpop.f32.mrb[0].mxu0
  %v1704 = vadd.f32 0.0, %v1703
  %v1705 = vpop.f32.mrb[0].mxu0
  %1706 = vdwg.mxu0
  %v1708 = vsel %vm110, %v35, 0
  %v1711 = vsel %vm110, %v67, 0
  %1713 = vmatprep.subr.mxu0 0.0
  %1714 = vmatpush1.xpose.msra.mxu0 %v1711
  %1715 = vmatprep.subr.mxu0 0.0
  %1716 = vmatpush1.xpose.msra.mxu0 0.0
  %1717 = vmatprep.subr.mxu0 0.0
  %1718 = vmatpush1.xpose.msra.mxu0 0.0
  %1719 = vmatprep.subr.mxu0 0.0
  %1720 = vmatpush1.xpose.msra.mxu0 0.0
  %1721 = vmatprep.subr.mxu0 0.0
  %1722 = vmatpush1.xpose.msra.mxu0 0.0
  %1723 = vmatprep.subr.mxu0 0.0
  %1724 = vmatpush1.xpose.msra.mxu0 0.0
  %1725 = vmatprep.subr.mxu0 0.0
  %1726 = vmatpush1.xpose.msra.mxu0 0.0
  %1727 = vmatprep.subr.mxu0 0.0
  %1728 = vmatpush1.xpose.msra.mxu0 0.0
  %1729 = vmatprep.subr.mxu0 0.0
  %1730 = vmatpush1.xpose.msra.mxu0 0.0
  %1731 = vmatprep.subr.mxu0 0.0
  %1732 = vmatpush1.xpose.msra.mxu0 0.0
  %1733 = vmatprep.subr.mxu0 0.0
  %1734 = vmatpush1.xpose.msra.mxu0 0.0
  %1735 = vmatprep.subr.mxu0 0.0
  %1736 = vmatpush1.xpose.msra.mxu0 0.0
  %1737 = vmatprep.subr.mxu0 0.0
  %1738 = vmatpush1.xpose.msra.mxu0 0.0
  %1739 = vmatprep.subr.mxu0 0.0
  %1740 = vmatpush1.xpose.msra.mxu0 0.0
  %1741 = vmatprep.subr.mxu0 0.0
  %1742 = vmatpush1.xpose.msra.mxu0 0.0
  %1743 = vmatprep.subr.mxu0 0.0
  %1744 = vmatpush1.xpose.msra.mxu0 0.0
  %1745 = vmatprep.subr.mxu0 0.0
  %1746 = vmatpush1.xpose.msra.mxu0 0.0
  %1747 = vmatprep.subr.mxu0 0.0
  %1748 = vmatpush1.xpose.msra.mxu0 0.0
  %1749 = vmatprep.subr.mxu0 0.0
  %1750 = vmatpush1.xpose.msra.mxu0 0.0
  %1751 = vmatprep.subr.mxu0 0.0
  %1752 = vmatpush1.xpose.msra.mxu0 0.0
  %1753 = vmatprep.subr.mxu0 0.0
  %1754 = vmatpush1.xpose.msra.mxu0 0.0
  %1755 = vmatprep.subr.mxu0 0.0
  %1756 = vmatpush1.xpose.msra.mxu0 0.0
  %1757 = vmatprep.subr.mxu0 0.0
  %1758 = vmatpush1.xpose.msra.mxu0 0.0
  %1759 = vmatprep.subr.mxu0 0.0
  %1760 = vmatpush1.xpose.msra.mxu0 0.0
  %1761 = vmatprep.subr.mxu0 0.0
  %1762 = vmatpush1.xpose.msra.mxu0 0.0
  %1763 = vmatprep.subr.mxu0 0.0
  %1764 = vmatpush1.xpose.msra.mxu0 0.0
  %1765 = vmatprep.subr.mxu0 0.0
  %1766 = vmatpush1.xpose.msra.mxu0 0.0
  %1767 = vmatprep.subr.mxu0 0.0
  %1768 = vmatpush1.xpose.msra.mxu0 0.0
  %1769 = vmatprep.subr.mxu0 0.0
  %1770 = vmatpush1.xpose.msra.mxu0 0.0
  %1771 = vmatprep.subr.mxu0 0.0
  %1772 = vmatpush1.xpose.msra.mxu0 0.0
  %1773 = vmatprep.subr.mxu0 0.0
  %1774 = vmatpush1.xpose.msra.mxu0 0.0
  %1775 = vmatprep.subr.mxu0 0.0
  %1776 = vmatpush1.xpose.msra.mxu0 0.0
  %1777 = vmatprep.mubr.f32.mxu0 0.0
  %1778 = vmatmul.mubr.f32.gmra.mrb[0].mxu0 %v1708
  %v1779 = vpop.f32.mrb[0].mxu0
  %v1780 = vadd.f32 0.0, %v1779
  %v1781 = vpop.f32.mrb[0].mxu0
  %1782 = vdwg.mxu0
  %v1784 = vsel %vm110, %v36, 0
  %v1787 = vsel %vm110, %v68, 0
  %1789 = vmatprep.subr.mxu0 0.0
  %1790 = vmatpush1.xpose.msra.mxu0 %v1787
  %1791 = vmatprep.subr.mxu0 0.0
  %1792 = vmatpush1.xpose.msra.mxu0 0.0
  %1793 = vmatprep.subr.mxu0 0.0
  %1794 = vmatpush1.xpose.msra.mxu0 0.0
  %1795 = vmatprep.subr.mxu0 0.0
  %1796 = vmatpush1.xpose.msra.mxu0 0.0
  %1797 = vmatprep.subr.mxu0 0.0
  %1798 = vmatpush1.xpose.msra.mxu0 0.0
  %1799 = vmatprep.subr.mxu0 0.0
  %1800 = vmatpush1.xpose.msra.mxu0 0.0
  %1801 = vmatprep.subr.mxu0 0.0
  %1802 = vmatpush1.xpose.msra.mxu0 0.0
  %1803 = vmatprep.subr.mxu0 0.0
  %1804 = vmatpush1.xpose.msra.mxu0 0.0
  %1805 = vmatprep.subr.mxu0 0.0
  %1806 = vmatpush1.xpose.msra.mxu0 0.0
  %1807 = vmatprep.subr.mxu0 0.0
  %1808 = vmatpush1.xpose.msra.mxu0 0.0
  %1809 = vmatprep.subr.mxu0 0.0
  %1810 = vmatpush1.xpose.msra.mxu0 0.0
  %1811 = vmatprep.subr.mxu0 0.0
  %1812 = vmatpush1.xpose.msra.mxu0 0.0
  %1813 = vmatprep.subr.mxu0 0.0
  %1814 = vmatpush1.xpose.msra.mxu0 0.0
  %1815 = vmatprep.subr.mxu0 0.0
  %1816 = vmatpush1.xpose.msra.mxu0 0.0
  %1817 = vmatprep.subr.mxu0 0.0
  %1818 = vmatpush1.xpose.msra.mxu0 0.0
  %1819 = vmatprep.subr.mxu0 0.0
  %1820 = vmatpush1.xpose.msra.mxu0 0.0
  %1821 = vmatprep.subr.mxu0 0.0
  %1822 = vmatpush1.xpose.msra.mxu0 0.0
  %1823 = vmatprep.subr.mxu0 0.0
  %1824 = vmatpush1.xpose.msra.mxu0 0.0
  %1825 = vmatprep.subr.mxu0 0.0
  %1826 = vmatpush1.xpose.msra.mxu0 0.0
  %1827 = vmatprep.subr.mxu0 0.0
  %1828 = vmatpush1.xpose.msra.mxu0 0.0
  %1829 = vmatprep.subr.mxu0 0.0
  %1830 = vmatpush1.xpose.msra.mxu0 0.0
  %1831 = vmatprep.subr.mxu0 0.0
  %1832 = vmatpush1.xpose.msra.mxu0 0.0
  %1833 = vmatprep.subr.mxu0 0.0
  %1834 = vmatpush1.xpose.msra.mxu0 0.0
  %1835 = vmatprep.subr.mxu0 0.0
  %1836 = vmatpush1.xpose.msra.mxu0 0.0
  %1837 = vmatprep.subr.mxu0 0.0
  %1838 = vmatpush1.xpose.msra.mxu0 0.0
  %1839 = vmatprep.subr.mxu0 0.0
  %1840 = vmatpush1.xpose.msra.mxu0 0.0
  %1841 = vmatprep.subr.mxu0 0.0
  %1842 = vmatpush1.xpose.msra.mxu0 0.0
  %1843 = vmatprep.subr.mxu0 0.0
  %1844 = vmatpush1.xpose.msra.mxu0 0.0
  %1845 = vmatprep.subr.mxu0 0.0
  %1846 = vmatpush1.xpose.msra.mxu0 0.0
  %1847 = vmatprep.subr.mxu0 0.0
  %1848 = vmatpush1.xpose.msra.mxu0 0.0
  %1849 = vmatprep.subr.mxu0 0.0
  %1850 = vmatpush1.xpose.msra.mxu0 0.0
  %1851 = vmatprep.subr.mxu0 0.0
  %1852 = vmatpush1.xpose.msra.mxu0 0.0
  %1853 = vmatprep.mubr.f32.mxu0 0.0
  %1854 = vmatmul.mubr.f32.gmra.mrb[0].mxu0 %v1784
  %v1855 = vpop.f32.mrb[0].mxu0
  %v1856 = vadd.f32 0.0, %v1855
  %v1857 = vpop.f32.mrb[0].mxu0
  %1858 = vdwg.mxu0
  %v1860 = vsel %vm110, %v37, 0
  %v1863 = vsel %vm110, %v69, 0
  %1865 = vmatprep.subr.mxu0 0.0
  %1866 = vmatpush1.xpose.msra.mxu0 %v1863
  %1867 = vmatprep.subr.mxu0 0.0
  %1868 = vmatpush1.xpose.msra.mxu0 0.0
  %1869 = vmatprep.subr.mxu0 0.0
  %1870 = vmatpush1.xpose.msra.mxu0 0.0
  %1871 = vmatprep.subr.mxu0 0.0
  %1872 = vmatpush1.xpose.msra.mxu0 0.0
  %1873 = vmatprep.subr.mxu0 0.0
  %1874 = vmatpush1.xpose.msra.mxu0 0.0
  %1875 = vmatprep.subr.mxu0 0.0
  %1876 = vmatpush1.xpose.msra.mxu0 0.0
  %1877 = vmatprep.subr.mxu0 0.0
  %1878 = vmatpush1.xpose.msra.mxu0 0.0
  %1879 = vmatprep.subr.mxu0 0.0
  %1880 = vmatpush1.xpose.msra.mxu0 0.0
  %1881 = vmatprep.subr.mxu0 0.0
  %1882 = vmatpush1.xpose.msra.mxu0 0.0
  %1883 = vmatprep.subr.mxu0 0.0
  %1884 = vmatpush1.xpose.msra.mxu0 0.0
  %1885 = vmatprep.subr.mxu0 0.0
  %1886 = vmatpush1.xpose.msra.mxu0 0.0
  %1887 = vmatprep.subr.mxu0 0.0
  %1888 = vmatpush1.xpose.msra.mxu0 0.0
  %1889 = vmatprep.subr.mxu0 0.0
  %1890 = vmatpush1.xpose.msra.mxu0 0.0
  %1891 = vmatprep.subr.mxu0 0.0
  %1892 = vmatpush1.xpose.msra.mxu0 0.0
  %1893 = vmatprep.subr.mxu0 0.0
  %1894 = vmatpush1.xpose.msra.mxu0 0.0
  %1895 = vmatprep.subr.mxu0 0.0
  %1896 = vmatpush1.xpose.msra.mxu0 0.0
  %1897 = vmatprep.subr.mxu0 0.0
  %1898 = vmatpush1.xpose.msra.mxu0 0.0
  %1899 = vmatprep.subr.mxu0 0.0
  %1900 = vmatpush1.xpose.msra.mxu0 0.0
  %1901 = vmatprep.subr.mxu0 0.0
  %1902 = vmatpush1.xpose.msra.mxu0 0.0
  %1903 = vmatprep.subr.mxu0 0.0
  %1904 = vmatpush1.xpose.msra.mxu0 0.0
  %1905 = vmatprep.subr.mxu0 0.0
  %1906 = vmatpush1.xpose.msra.mxu0 0.0
  %1907 = vmatprep.subr.mxu0 0.0
  %1908 = vmatpush1.xpose.msra.mxu0 0.0
  %1909 = vmatprep.subr.mxu0 0.0
  %1910 = vmatpush1.xpose.msra.mxu0 0.0
  %1911 = vmatprep.subr.mxu0 0.0
  %1912 = vmatpush1.xpose.msra.mxu0 0.0
  %1913 = vmatprep.subr.mxu0 0.0
  %1914 = vmatpush1.xpose.msra.mxu0 0.0
  %1915 = vmatprep.subr.mxu0 0.0
  %1916 = vmatpush1.xpose.msra.mxu0 0.0
  %1917 = vmatprep.subr.mxu0 0.0
  %1918 = vmatpush1.xpose.msra.mxu0 0.0
  %1919 = vmatprep.subr.mxu0 0.0
  %1920 = vmatpush1.xpose.msra.mxu0 0.0
  %1921 = vmatprep.subr.mxu0 0.0
  %1922 = vmatpush1.xpose.msra.mxu0 0.0
  %1923 = vmatprep.subr.mxu0 0.0
  %1924 = vmatpush1.xpose.msra.mxu0 0.0
  %1925 = vmatprep.subr.mxu0 0.0
  %1926 = vmatpush1.xpose.msra.mxu0 0.0
  %1927 = vmatprep.subr.mxu0 0.0
  %1928 = vmatpush1.xpose.msra.mxu0 0.0
  %1929 = vmatprep.mubr.f32.mxu0 0.0
  %1930 = vmatmul.mubr.f32.gmra.mrb[0].mxu0 %v1860
  %v1931 = vpop.f32.mrb[0].mxu0
  %v1932 = vadd.f32 0.0, %v1931
  %v1933 = vpop.f32.mrb[0].mxu0
  %1934 = vdwg.mxu0
  %v1936 = vsel %vm110, %v38, 0
  %v1939 = vsel %vm110, %v70, 0
  %1941 = vmatprep.subr.mxu0 0.0
  %1942 = vmatpush1.xpose.msra.mxu0 %v1939
  %1943 = vmatprep.subr.mxu0 0.0
  %1944 = vmatpush1.xpose.msra.mxu0 0.0
  %1945 = vmatprep.subr.mxu0 0.0
  %1946 = vmatpush1.xpose.msra.mxu0 0.0
  %1947 = vmatprep.subr.mxu0 0.0
  %1948 = vmatpush1.xpose.msra.mxu0 0.0
  %1949 = vmatprep.subr.mxu0 0.0
  %1950 = vmatpush1.xpose.msra.mxu0 0.0
  %1951 = vmatprep.subr.mxu0 0.0
  %1952 = vmatpush1.xpose.msra.mxu0 0.0
  %1953 = vmatprep.subr.mxu0 0.0
  %1954 = vmatpush1.xpose.msra.mxu0 0.0
  %1955 = vmatprep.subr.mxu0 0.0
  %1956 = vmatpush1.xpose.msra.mxu0 0.0
  %1957 = vmatprep.subr.mxu0 0.0
  %1958 = vmatpush1.xpose.msra.mxu0 0.0
  %1959 = vmatprep.subr.mxu0 0.0
  %1960 = vmatpush1.xpose.msra.mxu0 0.0
  %1961 = vmatprep.subr.mxu0 0.0
  %1962 = vmatpush1.xpose.msra.mxu0 0.0
  %1963 = vmatprep.subr.mxu0 0.0
  %1964 = vmatpush1.xpose.msra.mxu0 0.0
  %1965 = vmatprep.subr.mxu0 0.0
  %1966 = vmatpush1.xpose.msra.mxu0 0.0
  %1967 = vmatprep.subr.mxu0 0.0
  %1968 = vmatpush1.xpose.msra.mxu0 0.0
  %1969 = vmatprep.subr.mxu0 0.0
  %1970 = vmatpush1.xpose.msra.mxu0 0.0
  %1971 = vmatprep.subr.mxu0 0.0
  %1972 = vmatpush1.xpose.msra.mxu0 0.0
  %1973 = vmatprep.subr.mxu0 0.0
  %1974 = vmatpush1.xpose.msra.mxu0 0.0
  %1975 = vmatprep.subr.mxu0 0.0
  %1976 = vmatpush1.xpose.msra.mxu0 0.0
  %1977 = vmatprep.subr.mxu0 0.0
  %1978 = vmatpush1.xpose.msra.mxu0 0.0
  %1979 = vmatprep.subr.mxu0 0.0
  %1980 = vmatpush1.xpose.msra.mxu0 0.0
  %1981 = vmatprep.subr.mxu0 0.0
  %1982 = vmatpush1.xpose.msra.mxu0 0.0
  %1983 = vmatprep.subr.mxu0 0.0
  %1984 = vmatpush1.xpose.msra.mxu0 0.0
  %1985 = vmatprep.subr.mxu0 0.0
  %1986 = vmatpush1.xpose.msra.mxu0 0.0
  %1987 = vmatprep.subr.mxu0 0.0
  %1988 = vmatpush1.xpose.msra.mxu0 0.0
  %1989 = vmatprep.subr.mxu0 0.0
  %1990 = vmatpush1.xpose.msra.mxu0 0.0
  %1991 = vmatprep.subr.mxu0 0.0
  %1992 = vmatpush1.xpose.msra.mxu0 0.0
  %1993 = vmatprep.subr.mxu0 0.0
  %1994 = vmatpush1.xpose.msra.mxu0 0.0
  %1995 = vmatprep.subr.mxu0 0.0
  %1996 = vmatpush1.xpose.msra.mxu0 0.0
  %1997 = vmatprep.subr.mxu0 0.0
  %1998 = vmatpush1.xpose.msra.mxu0 0.0
  %1999 = vmatprep.subr.mxu0 0.0
  %2000 = vmatpush1.xpose.msra.mxu0 0.0
  %2001 = vmatprep.subr.mxu0 0.0
  %2002 = vmatpush1.xpose.msra.mxu0 0.0
  %2003 = vmatprep.subr.mxu0 0.0
  %2004 = vmatpush1.xpose.msra.mxu0 0.0
  %2005 = vmatprep.mubr.f32.mxu0 0.0
  %2006 = vmatmul.mubr.f32.gmra.mrb[0].mxu0 %v1936
  %v2007 = vpop.f32.mrb[0].mxu0
  %v2008 = vadd.f32 0.0, %v2007
  %v2009 = vpop.f32.mrb[0].mxu0
  %2010 = vdwg.mxu0
  %v2012 = vsel %vm110, %v39, 0
  %v2015 = vsel %vm110, %v71, 0
  %2017 = vmatprep.subr.mxu0 0.0
  %2018 = vmatpush1.xpose.msra.mxu0 %v2015
  %2019 = vmatprep.subr.mxu0 0.0
  %2020 = vmatpush1.xpose.msra.mxu0 0.0
  %2021 = vmatprep.subr.mxu0 0.0
  %2022 = vmatpush1.xpose.msra.mxu0 0.0
  %2023 = vmatprep.subr.mxu0 0.0
  %2024 = vmatpush1.xpose.msra.mxu0 0.0
  %2025 = vmatprep.subr.mxu0 0.0
  %2026 = vmatpush1.xpose.msra.mxu0 0.0
  %2027 = vmatprep.subr.mxu0 0.0
  %2028 = vmatpush1.xpose.msra.mxu0 0.0
  %2029 = vmatprep.subr.mxu0 0.0
  %2030 = vmatpush1.xpose.msra.mxu0 0.0
  %2031 = vmatprep.subr.mxu0 0.0
  %2032 = vmatpush1.xpose.msra.mxu0 0.0
  %2033 = vmatprep.subr.mxu0 0.0
  %2034 = vmatpush1.xpose.msra.mxu0 0.0
  %2035 = vmatprep.subr.mxu0 0.0
  %2036 = vmatpush1.xpose.msra.mxu0 0.0
  %2037 = vmatprep.subr.mxu0 0.0
  %2038 = vmatpush1.xpose.msra.mxu0 0.0
  %2039 = vmatprep.subr.mxu0 0.0
  %2040 = vmatpush1.xpose.msra.mxu0 0.0
  %2041 = vmatprep.subr.mxu0 0.0
  %2042 = vmatpush1.xpose.msra.mxu0 0.0
  %2043 = vmatprep.subr.mxu0 0.0
  %2044 = vmatpush1.xpose.msra.mxu0 0.0
  %2045 = vmatprep.subr.mxu0 0.0
  %2046 = vmatpush1.xpose.msra.mxu0 0.0
  %2047 = vmatprep.subr.mxu0 0.0
  %2048 = vmatpush1.xpose.msra.mxu0 0.0
  %2049 = vmatprep.subr.mxu0 0.0
  %2050 = vmatpush1.xpose.msra.mxu0 0.0
  %2051 = vmatprep.subr.mxu0 0.0
  %2052 = vmatpush1.xpose.msra.mxu0 0.0
  %2053 = vmatprep.subr.mxu0 0.0
  %2054 = vmatpush1.xpose.msra.mxu0 0.0
  %2055 = vmatprep.subr.mxu0 0.0
  %2056 = vmatpush1.xpose.msra.mxu0 0.0
  %2057 = vmatprep.subr.mxu0 0.0
  %2058 = vmatpush1.xpose.msra.mxu0 0.0
  %2059 = vmatprep.subr.mxu0 0.0
  %2060 = vmatpush1.xpose.msra.mxu0 0.0
  %2061 = vmatprep.subr.mxu0 0.0
  %2062 = vmatpush1.xpose.msra.mxu0 0.0
  %2063 = vmatprep.subr.mxu0 0.0
  %2064 = vmatpush1.xpose.msra.mxu0 0.0
  %2065 = vmatprep.subr.mxu0 0.0
  %2066 = vmatpush1.xpose.msra.mxu0 0.0
  %2067 = vmatprep.subr.mxu0 0.0
  %2068 = vmatpush1.xpose.msra.mxu0 0.0
  %2069 = vmatprep.subr.mxu0 0.0
  %2070 = vmatpush1.xpose.msra.mxu0 0.0
  %2071 = vmatprep.subr.mxu0 0.0
  %2072 = vmatpush1.xpose.msra.mxu0 0.0
  %2073 = vmatprep.subr.mxu0 0.0
  %2074 = vmatpush1.xpose.msra.mxu0 0.0
  %2075 = vmatprep.subr.mxu0 0.0
  %2076 = vmatpush1.xpose.msra.mxu0 0.0
  %2077 = vmatprep.subr.mxu0 0.0
  %2078 = vmatpush1.xpose.msra.mxu0 0.0
  %2079 = vmatprep.subr.mxu0 0.0
  %2080 = vmatpush1.xpose.msra.mxu0 0.0
  %2081 = vmatprep.mubr.f32.mxu0 0.0
  %2082 = vmatmul.mubr.f32.gmra.mrb[0].mxu0 %v2012
  %v2083 = vpop.f32.mrb[0].mxu0
  %v2084 = vadd.f32 0.0, %v2083
  %v2085 = vpop.f32.mrb[0].mxu0
  %2086 = vdwg.mxu0
  %v2088 = vsel %vm110, %v40, 0
  %v2091 = vsel %vm110, %v72, 0
  %2093 = vmatprep.subr.mxu0 0.0
  %2094 = vmatpush1.xpose.msra.mxu0 %v2091
  %2095 = vmatprep.subr.mxu0 0.0
  %2096 = vmatpush1.xpose.msra.mxu0 0.0
  %2097 = vmatprep.subr.mxu0 0.0
  %2098 = vmatpush1.xpose.msra.mxu0 0.0
  %2099 = vmatprep.subr.mxu0 0.0
  %2100 = vmatpush1.xpose.msra.mxu0 0.0
  %2101 = vmatprep.subr.mxu0 0.0
  %2102 = vmatpush1.xpose.msra.mxu0 0.0
  %2103 = vmatprep.subr.mxu0 0.0
  %2104 = vmatpush1.xpose.msra.mxu0 0.0
  %2105 = vmatprep.subr.mxu0 0.0
  %2106 = vmatpush1.xpose.msra.mxu0 0.0
  %2107 = vmatprep.subr.mxu0 0.0
  %2108 = vmatpush1.xpose.msra.mxu0 0.0
  %2109 = vmatprep.subr.mxu0 0.0
  %2110 = vmatpush1.xpose.msra.mxu0 0.0
  %2111 = vmatprep.subr.mxu0 0.0
  %2112 = vmatpush1.xpose.msra.mxu0 0.0
  %2113 = vmatprep.subr.mxu0 0.0
  %2114 = vmatpush1.xpose.msra.mxu0 0.0
  %2115 = vmatprep.subr.mxu0 0.0
  %2116 = vmatpush1.xpose.msra.mxu0 0.0
  %2117 = vmatprep.subr.mxu0 0.0
  %2118 = vmatpush1.xpose.msra.mxu0 0.0
  %2119 = vmatprep.subr.mxu0 0.0
  %2120 = vmatpush1.xpose.msra.mxu0 0.0
  %2121 = vmatprep.subr.mxu0 0.0
  %2122 = vmatpush1.xpose.msra.mxu0 0.0
  %2123 = vmatprep.subr.mxu0 0.0
  %2124 = vmatpush1.xpose.msra.mxu0 0.0
  %2125 = vmatprep.subr.mxu0 0.0
  %2126 = vmatpush1.xpose.msra.mxu0 0.0
  %2127 = vmatprep.subr.mxu0 0.0
  %2128 = vmatpush1.xpose.msra.mxu0 0.0
  %2129 = vmatprep.subr.mxu0 0.0
  %2130 = vmatpush1.xpose.msra.mxu0 0.0
  %2131 = vmatprep.subr.mxu0 0.0
  %2132 = vmatpush1.xpose.msra.mxu0 0.0
  %2133 = vmatprep.subr.mxu0 0.0
  %2134 = vmatpush1.xpose.msra.mxu0 0.0
  %2135 = vmatprep.subr.mxu0 0.0
  %2136 = vmatpush1.xpose.msra.mxu0 0.0
  %2137 = vmatprep.subr.mxu0 0.0
  %2138 = vmatpush1.xpose.msra.mxu0 0.0
  %2139 = vmatprep.subr.mxu0 0.0
  %2140 = vmatpush1.xpose.msra.mxu0 0.0
  %2141 = vmatprep.subr.mxu0 0.0
  %2142 = vmatpush1.xpose.msra.mxu0 0.0
  %2143 = vmatprep.subr.mxu0 0.0
  %2144 = vmatpush1.xpose.msra.mxu0 0.0
  %2145 = vmatprep.subr.mxu0 0.0
  %2146 = vmatpush1.xpose.msra.mxu0 0.0
  %2147 = vmatprep.subr.mxu0 0.0
  %2148 = vmatpush1.xpose.msra.mxu0 0.0
  %2149 = vmatprep.subr.mxu0 0.0
  %2150 = vmatpush1.xpose.msra.mxu0 0.0
  %2151 = vmatprep.subr.mxu0 0.0
  %2152 = vmatpush1.xpose.msra.mxu0 0.0
  %2153 = vmatprep.subr.mxu0 0.0
  %2154 = vmatpush1.xpose.msra.mxu0 0.0
  %2155 = vmatprep.subr.mxu0 0.0
  %2156 = vmatpush1.xpose.msra.mxu0 0.0
  %2157 = vmatprep.mubr.f32.mxu0 0.0
  %2158 = vmatmul.mubr.f32.gmra.mrb[0].mxu0 %v2088
  %v2159 = vpop.f32.mrb[0].mxu0
  %v2160 = vadd.f32 0.0, %v2159
  %v2161 = vpop.f32.mrb[0].mxu0
  %2162 = vdwg.mxu0
  %v2164 = vsel %vm110, %v41, 0
  %v2167 = vsel %vm110, %v73, 0
  %2169 = vmatprep.subr.mxu0 0.0
  %2170 = vmatpush1.xpose.msra.mxu0 %v2167
  %2171 = vmatprep.subr.mxu0 0.0
  %2172 = vmatpush1.xpose.msra.mxu0 0.0
  %2173 = vmatprep.subr.mxu0 0.0
  %2174 = vmatpush1.xpose.msra.mxu0 0.0
  %2175 = vmatprep.subr.mxu0 0.0
  %2176 = vmatpush1.xpose.msra.mxu0 0.0
  %2177 = vmatprep.subr.mxu0 0.0
  %2178 = vmatpush1.xpose.msra.mxu0 0.0
  %2179 = vmatprep.subr.mxu0 0.0
  %2180 = vmatpush1.xpose.msra.mxu0 0.0
  %2181 = vmatprep.subr.mxu0 0.0
  %2182 = vmatpush1.xpose.msra.mxu0 0.0
  %2183 = vmatprep.subr.mxu0 0.0
  %2184 = vmatpush1.xpose.msra.mxu0 0.0
  %2185 = vmatprep.subr.mxu0 0.0
  %2186 = vmatpush1.xpose.msra.mxu0 0.0
  %2187 = vmatprep.subr.mxu0 0.0
  %2188 = vmatpush1.xpose.msra.mxu0 0.0
  %2189 = vmatprep.subr.mxu0 0.0
  %2190 = vmatpush1.xpose.msra.mxu0 0.0
  %2191 = vmatprep.subr.mxu0 0.0
  %2192 = vmatpush1.xpose.msra.mxu0 0.0
  %2193 = vmatprep.subr.mxu0 0.0
  %2194 = vmatpush1.xpose.msra.mxu0 0.0
  %2195 = vmatprep.subr.mxu0 0.0
  %2196 = vmatpush1.xpose.msra.mxu0 0.0
  %2197 = vmatprep.subr.mxu0 0.0
  %2198 = vmatpush1.xpose.msra.mxu0 0.0
  %2199 = vmatprep.subr.mxu0 0.0
  %2200 = vmatpush1.xpose.msra.mxu0 0.0
  %2201 = vmatprep.subr.mxu0 0.0
  %2202 = vmatpush1.xpose.msra.mxu0 0.0
  %2203 = vmatprep.subr.mxu0 0.0
  %2204 = vmatpush1.xpose.msra.mxu0 0.0
  %2205 = vmatprep.subr.mxu0 0.0
  %2206 = vmatpush1.xpose.msra.mxu0 0.0
  %2207 = vmatprep.subr.mxu0 0.0
  %2208 = vmatpush1.xpose.msra.mxu0 0.0
  %2209 = vmatprep.subr.mxu0 0.0
  %2210 = vmatpush1.xpose.msra.mxu0 0.0
  %2211 = vmatprep.subr.mxu0 0.0
  %2212 = vmatpush1.xpose.msra.mxu0 0.0
  %2213 = vmatprep.subr.mxu0 0.0
  %2214 = vmatpush1.xpose.msra.mxu0 0.0
  %2215 = vmatprep.subr.mxu0 0.0
  %2216 = vmatpush1.xpose.msra.mxu0 0.0
  %2217 = vmatprep.subr.mxu0 0.0
  %2218 = vmatpush1.xpose.msra.mxu0 0.0
  %2219 = vmatprep.subr.mxu0 0.0
  %2220 = vmatpush1.xpose.msra.mxu0 0.0
  %2221 = vmatprep.subr.mxu0 0.0
  %2222 = vmatpush1.xpose.msra.mxu0 0.0
  %2223 = vmatprep.subr.mxu0 0.0
  %2224 = vmatpush1.xpose.msra.mxu0 0.0
  %2225 = vmatprep.subr.mxu0 0.0
  %2226 = vmatpush1.xpose.msra.mxu0 0.0
  %2227 = vmatprep.subr.mxu0 0.0
  %2228 = vmatpush1.xpose.msra.mxu0 0.0
  %2229 = vmatprep.subr.mxu0 0.0
  %2230 = vmatpush1.xpose.msra.mxu0 0.0
  %2231 = vmatprep.subr.mxu0 0.0
  %2232 = vmatpush1.xpose.msra.mxu0 0.0
  %2233 = vmatprep.mubr.f32.mxu0 0.0
  %2234 = vmatmul.mubr.f32.gmra.mrb[0].mxu0 %v2164
  %v2235 = vpop.f32.mrb[0].mxu0
  %v2236 = vadd.f32 0.0, %v2235
  %v2237 = vpop.f32.mrb[0].mxu0
  %2238 = vdwg.mxu0
  %v2240 = vsel %vm110, %v42, 0
  %v2243 = vsel %vm110, %v74, 0
  %2245 = vmatprep.subr.mxu0 0.0
  %2246 = vmatpush1.xpose.msra.mxu0 %v2243
  %2247 = vmatprep.subr.mxu0 0.0
  %2248 = vmatpush1.xpose.msra.mxu0 0.0
  %2249 = vmatprep.subr.mxu0 0.0
  %2250 = vmatpush1.xpose.msra.mxu0 0.0
  %2251 = vmatprep.subr.mxu0 0.0
  %2252 = vmatpush1.xpose.msra.mxu0 0.0
  %2253 = vmatprep.subr.mxu0 0.0
  %2254 = vmatpush1.xpose.msra.mxu0 0.0
  %2255 = vmatprep.subr.mxu0 0.0
  %2256 = vmatpush1.xpose.msra.mxu0 0.0
  %2257 = vmatprep.subr.mxu0 0.0
  %2258 = vmatpush1.xpose.msra.mxu0 0.0
  %2259 = vmatprep.subr.mxu0 0.0
  %2260 = vmatpush1.xpose.msra.mxu0 0.0
  %2261 = vmatprep.subr.mxu0 0.0
  %2262 = vmatpush1.xpose.msra.mxu0 0.0
  %2263 = vmatprep.subr.mxu0 0.0
  %2264 = vmatpush1.xpose.msra.mxu0 0.0
  %2265 = vmatprep.subr.mxu0 0.0
  %2266 = vmatpush1.xpose.msra.mxu0 0.0
  %2267 = vmatprep.subr.mxu0 0.0
  %2268 = vmatpush1.xpose.msra.mxu0 0.0
  %2269 = vmatprep.subr.mxu0 0.0
  %2270 = vmatpush1.xpose.msra.mxu0 0.0
  %2271 = vmatprep.subr.mxu0 0.0
  %2272 = vmatpush1.xpose.msra.mxu0 0.0
  %2273 = vmatprep.subr.mxu0 0.0
  %2274 = vmatpush1.xpose.msra.mxu0 0.0
  %2275 = vmatprep.subr.mxu0 0.0
  %2276 = vmatpush1.xpose.msra.mxu0 0.0
  %2277 = vmatprep.subr.mxu0 0.0
  %2278 = vmatpush1.xpose.msra.mxu0 0.0
  %2279 = vmatprep.subr.mxu0 0.0
  %2280 = vmatpush1.xpose.msra.mxu0 0.0
  %2281 = vmatprep.subr.mxu0 0.0
  %2282 = vmatpush1.xpose.msra.mxu0 0.0
  %2283 = vmatprep.subr.mxu0 0.0
  %2284 = vmatpush1.xpose.msra.mxu0 0.0
  %2285 = vmatprep.subr.mxu0 0.0
  %2286 = vmatpush1.xpose.msra.mxu0 0.0
  %2287 = vmatprep.subr.mxu0 0.0
  %2288 = vmatpush1.xpose.msra.mxu0 0.0
  %2289 = vmatprep.subr.mxu0 0.0
  %2290 = vmatpush1.xpose.msra.mxu0 0.0
  %2291 = vmatprep.subr.mxu0 0.0
  %2292 = vmatpush1.xpose.msra.mxu0 0.0
  %2293 = vmatprep.subr.mxu0 0.0
  %2294 = vmatpush1.xpose.msra.mxu0 0.0
  %2295 = vmatprep.subr.mxu0 0.0
  %2296 = vmatpush1.xpose.msra.mxu0 0.0
  %2297 = vmatprep.subr.mxu0 0.0
  %2298 = vmatpush1.xpose.msra.mxu0 0.0
  %2299 = vmatprep.subr.mxu0 0.0
  %2300 = vmatpush1.xpose.msra.mxu0 0.0
  %2301 = vmatprep.subr.mxu0 0.0
  %2302 = vmatpush1.xpose.msra.mxu0 0.0
  %2303 = vmatprep.subr.mxu0 0.0
  %2304 = vmatpush1.xpose.msra.mxu0 0.0
  %2305 = vmatprep.subr.mxu0 0.0
  %2306 = vmatpush1.xpose.msra.mxu0 0.0
  %2307 = vmatprep.subr.mxu0 0.0
  %2308 = vmatpush1.xpose.msra.mxu0 0.0
  %2309 = vmatprep.mubr.f32.mxu0 0.0
  %2310 = vmatmul.mubr.f32.gmra.mrb[0].mxu0 %v2240
  %v2311 = vpop.f32.mrb[0].mxu0
  %v2312 = vadd.f32 0.0, %v2311
  %v2313 = vpop.f32.mrb[0].mxu0
  %2314 = vdwg.mxu0
  %v2316 = vsel %vm110, %v43, 0
  %v2319 = vsel %vm110, %v75, 0
  %2321 = vmatprep.subr.mxu0 0.0
  %2322 = vmatpush1.xpose.msra.mxu0 %v2319
  %2323 = vmatprep.subr.mxu0 0.0
  %2324 = vmatpush1.xpose.msra.mxu0 0.0
  %2325 = vmatprep.subr.mxu0 0.0
  %2326 = vmatpush1.xpose.msra.mxu0 0.0
  %2327 = vmatprep.subr.mxu0 0.0
  %2328 = vmatpush1.xpose.msra.mxu0 0.0
  %2329 = vmatprep.subr.mxu0 0.0
  %2330 = vmatpush1.xpose.msra.mxu0 0.0
  %2331 = vmatprep.subr.mxu0 0.0
  %2332 = vmatpush1.xpose.msra.mxu0 0.0
  %2333 = vmatprep.subr.mxu0 0.0
  %2334 = vmatpush1.xpose.msra.mxu0 0.0
  %2335 = vmatprep.subr.mxu0 0.0
  %2336 = vmatpush1.xpose.msra.mxu0 0.0
  %2337 = vmatprep.subr.mxu0 0.0
  %2338 = vmatpush1.xpose.msra.mxu0 0.0
  %2339 = vmatprep.subr.mxu0 0.0
  %2340 = vmatpush1.xpose.msra.mxu0 0.0
  %2341 = vmatprep.subr.mxu0 0.0
  %2342 = vmatpush1.xpose.msra.mxu0 0.0
  %2343 = vmatprep.subr.mxu0 0.0
  %2344 = vmatpush1.xpose.msra.mxu0 0.0
  %2345 = vmatprep.subr.mxu0 0.0
  %2346 = vmatpush1.xpose.msra.mxu0 0.0
  %2347 = vmatprep.subr.mxu0 0.0
  %2348 = vmatpush1.xpose.msra.mxu0 0.0
  %2349 = vmatprep.subr.mxu0 0.0
  %2350 = vmatpush1.xpose.msra.mxu0 0.0
  %2351 = vmatprep.subr.mxu0 0.0
  %2352 = vmatpush1.xpose.msra.mxu0 0.0
  %2353 = vmatprep.subr.mxu0 0.0
  %2354 = vmatpush1.xpose.msra.mxu0 0.0
  %2355 = vmatprep.subr.mxu0 0.0
  %2356 = vmatpush1.xpose.msra.mxu0 0.0
  %2357 = vmatprep.subr.mxu0 0.0
  %2358 = vmatpush1.xpose.msra.mxu0 0.0
  %2359 = vmatprep.subr.mxu0 0.0
  %2360 = vmatpush1.xpose.msra.mxu0 0.0
  %2361 = vmatprep.subr.mxu0 0.0
  %2362 = vmatpush1.xpose.msra.mxu0 0.0
  %2363 = vmatprep.subr.mxu0 0.0
  %2364 = vmatpush1.xpose.msra.mxu0 0.0
  %2365 = vmatprep.subr.mxu0 0.0
  %2366 = vmatpush1.xpose.msra.mxu0 0.0
  %2367 = vmatprep.subr.mxu0 0.0
  %2368 = vmatpush1.xpose.msra.mxu0 0.0
  %2369 = vmatprep.subr.mxu0 0.0
  %2370 = vmatpush1.xpose.msra.mxu0 0.0
  %2371 = vmatprep.subr.mxu0 0.0
  %2372 = vmatpush1.xpose.msra.mxu0 0.0
  %2373 = vmatprep.subr.mxu0 0.0
  %2374 = vmatpush1.xpose.msra.mxu0 0.0
  %2375 = vmatprep.subr.mxu0 0.0
  %2376 = vmatpush1.xpose.msra.mxu0 0.0
  %2377 = vmatprep.subr.mxu0 0.0
  %2378 = vmatpush1.xpose.msra.mxu0 0.0
  %2379 = vmatprep.subr.mxu0 0.0
  %2380 = vmatpush1.xpose.msra.mxu0 0.0
  %2381 = vmatprep.subr.mxu0 0.0
  %2382 = vmatpush1.xpose.msra.mxu0 0.0
  %2383 = vmatprep.subr.mxu0 0.0
  %2384 = vmatpush1.xpose.msra.mxu0 0.0
  %2385 = vmatprep.mubr.f32.mxu0 0.0
  %2386 = vmatmul.mubr.f32.gmra.mrb[0].mxu0 %v2316
  %v2387 = vpop.f32.mrb[0].mxu0
  %v2388 = vadd.f32 0.0, %v2387
  %v2389 = vpop.f32.mrb[0].mxu0
  %2390 = vdwg.mxu0
  %v2392 = vsel %vm110, %v44, 0
  %v2395 = vsel %vm110, %v76, 0
  %2397 = vmatprep.subr.mxu0 0.0
  %2398 = vmatpush1.xpose.msra.mxu0 %v2395
  %2399 = vmatprep.subr.mxu0 0.0
  %2400 = vmatpush1.xpose.msra.mxu0 0.0
  %2401 = vmatprep.subr.mxu0 0.0
  %2402 = vmatpush1.xpose.msra.mxu0 0.0
  %2403 = vmatprep.subr.mxu0 0.0
  %2404 = vmatpush1.xpose.msra.mxu0 0.0
  %2405 = vmatprep.subr.mxu0 0.0
  %2406 = vmatpush1.xpose.msra.mxu0 0.0
  %2407 = vmatprep.subr.mxu0 0.0
  %2408 = vmatpush1.xpose.msra.mxu0 0.0
  %2409 = vmatprep.subr.mxu0 0.0
  %2410 = vmatpush1.xpose.msra.mxu0 0.0
  %2411 = vmatprep.subr.mxu0 0.0
  %2412 = vmatpush1.xpose.msra.mxu0 0.0
  %2413 = vmatprep.subr.mxu0 0.0
  %2414 = vmatpush1.xpose.msra.mxu0 0.0
  %2415 = vmatprep.subr.mxu0 0.0
  %2416 = vmatpush1.xpose.msra.mxu0 0.0
  %2417 = vmatprep.subr.mxu0 0.0
  %2418 = vmatpush1.xpose.msra.mxu0 0.0
  %2419 = vmatprep.subr.mxu0 0.0
  %2420 = vmatpush1.xpose.msra.mxu0 0.0
  %2421 = vmatprep.subr.mxu0 0.0
  %2422 = vmatpush1.xpose.msra.mxu0 0.0
  %2423 = vmatprep.subr.mxu0 0.0
  %2424 = vmatpush1.xpose.msra.mxu0 0.0
  %2425 = vmatprep.subr.mxu0 0.0
  %2426 = vmatpush1.xpose.msra.mxu0 0.0
  %2427 = vmatprep.subr.mxu0 0.0
  %2428 = vmatpush1.xpose.msra.mxu0 0.0
  %2429 = vmatprep.subr.mxu0 0.0
  %2430 = vmatpush1.xpose.msra.mxu0 0.0
  %2431 = vmatprep.subr.mxu0 0.0
  %2432 = vmatpush1.xpose.msra.mxu0 0.0
  %2433 = vmatprep.subr.mxu0 0.0
  %2434 = vmatpush1.xpose.msra.mxu0 0.0
  %2435 = vmatprep.subr.mxu0 0.0
  %2436 = vmatpush1.xpose.msra.mxu0 0.0
  %2437 = vmatprep.subr.mxu0 0.0
  %2438 = vmatpush1.xpose.msra.mxu0 0.0
  %2439 = vmatprep.subr.mxu0 0.0
  %2440 = vmatpush1.xpose.msra.mxu0 0.0
  %2441 = vmatprep.subr.mxu0 0.0
  %2442 = vmatpush1.xpose.msra.mxu0 0.0
  %2443 = vmatprep.subr.mxu0 0.0
  %2444 = vmatpush1.xpose.msra.mxu0 0.0
  %2445 = vmatprep.subr.mxu0 0.0
  %2446 = vmatpush1.xpose.msra.mxu0 0.0
  %2447 = vmatprep.subr.mxu0 0.0
  %2448 = vmatpush1.xpose.msra.mxu0 0.0
  %2449 = vmatprep.subr.mxu0 0.0
  %2450 = vmatpush1.xpose.msra.mxu0 0.0
  %2451 = vmatprep.subr.mxu0 0.0
  %2452 = vmatpush1.xpose.msra.mxu0 0.0
  %2453 = vmatprep.subr.mxu0 0.0
  %2454 = vmatpush1.xpose.msra.mxu0 0.0
  %2455 = vmatprep.subr.mxu0 0.0
  %2456 = vmatpush1.xpose.msra.mxu0 0.0
  %2457 = vmatprep.subr.mxu0 0.0
  %2458 = vmatpush1.xpose.msra.mxu0 0.0
  %2459 = vmatprep.subr.mxu0 0.0
  %2460 = vmatpush1.xpose.msra.mxu0 0.0
  %2461 = vmatprep.mubr.f32.mxu0 0.0
  %2462 = vmatmul.mubr.f32.gmra.mrb[0].mxu0 %v2392
  %v2463 = vpop.f32.mrb[0].mxu0
  %v2464 = vadd.f32 0.0, %v2463
  %v2465 = vpop.f32.mrb[0].mxu0
  %2466 = vdwg.mxu0
  %v2468 = vsel %vm110, %v45, 0
  %v2471 = vsel %vm110, %v77, 0
  %2473 = vmatprep.subr.mxu0 0.0
  %2474 = vmatpush1.xpose.msra.mxu0 %v2471
  %2475 = vmatprep.subr.mxu0 0.0
  %2476 = vmatpush1.xpose.msra.mxu0 0.0
  %2477 = vmatprep.subr.mxu0 0.0
  %2478 = vmatpush1.xpose.msra.mxu0 0.0
  %2479 = vmatprep.subr.mxu0 0.0
  %2480 = vmatpush1.xpose.msra.mxu0 0.0
  %2481 = vmatprep.subr.mxu0 0.0
  %2482 = vmatpush1.xpose.msra.mxu0 0.0
  %2483 = vmatprep.subr.mxu0 0.0
  %2484 = vmatpush1.xpose.msra.mxu0 0.0
  %2485 = vmatprep.subr.mxu0 0.0
  %2486 = vmatpush1.xpose.msra.mxu0 0.0
  %2487 = vmatprep.subr.mxu0 0.0
  %2488 = vmatpush1.xpose.msra.mxu0 0.0
  %2489 = vmatprep.subr.mxu0 0.0
  %2490 = vmatpush1.xpose.msra.mxu0 0.0
  %2491 = vmatprep.subr.mxu0 0.0
  %2492 = vmatpush1.xpose.msra.mxu0 0.0
  %2493 = vmatprep.subr.mxu0 0.0
  %2494 = vmatpush1.xpose.msra.mxu0 0.0
  %2495 = vmatprep.subr.mxu0 0.0
  %2496 = vmatpush1.xpose.msra.mxu0 0.0
  %2497 = vmatprep.subr.mxu0 0.0
  %2498 = vmatpush1.xpose.msra.mxu0 0.0
  %2499 = vmatprep.subr.mxu0 0.0
  %2500 = vmatpush1.xpose.msra.mxu0 0.0
  %2501 = vmatprep.subr.mxu0 0.0
  %2502 = vmatpush1.xpose.msra.mxu0 0.0
  %2503 = vmatprep.subr.mxu0 0.0
  %2504 = vmatpush1.xpose.msra.mxu0 0.0
  %2505 = vmatprep.subr.mxu0 0.0
  %2506 = vmatpush1.xpose.msra.mxu0 0.0
  %2507 = vmatprep.subr.mxu0 0.0
  %2508 = vmatpush1.xpose.msra.mxu0 0.0
  %2509 = vmatprep.subr.mxu0 0.0
  %2510 = vmatpush1.xpose.msra.mxu0 0.0
  %2511 = vmatprep.subr.mxu0 0.0
  %2512 = vmatpush1.xpose.msra.mxu0 0.0
  %2513 = vmatprep.subr.mxu0 0.0
  %2514 = vmatpush1.xpose.msra.mxu0 0.0
  %2515 = vmatprep.subr.mxu0 0.0
  %2516 = vmatpush1.xpose.msra.mxu0 0.0
  %2517 = vmatprep.subr.mxu0 0.0
  %2518 = vmatpush1.xpose.msra.mxu0 0.0
  %2519 = vmatprep.subr.mxu0 0.0
  %2520 = vmatpush1.xpose.msra.mxu0 0.0
  %2521 = vmatprep.subr.mxu0 0.0
  %2522 = vmatpush1.xpose.msra.mxu0 0.0
  %2523 = vmatprep.subr.mxu0 0.0
  %2524 = vmatpush1.xpose.msra.mxu0 0.0
  %2525 = vmatprep.subr.mxu0 0.0
  %2526 = vmatpush1.xpose.msra.mxu0 0.0
  %2527 = vmatprep.subr.mxu0 0.0
  %2528 = vmatpush1.xpose.msra.mxu0 0.0
  %2529 = vmatprep.subr.mxu0 0.0
  %2530 = vmatpush1.xpose.msra.mxu0 0.0
  %2531 = vmatprep.subr.mxu0 0.0
  %2532 = vmatpush1.xpose.msra.mxu0 0.0
  %2533 = vmatprep.subr.mxu0 0.0
  %2534 = vmatpush1.xpose.msra.mxu0 0.0
  %2535 = vmatprep.subr.mxu0 0.0
  %2536 = vmatpush1.xpose.msra.mxu0 0.0
  %2537 = vmatprep.mubr.f32.mxu0 0.0
  %2538 = vmatmul.mubr.f32.gmra.mrb[0].mxu0 %v2468
  %v2539 = vpop.f32.mrb[0].mxu0
  %v2540 = vadd.f32 0.0, %v2539
  %v2541 = vpop.f32.mrb[0].mxu0
  %2542 = vdwg.mxu0
  %v2543 = vmul.f32 %v184, 0.35355338
  %v2544 = vmul.f32 %v260, 0.35355338
  %v2545 = vmul.f32 %v336, 0.35355338
  %v2546 = vmul.f32 %v412, 0.35355338
  %v2547 = vmul.f32 %v488, 0.35355338
  %v2548 = vmul.f32 %v564, 0.35355338
  %v2549 = vmul.f32 %v640, 0.35355338
  %v2550 = vmul.f32 %v716, 0.35355338
  %v2551 = vmul.f32 %v792, 0.35355338
  %v2552 = vmul.f32 %v868, 0.35355338
  %v2553 = vmul.f32 %v944, 0.35355338
  %v2554 = vmul.f32 %v1020, 0.35355338
  %v2555 = vmul.f32 %v1096, 0.35355338
  %v2556 = vmul.f32 %v1172, 0.35355338
  %v2557 = vmul.f32 %v1248, 0.35355338
  %v2558 = vmul.f32 %v1324, 0.35355338
  %v2559 = vmul.f32 %v1400, 0.35355338
  %v2560 = vmul.f32 %v1476, 0.35355338
  %v2561 = vmul.f32 %v1552, 0.35355338
  %v2562 = vmul.f32 %v1628, 0.35355338
  %v2563 = vmul.f32 %v1704, 0.35355338
  %v2564 = vmul.f32 %v1780, 0.35355338
  %v2565 = vmul.f32 %v1856, 0.35355338
  %v2566 = vmul.f32 %v1932, 0.35355338
  %v2567 = vmul.f32 %v2008, 0.35355338
  %v2568 = vmul.f32 %v2084, 0.35355338
  %v2569 = vmul.f32 %v2160, 0.35355338
  %v2570 = vmul.f32 %v2236, 0.35355338
  %v2571 = vmul.f32 %v2312, 0.35355338
  %v2572 = vmul.f32 %v2388, 0.35355338
  %v2573 = vmul.f32 %v2464, 0.35355338
  %v2574 = vmul.f32 %v2540, 0.35355338
  %vm2575 = vcmask 9216
  %v2576 = vsel %vm2575, %v2543, -inf
  %2577 = vmax.xlane.f32.xlu0 %v2576
  %v2578 = vpop.xlane.xlu0 %2577
  %v2579 = vsel %vm2575, %v2544, -inf
  %2580 = vmax.xlane.f32.xlu0 %v2579
  %v2581 = vpop.xlane.xlu0 %2580
  %v2582 = vsel %vm2575, %v2545, -inf
  %2583 = vmax.xlane.f32.xlu0 %v2582
  %v2584 = vpop.xlane.xlu0 %2583
  %v2585 = vsel %vm2575, %v2546, -inf
  %2586 = vmax.xlane.f32.xlu0 %v2585
  %v2587 = vpop.xlane.xlu0 %2586
  %v2588 = vsel %vm2575, %v2547, -inf
  %2589 = vmax.xlane.f32.xlu0 %v2588
  %v2590 = vpop.xlane.xlu0 %2589
  %v2591 = vsel %vm2575, %v2548, -inf
  %2592 = vmax.xlane.f32.xlu0 %v2591
  %v2593 = vpop.xlane.xlu0 %2592
  %v2594 = vsel %vm2575, %v2549, -inf
  %2595 = vmax.xlane.f32.xlu0 %v2594
  %v2596 = vpop.xlane.xlu0 %2595
  %v2597 = vsel %vm2575, %v2550, -inf
  %2598 = vmax.xlane.f32.xlu0 %v2597
  %v2599 = vpop.xlane.xlu0 %2598
  %v2600 = vsel %vm2575, %v2551, -inf
  %2601 = vmax.xlane.f32.xlu0 %v2600
  %v2602 = vpop.xlane.xlu0 %2601
  %v2603 = vsel %vm2575, %v2552, -inf
  %2604 = vmax.xlane.f32.xlu0 %v2603
  %v2605 = vpop.xlane.xlu0 %2604
  %v2606 = vsel %vm2575, %v2553, -inf
  %2607 = vmax.xlane.f32.xlu0 %v2606
  %v2608 = vpop.xlane.xlu0 %2607
  %v2609 = vsel %vm2575, %v2554, -inf
  %2610 = vmax.xlane.f32.xlu0 %v2609
  %v2611 = vpop.xlane.xlu0 %2610
  %v2612 = vsel %vm2575, %v2555, -inf
  %2613 = vmax.xlane.f32.xlu0 %v2612
  %v2614 = vpop.xlane.xlu0 %2613
  %v2615 = vsel %vm2575, %v2556, -inf
  %2616 = vmax.xlane.f32.xlu0 %v2615
  %v2617 = vpop.xlane.xlu0 %2616
  %v2618 = vsel %vm2575, %v2557, -inf
  %2619 = vmax.xlane.f32.xlu0 %v2618
  %v2620 = vpop.xlane.xlu0 %2619
  %v2621 = vsel %vm2575, %v2558, -inf
  %2622 = vmax.xlane.f32.xlu0 %v2621
  %v2623 = vpop.xlane.xlu0 %2622
  %v2624 = vsel %vm2575, %v2559, -inf
  %2625 = vmax.xlane.f32.xlu0 %v2624
  %v2626 = vpop.xlane.xlu0 %2625
  %v2627 = vsel %vm2575, %v2560, -inf
  %2628 = vmax.xlane.f32.xlu0 %v2627
  %v2629 = vpop.xlane.xlu0 %2628
  %v2630 = vsel %vm2575, %v2561, -inf
  %2631 = vmax.xlane.f32.xlu0 %v2630
  %v2632 = vpop.xlane.xlu0 %2631
  %v2633 = vsel %vm2575, %v2562, -inf
  %2634 = vmax.xlane.f32.xlu0 %v2633
  %v2635 = vpop.xlane.xlu0 %2634
  %v2636 = vsel %vm2575, %v2563, -inf
  %2637 = vmax.xlane.f32.xlu0 %v2636
  %v2638 = vpop.xlane.xlu0 %2637
  %v2639 = vsel %vm2575, %v2564, -inf
  %2640 = vmax.xlane.f32.xlu0 %v2639
  %v2641 = vpop.xlane.xlu0 %2640
  %v2642 = vsel %vm2575, %v2565, -inf
  %2643 = vmax.xlane.f32.xlu0 %v2642
  %v2644 = vpop.xlane.xlu0 %2643
  %v2645 = vsel %vm2575, %v2566, -inf
  %2646 = vmax.xlane.f32.xlu0 %v2645
  %v2647 = vpop.xlane.xlu0 %2646
  %v2648 = vsel %vm2575, %v2567, -inf
  %2649 = vmax.xlane.f32.xlu0 %v2648
  %v2650 = vpop.xlane.xlu0 %2649
  %v2651 = vsel %vm2575, %v2568, -inf
  %2652 = vmax.xlane.f32.xlu0 %v2651
  %v2653 = vpop.xlane.xlu0 %2652
  %v2654 = vsel %vm2575, %v2569, -inf
  %2655 = vmax.xlane.f32.xlu0 %v2654
  %v2656 = vpop.xlane.xlu0 %2655
  %v2657 = vsel %vm2575, %v2570, -inf
  %2658 = vmax.xlane.f32.xlu0 %v2657
  %v2659 = vpop.xlane.xlu0 %2658
  %v2660 = vsel %vm2575, %v2571, -inf
  %2661 = vmax.xlane.f32.xlu0 %v2660
  %v2662 = vpop.xlane.xlu0 %2661
  %v2663 = vsel %vm2575, %v2572, -inf
  %2664 = vmax.xlane.f32.xlu0 %v2663
  %v2665 = vpop.xlane.xlu0 %2664
  %v2666 = vsel %vm2575, %v2573, -inf
  %2667 = vmax.xlane.f32.xlu0 %v2666
  %v2668 = vpop.xlane.xlu0 %2667
  %v2669 = vsel %vm2575, %v2574, -inf
  %2670 = vmax.xlane.f32.xlu0 %v2669
  %v2671 = vpop.xlane.xlu0 %2670
  %v2672 = vsub.f32 %v2543, %v2578
  %v2673 = vsub.f32 %v2544, %v2581
  %v2674 = vsub.f32 %v2545, %v2584
  %v2675 = vsub.f32 %v2546, %v2587
  %v2676 = vsub.f32 %v2547, %v2590
  %v2677 = vsub.f32 %v2548, %v2593
  %v2678 = vsub.f32 %v2549, %v2596
  %v2679 = vsub.f32 %v2550, %v2599
  %v2680 = vsub.f32 %v2551, %v2602
  %v2681 = vsub.f32 %v2552, %v2605
  %v2682 = vsub.f32 %v2553, %v2608
  %v2683 = vsub.f32 %v2554, %v2611
  %v2684 = vsub.f32 %v2555, %v2614
  %v2685 = vsub.f32 %v2556, %v2617
  %v2686 = vsub.f32 %v2557, %v2620
  %v2687 = vsub.f32 %v2558, %v2623
  %v2688 = vsub.f32 %v2559, %v2626
  %v2689 = vsub.f32 %v2560, %v2629
  %v2690 = vsub.f32 %v2561, %v2632
  %v2691 = vsub.f32 %v2562, %v2635
  %v2692 = vsub.f32 %v2563, %v2638
  %v2693 = vsub.f32 %v2564, %v2641
  %v2694 = vsub.f32 %v2565, %v2644
  %v2695 = vsub.f32 %v2566, %v2647
  %v2696 = vsub.f32 %v2567, %v2650
  %v2697 = vsub.f32 %v2568, %v2653
  %v2698 = vsub.f32 %v2569, %v2656
  %v2699 = vsub.f32 %v2570, %v2659
  %v2700 = vsub.f32 %v2571, %v2662
  %v2701 = vsub.f32 %v2572, %v2665
  %v2702 = vsub.f32 %v2573, %v2668
  %v2703 = vsub.f32 %v2574, %v2671
  %v2704 = vmul.f32 %v2672, 1.442695
  %v2705 = vpow.pop %v2704
  %v2706 = vmul.f32 %v2673, 1.442695
  %v2707 = vpow.pop %v2706
  %v2708 = vmul.f32 %v2674, 1.442695
  %v2709 = vpow.pop %v2708
  %v2710 = vmul.f32 %v2675, 1.442695
  %v2711 = vpow.pop %v2710
  %v2712 = vmul.f32 %v2676, 1.442695
  %v2713 = vpow.pop %v2712
  %v2714 = vmul.f32 %v2677, 1.442695
  %v2715 = vpow.pop %v2714
  %v2716 = vmul.f32 %v2678, 1.442695
  %v2717 = vpow.pop %v2716
  %v2718 = vmul.f32 %v2679, 1.442695
  %v2719 = vpow.pop %v2718
  %v2720 = vmul.f32 %v2680, 1.442695
  %v2721 = vpow.pop %v2720
  %v2722 = vmul.f32 %v2681, 1.442695
  %v2723 = vpow.pop %v2722
  %v2724 = vmul.f32 %v2682, 1.442695
  %v2725 = vpow.pop %v2724
  %v2726 = vmul.f32 %v2683, 1.442695
  %v2727 = vpow.pop %v2726
  %v2728 = vmul.f32 %v2684, 1.442695
  %v2729 = vpow.pop %v2728
  %v2730 = vmul.f32 %v2685, 1.442695
  %v2731 = vpow.pop %v2730
  %v2732 = vmul.f32 %v2686, 1.442695
  %v2733 = vpow.pop %v2732
  %v2734 = vmul.f32 %v2687, 1.442695
  %v2735 = vpow.pop %v2734
  %v2736 = vmul.f32 %v2688, 1.442695
  %v2737 = vpow.pop %v2736
  %v2738 = vmul.f32 %v2689, 1.442695
  %v2739 = vpow.pop %v2738
  %v2740 = vmul.f32 %v2690, 1.442695
  %v2741 = vpow.pop %v2740
  %v2742 = vmul.f32 %v2691, 1.442695
  %v2743 = vpow.pop %v2742
  %v2744 = vmul.f32 %v2692, 1.442695
  %v2745 = vpow.pop %v2744
  %v2746 = vmul.f32 %v2693, 1.442695
  %v2747 = vpow.pop %v2746
  %v2748 = vmul.f32 %v2694, 1.442695
  %v2749 = vpow.pop %v2748
  %v2750 = vmul.f32 %v2695, 1.442695
  %v2751 = vpow.pop %v2750
  %v2752 = vmul.f32 %v2696, 1.442695
  %v2753 = vpow.pop %v2752
  %v2754 = vmul.f32 %v2697, 1.442695
  %v2755 = vpow.pop %v2754
  %v2756 = vmul.f32 %v2698, 1.442695
  %v2757 = vpow.pop %v2756
  %v2758 = vmul.f32 %v2699, 1.442695
  %v2759 = vpow.pop %v2758
  %v2760 = vmul.f32 %v2700, 1.442695
  %v2761 = vpow.pop %v2760
  %v2762 = vmul.f32 %v2701, 1.442695
  %v2763 = vpow.pop %v2762
  %v2764 = vmul.f32 %v2702, 1.442695
  %v2765 = vpow.pop %v2764
  %v2766 = vmul.f32 %v2703, 1.442695
  %v2767 = vpow.pop %v2766
  %v2768 = vsel %vm2575, %v2705, 0.0
  %2769 = vadd.xlane.f32.xlu0 %v2768
  %v2770 = vpop.xlane.xlu0 %2769
  %v2771 = vsel %vm2575, %v2707, 0.0
  %2772 = vadd.xlane.f32.xlu0 %v2771
  %v2773 = vpop.xlane.xlu0 %2772
  %v2774 = vsel %vm2575, %v2709, 0.0
  %2775 = vadd.xlane.f32.xlu0 %v2774
  %v2776 = vpop.xlane.xlu0 %2775
  %v2777 = vsel %vm2575, %v2711, 0.0
  %2778 = vadd.xlane.f32.xlu0 %v2777
  %v2779 = vpop.xlane.xlu0 %2778
  %v2780 = vsel %vm2575, %v2713, 0.0
  %2781 = vadd.xlane.f32.xlu0 %v2780
  %v2782 = vpop.xlane.xlu0 %2781
  %v2783 = vsel %vm2575, %v2715, 0.0
  %2784 = vadd.xlane.f32.xlu0 %v2783
  %v2785 = vpop.xlane.xlu0 %2784
  %v2786 = vsel %vm2575, %v2717, 0.0
  %2787 = vadd.xlane.f32.xlu0 %v2786
  %v2788 = vpop.xlane.xlu0 %2787
  %v2789 = vsel %vm2575, %v2719, 0.0
  %2790 = vadd.xlane.f32.xlu0 %v2789
  %v2791 = vpop.xlane.xlu0 %2790
  %v2792 = vsel %vm2575, %v2721, 0.0
  %2793 = vadd.xlane.f32.xlu0 %v2792
  %v2794 = vpop.xlane.xlu0 %2793
  %v2795 = vsel %vm2575, %v2723, 0.0
  %2796 = vadd.xlane.f32.xlu0 %v2795
  %v2797 = vpop.xlane.xlu0 %2796
  %v2798 = vsel %vm2575, %v2725, 0.0
  %2799 = vadd.xlane.f32.xlu0 %v2798
  %v2800 = vpop.xlane.xlu0 %2799
  %v2801 = vsel %vm2575, %v2727, 0.0
  %2802 = vadd.xlane.f32.xlu0 %v2801
  %v2803 = vpop.xlane.xlu0 %2802
  %v2804 = vsel %vm2575, %v2729, 0.0
  %2805 = vadd.xlane.f32.xlu0 %v2804
  %v2806 = vpop.xlane.xlu0 %2805
  %v2807 = vsel %vm2575, %v2731, 0.0
  %2808 = vadd.xlane.f32.xlu0 %v2807
  %v2809 = vpop.xlane.xlu0 %2808
  %v2810 = vsel %vm2575, %v2733, 0.0
  %2811 = vadd.xlane.f32.xlu0 %v2810
  %v2812 = vpop.xlane.xlu0 %2811
  %v2813 = vsel %vm2575, %v2735, 0.0
  %2814 = vadd.xlane.f32.xlu0 %v2813
  %v2815 = vpop.xlane.xlu0 %2814
  %v2816 = vsel %vm2575, %v2737, 0.0
  %2817 = vadd.xlane.f32.xlu0 %v2816
  %v2818 = vpop.xlane.xlu0 %2817
  %v2819 = vsel %vm2575, %v2739, 0.0
  %2820 = vadd.xlane.f32.xlu0 %v2819
  %v2821 = vpop.xlane.xlu0 %2820
  %v2822 = vsel %vm2575, %v2741, 0.0
  %2823 = vadd.xlane.f32.xlu0 %v2822
  %v2824 = vpop.xlane.xlu0 %2823
  %v2825 = vsel %vm2575, %v2743, 0.0
  %2826 = vadd.xlane.f32.xlu0 %v2825
  %v2827 = vpop.xlane.xlu0 %2826
  %v2828 = vsel %vm2575, %v2745, 0.0
  %2829 = vadd.xlane.f32.xlu0 %v2828
  %v2830 = vpop.xlane.xlu0 %2829
  %v2831 = vsel %vm2575, %v2747, 0.0
  %2832 = vadd.xlane.f32.xlu0 %v2831
  %v2833 = vpop.xlane.xlu0 %2832
  %v2834 = vsel %vm2575, %v2749, 0.0
  %2835 = vadd.xlane.f32.xlu0 %v2834
  %v2836 = vpop.xlane.xlu0 %2835
  %v2837 = vsel %vm2575, %v2751, 0.0
  %2838 = vadd.xlane.f32.xlu0 %v2837
  %v2839 = vpop.xlane.xlu0 %2838
  %v2840 = vsel %vm2575, %v2753, 0.0
  %2841 = vadd.xlane.f32.xlu0 %v2840
  %v2842 = vpop.xlane.xlu0 %2841
  %v2843 = vsel %vm2575, %v2755, 0.0
  %2844 = vadd.xlane.f32.xlu0 %v2843
  %v2845 = vpop.xlane.xlu0 %2844
  %v2846 = vsel %vm2575, %v2757, 0.0
  %2847 = vadd.xlane.f32.xlu0 %v2846
  %v2848 = vpop.xlane.xlu0 %2847
  %v2849 = vsel %vm2575, %v2759, 0.0
  %2850 = vadd.xlane.f32.xlu0 %v2849
  %v2851 = vpop.xlane.xlu0 %2850
  %v2852 = vsel %vm2575, %v2761, 0.0
  %2853 = vadd.xlane.f32.xlu0 %v2852
  %v2854 = vpop.xlane.xlu0 %2853
  %v2855 = vsel %vm2575, %v2763, 0.0
  %2856 = vadd.xlane.f32.xlu0 %v2855
  %v2857 = vpop.xlane.xlu0 %2856
  %v2858 = vsel %vm2575, %v2765, 0.0
  %2859 = vadd.xlane.f32.xlu0 %v2858
  %v2860 = vpop.xlane.xlu0 %2859
  %v2861 = vsel %vm2575, %v2767, 0.0
  %2862 = vadd.xlane.f32.xlu0 %v2861
  %v2863 = vpop.xlane.xlu0 %2862
  %v2864 = vrcp.pop %v2770
  %v2865 = vrcp.pop %v2773
  %v2866 = vrcp.pop %v2776
  %v2867 = vrcp.pop %v2779
  %v2868 = vrcp.pop %v2782
  %v2869 = vrcp.pop %v2785
  %v2870 = vrcp.pop %v2788
  %v2871 = vrcp.pop %v2791
  %v2872 = vrcp.pop %v2794
  %v2873 = vrcp.pop %v2797
  %v2874 = vrcp.pop %v2800
  %v2875 = vrcp.pop %v2803
  %v2876 = vrcp.pop %v2806
  %v2877 = vrcp.pop %v2809
  %v2878 = vrcp.pop %v2812
  %v2879 = vrcp.pop %v2815
  %v2880 = vrcp.pop %v2818
  %v2881 = vrcp.pop %v2821
  %v2882 = vrcp.pop %v2824
  %v2883 = vrcp.pop %v2827
  %v2884 = vrcp.pop %v2830
  %v2885 = vrcp.pop %v2833
  %v2886 = vrcp.pop %v2836
  %v2887 = vrcp.pop %v2839
  %v2888 = vrcp.pop %v2842
  %v2889 = vrcp.pop %v2845
  %v2890 = vrcp.pop %v2848
  %v2891 = vrcp.pop %v2851
  %v2892 = vrcp.pop %v2854
  %v2893 = vrcp.pop %v2857
  %v2894 = vrcp.pop %v2860
  %v2895 = vrcp.pop %v2863
  %v2896 = vmul.f32 %v2770, %v2864
  %v2897 = vmul.f32 %v2773, %v2865
  %v2898 = vmul.f32 %v2776, %v2866
  %v2899 = vmul.f32 %v2779, %v2867
  %v2900 = vmul.f32 %v2782, %v2868
  %v2901 = vmul.f32 %v2785, %v2869
  %v2902 = vmul.f32 %v2788, %v2870
  %v2903 = vmul.f32 %v2791, %v2871
  %v2904 = vmul.f32 %v2794, %v2872
  %v2905 = vmul.f32 %v2797, %v2873
  %v2906 = vmul.f32 %v2800, %v2874
  %v2907 = vmul.f32 %v2803, %v2875
  %v2908 = vmul.f32 %v2806, %v2876
  %v2909 = vmul.f32 %v2809, %v2877
  %v2910 = vmul.f32 %v2812, %v2878
  %v2911 = vmul.f32 %v2815, %v2879
  %v2912 = vmul.f32 %v2818, %v2880
  %v2913 = vmul.f32 %v2821, %v2881
  %v2914 = vmul.f32 %v2824, %v2882
  %v2915 = vmul.f32 %v2827, %v2883
  %v2916 = vmul.f32 %v2830, %v2884
  %v2917 = vmul.f32 %v2833, %v2885
  %v2918 = vmul.f32 %v2836, %v2886
  %v2919 = vmul.f32 %v2839, %v2887
  %v2920 = vmul.f32 %v2842, %v2888
  %v2921 = vmul.f32 %v2845, %v2889
  %v2922 = vmul.f32 %v2848, %v2890
  %v2923 = vmul.f32 %v2851, %v2891
  %v2924 = vmul.f32 %v2854, %v2892
  %v2925 = vmul.f32 %v2857, %v2893
  %v2926 = vmul.f32 %v2860, %v2894
  %v2927 = vmul.f32 %v2863, %v2895
  %v2928 = vsub.f32 2.0, %v2896
  %v2929 = vsub.f32 2.0, %v2897
  %v2930 = vsub.f32 2.0, %v2898
  %v2931 = vsub.f32 2.0, %v2899
  %v2932 = vsub.f32 2.0, %v2900
  %v2933 = vsub.f32 2.0, %v2901
  %v2934 = vsub.f32 2.0, %v2902
  %v2935 = vsub.f32 2.0, %v2903
  %v2936 = vsub.f32 2.0, %v2904
  %v2937 = vsub.f32 2.0, %v2905
  %v2938 = vsub.f32 2.0, %v2906
  %v2939 = vsub.f32 2.0, %v2907
  %v2940 = vsub.f32 2.0, %v2908
  %v2941 = vsub.f32 2.0, %v2909
  %v2942 = vsub.f32 2.0, %v2910
  %v2943 = vsub.f32 2.0, %v2911
  %v2944 = vsub.f32 2.0, %v2912
  %v2945 = vsub.f32 2.0, %v2913
  %v2946 = vsub.f32 2.0, %v2914
  %v2947 = vsub.f32 2.0, %v2915
  %v2948 = vsub.f32 2.0, %v2916
  %v2949 = vsub.f32 2.0, %v2917
  %v2950 = vsub.f32 2.0, %v2918
  %v2951 = vsub.f32 2.0, %v2919
  %v2952 = vsub.f32 2.0, %v2920
  %v2953 = vsub.f32 2.0, %v2921
  %v2954 = vsub.f32 2.0, %v2922
  %v2955 = vsub.f32 2.0, %v2923
  %v2956 = vsub.f32 2.0, %v2924
  %v2957 = vsub.f32 2.0, %v2925
  %v2958 = vsub.f32 2.0, %v2926
  %v2959 = vsub.f32 2.0, %v2927
  %v2960 = vmul.f32 %v2864, %v2928
  %v2961 = vmul.f32 %v2865, %v2929
  %v2962 = vmul.f32 %v2866, %v2930
  %v2963 = vmul.f32 %v2867, %v2931
  %v2964 = vmul.f32 %v2868, %v2932
  %v2965 = vmul.f32 %v2869, %v2933
  %v2966 = vmul.f32 %v2870, %v2934
  %v2967 = vmul.f32 %v2871, %v2935
  %v2968 = vmul.f32 %v2872, %v2936
  %v2969 = vmul.f32 %v2873, %v2937
  %v2970 = vmul.f32 %v2874, %v2938
  %v2971 = vmul.f32 %v2875, %v2939
  %v2972 = vmul.f32 %v2876, %v2940
  %v2973 = vmul.f32 %v2877, %v2941
  %v2974 = vmul.f32 %v2878, %v2942
  %v2975 = vmul.f32 %v2879, %v2943
  %v2976 = vmul.f32 %v2880, %v2944
  %v2977 = vmul.f32 %v2881, %v2945
  %v2978 = vmul.f32 %v2882, %v2946
  %v2979 = vmul.f32 %v2883, %v2947
  %v2980 = vmul.f32 %v2884, %v2948
  %v2981 = vmul.f32 %v2885, %v2949
  %v2982 = vmul.f32 %v2886, %v2950
  %v2983 = vmul.f32 %v2887, %v2951
  %v2984 = vmul.f32 %v2888, %v2952
  %v2985 = vmul.f32 %v2889, %v2953
  %v2986 = vmul.f32 %v2890, %v2954
  %v2987 = vmul.f32 %v2891, %v2955
  %v2988 = vmul.f32 %v2892, %v2956
  %v2989 = vmul.f32 %v2893, %v2957
  %v2990 = vmul.f32 %v2894, %v2958
  %v2991 = vmul.f32 %v2895, %v2959
  %v2992 = vmul.f32 %v2705, %v2960
  %v2993 = vmul.f32 %v2707, %v2961
  %v2994 = vmul.f32 %v2709, %v2962
  %v2995 = vmul.f32 %v2711, %v2963
  %v2996 = vmul.f32 %v2713, %v2964
  %v2997 = vmul.f32 %v2715, %v2965
  %v2998 = vmul.f32 %v2717, %v2966
  %v2999 = vmul.f32 %v2719, %v2967
  %v3000 = vmul.f32 %v2721, %v2968
  %v3001 = vmul.f32 %v2723, %v2969
  %v3002 = vmul.f32 %v2725, %v2970
  %v3003 = vmul.f32 %v2727, %v2971
  %v3004 = vmul.f32 %v2729, %v2972
  %v3005 = vmul.f32 %v2731, %v2973
  %v3006 = vmul.f32 %v2733, %v2974
  %v3007 = vmul.f32 %v2735, %v2975
  %v3008 = vmul.f32 %v2737, %v2976
  %v3009 = vmul.f32 %v2739, %v2977
  %v3010 = vmul.f32 %v2741, %v2978
  %v3011 = vmul.f32 %v2743, %v2979
  %v3012 = vmul.f32 %v2745, %v2980
  %v3013 = vmul.f32 %v2747, %v2981
  %v3014 = vmul.f32 %v2749, %v2982
  %v3015 = vmul.f32 %v2751, %v2983
  %v3016 = vmul.f32 %v2753, %v2984
  %v3017 = vmul.f32 %v2755, %v2985
  %v3018 = vmul.f32 %v2757, %v2986
  %v3019 = vmul.f32 %v2759, %v2987
  %v3020 = vmul.f32 %v2761, %v2988
  %v3021 = vmul.f32 %v2763, %v2989
  %v3022 = vmul.f32 %v2765, %v2990
  %v3023 = vmul.f32 %v2767, %v2991
  %vm3024 = vcmask 15360
  %v3026 = vsel %vm3024, %v2992, 0
  %vm3028 = vcmask 1041408
  %v3030 = vsel %vm3028, %v78, 0
  %3032 = vmatprep.subr.mxu0 0.0
  %3033 = vmatpush1.msra.mxu0 %v3030
  %3034 = vmatprep.subr.mxu0 0.0
  %3035 = vmatpush1.msra.mxu0 0.0
  %3036 = vmatprep.subr.mxu0 0.0
  %3037 = vmatpush1.msra.mxu0 0.0
  %3038 = vmatprep.subr.mxu0 0.0
  %3039 = vmatpush1.msra.mxu0 0.0
  %3040 = vmatprep.subr.mxu0 0.0
  %3041 = vmatpush1.msra.mxu0 0.0
  %3042 = vmatprep.subr.mxu0 0.0
  %3043 = vmatpush1.msra.mxu0 0.0
  %3044 = vmatprep.subr.mxu0 0.0
  %3045 = vmatpush1.msra.mxu0 0.0
  %3046 = vmatprep.subr.mxu0 0.0
  %3047 = vmatpush1.msra.mxu0 0.0
  %3048 = vmatprep.subr.mxu0 0.0
  %3049 = vmatpush1.msra.mxu0 0.0
  %3050 = vmatprep.subr.mxu0 0.0
  %3051 = vmatpush1.msra.mxu0 0.0
  %3052 = vmatprep.subr.mxu0 0.0
  %3053 = vmatpush1.msra.mxu0 0.0
  %3054 = vmatprep.subr.mxu0 0.0
  %3055 = vmatpush1.msra.mxu0 0.0
  %3056 = vmatprep.subr.mxu0 0.0
  %3057 = vmatpush1.msra.mxu0 0.0
  %3058 = vmatprep.subr.mxu0 0.0
  %3059 = vmatpush1.msra.mxu0 0.0
  %3060 = vmatprep.subr.mxu0 0.0
  %3061 = vmatpush1.msra.mxu0 0.0
  %3062 = vmatprep.subr.mxu0 0.0
  %3063 = vmatpush1.msra.mxu0 0.0
  %3064 = vmatprep.subr.mxu0 0.0
  %3065 = vmatpush1.msra.mxu0 0.0
  %3066 = vmatprep.subr.mxu0 0.0
  %3067 = vmatpush1.msra.mxu0 0.0
  %3068 = vmatprep.subr.mxu0 0.0
  %3069 = vmatpush1.msra.mxu0 0.0
  %3070 = vmatprep.subr.mxu0 0.0
  %3071 = vmatpush1.msra.mxu0 0.0
  %3072 = vmatprep.subr.mxu0 0.0
  %3073 = vmatpush1.msra.mxu0 0.0
  %3074 = vmatprep.subr.mxu0 0.0
  %3075 = vmatpush1.msra.mxu0 0.0
  %3076 = vmatprep.subr.mxu0 0.0
  %3077 = vmatpush1.msra.mxu0 0.0
  %3078 = vmatprep.subr.mxu0 0.0
  %3079 = vmatpush1.msra.mxu0 0.0
  %3080 = vmatprep.subr.mxu0 0.0
  %3081 = vmatpush1.msra.mxu0 0.0
  %3082 = vmatprep.subr.mxu0 0.0
  %3083 = vmatpush1.msra.mxu0 0.0
  %3084 = vmatprep.subr.mxu0 0.0
  %3085 = vmatpush1.msra.mxu0 0.0
  %3086 = vmatprep.subr.mxu0 0.0
  %3087 = vmatpush1.msra.mxu0 0.0
  %3088 = vmatprep.subr.mxu0 0.0
  %3089 = vmatpush1.msra.mxu0 0.0
  %3090 = vmatprep.subr.mxu0 0.0
  %3091 = vmatpush1.msra.mxu0 0.0
  %3092 = vmatprep.subr.mxu0 0.0
  %3093 = vmatpush1.msra.mxu0 0.0
  %3094 = vmatprep.subr.mxu0 0.0
  %3095 = vmatpush1.msra.mxu0 0.0
  %3096 = vmatprep.mubr.f32.mxu0 0.0
  %3097 = vmatmul.mubr.f32.gmra.mrb[0].mxu0 %v3026
  %v3098 = vpop.f32.mrb[0].mxu0
  %v3099 = vadd.f32 0.0, %v3098
  %v3100 = vpop.f32.mrb[0].mxu0
  %3101 = vdwg.mxu0
  %v3103 = vsel %vm3024, %v2993, 0
  %v3106 = vsel %vm3028, %v79, 0
  %3108 = vmatprep.subr.mxu0 0.0
  %3109 = vmatpush1.msra.mxu0 %v3106
  %3110 = vmatprep.subr.mxu0 0.0
  %3111 = vmatpush1.msra.mxu0 0.0
  %3112 = vmatprep.subr.mxu0 0.0
  %3113 = vmatpush1.msra.mxu0 0.0
  %3114 = vmatprep.subr.mxu0 0.0
  %3115 = vmatpush1.msra.mxu0 0.0
  %3116 = vmatprep.subr.mxu0 0.0
  %3117 = vmatpush1.msra.mxu0 0.0
  %3118 = vmatprep.subr.mxu0 0.0
  %3119 = vmatpush1.msra.mxu0 0.0
  %3120 = vmatprep.subr.mxu0 0.0
  %3121 = vmatpush1.msra.mxu0 0.0
  %3122 = vmatprep.subr.mxu0 0.0
  %3123 = vmatpush1.msra.mxu0 0.0
  %3124 = vmatprep.subr.mxu0 0.0
  %3125 = vmatpush1.msra.mxu0 0.0
  %3126 = vmatprep.subr.mxu0 0.0
  %3127 = vmatpush1.msra.mxu0 0.0
  %3128 = vmatprep.subr.mxu0 0.0
  %3129 = vmatpush1.msra.mxu0 0.0
  %3130 = vmatprep.subr.mxu0 0.0
  %3131 = vmatpush1.msra.mxu0 0.0
  %3132 = vmatprep.subr.mxu0 0.0
  %3133 = vmatpush1.msra.mxu0 0.0
  %3134 = vmatprep.subr.mxu0 0.0
  %3135 = vmatpush1.msra.mxu0 0.0
  %3136 = vmatprep.subr.mxu0 0.0
  %3137 = vmatpush1.msra.mxu0 0.0
  %3138 = vmatprep.subr.mxu0 0.0
  %3139 = vmatpush1.msra.mxu0 0.0
  %3140 = vmatprep.subr.mxu0 0.0
  %3141 = vmatpush1.msra.mxu0 0.0
  %3142 = vmatprep.subr.mxu0 0.0
  %3143 = vmatpush1.msra.mxu0 0.0
  %3144 = vmatprep.subr.mxu0 0.0
  %3145 = vmatpush1.msra.mxu0 0.0
  %3146 = vmatprep.subr.mxu0 0.0
  %3147 = vmatpush1.msra.mxu0 0.0
  %3148 = vmatprep.subr.mxu0 0.0
  %3149 = vmatpush1.msra.mxu0 0.0
  %3150 = vmatprep.subr.mxu0 0.0
  %3151 = vmatpush1.msra.mxu0 0.0
  %3152 = vmatprep.subr.mxu0 0.0
  %3153 = vmatpush1.msra.mxu0 0.0
  %3154 = vmatprep.subr.mxu0 0.0
  %3155 = vmatpush1.msra.mxu0 0.0
  %3156 = vmatprep.subr.mxu0 0.0
  %3157 = vmatpush1.msra.mxu0 0.0
  %3158 = vmatprep.subr.mxu0 0.0
  %3159 = vmatpush1.msra.mxu0 0.0
  %3160 = vmatprep.subr.mxu0 0.0
  %3161 = vmatpush1.msra.mxu0 0.0
  %3162 = vmatprep.subr.mxu0 0.0
  %3163 = vmatpush1.msra.mxu0 0.0
  %3164 = vmatprep.subr.mxu0 0.0
  %3165 = vmatpush1.msra.mxu0 0.0
  %3166 = vmatprep.subr.mxu0 0.0
  %3167 = vmatpush1.msra.mxu0 0.0
  %3168 = vmatprep.subr.mxu0 0.0
  %3169 = vmatpush1.msra.mxu0 0.0
  %3170 = vmatprep.subr.mxu0 0.0
  %3171 = vmatpush1.msra.mxu0 0.0
  %3172 = vmatprep.mubr.f32.mxu0 0.0
  %3173 = vmatmul.mubr.f32.gmra.mrb[0].mxu0 %v3103
  %v3174 = vpop.f32.mrb[0].mxu0
  %v3175 = vadd.f32 0.0, %v3174
  %v3176 = vpop.f32.mrb[0].mxu0
  %3177 = vdwg.mxu0
  %v3179 = vsel %vm3024, %v2994, 0
  %v3182 = vsel %vm3028, %v80, 0
  %3184 = vmatprep.subr.mxu0 0.0
  %3185 = vmatpush1.msra.mxu0 %v3182
  %3186 = vmatprep.subr.mxu0 0.0
  %3187 = vmatpush1.msra.mxu0 0.0
  %3188 = vmatprep.subr.mxu0 0.0
  %3189 = vmatpush1.msra.mxu0 0.0
  %3190 = vmatprep.subr.mxu0 0.0
  %3191 = vmatpush1.msra.mxu0 0.0
  %3192 = vmatprep.subr.mxu0 0.0
  %3193 = vmatpush1.msra.mxu0 0.0
  %3194 = vmatprep.subr.mxu0 0.0
  %3195 = vmatpush1.msra.mxu0 0.0
  %3196 = vmatprep.subr.mxu0 0.0
  %3197 = vmatpush1.msra.mxu0 0.0
  %3198 = vmatprep.subr.mxu0 0.0
  %3199 = vmatpush1.msra.mxu0 0.0
  %3200 = vmatprep.subr.mxu0 0.0
  %3201 = vmatpush1.msra.mxu0 0.0
  %3202 = vmatprep.subr.mxu0 0.0
  %3203 = vmatpush1.msra.mxu0 0.0
  %3204 = vmatprep.subr.mxu0 0.0
  %3205 = vmatpush1.msra.mxu0 0.0
  %3206 = vmatprep.subr.mxu0 0.0
  %3207 = vmatpush1.msra.mxu0 0.0
  %3208 = vmatprep.subr.mxu0 0.0
  %3209 = vmatpush1.msra.mxu0 0.0
  %3210 = vmatprep.subr.mxu0 0.0
  %3211 = vmatpush1.msra.mxu0 0.0
  %3212 = vmatprep.subr.mxu0 0.0
  %3213 = vmatpush1.msra.mxu0 0.0
  %3214 = vmatprep.subr.mxu0 0.0
  %3215 = vmatpush1.msra.mxu0 0.0
  %3216 = vmatprep.subr.mxu0 0.0
  %3217 = vmatpush1.msra.mxu0 0.0
  %3218 = vmatprep.subr.mxu0 0.0
  %3219 = vmatpush1.msra.mxu0 0.0
  %3220 = vmatprep.subr.mxu0 0.0
  %3221 = vmatpush1.msra.mxu0 0.0
  %3222 = vmatprep.subr.mxu0 0.0
  %3223 = vmatpush1.msra.mxu0 0.0
  %3224 = vmatprep.subr.mxu0 0.0
  %3225 = vmatpush1.msra.mxu0 0.0
  %3226 = vmatprep.subr.mxu0 0.0
  %3227 = vmatpush1.msra.mxu0 0.0
  %3228 = vmatprep.subr.mxu0 0.0
  %3229 = vmatpush1.msra.mxu0 0.0
  %3230 = vmatprep.subr.mxu0 0.0
  %3231 = vmatpush1.msra.mxu0 0.0
  %3232 = vmatprep.subr.mxu0 0.0
  %3233 = vmatpush1.msra.mxu0 0.0
  %3234 = vmatprep.subr.mxu0 0.0
  %3235 = vmatpush1.msra.mxu0 0.0
  %3236 = vmatprep.subr.mxu0 0.0
  %3237 = vmatpush1.msra.mxu0 0.0
  %3238 = vmatprep.subr.mxu0 0.0
  %3239 = vmatpush1.msra.mxu0 0.0
  %3240 = vmatprep.subr.mxu0 0.0
  %3241 = vmatpush1.msra.mxu0 0.0
  %3242 = vmatprep.subr.mxu0 0.0
  %3243 = vmatpush1.msra.mxu0 0.0
  %3244 = vmatprep.subr.mxu0 0.0
  %3245 = vmatpush1.msra.mxu0 0.0
  %3246 = vmatprep.subr.mxu0 0.0
  %3247 = vmatpush1.msra.mxu0 0.0
  %3248 = vmatprep.mubr.f32.mxu0 0.0
  %3249 = vmatmul.mubr.f32.gmra.mrb[0].mxu0 %v3179
  %v3250 = vpop.f32.mrb[0].mxu0
  %v3251 = vadd.f32 0.0, %v3250
  %v3252 = vpop.f32.mrb[0].mxu0
  %3253 = vdwg.mxu0
  %v3255 = vsel %vm3024, %v2995, 0
  %v3258 = vsel %vm3028, %v81, 0
  %3260 = vmatprep.subr.mxu0 0.0
  %3261 = vmatpush1.msra.mxu0 %v3258
  %3262 = vmatprep.subr.mxu0 0.0
  %3263 = vmatpush1.msra.mxu0 0.0
  %3264 = vmatprep.subr.mxu0 0.0
  %3265 = vmatpush1.msra.mxu0 0.0
  %3266 = vmatprep.subr.mxu0 0.0
  %3267 = vmatpush1.msra.mxu0 0.0
  %3268 = vmatprep.subr.mxu0 0.0
  %3269 = vmatpush1.msra.mxu0 0.0
  %3270 = vmatprep.subr.mxu0 0.0
  %3271 = vmatpush1.msra.mxu0 0.0
  %3272 = vmatprep.subr.mxu0 0.0
  %3273 = vmatpush1.msra.mxu0 0.0
  %3274 = vmatprep.subr.mxu0 0.0
  %3275 = vmatpush1.msra.mxu0 0.0
  %3276 = vmatprep.subr.mxu0 0.0
  %3277 = vmatpush1.msra.mxu0 0.0
  %3278 = vmatprep.subr.mxu0 0.0
  %3279 = vmatpush1.msra.mxu0 0.0
  %3280 = vmatprep.subr.mxu0 0.0
  %3281 = vmatpush1.msra.mxu0 0.0
  %3282 = vmatprep.subr.mxu0 0.0
  %3283 = vmatpush1.msra.mxu0 0.0
  %3284 = vmatprep.subr.mxu0 0.0
  %3285 = vmatpush1.msra.mxu0 0.0
  %3286 = vmatprep.subr.mxu0 0.0
  %3287 = vmatpush1.msra.mxu0 0.0
  %3288 = vmatprep.subr.mxu0 0.0
  %3289 = vmatpush1.msra.mxu0 0.0
  %3290 = vmatprep.subr.mxu0 0.0
  %3291 = vmatpush1.msra.mxu0 0.0
  %3292 = vmatprep.subr.mxu0 0.0
  %3293 = vmatpush1.msra.mxu0 0.0
  %3294 = vmatprep.subr.mxu0 0.0
  %3295 = vmatpush1.msra.mxu0 0.0
  %3296 = vmatprep.subr.mxu0 0.0
  %3297 = vmatpush1.msra.mxu0 0.0
  %3298 = vmatprep.subr.mxu0 0.0
  %3299 = vmatpush1.msra.mxu0 0.0
  %3300 = vmatprep.subr.mxu0 0.0
  %3301 = vmatpush1.msra.mxu0 0.0
  %3302 = vmatprep.subr.mxu0 0.0
  %3303 = vmatpush1.msra.mxu0 0.0
  %3304 = vmatprep.subr.mxu0 0.0
  %3305 = vmatpush1.msra.mxu0 0.0
  %3306 = vmatprep.subr.mxu0 0.0
  %3307 = vmatpush1.msra.mxu0 0.0
  %3308 = vmatprep.subr.mxu0 0.0
  %3309 = vmatpush1.msra.mxu0 0.0
  %3310 = vmatprep.subr.mxu0 0.0
  %3311 = vmatpush1.msra.mxu0 0.0
  %3312 = vmatprep.subr.mxu0 0.0
  %3313 = vmatpush1.msra.mxu0 0.0
  %3314 = vmatprep.subr.mxu0 0.0
  %3315 = vmatpush1.msra.mxu0 0.0
  %3316 = vmatprep.subr.mxu0 0.0
  %3317 = vmatpush1.msra.mxu0 0.0
  %3318 = vmatprep.subr.mxu0 0.0
  %3319 = vmatpush1.msra.mxu0 0.0
  %3320 = vmatprep.subr.mxu0 0.0
  %3321 = vmatpush1.msra.mxu0 0.0
  %3322 = vmatprep.subr.mxu0 0.0
  %3323 = vmatpush1.msra.mxu0 0.0
  %3324 = vmatprep.mubr.f32.mxu0 0.0
  %3325 = vmatmul.mubr.f32.gmra.mrb[0].mxu0 %v3255
  %v3326 = vpop.f32.mrb[0].mxu0
  %v3327 = vadd.f32 0.0, %v3326
  %v3328 = vpop.f32.mrb[0].mxu0
  %3329 = vdwg.mxu0
  %v3331 = vsel %vm3024, %v2996, 0
  %v3334 = vsel %vm3028, %v82, 0
  %3336 = vmatprep.subr.mxu0 0.0
  %3337 = vmatpush1.msra.mxu0 %v3334
  %3338 = vmatprep.subr.mxu0 0.0
  %3339 = vmatpush1.msra.mxu0 0.0
  %3340 = vmatprep.subr.mxu0 0.0
  %3341 = vmatpush1.msra.mxu0 0.0
  %3342 = vmatprep.subr.mxu0 0.0
  %3343 = vmatpush1.msra.mxu0 0.0
  %3344 = vmatprep.subr.mxu0 0.0
  %3345 = vmatpush1.msra.mxu0 0.0
  %3346 = vmatprep.subr.mxu0 0.0
  %3347 = vmatpush1.msra.mxu0 0.0
  %3348 = vmatprep.subr.mxu0 0.0
  %3349 = vmatpush1.msra.mxu0 0.0
  %3350 = vmatprep.subr.mxu0 0.0
  %3351 = vmatpush1.msra.mxu0 0.0
  %3352 = vmatprep.subr.mxu0 0.0
  %3353 = vmatpush1.msra.mxu0 0.0
  %3354 = vmatprep.subr.mxu0 0.0
  %3355 = vmatpush1.msra.mxu0 0.0
  %3356 = vmatprep.subr.mxu0 0.0
  %3357 = vmatpush1.msra.mxu0 0.0
  %3358 = vmatprep.subr.mxu0 0.0
  %3359 = vmatpush1.msra.mxu0 0.0
  %3360 = vmatprep.subr.mxu0 0.0
  %3361 = vmatpush1.msra.mxu0 0.0
  %3362 = vmatprep.subr.mxu0 0.0
  %3363 = vmatpush1.msra.mxu0 0.0
  %3364 = vmatprep.subr.mxu0 0.0
  %3365 = vmatpush1.msra.mxu0 0.0
  %3366 = vmatprep.subr.mxu0 0.0
  %3367 = vmatpush1.msra.mxu0 0.0
  %3368 = vmatprep.subr.mxu0 0.0
  %3369 = vmatpush1.msra.mxu0 0.0
  %3370 = vmatprep.subr.mxu0 0.0
  %3371 = vmatpush1.msra.mxu0 0.0
  %3372 = vmatprep.subr.mxu0 0.0
  %3373 = vmatpush1.msra.mxu0 0.0
  %3374 = vmatprep.subr.mxu0 0.0
  %3375 = vmatpush1.msra.mxu0 0.0
  %3376 = vmatprep.subr.mxu0 0.0
  %3377 = vmatpush1.msra.mxu0 0.0
  %3378 = vmatprep.subr.mxu0 0.0
  %3379 = vmatpush1.msra.mxu0 0.0
  %3380 = vmatprep.subr.mxu0 0.0
  %3381 = vmatpush1.msra.mxu0 0.0
  %3382 = vmatprep.subr.mxu0 0.0
  %3383 = vmatpush1.msra.mxu0 0.0
  %3384 = vmatprep.subr.mxu0 0.0
  %3385 = vmatpush1.msra.mxu0 0.0
  %3386 = vmatprep.subr.mxu0 0.0
  %3387 = vmatpush1.msra.mxu0 0.0
  %3388 = vmatprep.subr.mxu0 0.0
  %3389 = vmatpush1.msra.mxu0 0.0
  %3390 = vmatprep.subr.mxu0 0.0
  %3391 = vmatpush1.msra.mxu0 0.0
  %3392 = vmatprep.subr.mxu0 0.0
  %3393 = vmatpush1.msra.mxu0 0.0
  %3394 = vmatprep.subr.mxu0 0.0
  %3395 = vmatpush1.msra.mxu0 0.0
  %3396 = vmatprep.subr.mxu0 0.0
  %3397 = vmatpush1.msra.mxu0 0.0
  %3398 = vmatprep.subr.mxu0 0.0
  %3399 = vmatpush1.msra.mxu0 0.0
  %3400 = vmatprep.mubr.f32.mxu0 0.0
  %3401 = vmatmul.mubr.f32.gmra.mrb[0].mxu0 %v3331
  %v3402 = vpop.f32.mrb[0].mxu0
  %v3403 = vadd.f32 0.0, %v3402
  %v3404 = vpop.f32.mrb[0].mxu0
  %3405 = vdwg.mxu0
  %v3407 = vsel %vm3024, %v2997, 0
  %v3410 = vsel %vm3028, %v83, 0
  %3412 = vmatprep.subr.mxu0 0.0
  %3413 = vmatpush1.msra.mxu0 %v3410
  %3414 = vmatprep.subr.mxu0 0.0
  %3415 = vmatpush1.msra.mxu0 0.0
  %3416 = vmatprep.subr.mxu0 0.0
  %3417 = vmatpush1.msra.mxu0 0.0
  %3418 = vmatprep.subr.mxu0 0.0
  %3419 = vmatpush1.msra.mxu0 0.0
  %3420 = vmatprep.subr.mxu0 0.0
  %3421 = vmatpush1.msra.mxu0 0.0
  %3422 = vmatprep.subr.mxu0 0.0
  %3423 = vmatpush1.msra.mxu0 0.0
  %3424 = vmatprep.subr.mxu0 0.0
  %3425 = vmatpush1.msra.mxu0 0.0
  %3426 = vmatprep.subr.mxu0 0.0
  %3427 = vmatpush1.msra.mxu0 0.0
  %3428 = vmatprep.subr.mxu0 0.0
  %3429 = vmatpush1.msra.mxu0 0.0
  %3430 = vmatprep.subr.mxu0 0.0
  %3431 = vmatpush1.msra.mxu0 0.0
  %3432 = vmatprep.subr.mxu0 0.0
  %3433 = vmatpush1.msra.mxu0 0.0
  %3434 = vmatprep.subr.mxu0 0.0
  %3435 = vmatpush1.msra.mxu0 0.0
  %3436 = vmatprep.subr.mxu0 0.0
  %3437 = vmatpush1.msra.mxu0 0.0
  %3438 = vmatprep.subr.mxu0 0.0
  %3439 = vmatpush1.msra.mxu0 0.0
  %3440 = vmatprep.subr.mxu0 0.0
  %3441 = vmatpush1.msra.mxu0 0.0
  %3442 = vmatprep.subr.mxu0 0.0
  %3443 = vmatpush1.msra.mxu0 0.0
  %3444 = vmatprep.subr.mxu0 0.0
  %3445 = vmatpush1.msra.mxu0 0.0
  %3446 = vmatprep.subr.mxu0 0.0
  %3447 = vmatpush1.msra.mxu0 0.0
  %3448 = vmatprep.subr.mxu0 0.0
  %3449 = vmatpush1.msra.mxu0 0.0
  %3450 = vmatprep.subr.mxu0 0.0
  %3451 = vmatpush1.msra.mxu0 0.0
  %3452 = vmatprep.subr.mxu0 0.0
  %3453 = vmatpush1.msra.mxu0 0.0
  %3454 = vmatprep.subr.mxu0 0.0
  %3455 = vmatpush1.msra.mxu0 0.0
  %3456 = vmatprep.subr.mxu0 0.0
  %3457 = vmatpush1.msra.mxu0 0.0
  %3458 = vmatprep.subr.mxu0 0.0
  %3459 = vmatpush1.msra.mxu0 0.0
  %3460 = vmatprep.subr.mxu0 0.0
  %3461 = vmatpush1.msra.mxu0 0.0
  %3462 = vmatprep.subr.mxu0 0.0
  %3463 = vmatpush1.msra.mxu0 0.0
  %3464 = vmatprep.subr.mxu0 0.0
  %3465 = vmatpush1.msra.mxu0 0.0
  %3466 = vmatprep.subr.mxu0 0.0
  %3467 = vmatpush1.msra.mxu0 0.0
  %3468 = vmatprep.subr.mxu0 0.0
  %3469 = vmatpush1.msra.mxu0 0.0
  %3470 = vmatprep.subr.mxu0 0.0
  %3471 = vmatpush1.msra.mxu0 0.0
  %3472 = vmatprep.subr.mxu0 0.0
  %3473 = vmatpush1.msra.mxu0 0.0
  %3474 = vmatprep.subr.mxu0 0.0
  %3475 = vmatpush1.msra.mxu0 0.0
  %3476 = vmatprep.mubr.f32.mxu0 0.0
  %3477 = vmatmul.mubr.f32.gmra.mrb[0].mxu0 %v3407
  %v3478 = vpop.f32.mrb[0].mxu0
  %v3479 = vadd.f32 0.0, %v3478
  %v3480 = vpop.f32.mrb[0].mxu0
  %3481 = vdwg.mxu0
  %v3483 = vsel %vm3024, %v2998, 0
  %v3486 = vsel %vm3028, %v84, 0
  %3488 = vmatprep.subr.mxu0 0.0
  %3489 = vmatpush1.msra.mxu0 %v3486
  %3490 = vmatprep.subr.mxu0 0.0
  %3491 = vmatpush1.msra.mxu0 0.0
  %3492 = vmatprep.subr.mxu0 0.0
  %3493 = vmatpush1.msra.mxu0 0.0
  %3494 = vmatprep.subr.mxu0 0.0
  %3495 = vmatpush1.msra.mxu0 0.0
  %3496 = vmatprep.subr.mxu0 0.0
  %3497 = vmatpush1.msra.mxu0 0.0
  %3498 = vmatprep.subr.mxu0 0.0
  %3499 = vmatpush1.msra.mxu0 0.0
  %3500 = vmatprep.subr.mxu0 0.0
  %3501 = vmatpush1.msra.mxu0 0.0
  %3502 = vmatprep.subr.mxu0 0.0
  %3503 = vmatpush1.msra.mxu0 0.0
  %3504 = vmatprep.subr.mxu0 0.0
  %3505 = vmatpush1.msra.mxu0 0.0
  %3506 = vmatprep.subr.mxu0 0.0
  %3507 = vmatpush1.msra.mxu0 0.0
  %3508 = vmatprep.subr.mxu0 0.0
  %3509 = vmatpush1.msra.mxu0 0.0
  %3510 = vmatprep.subr.mxu0 0.0
  %3511 = vmatpush1.msra.mxu0 0.0
  %3512 = vmatprep.subr.mxu0 0.0
  %3513 = vmatpush1.msra.mxu0 0.0
  %3514 = vmatprep.subr.mxu0 0.0
  %3515 = vmatpush1.msra.mxu0 0.0
  %3516 = vmatprep.subr.mxu0 0.0
  %3517 = vmatpush1.msra.mxu0 0.0
  %3518 = vmatprep.subr.mxu0 0.0
  %3519 = vmatpush1.msra.mxu0 0.0
  %3520 = vmatprep.subr.mxu0 0.0
  %3521 = vmatpush1.msra.mxu0 0.0
  %3522 = vmatprep.subr.mxu0 0.0
  %3523 = vmatpush1.msra.mxu0 0.0
  %3524 = vmatprep.subr.mxu0 0.0
  %3525 = vmatpush1.msra.mxu0 0.0
  %3526 = vmatprep.subr.mxu0 0.0
  %3527 = vmatpush1.msra.mxu0 0.0
  %3528 = vmatprep.subr.mxu0 0.0
  %3529 = vmatpush1.msra.mxu0 0.0
  %3530 = vmatprep.subr.mxu0 0.0
  %3531 = vmatpush1.msra.mxu0 0.0
  %3532 = vmatprep.subr.mxu0 0.0
  %3533 = vmatpush1.msra.mxu0 0.0
  %3534 = vmatprep.subr.mxu0 0.0
  %3535 = vmatpush1.msra.mxu0 0.0
  %3536 = vmatprep.subr.mxu0 0.0
  %3537 = vmatpush1.msra.mxu0 0.0
  %3538 = vmatprep.subr.mxu0 0.0
  %3539 = vmatpush1.msra.mxu0 0.0
  %3540 = vmatprep.subr.mxu0 0.0
  %3541 = vmatpush1.msra.mxu0 0.0
  %3542 = vmatprep.subr.mxu0 0.0
  %3543 = vmatpush1.msra.mxu0 0.0
  %3544 = vmatprep.subr.mxu0 0.0
  %3545 = vmatpush1.msra.mxu0 0.0
  %3546 = vmatprep.subr.mxu0 0.0
  %3547 = vmatpush1.msra.mxu0 0.0
  %3548 = vmatprep.subr.mxu0 0.0
  %3549 = vmatpush1.msra.mxu0 0.0
  %3550 = vmatprep.subr.mxu0 0.0
  %3551 = vmatpush1.msra.mxu0 0.0
  %3552 = vmatprep.mubr.f32.mxu0 0.0
  %3553 = vmatmul.mubr.f32.gmra.mrb[0].mxu0 %v3483
  %v3554 = vpop.f32.mrb[0].mxu0
  %v3555 = vadd.f32 0.0, %v3554
  %v3556 = vpop.f32.mrb[0].mxu0
  %3557 = vdwg.mxu0
  %v3559 = vsel %vm3024, %v2999, 0
  %v3562 = vsel %vm3028, %v85, 0
  %3564 = vmatprep.subr.mxu0 0.0
  %3565 = vmatpush1.msra.mxu0 %v3562
  %3566 = vmatprep.subr.mxu0 0.0
  %3567 = vmatpush1.msra.mxu0 0.0
  %3568 = vmatprep.subr.mxu0 0.0
  %3569 = vmatpush1.msra.mxu0 0.0
  %3570 = vmatprep.subr.mxu0 0.0
  %3571 = vmatpush1.msra.mxu0 0.0
  %3572 = vmatprep.subr.mxu0 0.0
  %3573 = vmatpush1.msra.mxu0 0.0
  %3574 = vmatprep.subr.mxu0 0.0
  %3575 = vmatpush1.msra.mxu0 0.0
  %3576 = vmatprep.subr.mxu0 0.0
  %3577 = vmatpush1.msra.mxu0 0.0
  %3578 = vmatprep.subr.mxu0 0.0
  %3579 = vmatpush1.msra.mxu0 0.0
  %3580 = vmatprep.subr.mxu0 0.0
  %3581 = vmatpush1.msra.mxu0 0.0
  %3582 = vmatprep.subr.mxu0 0.0
  %3583 = vmatpush1.msra.mxu0 0.0
  %3584 = vmatprep.subr.mxu0 0.0
  %3585 = vmatpush1.msra.mxu0 0.0
  %3586 = vmatprep.subr.mxu0 0.0
  %3587 = vmatpush1.msra.mxu0 0.0
  %3588 = vmatprep.subr.mxu0 0.0
  %3589 = vmatpush1.msra.mxu0 0.0
  %3590 = vmatprep.subr.mxu0 0.0
  %3591 = vmatpush1.msra.mxu0 0.0
  %3592 = vmatprep.subr.mxu0 0.0
  %3593 = vmatpush1.msra.mxu0 0.0
  %3594 = vmatprep.subr.mxu0 0.0
  %3595 = vmatpush1.msra.mxu0 0.0
  %3596 = vmatprep.subr.mxu0 0.0
  %3597 = vmatpush1.msra.mxu0 0.0
  %3598 = vmatprep.subr.mxu0 0.0
  %3599 = vmatpush1.msra.mxu0 0.0
  %3600 = vmatprep.subr.mxu0 0.0
  %3601 = vmatpush1.msra.mxu0 0.0
  %3602 = vmatprep.subr.mxu0 0.0
  %3603 = vmatpush1.msra.mxu0 0.0
  %3604 = vmatprep.subr.mxu0 0.0
  %3605 = vmatpush1.msra.mxu0 0.0
  %3606 = vmatprep.subr.mxu0 0.0
  %3607 = vmatpush1.msra.mxu0 0.0
  %3608 = vmatprep.subr.mxu0 0.0
  %3609 = vmatpush1.msra.mxu0 0.0
  %3610 = vmatprep.subr.mxu0 0.0
  %3611 = vmatpush1.msra.mxu0 0.0
  %3612 = vmatprep.subr.mxu0 0.0
  %3613 = vmatpush1.msra.mxu0 0.0
  %3614 = vmatprep.subr.mxu0 0.0
  %3615 = vmatpush1.msra.mxu0 0.0
  %3616 = vmatprep.subr.mxu0 0.0
  %3617 = vmatpush1.msra.mxu0 0.0
  %3618 = vmatprep.subr.mxu0 0.0
  %3619 = vmatpush1.msra.mxu0 0.0
  %3620 = vmatprep.subr.mxu0 0.0
  %3621 = vmatpush1.msra.mxu0 0.0
  %3622 = vmatprep.subr.mxu0 0.0
  %3623 = vmatpush1.msra.mxu0 0.0
  %3624 = vmatprep.subr.mxu0 0.0
  %3625 = vmatpush1.msra.mxu0 0.0
  %3626 = vmatprep.subr.mxu0 0.0
  %3627 = vmatpush1.msra.mxu0 0.0
  %3628 = vmatprep.mubr.f32.mxu0 0.0
  %3629 = vmatmul.mubr.f32.gmra.mrb[0].mxu0 %v3559
  %v3630 = vpop.f32.mrb[0].mxu0
  %v3631 = vadd.f32 0.0, %v3630
  %v3632 = vpop.f32.mrb[0].mxu0
  %3633 = vdwg.mxu0
  %v3635 = vsel %vm3024, %v3000, 0
  %v3638 = vsel %vm3028, %v86, 0
  %3640 = vmatprep.subr.mxu0 0.0
  %3641 = vmatpush1.msra.mxu0 %v3638
  %3642 = vmatprep.subr.mxu0 0.0
  %3643 = vmatpush1.msra.mxu0 0.0
  %3644 = vmatprep.subr.mxu0 0.0
  %3645 = vmatpush1.msra.mxu0 0.0
  %3646 = vmatprep.subr.mxu0 0.0
  %3647 = vmatpush1.msra.mxu0 0.0
  %3648 = vmatprep.subr.mxu0 0.0
  %3649 = vmatpush1.msra.mxu0 0.0
  %3650 = vmatprep.subr.mxu0 0.0
  %3651 = vmatpush1.msra.mxu0 0.0
  %3652 = vmatprep.subr.mxu0 0.0
  %3653 = vmatpush1.msra.mxu0 0.0
  %3654 = vmatprep.subr.mxu0 0.0
  %3655 = vmatpush1.msra.mxu0 0.0
  %3656 = vmatprep.subr.mxu0 0.0
  %3657 = vmatpush1.msra.mxu0 0.0
  %3658 = vmatprep.subr.mxu0 0.0
  %3659 = vmatpush1.msra.mxu0 0.0
  %3660 = vmatprep.subr.mxu0 0.0
  %3661 = vmatpush1.msra.mxu0 0.0
  %3662 = vmatprep.subr.mxu0 0.0
  %3663 = vmatpush1.msra.mxu0 0.0
  %3664 = vmatprep.subr.mxu0 0.0
  %3665 = vmatpush1.msra.mxu0 0.0
  %3666 = vmatprep.subr.mxu0 0.0
  %3667 = vmatpush1.msra.mxu0 0.0
  %3668 = vmatprep.subr.mxu0 0.0
  %3669 = vmatpush1.msra.mxu0 0.0
  %3670 = vmatprep.subr.mxu0 0.0
  %3671 = vmatpush1.msra.mxu0 0.0
  %3672 = vmatprep.subr.mxu0 0.0
  %3673 = vmatpush1.msra.mxu0 0.0
  %3674 = vmatprep.subr.mxu0 0.0
  %3675 = vmatpush1.msra.mxu0 0.0
  %3676 = vmatprep.subr.mxu0 0.0
  %3677 = vmatpush1.msra.mxu0 0.0
  %3678 = vmatprep.subr.mxu0 0.0
  %3679 = vmatpush1.msra.mxu0 0.0
  %3680 = vmatprep.subr.mxu0 0.0
  %3681 = vmatpush1.msra.mxu0 0.0
  %3682 = vmatprep.subr.mxu0 0.0
  %3683 = vmatpush1.msra.mxu0 0.0
  %3684 = vmatprep.subr.mxu0 0.0
  %3685 = vmatpush1.msra.mxu0 0.0
  %3686 = vmatprep.subr.mxu0 0.0
  %3687 = vmatpush1.msra.mxu0 0.0
  %3688 = vmatprep.subr.mxu0 0.0
  %3689 = vmatpush1.msra.mxu0 0.0
  %3690 = vmatprep.subr.mxu0 0.0
  %3691 = vmatpush1.msra.mxu0 0.0
  %3692 = vmatprep.subr.mxu0 0.0
  %3693 = vmatpush1.msra.mxu0 0.0
  %3694 = vmatprep.subr.mxu0 0.0
  %3695 = vmatpush1.msra.mxu0 0.0
  %3696 = vmatprep.subr.mxu0 0.0
  %3697 = vmatpush1.msra.mxu0 0.0
  %3698 = vmatprep.subr.mxu0 0.0
  %3699 = vmatpush1.msra.mxu0 0.0
  %3700 = vmatprep.subr.mxu0 0.0
  %3701 = vmatpush1.msra.mxu0 0.0
  %3702 = vmatprep.subr.mxu0 0.0
  %3703 = vmatpush1.msra.mxu0 0.0
  %3704 = vmatprep.mubr.f32.mxu0 0.0
  %3705 = vmatmul.mubr.f32.gmra.mrb[0].mxu0 %v3635
  %v3706 = vpop.f32.mrb[0].mxu0
  %v3707 = vadd.f32 0.0, %v3706
  %v3708 = vpop.f32.mrb[0].mxu0
  %3709 = vdwg.mxu0
  %v3711 = vsel %vm3024, %v3001, 0
  %v3714 = vsel %vm3028, %v87, 0
  %3716 = vmatprep.subr.mxu0 0.0
  %3717 = vmatpush1.msra.mxu0 %v3714
  %3718 = vmatprep.subr.mxu0 0.0
  %3719 = vmatpush1.msra.mxu0 0.0
  %3720 = vmatprep.subr.mxu0 0.0
  %3721 = vmatpush1.msra.mxu0 0.0
  %3722 = vmatprep.subr.mxu0 0.0
  %3723 = vmatpush1.msra.mxu0 0.0
  %3724 = vmatprep.subr.mxu0 0.0
  %3725 = vmatpush1.msra.mxu0 0.0
  %3726 = vmatprep.subr.mxu0 0.0
  %3727 = vmatpush1.msra.mxu0 0.0
  %3728 = vmatprep.subr.mxu0 0.0
  %3729 = vmatpush1.msra.mxu0 0.0
  %3730 = vmatprep.subr.mxu0 0.0
  %3731 = vmatpush1.msra.mxu0 0.0
  %3732 = vmatprep.subr.mxu0 0.0
  %3733 = vmatpush1.msra.mxu0 0.0
  %3734 = vmatprep.subr.mxu0 0.0
  %3735 = vmatpush1.msra.mxu0 0.0
  %3736 = vmatprep.subr.mxu0 0.0
  %3737 = vmatpush1.msra.mxu0 0.0
  %3738 = vmatprep.subr.mxu0 0.0
  %3739 = vmatpush1.msra.mxu0 0.0
  %3740 = vmatprep.subr.mxu0 0.0
  %3741 = vmatpush1.msra.mxu0 0.0
  %3742 = vmatprep.subr.mxu0 0.0
  %3743 = vmatpush1.msra.mxu0 0.0
  %3744 = vmatprep.subr.mxu0 0.0
  %3745 = vmatpush1.msra.mxu0 0.0
  %3746 = vmatprep.subr.mxu0 0.0
  %3747 = vmatpush1.msra.mxu0 0.0
  %3748 = vmatprep.subr.mxu0 0.0
  %3749 = vmatpush1.msra.mxu0 0.0
  %3750 = vmatprep.subr.mxu0 0.0
  %3751 = vmatpush1.msra.mxu0 0.0
  %3752 = vmatprep.subr.mxu0 0.0
  %3753 = vmatpush1.msra.mxu0 0.0
  %3754 = vmatprep.subr.mxu0 0.0
  %3755 = vmatpush1.msra.mxu0 0.0
  %3756 = vmatprep.subr.mxu0 0.0
  %3757 = vmatpush1.msra.mxu0 0.0
  %3758 = vmatprep.subr.mxu0 0.0
  %3759 = vmatpush1.msra.mxu0 0.0
  %3760 = vmatprep.subr.mxu0 0.0
  %3761 = vmatpush1.msra.mxu0 0.0
  %3762 = vmatprep.subr.mxu0 0.0
  %3763 = vmatpush1.msra.mxu0 0.0
  %3764 = vmatprep.subr.mxu0 0.0
  %3765 = vmatpush1.msra.mxu0 0.0
  %3766 = vmatprep.subr.mxu0 0.0
  %3767 = vmatpush1.msra.mxu0 0.0
  %3768 = vmatprep.subr.mxu0 0.0
  %3769 = vmatpush1.msra.mxu0 0.0
  %3770 = vmatprep.subr.mxu0 0.0
  %3771 = vmatpush1.msra.mxu0 0.0
  %3772 = vmatprep.subr.mxu0 0.0
  %3773 = vmatpush1.msra.mxu0 0.0
  %3774 = vmatprep.subr.mxu0 0.0
  %3775 = vmatpush1.msra.mxu0 0.0
  %3776 = vmatprep.subr.mxu0 0.0
  %3777 = vmatpush1.msra.mxu0 0.0
  %3778 = vmatprep.subr.mxu0 0.0
  %3779 = vmatpush1.msra.mxu0 0.0
  %3780 = vmatprep.mubr.f32.mxu0 0.0
  %3781 = vmatmul.mubr.f32.gmra.mrb[0].mxu0 %v3711
  %v3782 = vpop.f32.mrb[0].mxu0
  %v3783 = vadd.f32 0.0, %v3782
  %v3784 = vpop.f32.mrb[0].mxu0
  %3785 = vdwg.mxu0
  %v3787 = vsel %vm3024, %v3002, 0
  %v3790 = vsel %vm3028, %v88, 0
  %3792 = vmatprep.subr.mxu0 0.0
  %3793 = vmatpush1.msra.mxu0 %v3790
  %3794 = vmatprep.subr.mxu0 0.0
  %3795 = vmatpush1.msra.mxu0 0.0
  %3796 = vmatprep.subr.mxu0 0.0
  %3797 = vmatpush1.msra.mxu0 0.0
  %3798 = vmatprep.subr.mxu0 0.0
  %3799 = vmatpush1.msra.mxu0 0.0
  %3800 = vmatprep.subr.mxu0 0.0
  %3801 = vmatpush1.msra.mxu0 0.0
  %3802 = vmatprep.subr.mxu0 0.0
  %3803 = vmatpush1.msra.mxu0 0.0
  %3804 = vmatprep.subr.mxu0 0.0
  %3805 = vmatpush1.msra.mxu0 0.0
  %3806 = vmatprep.subr.mxu0 0.0
  %3807 = vmatpush1.msra.mxu0 0.0
  %3808 = vmatprep.subr.mxu0 0.0
  %3809 = vmatpush1.msra.mxu0 0.0
  %3810 = vmatprep.subr.mxu0 0.0
  %3811 = vmatpush1.msra.mxu0 0.0
  %3812 = vmatprep.subr.mxu0 0.0
  %3813 = vmatpush1.msra.mxu0 0.0
  %3814 = vmatprep.subr.mxu0 0.0
  %3815 = vmatpush1.msra.mxu0 0.0
  %3816 = vmatprep.subr.mxu0 0.0
  %3817 = vmatpush1.msra.mxu0 0.0
  %3818 = vmatprep.subr.mxu0 0.0
  %3819 = vmatpush1.msra.mxu0 0.0
  %3820 = vmatprep.subr.mxu0 0.0
  %3821 = vmatpush1.msra.mxu0 0.0
  %3822 = vmatprep.subr.mxu0 0.0
  %3823 = vmatpush1.msra.mxu0 0.0
  %3824 = vmatprep.subr.mxu0 0.0
  %3825 = vmatpush1.msra.mxu0 0.0
  %3826 = vmatprep.subr.mxu0 0.0
  %3827 = vmatpush1.msra.mxu0 0.0
  %3828 = vmatprep.subr.mxu0 0.0
  %3829 = vmatpush1.msra.mxu0 0.0
  %3830 = vmatprep.subr.mxu0 0.0
  %3831 = vmatpush1.msra.mxu0 0.0
  %3832 = vmatprep.subr.mxu0 0.0
  %3833 = vmatpush1.msra.mxu0 0.0
  %3834 = vmatprep.subr.mxu0 0.0
  %3835 = vmatpush1.msra.mxu0 0.0
  %3836 = vmatprep.subr.mxu0 0.0
  %3837 = vmatpush1.msra.mxu0 0.0
  %3838 = vmatprep.subr.mxu0 0.0
  %3839 = vmatpush1.msra.mxu0 0.0
  %3840 = vmatprep.subr.mxu0 0.0
  %3841 = vmatpush1.msra.mxu0 0.0
  %3842 = vmatprep.subr.mxu0 0.0
  %3843 = vmatpush1.msra.mxu0 0.0
  %3844 = vmatprep.subr.mxu0 0.0
  %3845 = vmatpush1.msra.mxu0 0.0
  %3846 = vmatprep.subr.mxu0 0.0
  %3847 = vmatpush1.msra.mxu0 0.0
  %3848 = vmatprep.subr.mxu0 0.0
  %3849 = vmatpush1.msra.mxu0 0.0
  %3850 = vmatprep.subr.mxu0 0.0
  %3851 = vmatpush1.msra.mxu0 0.0
  %3852 = vmatprep.subr.mxu0 0.0
  %3853 = vmatpush1.msra.mxu0 0.0
  %3854 = vmatprep.subr.mxu0 0.0
  %3855 = vmatpush1.msra.mxu0 0.0
  %3856 = vmatprep.mubr.f32.mxu0 0.0
  %3857 = vmatmul.mubr.f32.gmra.mrb[0].mxu0 %v3787
  %v3858 = vpop.f32.mrb[0].mxu0
  %v3859 = vadd.f32 0.0, %v3858
  %v3860 = vpop.f32.mrb[0].mxu0
  %3861 = vdwg.mxu0
  %v3863 = vsel %vm3024, %v3003, 0
  %v3866 = vsel %vm3028, %v89, 0
  %3868 = vmatprep.subr.mxu0 0.0
  %3869 = vmatpush1.msra.mxu0 %v3866
  %3870 = vmatprep.subr.mxu0 0.0
  %3871 = vmatpush1.msra.mxu0 0.0
  %3872 = vmatprep.subr.mxu0 0.0
  %3873 = vmatpush1.msra.mxu0 0.0
  %3874 = vmatprep.subr.mxu0 0.0
  %3875 = vmatpush1.msra.mxu0 0.0
  %3876 = vmatprep.subr.mxu0 0.0
  %3877 = vmatpush1.msra.mxu0 0.0
  %3878 = vmatprep.subr.mxu0 0.0
  %3879 = vmatpush1.msra.mxu0 0.0
  %3880 = vmatprep.subr.mxu0 0.0
  %3881 = vmatpush1.msra.mxu0 0.0
  %3882 = vmatprep.subr.mxu0 0.0
  %3883 = vmatpush1.msra.mxu0 0.0
  %3884 = vmatprep.subr.mxu0 0.0
  %3885 = vmatpush1.msra.mxu0 0.0
  %3886 = vmatprep.subr.mxu0 0.0
  %3887 = vmatpush1.msra.mxu0 0.0
  %3888 = vmatprep.subr.mxu0 0.0
  %3889 = vmatpush1.msra.mxu0 0.0
  %3890 = vmatprep.subr.mxu0 0.0
  %3891 = vmatpush1.msra.mxu0 0.0
  %3892 = vmatprep.subr.mxu0 0.0
  %3893 = vmatpush1.msra.mxu0 0.0
  %3894 = vmatprep.subr.mxu0 0.0
  %3895 = vmatpush1.msra.mxu0 0.0
  %3896 = vmatprep.subr.mxu0 0.0
  %3897 = vmatpush1.msra.mxu0 0.0
  %3898 = vmatprep.subr.mxu0 0.0
  %3899 = vmatpush1.msra.mxu0 0.0
  %3900 = vmatprep.subr.mxu0 0.0
  %3901 = vmatpush1.msra.mxu0 0.0
  %3902 = vmatprep.subr.mxu0 0.0
  %3903 = vmatpush1.msra.mxu0 0.0
  %3904 = vmatprep.subr.mxu0 0.0
  %3905 = vmatpush1.msra.mxu0 0.0
  %3906 = vmatprep.subr.mxu0 0.0
  %3907 = vmatpush1.msra.mxu0 0.0
  %3908 = vmatprep.subr.mxu0 0.0
  %3909 = vmatpush1.msra.mxu0 0.0
  %3910 = vmatprep.subr.mxu0 0.0
  %3911 = vmatpush1.msra.mxu0 0.0
  %3912 = vmatprep.subr.mxu0 0.0
  %3913 = vmatpush1.msra.mxu0 0.0
  %3914 = vmatprep.subr.mxu0 0.0
  %3915 = vmatpush1.msra.mxu0 0.0
  %3916 = vmatprep.subr.mxu0 0.0
  %3917 = vmatpush1.msra.mxu0 0.0
  %3918 = vmatprep.subr.mxu0 0.0
  %3919 = vmatpush1.msra.mxu0 0.0
  %3920 = vmatprep.subr.mxu0 0.0
  %3921 = vmatpush1.msra.mxu0 0.0
  %3922 = vmatprep.subr.mxu0 0.0
  %3923 = vmatpush1.msra.mxu0 0.0
  %3924 = vmatprep.subr.mxu0 0.0
  %3925 = vmatpush1.msra.mxu0 0.0
  %3926 = vmatprep.subr.mxu0 0.0
  %3927 = vmatpush1.msra.mxu0 0.0
  %3928 = vmatprep.subr.mxu0 0.0
  %3929 = vmatpush1.msra.mxu0 0.0
  %3930 = vmatprep.subr.mxu0 0.0
  %3931 = vmatpush1.msra.mxu0 0.0
  %3932 = vmatprep.mubr.f32.mxu0 0.0
  %3933 = vmatmul.mubr.f32.gmra.mrb[0].mxu0 %v3863
  %v3934 = vpop.f32.mrb[0].mxu0
  %v3935 = vadd.f32 0.0, %v3934
  %v3936 = vpop.f32.mrb[0].mxu0
  %3937 = vdwg.mxu0
  %v3939 = vsel %vm3024, %v3004, 0
  %v3942 = vsel %vm3028, %v90, 0
  %3944 = vmatprep.subr.mxu0 0.0
  %3945 = vmatpush1.msra.mxu0 %v3942
  %3946 = vmatprep.subr.mxu0 0.0
  %3947 = vmatpush1.msra.mxu0 0.0
  %3948 = vmatprep.subr.mxu0 0.0
  %3949 = vmatpush1.msra.mxu0 0.0
  %3950 = vmatprep.subr.mxu0 0.0
  %3951 = vmatpush1.msra.mxu0 0.0
  %3952 = vmatprep.subr.mxu0 0.0
  %3953 = vmatpush1.msra.mxu0 0.0
  %3954 = vmatprep.subr.mxu0 0.0
  %3955 = vmatpush1.msra.mxu0 0.0
  %3956 = vmatprep.subr.mxu0 0.0
  %3957 = vmatpush1.msra.mxu0 0.0
  %3958 = vmatprep.subr.mxu0 0.0
  %3959 = vmatpush1.msra.mxu0 0.0
  %3960 = vmatprep.subr.mxu0 0.0
  %3961 = vmatpush1.msra.mxu0 0.0
  %3962 = vmatprep.subr.mxu0 0.0
  %3963 = vmatpush1.msra.mxu0 0.0
  %3964 = vmatprep.subr.mxu0 0.0
  %3965 = vmatpush1.msra.mxu0 0.0
  %3966 = vmatprep.subr.mxu0 0.0
  %3967 = vmatpush1.msra.mxu0 0.0
  %3968 = vmatprep.subr.mxu0 0.0
  %3969 = vmatpush1.msra.mxu0 0.0
  %3970 = vmatprep.subr.mxu0 0.0
  %3971 = vmatpush1.msra.mxu0 0.0
  %3972 = vmatprep.subr.mxu0 0.0
  %3973 = vmatpush1.msra.mxu0 0.0
  %3974 = vmatprep.subr.mxu0 0.0
  %3975 = vmatpush1.msra.mxu0 0.0
  %3976 = vmatprep.subr.mxu0 0.0
  %3977 = vmatpush1.msra.mxu0 0.0
  %3978 = vmatprep.subr.mxu0 0.0
  %3979 = vmatpush1.msra.mxu0 0.0
  %3980 = vmatprep.subr.mxu0 0.0
  %3981 = vmatpush1.msra.mxu0 0.0
  %3982 = vmatprep.subr.mxu0 0.0
  %3983 = vmatpush1.msra.mxu0 0.0
  %3984 = vmatprep.subr.mxu0 0.0
  %3985 = vmatpush1.msra.mxu0 0.0
  %3986 = vmatprep.subr.mxu0 0.0
  %3987 = vmatpush1.msra.mxu0 0.0
  %3988 = vmatprep.subr.mxu0 0.0
  %3989 = vmatpush1.msra.mxu0 0.0
  %3990 = vmatprep.subr.mxu0 0.0
  %3991 = vmatpush1.msra.mxu0 0.0
  %3992 = vmatprep.subr.mxu0 0.0
  %3993 = vmatpush1.msra.mxu0 0.0
  %3994 = vmatprep.subr.mxu0 0.0
  %3995 = vmatpush1.msra.mxu0 0.0
  %3996 = vmatprep.subr.mxu0 0.0
  %3997 = vmatpush1.msra.mxu0 0.0
  %3998 = vmatprep.subr.mxu0 0.0
  %3999 = vmatpush1.msra.mxu0 0.0
  %4000 = vmatprep.subr.mxu0 0.0
  %4001 = vmatpush1.msra.mxu0 0.0
  %4002 = vmatprep.subr.mxu0 0.0
  %4003 = vmatpush1.msra.mxu0 0.0
  %4004 = vmatprep.subr.mxu0 0.0
  %4005 = vmatpush1.msra.mxu0 0.0
  %4006 = vmatprep.subr.mxu0 0.0
  %4007 = vmatpush1.msra.mxu0 0.0
  %4008 = vmatprep.mubr.f32.mxu0 0.0
  %4009 = vmatmul.mubr.f32.gmra.mrb[0].mxu0 %v3939
  %v4010 = vpop.f32.mrb[0].mxu0
  %v4011 = vadd.f32 0.0, %v4010
  %v4012 = vpop.f32.mrb[0].mxu0
  %4013 = vdwg.mxu0
  %v4015 = vsel %vm3024, %v3005, 0
  %v4018 = vsel %vm3028, %v91, 0
  %4020 = vmatprep.subr.mxu0 0.0
  %4021 = vmatpush1.msra.mxu0 %v4018
  %4022 = vmatprep.subr.mxu0 0.0
  %4023 = vmatpush1.msra.mxu0 0.0
  %4024 = vmatprep.subr.mxu0 0.0
  %4025 = vmatpush1.msra.mxu0 0.0
  %4026 = vmatprep.subr.mxu0 0.0
  %4027 = vmatpush1.msra.mxu0 0.0
  %4028 = vmatprep.subr.mxu0 0.0
  %4029 = vmatpush1.msra.mxu0 0.0
  %4030 = vmatprep.subr.mxu0 0.0
  %4031 = vmatpush1.msra.mxu0 0.0
  %4032 = vmatprep.subr.mxu0 0.0
  %4033 = vmatpush1.msra.mxu0 0.0
  %4034 = vmatprep.subr.mxu0 0.0
  %4035 = vmatpush1.msra.mxu0 0.0
  %4036 = vmatprep.subr.mxu0 0.0
  %4037 = vmatpush1.msra.mxu0 0.0
  %4038 = vmatprep.subr.mxu0 0.0
  %4039 = vmatpush1.msra.mxu0 0.0
  %4040 = vmatprep.subr.mxu0 0.0
  %4041 = vmatpush1.msra.mxu0 0.0
  %4042 = vmatprep.subr.mxu0 0.0
  %4043 = vmatpush1.msra.mxu0 0.0
  %4044 = vmatprep.subr.mxu0 0.0
  %4045 = vmatpush1.msra.mxu0 0.0
  %4046 = vmatprep.subr.mxu0 0.0
  %4047 = vmatpush1.msra.mxu0 0.0
  %4048 = vmatprep.subr.mxu0 0.0
  %4049 = vmatpush1.msra.mxu0 0.0
  %4050 = vmatprep.subr.mxu0 0.0
  %4051 = vmatpush1.msra.mxu0 0.0
  %4052 = vmatprep.subr.mxu0 0.0
  %4053 = vmatpush1.msra.mxu0 0.0
  %4054 = vmatprep.subr.mxu0 0.0
  %4055 = vmatpush1.msra.mxu0 0.0
  %4056 = vmatprep.subr.mxu0 0.0
  %4057 = vmatpush1.msra.mxu0 0.0
  %4058 = vmatprep.subr.mxu0 0.0
  %4059 = vmatpush1.msra.mxu0 0.0
  %4060 = vmatprep.subr.mxu0 0.0
  %4061 = vmatpush1.msra.mxu0 0.0
  %4062 = vmatprep.subr.mxu0 0.0
  %4063 = vmatpush1.msra.mxu0 0.0
  %4064 = vmatprep.subr.mxu0 0.0
  %4065 = vmatpush1.msra.mxu0 0.0
  %4066 = vmatprep.subr.mxu0 0.0
  %4067 = vmatpush1.msra.mxu0 0.0
  %4068 = vmatprep.subr.mxu0 0.0
  %4069 = vmatpush1.msra.mxu0 0.0
  %4070 = vmatprep.subr.mxu0 0.0
  %4071 = vmatpush1.msra.mxu0 0.0
  %4072 = vmatprep.subr.mxu0 0.0
  %4073 = vmatpush1.msra.mxu0 0.0
  %4074 = vmatprep.subr.mxu0 0.0
  %4075 = vmatpush1.msra.mxu0 0.0
  %4076 = vmatprep.subr.mxu0 0.0
  %4077 = vmatpush1.msra.mxu0 0.0
  %4078 = vmatprep.subr.mxu0 0.0
  %4079 = vmatpush1.msra.mxu0 0.0
  %4080 = vmatprep.subr.mxu0 0.0
  %4081 = vmatpush1.msra.mxu0 0.0
  %4082 = vmatprep.subr.mxu0 0.0
  %4083 = vmatpush1.msra.mxu0 0.0
  %4084 = vmatprep.mubr.f32.mxu0 0.0
  %4085 = vmatmul.mubr.f32.gmra.mrb[0].mxu0 %v4015
  %v4086 = vpop.f32.mrb[0].mxu0
  %v4087 = vadd.f32 0.0, %v4086
  %v4088 = vpop.f32.mrb[0].mxu0
  %4089 = vdwg.mxu0
  %v4091 = vsel %vm3024, %v3006, 0
  %v4094 = vsel %vm3028, %v92, 0
  %4096 = vmatprep.subr.mxu0 0.0
  %4097 = vmatpush1.msra.mxu0 %v4094
  %4098 = vmatprep.subr.mxu0 0.0
  %4099 = vmatpush1.msra.mxu0 0.0
  %4100 = vmatprep.subr.mxu0 0.0
  %4101 = vmatpush1.msra.mxu0 0.0
  %4102 = vmatprep.subr.mxu0 0.0
  %4103 = vmatpush1.msra.mxu0 0.0
  %4104 = vmatprep.subr.mxu0 0.0
  %4105 = vmatpush1.msra.mxu0 0.0
  %4106 = vmatprep.subr.mxu0 0.0
  %4107 = vmatpush1.msra.mxu0 0.0
  %4108 = vmatprep.subr.mxu0 0.0
  %4109 = vmatpush1.msra.mxu0 0.0
  %4110 = vmatprep.subr.mxu0 0.0
  %4111 = vmatpush1.msra.mxu0 0.0
  %4112 = vmatprep.subr.mxu0 0.0
  %4113 = vmatpush1.msra.mxu0 0.0
  %4114 = vmatprep.subr.mxu0 0.0
  %4115 = vmatpush1.msra.mxu0 0.0
  %4116 = vmatprep.subr.mxu0 0.0
  %4117 = vmatpush1.msra.mxu0 0.0
  %4118 = vmatprep.subr.mxu0 0.0
  %4119 = vmatpush1.msra.mxu0 0.0
  %4120 = vmatprep.subr.mxu0 0.0
  %4121 = vmatpush1.msra.mxu0 0.0
  %4122 = vmatprep.subr.mxu0 0.0
  %4123 = vmatpush1.msra.mxu0 0.0
  %4124 = vmatprep.subr.mxu0 0.0
  %4125 = vmatpush1.msra.mxu0 0.0
  %4126 = vmatprep.subr.mxu0 0.0
  %4127 = vmatpush1.msra.mxu0 0.0
  %4128 = vmatprep.subr.mxu0 0.0
  %4129 = vmatpush1.msra.mxu0 0.0
  %4130 = vmatprep.subr.mxu0 0.0
  %4131 = vmatpush1.msra.mxu0 0.0
  %4132 = vmatprep.subr.mxu0 0.0
  %4133 = vmatpush1.msra.mxu0 0.0
  %4134 = vmatprep.subr.mxu0 0.0
  %4135 = vmatpush1.msra.mxu0 0.0
  %4136 = vmatprep.subr.mxu0 0.0
  %4137 = vmatpush1.msra.mxu0 0.0
  %4138 = vmatprep.subr.mxu0 0.0
  %4139 = vmatpush1.msra.mxu0 0.0
  %4140 = vmatprep.subr.mxu0 0.0
  %4141 = vmatpush1.msra.mxu0 0.0
  %4142 = vmatprep.subr.mxu0 0.0
  %4143 = vmatpush1.msra.mxu0 0.0
  %4144 = vmatprep.subr.mxu0 0.0
  %4145 = vmatpush1.msra.mxu0 0.0
  %4146 = vmatprep.subr.mxu0 0.0
  %4147 = vmatpush1.msra.mxu0 0.0
  %4148 = vmatprep.subr.mxu0 0.0
  %4149 = vmatpush1.msra.mxu0 0.0
  %4150 = vmatprep.subr.mxu0 0.0
  %4151 = vmatpush1.msra.mxu0 0.0
  %4152 = vmatprep.subr.mxu0 0.0
  %4153 = vmatpush1.msra.mxu0 0.0
  %4154 = vmatprep.subr.mxu0 0.0
  %4155 = vmatpush1.msra.mxu0 0.0
  %4156 = vmatprep.subr.mxu0 0.0
  %4157 = vmatpush1.msra.mxu0 0.0
  %4158 = vmatprep.subr.mxu0 0.0
  %4159 = vmatpush1.msra.mxu0 0.0
  %4160 = vmatprep.mubr.f32.mxu0 0.0
  %4161 = vmatmul.mubr.f32.gmra.mrb[0].mxu0 %v4091
  %v4162 = vpop.f32.mrb[0].mxu0
  %v4163 = vadd.f32 0.0, %v4162
  %v4164 = vpop.f32.mrb[0].mxu0
  %4165 = vdwg.mxu0
  %v4167 = vsel %vm3024, %v3007, 0
  %v4170 = vsel %vm3028, %v93, 0
  %4172 = vmatprep.subr.mxu0 0.0
  %4173 = vmatpush1.msra.mxu0 %v4170
  %4174 = vmatprep.subr.mxu0 0.0
  %4175 = vmatpush1.msra.mxu0 0.0
  %4176 = vmatprep.subr.mxu0 0.0
  %4177 = vmatpush1.msra.mxu0 0.0
  %4178 = vmatprep.subr.mxu0 0.0
  %4179 = vmatpush1.msra.mxu0 0.0
  %4180 = vmatprep.subr.mxu0 0.0
  %4181 = vmatpush1.msra.mxu0 0.0
  %4182 = vmatprep.subr.mxu0 0.0
  %4183 = vmatpush1.msra.mxu0 0.0
  %4184 = vmatprep.subr.mxu0 0.0
  %4185 = vmatpush1.msra.mxu0 0.0
  %4186 = vmatprep.subr.mxu0 0.0
  %4187 = vmatpush1.msra.mxu0 0.0
  %4188 = vmatprep.subr.mxu0 0.0
  %4189 = vmatpush1.msra.mxu0 0.0
  %4190 = vmatprep.subr.mxu0 0.0
  %4191 = vmatpush1.msra.mxu0 0.0
  %4192 = vmatprep.subr.mxu0 0.0
  %4193 = vmatpush1.msra.mxu0 0.0
  %4194 = vmatprep.subr.mxu0 0.0
  %4195 = vmatpush1.msra.mxu0 0.0
  %4196 = vmatprep.subr.mxu0 0.0
  %4197 = vmatpush1.msra.mxu0 0.0
  %4198 = vmatprep.subr.mxu0 0.0
  %4199 = vmatpush1.msra.mxu0 0.0
  %4200 = vmatprep.subr.mxu0 0.0
  %4201 = vmatpush1.msra.mxu0 0.0
  %4202 = vmatprep.subr.mxu0 0.0
  %4203 = vmatpush1.msra.mxu0 0.0
  %4204 = vmatprep.subr.mxu0 0.0
  %4205 = vmatpush1.msra.mxu0 0.0
  %4206 = vmatprep.subr.mxu0 0.0
  %4207 = vmatpush1.msra.mxu0 0.0
  %4208 = vmatprep.subr.mxu0 0.0
  %4209 = vmatpush1.msra.mxu0 0.0
  %4210 = vmatprep.subr.mxu0 0.0
  %4211 = vmatpush1.msra.mxu0 0.0
  %4212 = vmatprep.subr.mxu0 0.0
  %4213 = vmatpush1.msra.mxu0 0.0
  %4214 = vmatprep.subr.mxu0 0.0
  %4215 = vmatpush1.msra.mxu0 0.0
  %4216 = vmatprep.subr.mxu0 0.0
  %4217 = vmatpush1.msra.mxu0 0.0
  %4218 = vmatprep.subr.mxu0 0.0
  %4219 = vmatpush1.msra.mxu0 0.0
  %4220 = vmatprep.subr.mxu0 0.0
  %4221 = vmatpush1.msra.mxu0 0.0
  %4222 = vmatprep.subr.mxu0 0.0
  %4223 = vmatpush1.msra.mxu0 0.0
  %4224 = vmatprep.subr.mxu0 0.0
  %4225 = vmatpush1.msra.mxu0 0.0
  %4226 = vmatprep.subr.mxu0 0.0
  %4227 = vmatpush1.msra.mxu0 0.0
  %4228 = vmatprep.subr.mxu0 0.0
  %4229 = vmatpush1.msra.mxu0 0.0
  %4230 = vmatprep.subr.mxu0 0.0
  %4231 = vmatpush1.msra.mxu0 0.0
  %4232 = vmatprep.subr.mxu0 0.0
  %4233 = vmatpush1.msra.mxu0 0.0
  %4234 = vmatprep.subr.mxu0 0.0
  %4235 = vmatpush1.msra.mxu0 0.0
  %4236 = vmatprep.mubr.f32.mxu0 0.0
  %4237 = vmatmul.mubr.f32.gmra.mrb[0].mxu0 %v4167
  %v4238 = vpop.f32.mrb[0].mxu0
  %v4239 = vadd.f32 0.0, %v4238
  %v4240 = vpop.f32.mrb[0].mxu0
  %4241 = vdwg.mxu0
  %v4243 = vsel %vm3024, %v3008, 0
  %v4246 = vsel %vm3028, %v94, 0
  %4248 = vmatprep.subr.mxu0 0.0
  %4249 = vmatpush1.msra.mxu0 %v4246
  %4250 = vmatprep.subr.mxu0 0.0
  %4251 = vmatpush1.msra.mxu0 0.0
  %4252 = vmatprep.subr.mxu0 0.0
  %4253 = vmatpush1.msra.mxu0 0.0
  %4254 = vmatprep.subr.mxu0 0.0
  %4255 = vmatpush1.msra.mxu0 0.0
  %4256 = vmatprep.subr.mxu0 0.0
  %4257 = vmatpush1.msra.mxu0 0.0
  %4258 = vmatprep.subr.mxu0 0.0
  %4259 = vmatpush1.msra.mxu0 0.0
  %4260 = vmatprep.subr.mxu0 0.0
  %4261 = vmatpush1.msra.mxu0 0.0
  %4262 = vmatprep.subr.mxu0 0.0
  %4263 = vmatpush1.msra.mxu0 0.0
  %4264 = vmatprep.subr.mxu0 0.0
  %4265 = vmatpush1.msra.mxu0 0.0
  %4266 = vmatprep.subr.mxu0 0.0
  %4267 = vmatpush1.msra.mxu0 0.0
  %4268 = vmatprep.subr.mxu0 0.0
  %4269 = vmatpush1.msra.mxu0 0.0
  %4270 = vmatprep.subr.mxu0 0.0
  %4271 = vmatpush1.msra.mxu0 0.0
  %4272 = vmatprep.subr.mxu0 0.0
  %4273 = vmatpush1.msra.mxu0 0.0
  %4274 = vmatprep.subr.mxu0 0.0
  %4275 = vmatpush1.msra.mxu0 0.0
  %4276 = vmatprep.subr.mxu0 0.0
  %4277 = vmatpush1.msra.mxu0 0.0
  %4278 = vmatprep.subr.mxu0 0.0
  %4279 = vmatpush1.msra.mxu0 0.0
  %4280 = vmatprep.subr.mxu0 0.0
  %4281 = vmatpush1.msra.mxu0 0.0
  %4282 = vmatprep.subr.mxu0 0.0
  %4283 = vmatpush1.msra.mxu0 0.0
  %4284 = vmatprep.subr.mxu0 0.0
  %4285 = vmatpush1.msra.mxu0 0.0
  %4286 = vmatprep.subr.mxu0 0.0
  %4287 = vmatpush1.msra.mxu0 0.0
  %4288 = vmatprep.subr.mxu0 0.0
  %4289 = vmatpush1.msra.mxu0 0.0
  %4290 = vmatprep.subr.mxu0 0.0
  %4291 = vmatpush1.msra.mxu0 0.0
  %4292 = vmatprep.subr.mxu0 0.0
  %4293 = vmatpush1.msra.mxu0 0.0
  %4294 = vmatprep.subr.mxu0 0.0
  %4295 = vmatpush1.msra.mxu0 0.0
  %4296 = vmatprep.subr.mxu0 0.0
  %4297 = vmatpush1.msra.mxu0 0.0
  %4298 = vmatprep.subr.mxu0 0.0
  %4299 = vmatpush1.msra.mxu0 0.0
  %4300 = vmatprep.subr.mxu0 0.0
  %4301 = vmatpush1.msra.mxu0 0.0
  %4302 = vmatprep.subr.mxu0 0.0
  %4303 = vmatpush1.msra.mxu0 0.0
  %4304 = vmatprep.subr.mxu0 0.0
  %4305 = vmatpush1.msra.mxu0 0.0
  %4306 = vmatprep.subr.mxu0 0.0
  %4307 = vmatpush1.msra.mxu0 0.0
  %4308 = vmatprep.subr.mxu0 0.0
  %4309 = vmatpush1.msra.mxu0 0.0
  %4310 = vmatprep.subr.mxu0 0.0
  %4311 = vmatpush1.msra.mxu0 0.0
  %4312 = vmatprep.mubr.f32.mxu0 0.0
  %4313 = vmatmul.mubr.f32.gmra.mrb[0].mxu0 %v4243
  %v4314 = vpop.f32.mrb[0].mxu0
  %v4315 = vadd.f32 0.0, %v4314
  %v4316 = vpop.f32.mrb[0].mxu0
  %4317 = vdwg.mxu0
  %v4319 = vsel %vm3024, %v3009, 0
  %v4322 = vsel %vm3028, %v95, 0
  %4324 = vmatprep.subr.mxu0 0.0
  %4325 = vmatpush1.msra.mxu0 %v4322
  %4326 = vmatprep.subr.mxu0 0.0
  %4327 = vmatpush1.msra.mxu0 0.0
  %4328 = vmatprep.subr.mxu0 0.0
  %4329 = vmatpush1.msra.mxu0 0.0
  %4330 = vmatprep.subr.mxu0 0.0
  %4331 = vmatpush1.msra.mxu0 0.0
  %4332 = vmatprep.subr.mxu0 0.0
  %4333 = vmatpush1.msra.mxu0 0.0
  %4334 = vmatprep.subr.mxu0 0.0
  %4335 = vmatpush1.msra.mxu0 0.0
  %4336 = vmatprep.subr.mxu0 0.0
  %4337 = vmatpush1.msra.mxu0 0.0
  %4338 = vmatprep.subr.mxu0 0.0
  %4339 = vmatpush1.msra.mxu0 0.0
  %4340 = vmatprep.subr.mxu0 0.0
  %4341 = vmatpush1.msra.mxu0 0.0
  %4342 = vmatprep.subr.mxu0 0.0
  %4343 = vmatpush1.msra.mxu0 0.0
  %4344 = vmatprep.subr.mxu0 0.0
  %4345 = vmatpush1.msra.mxu0 0.0
  %4346 = vmatprep.subr.mxu0 0.0
  %4347 = vmatpush1.msra.mxu0 0.0
  %4348 = vmatprep.subr.mxu0 0.0
  %4349 = vmatpush1.msra.mxu0 0.0
  %4350 = vmatprep.subr.mxu0 0.0
  %4351 = vmatpush1.msra.mxu0 0.0
  %4352 = vmatprep.subr.mxu0 0.0
  %4353 = vmatpush1.msra.mxu0 0.0
  %4354 = vmatprep.subr.mxu0 0.0
  %4355 = vmatpush1.msra.mxu0 0.0
  %4356 = vmatprep.subr.mxu0 0.0
  %4357 = vmatpush1.msra.mxu0 0.0
  %4358 = vmatprep.subr.mxu0 0.0
  %4359 = vmatpush1.msra.mxu0 0.0
  %4360 = vmatprep.subr.mxu0 0.0
  %4361 = vmatpush1.msra.mxu0 0.0
  %4362 = vmatprep.subr.mxu0 0.0
  %4363 = vmatpush1.msra.mxu0 0.0
  %4364 = vmatprep.subr.mxu0 0.0
  %4365 = vmatpush1.msra.mxu0 0.0
  %4366 = vmatprep.subr.mxu0 0.0
  %4367 = vmatpush1.msra.mxu0 0.0
  %4368 = vmatprep.subr.mxu0 0.0
  %4369 = vmatpush1.msra.mxu0 0.0
  %4370 = vmatprep.subr.mxu0 0.0
  %4371 = vmatpush1.msra.mxu0 0.0
  %4372 = vmatprep.subr.mxu0 0.0
  %4373 = vmatpush1.msra.mxu0 0.0
  %4374 = vmatprep.subr.mxu0 0.0
  %4375 = vmatpush1.msra.mxu0 0.0
  %4376 = vmatprep.subr.mxu0 0.0
  %4377 = vmatpush1.msra.mxu0 0.0
  %4378 = vmatprep.subr.mxu0 0.0
  %4379 = vmatpush1.msra.mxu0 0.0
  %4380 = vmatprep.subr.mxu0 0.0
  %4381 = vmatpush1.msra.mxu0 0.0
  %4382 = vmatprep.subr.mxu0 0.0
  %4383 = vmatpush1.msra.mxu0 0.0
  %4384 = vmatprep.subr.mxu0 0.0
  %4385 = vmatpush1.msra.mxu0 0.0
  %4386 = vmatprep.subr.mxu0 0.0
  %4387 = vmatpush1.msra.mxu0 0.0
  %4388 = vmatprep.mubr.f32.mxu0 0.0
  %4389 = vmatmul.mubr.f32.gmra.mrb[0].mxu0 %v4319
  %v4390 = vpop.f32.mrb[0].mxu0
  %v4391 = vadd.f32 0.0, %v4390
  %v4392 = vpop.f32.mrb[0].mxu0
  %4393 = vdwg.mxu0
  %v4395 = vsel %vm3024, %v3010, 0
  %v4398 = vsel %vm3028, %v96, 0
  %4400 = vmatprep.subr.mxu0 0.0
  %4401 = vmatpush1.msra.mxu0 %v4398
  %4402 = vmatprep.subr.mxu0 0.0
  %4403 = vmatpush1.msra.mxu0 0.0
  %4404 = vmatprep.subr.mxu0 0.0
  %4405 = vmatpush1.msra.mxu0 0.0
  %4406 = vmatprep.subr.mxu0 0.0
  %4407 = vmatpush1.msra.mxu0 0.0
  %4408 = vmatprep.subr.mxu0 0.0
  %4409 = vmatpush1.msra.mxu0 0.0
  %4410 = vmatprep.subr.mxu0 0.0
  %4411 = vmatpush1.msra.mxu0 0.0
  %4412 = vmatprep.subr.mxu0 0.0
  %4413 = vmatpush1.msra.mxu0 0.0
  %4414 = vmatprep.subr.mxu0 0.0
  %4415 = vmatpush1.msra.mxu0 0.0
  %4416 = vmatprep.subr.mxu0 0.0
  %4417 = vmatpush1.msra.mxu0 0.0
  %4418 = vmatprep.subr.mxu0 0.0
  %4419 = vmatpush1.msra.mxu0 0.0
  %4420 = vmatprep.subr.mxu0 0.0
  %4421 = vmatpush1.msra.mxu0 0.0
  %4422 = vmatprep.subr.mxu0 0.0
  %4423 = vmatpush1.msra.mxu0 0.0
  %4424 = vmatprep.subr.mxu0 0.0
  %4425 = vmatpush1.msra.mxu0 0.0
  %4426 = vmatprep.subr.mxu0 0.0
  %4427 = vmatpush1.msra.mxu0 0.0
  %4428 = vmatprep.subr.mxu0 0.0
  %4429 = vmatpush1.msra.mxu0 0.0
  %4430 = vmatprep.subr.mxu0 0.0
  %4431 = vmatpush1.msra.mxu0 0.0
  %4432 = vmatprep.subr.mxu0 0.0
  %4433 = vmatpush1.msra.mxu0 0.0
  %4434 = vmatprep.subr.mxu0 0.0
  %4435 = vmatpush1.msra.mxu0 0.0
  %4436 = vmatprep.subr.mxu0 0.0
  %4437 = vmatpush1.msra.mxu0 0.0
  %4438 = vmatprep.subr.mxu0 0.0
  %4439 = vmatpush1.msra.mxu0 0.0
  %4440 = vmatprep.subr.mxu0 0.0
  %4441 = vmatpush1.msra.mxu0 0.0
  %4442 = vmatprep.subr.mxu0 0.0
  %4443 = vmatpush1.msra.mxu0 0.0
  %4444 = vmatprep.subr.mxu0 0.0
  %4445 = vmatpush1.msra.mxu0 0.0
  %4446 = vmatprep.subr.mxu0 0.0
  %4447 = vmatpush1.msra.mxu0 0.0
  %4448 = vmatprep.subr.mxu0 0.0
  %4449 = vmatpush1.msra.mxu0 0.0
  %4450 = vmatprep.subr.mxu0 0.0
  %4451 = vmatpush1.msra.mxu0 0.0
  %4452 = vmatprep.subr.mxu0 0.0
  %4453 = vmatpush1.msra.mxu0 0.0
  %4454 = vmatprep.subr.mxu0 0.0
  %4455 = vmatpush1.msra.mxu0 0.0
  %4456 = vmatprep.subr.mxu0 0.0
  %4457 = vmatpush1.msra.mxu0 0.0
  %4458 = vmatprep.subr.mxu0 0.0
  %4459 = vmatpush1.msra.mxu0 0.0
  %4460 = vmatprep.subr.mxu0 0.0
  %4461 = vmatpush1.msra.mxu0 0.0
  %4462 = vmatprep.subr.mxu0 0.0
  %4463 = vmatpush1.msra.mxu0 0.0
  %4464 = vmatprep.mubr.f32.mxu0 0.0
  %4465 = vmatmul.mubr.f32.gmra.mrb[0].mxu0 %v4395
  %v4466 = vpop.f32.mrb[0].mxu0
  %v4467 = vadd.f32 0.0, %v4466
  %v4468 = vpop.f32.mrb[0].mxu0
  %4469 = vdwg.mxu0
  %v4471 = vsel %vm3024, %v3011, 0
  %v4474 = vsel %vm3028, %v97, 0
  %4476 = vmatprep.subr.mxu0 0.0
  %4477 = vmatpush1.msra.mxu0 %v4474
  %4478 = vmatprep.subr.mxu0 0.0
  %4479 = vmatpush1.msra.mxu0 0.0
  %4480 = vmatprep.subr.mxu0 0.0
  %4481 = vmatpush1.msra.mxu0 0.0
  %4482 = vmatprep.subr.mxu0 0.0
  %4483 = vmatpush1.msra.mxu0 0.0
  %4484 = vmatprep.subr.mxu0 0.0
  %4485 = vmatpush1.msra.mxu0 0.0
  %4486 = vmatprep.subr.mxu0 0.0
  %4487 = vmatpush1.msra.mxu0 0.0
  %4488 = vmatprep.subr.mxu0 0.0
  %4489 = vmatpush1.msra.mxu0 0.0
  %4490 = vmatprep.subr.mxu0 0.0
  %4491 = vmatpush1.msra.mxu0 0.0
  %4492 = vmatprep.subr.mxu0 0.0
  %4493 = vmatpush1.msra.mxu0 0.0
  %4494 = vmatprep.subr.mxu0 0.0
  %4495 = vmatpush1.msra.mxu0 0.0
  %4496 = vmatprep.subr.mxu0 0.0
  %4497 = vmatpush1.msra.mxu0 0.0
  %4498 = vmatprep.subr.mxu0 0.0
  %4499 = vmatpush1.msra.mxu0 0.0
  %4500 = vmatprep.subr.mxu0 0.0
  %4501 = vmatpush1.msra.mxu0 0.0
  %4502 = vmatprep.subr.mxu0 0.0
  %4503 = vmatpush1.msra.mxu0 0.0
  %4504 = vmatprep.subr.mxu0 0.0
  %4505 = vmatpush1.msra.mxu0 0.0
  %4506 = vmatprep.subr.mxu0 0.0
  %4507 = vmatpush1.msra.mxu0 0.0
  %4508 = vmatprep.subr.mxu0 0.0
  %4509 = vmatpush1.msra.mxu0 0.0
  %4510 = vmatprep.subr.mxu0 0.0
  %4511 = vmatpush1.msra.mxu0 0.0
  %4512 = vmatprep.subr.mxu0 0.0
  %4513 = vmatpush1.msra.mxu0 0.0
  %4514 = vmatprep.subr.mxu0 0.0
  %4515 = vmatpush1.msra.mxu0 0.0
  %4516 = vmatprep.subr.mxu0 0.0
  %4517 = vmatpush1.msra.mxu0 0.0
  %4518 = vmatprep.subr.mxu0 0.0
  %4519 = vmatpush1.msra.mxu0 0.0
  %4520 = vmatprep.subr.mxu0 0.0
  %4521 = vmatpush1.msra.mxu0 0.0
  %4522 = vmatprep.subr.mxu0 0.0
  %4523 = vmatpush1.msra.mxu0 0.0
  %4524 = vmatprep.subr.mxu0 0.0
  %4525 = vmatpush1.msra.mxu0 0.0
  %4526 = vmatprep.subr.mxu0 0.0
  %4527 = vmatpush1.msra.mxu0 0.0
  %4528 = vmatprep.subr.mxu0 0.0
  %4529 = vmatpush1.msra.mxu0 0.0
  %4530 = vmatprep.subr.mxu0 0.0
  %4531 = vmatpush1.msra.mxu0 0.0
  %4532 = vmatprep.subr.mxu0 0.0
  %4533 = vmatpush1.msra.mxu0 0.0
  %4534 = vmatprep.subr.mxu0 0.0
  %4535 = vmatpush1.msra.mxu0 0.0
  %4536 = vmatprep.subr.mxu0 0.0
  %4537 = vmatpush1.msra.mxu0 0.0
  %4538 = vmatprep.subr.mxu0 0.0
  %4539 = vmatpush1.msra.mxu0 0.0
  %4540 = vmatprep.mubr.f32.mxu0 0.0
  %4541 = vmatmul.mubr.f32.gmra.mrb[0].mxu0 %v4471
  %v4542 = vpop.f32.mrb[0].mxu0
  %v4543 = vadd.f32 0.0, %v4542
  %v4544 = vpop.f32.mrb[0].mxu0
  %4545 = vdwg.mxu0
  %v4547 = vsel %vm3024, %v3012, 0
  %v4550 = vsel %vm3028, %v98, 0
  %4552 = vmatprep.subr.mxu0 0.0
  %4553 = vmatpush1.msra.mxu0 %v4550
  %4554 = vmatprep.subr.mxu0 0.0
  %4555 = vmatpush1.msra.mxu0 0.0
  %4556 = vmatprep.subr.mxu0 0.0
  %4557 = vmatpush1.msra.mxu0 0.0
  %4558 = vmatprep.subr.mxu0 0.0
  %4559 = vmatpush1.msra.mxu0 0.0
  %4560 = vmatprep.subr.mxu0 0.0
  %4561 = vmatpush1.msra.mxu0 0.0
  %4562 = vmatprep.subr.mxu0 0.0
  %4563 = vmatpush1.msra.mxu0 0.0
  %4564 = vmatprep.subr.mxu0 0.0
  %4565 = vmatpush1.msra.mxu0 0.0
  %4566 = vmatprep.subr.mxu0 0.0
  %4567 = vmatpush1.msra.mxu0 0.0
  %4568 = vmatprep.subr.mxu0 0.0
  %4569 = vmatpush1.msra.mxu0 0.0
  %4570 = vmatprep.subr.mxu0 0.0
  %4571 = vmatpush1.msra.mxu0 0.0
  %4572 = vmatprep.subr.mxu0 0.0
  %4573 = vmatpush1.msra.mxu0 0.0
  %4574 = vmatprep.subr.mxu0 0.0
  %4575 = vmatpush1.msra.mxu0 0.0
  %4576 = vmatprep.subr.mxu0 0.0
  %4577 = vmatpush1.msra.mxu0 0.0
  %4578 = vmatprep.subr.mxu0 0.0
  %4579 = vmatpush1.msra.mxu0 0.0
  %4580 = vmatprep.subr.mxu0 0.0
  %4581 = vmatpush1.msra.mxu0 0.0
  %4582 = vmatprep.subr.mxu0 0.0
  %4583 = vmatpush1.msra.mxu0 0.0
  %4584 = vmatprep.subr.mxu0 0.0
  %4585 = vmatpush1.msra.mxu0 0.0
  %4586 = vmatprep.subr.mxu0 0.0
  %4587 = vmatpush1.msra.mxu0 0.0
  %4588 = vmatprep.subr.mxu0 0.0
  %4589 = vmatpush1.msra.mxu0 0.0
  %4590 = vmatprep.subr.mxu0 0.0
  %4591 = vmatpush1.msra.mxu0 0.0
  %4592 = vmatprep.subr.mxu0 0.0
  %4593 = vmatpush1.msra.mxu0 0.0
  %4594 = vmatprep.subr.mxu0 0.0
  %4595 = vmatpush1.msra.mxu0 0.0
  %4596 = vmatprep.subr.mxu0 0.0
  %4597 = vmatpush1.msra.mxu0 0.0
  %4598 = vmatprep.subr.mxu0 0.0
  %4599 = vmatpush1.msra.mxu0 0.0
  %4600 = vmatprep.subr.mxu0 0.0
  %4601 = vmatpush1.msra.mxu0 0.0
  %4602 = vmatprep.subr.mxu0 0.0
  %4603 = vmatpush1.msra.mxu0 0.0
  %4604 = vmatprep.subr.mxu0 0.0
  %4605 = vmatpush1.msra.mxu0 0.0
  %4606 = vmatprep.subr.mxu0 0.0
  %4607 = vmatpush1.msra.mxu0 0.0
  %4608 = vmatprep.subr.mxu0 0.0
  %4609 = vmatpush1.msra.mxu0 0.0
  %4610 = vmatprep.subr.mxu0 0.0
  %4611 = vmatpush1.msra.mxu0 0.0
  %4612 = vmatprep.subr.mxu0 0.0
  %4613 = vmatpush1.msra.mxu0 0.0
  %4614 = vmatprep.subr.mxu0 0.0
  %4615 = vmatpush1.msra.mxu0 0.0
  %4616 = vmatprep.mubr.f32.mxu0 0.0
  %4617 = vmatmul.mubr.f32.gmra.mrb[0].mxu0 %v4547
  %v4618 = vpop.f32.mrb[0].mxu0
  %v4619 = vadd.f32 0.0, %v4618
  %v4620 = vpop.f32.mrb[0].mxu0
  %4621 = vdwg.mxu0
  %v4623 = vsel %vm3024, %v3013, 0
  %v4626 = vsel %vm3028, %v99, 0
  %4628 = vmatprep.subr.mxu0 0.0
  %4629 = vmatpush1.msra.mxu0 %v4626
  %4630 = vmatprep.subr.mxu0 0.0
  %4631 = vmatpush1.msra.mxu0 0.0
  %4632 = vmatprep.subr.mxu0 0.0
  %4633 = vmatpush1.msra.mxu0 0.0
  %4634 = vmatprep.subr.mxu0 0.0
  %4635 = vmatpush1.msra.mxu0 0.0
  %4636 = vmatprep.subr.mxu0 0.0
  %4637 = vmatpush1.msra.mxu0 0.0
  %4638 = vmatprep.subr.mxu0 0.0
  %4639 = vmatpush1.msra.mxu0 0.0
  %4640 = vmatprep.subr.mxu0 0.0
  %4641 = vmatpush1.msra.mxu0 0.0
  %4642 = vmatprep.subr.mxu0 0.0
  %4643 = vmatpush1.msra.mxu0 0.0
  %4644 = vmatprep.subr.mxu0 0.0
  %4645 = vmatpush1.msra.mxu0 0.0
  %4646 = vmatprep.subr.mxu0 0.0
  %4647 = vmatpush1.msra.mxu0 0.0
  %4648 = vmatprep.subr.mxu0 0.0
  %4649 = vmatpush1.msra.mxu0 0.0
  %4650 = vmatprep.subr.mxu0 0.0
  %4651 = vmatpush1.msra.mxu0 0.0
  %4652 = vmatprep.subr.mxu0 0.0
  %4653 = vmatpush1.msra.mxu0 0.0
  %4654 = vmatprep.subr.mxu0 0.0
  %4655 = vmatpush1.msra.mxu0 0.0
  %4656 = vmatprep.subr.mxu0 0.0
  %4657 = vmatpush1.msra.mxu0 0.0
  %4658 = vmatprep.subr.mxu0 0.0
  %4659 = vmatpush1.msra.mxu0 0.0
  %4660 = vmatprep.subr.mxu0 0.0
  %4661 = vmatpush1.msra.mxu0 0.0
  %4662 = vmatprep.subr.mxu0 0.0
  %4663 = vmatpush1.msra.mxu0 0.0
  %4664 = vmatprep.subr.mxu0 0.0
  %4665 = vmatpush1.msra.mxu0 0.0
  %4666 = vmatprep.subr.mxu0 0.0
  %4667 = vmatpush1.msra.mxu0 0.0
  %4668 = vmatprep.subr.mxu0 0.0
  %4669 = vmatpush1.msra.mxu0 0.0
  %4670 = vmatprep.subr.mxu0 0.0
  %4671 = vmatpush1.msra.mxu0 0.0
  %4672 = vmatprep.subr.mxu0 0.0
  %4673 = vmatpush1.msra.mxu0 0.0
  %4674 = vmatprep.subr.mxu0 0.0
  %4675 = vmatpush1.msra.mxu0 0.0
  %4676 = vmatprep.subr.mxu0 0.0
  %4677 = vmatpush1.msra.mxu0 0.0
  %4678 = vmatprep.subr.mxu0 0.0
  %4679 = vmatpush1.msra.mxu0 0.0
  %4680 = vmatprep.subr.mxu0 0.0
  %4681 = vmatpush1.msra.mxu0 0.0
  %4682 = vmatprep.subr.mxu0 0.0
  %4683 = vmatpush1.msra.mxu0 0.0
  %4684 = vmatprep.subr.mxu0 0.0
  %4685 = vmatpush1.msra.mxu0 0.0
  %4686 = vmatprep.subr.mxu0 0.0
  %4687 = vmatpush1.msra.mxu0 0.0
  %4688 = vmatprep.subr.mxu0 0.0
  %4689 = vmatpush1.msra.mxu0 0.0
  %4690 = vmatprep.subr.mxu0 0.0
  %4691 = vmatpush1.msra.mxu0 0.0
  %4692 = vmatprep.mubr.f32.mxu0 0.0
  %4693 = vmatmul.mubr.f32.gmra.mrb[0].mxu0 %v4623
  %v4694 = vpop.f32.mrb[0].mxu0
  %v4695 = vadd.f32 0.0, %v4694
  %v4696 = vpop.f32.mrb[0].mxu0
  %4697 = vdwg.mxu0
  %v4699 = vsel %vm3024, %v3014, 0
  %v4702 = vsel %vm3028, %v100, 0
  %4704 = vmatprep.subr.mxu0 0.0
  %4705 = vmatpush1.msra.mxu0 %v4702
  %4706 = vmatprep.subr.mxu0 0.0
  %4707 = vmatpush1.msra.mxu0 0.0
  %4708 = vmatprep.subr.mxu0 0.0
  %4709 = vmatpush1.msra.mxu0 0.0
  %4710 = vmatprep.subr.mxu0 0.0
  %4711 = vmatpush1.msra.mxu0 0.0
  %4712 = vmatprep.subr.mxu0 0.0
  %4713 = vmatpush1.msra.mxu0 0.0
  %4714 = vmatprep.subr.mxu0 0.0
  %4715 = vmatpush1.msra.mxu0 0.0
  %4716 = vmatprep.subr.mxu0 0.0
  %4717 = vmatpush1.msra.mxu0 0.0
  %4718 = vmatprep.subr.mxu0 0.0
  %4719 = vmatpush1.msra.mxu0 0.0
  %4720 = vmatprep.subr.mxu0 0.0
  %4721 = vmatpush1.msra.mxu0 0.0
  %4722 = vmatprep.subr.mxu0 0.0
  %4723 = vmatpush1.msra.mxu0 0.0
  %4724 = vmatprep.subr.mxu0 0.0
  %4725 = vmatpush1.msra.mxu0 0.0
  %4726 = vmatprep.subr.mxu0 0.0
  %4727 = vmatpush1.msra.mxu0 0.0
  %4728 = vmatprep.subr.mxu0 0.0
  %4729 = vmatpush1.msra.mxu0 0.0
  %4730 = vmatprep.subr.mxu0 0.0
  %4731 = vmatpush1.msra.mxu0 0.0
  %4732 = vmatprep.subr.mxu0 0.0
  %4733 = vmatpush1.msra.mxu0 0.0
  %4734 = vmatprep.subr.mxu0 0.0
  %4735 = vmatpush1.msra.mxu0 0.0
  %4736 = vmatprep.subr.mxu0 0.0
  %4737 = vmatpush1.msra.mxu0 0.0
  %4738 = vmatprep.subr.mxu0 0.0
  %4739 = vmatpush1.msra.mxu0 0.0
  %4740 = vmatprep.subr.mxu0 0.0
  %4741 = vmatpush1.msra.mxu0 0.0
  %4742 = vmatprep.subr.mxu0 0.0
  %4743 = vmatpush1.msra.mxu0 0.0
  %4744 = vmatprep.subr.mxu0 0.0
  %4745 = vmatpush1.msra.mxu0 0.0
  %4746 = vmatprep.subr.mxu0 0.0
  %4747 = vmatpush1.msra.mxu0 0.0
  %4748 = vmatprep.subr.mxu0 0.0
  %4749 = vmatpush1.msra.mxu0 0.0
  %4750 = vmatprep.subr.mxu0 0.0
  %4751 = vmatpush1.msra.mxu0 0.0
  %4752 = vmatprep.subr.mxu0 0.0
  %4753 = vmatpush1.msra.mxu0 0.0
  %4754 = vmatprep.subr.mxu0 0.0
  %4755 = vmatpush1.msra.mxu0 0.0
  %4756 = vmatprep.subr.mxu0 0.0
  %4757 = vmatpush1.msra.mxu0 0.0
  %4758 = vmatprep.subr.mxu0 0.0
  %4759 = vmatpush1.msra.mxu0 0.0
  %4760 = vmatprep.subr.mxu0 0.0
  %4761 = vmatpush1.msra.mxu0 0.0
  %4762 = vmatprep.subr.mxu0 0.0
  %4763 = vmatpush1.msra.mxu0 0.0
  %4764 = vmatprep.subr.mxu0 0.0
  %4765 = vmatpush1.msra.mxu0 0.0
  %4766 = vmatprep.subr.mxu0 0.0
  %4767 = vmatpush1.msra.mxu0 0.0
  %4768 = vmatprep.mubr.f32.mxu0 0.0
  %4769 = vmatmul.mubr.f32.gmra.mrb[0].mxu0 %v4699
  %v4770 = vpop.f32.mrb[0].mxu0
  %v4771 = vadd.f32 0.0, %v4770
  %v4772 = vpop.f32.mrb[0].mxu0
  %4773 = vdwg.mxu0
  %v4775 = vsel %vm3024, %v3015, 0
  %v4778 = vsel %vm3028, %v101, 0
  %4780 = vmatprep.subr.mxu0 0.0
  %4781 = vmatpush1.msra.mxu0 %v4778
  %4782 = vmatprep.subr.mxu0 0.0
  %4783 = vmatpush1.msra.mxu0 0.0
  %4784 = vmatprep.subr.mxu0 0.0
  %4785 = vmatpush1.msra.mxu0 0.0
  %4786 = vmatprep.subr.mxu0 0.0
  %4787 = vmatpush1.msra.mxu0 0.0
  %4788 = vmatprep.subr.mxu0 0.0
  %4789 = vmatpush1.msra.mxu0 0.0
  %4790 = vmatprep.subr.mxu0 0.0
  %4791 = vmatpush1.msra.mxu0 0.0
  %4792 = vmatprep.subr.mxu0 0.0
  %4793 = vmatpush1.msra.mxu0 0.0
  %4794 = vmatprep.subr.mxu0 0.0
  %4795 = vmatpush1.msra.mxu0 0.0
  %4796 = vmatprep.subr.mxu0 0.0
  %4797 = vmatpush1.msra.mxu0 0.0
  %4798 = vmatprep.subr.mxu0 0.0
  %4799 = vmatpush1.msra.mxu0 0.0
  %4800 = vmatprep.subr.mxu0 0.0
  %4801 = vmatpush1.msra.mxu0 0.0
  %4802 = vmatprep.subr.mxu0 0.0
  %4803 = vmatpush1.msra.mxu0 0.0
  %4804 = vmatprep.subr.mxu0 0.0
  %4805 = vmatpush1.msra.mxu0 0.0
  %4806 = vmatprep.subr.mxu0 0.0
  %4807 = vmatpush1.msra.mxu0 0.0
  %4808 = vmatprep.subr.mxu0 0.0
  %4809 = vmatpush1.msra.mxu0 0.0
  %4810 = vmatprep.subr.mxu0 0.0
  %4811 = vmatpush1.msra.mxu0 0.0
  %4812 = vmatprep.subr.mxu0 0.0
  %4813 = vmatpush1.msra.mxu0 0.0
  %4814 = vmatprep.subr.mxu0 0.0
  %4815 = vmatpush1.msra.mxu0 0.0
  %4816 = vmatprep.subr.mxu0 0.0
  %4817 = vmatpush1.msra.mxu0 0.0
  %4818 = vmatprep.subr.mxu0 0.0
  %4819 = vmatpush1.msra.mxu0 0.0
  %4820 = vmatprep.subr.mxu0 0.0
  %4821 = vmatpush1.msra.mxu0 0.0
  %4822 = vmatprep.subr.mxu0 0.0
  %4823 = vmatpush1.msra.mxu0 0.0
  %4824 = vmatprep.subr.mxu0 0.0
  %4825 = vmatpush1.msra.mxu0 0.0
  %4826 = vmatprep.subr.mxu0 0.0
  %4827 = vmatpush1.msra.mxu0 0.0
  %4828 = vmatprep.subr.mxu0 0.0
  %4829 = vmatpush1.msra.mxu0 0.0
  %4830 = vmatprep.subr.mxu0 0.0
  %4831 = vmatpush1.msra.mxu0 0.0
  %4832 = vmatprep.subr.mxu0 0.0
  %4833 = vmatpush1.msra.mxu0 0.0
  %4834 = vmatprep.subr.mxu0 0.0
  %4835 = vmatpush1.msra.mxu0 0.0
  %4836 = vmatprep.subr.mxu0 0.0
  %4837 = vmatpush1.msra.mxu0 0.0
  %4838 = vmatprep.subr.mxu0 0.0
  %4839 = vmatpush1.msra.mxu0 0.0
  %4840 = vmatprep.subr.mxu0 0.0
  %4841 = vmatpush1.msra.mxu0 0.0
  %4842 = vmatprep.subr.mxu0 0.0
  %4843 = vmatpush1.msra.mxu0 0.0
  %4844 = vmatprep.mubr.f32.mxu0 0.0
  %4845 = vmatmul.mubr.f32.gmra.mrb[0].mxu0 %v4775
  %v4846 = vpop.f32.mrb[0].mxu0
  %v4847 = vadd.f32 0.0, %v4846
  %v4848 = vpop.f32.mrb[0].mxu0
  %4849 = vdwg.mxu0
  %v4851 = vsel %vm3024, %v3016, 0
  %v4854 = vsel %vm3028, %v102, 0
  %4856 = vmatprep.subr.mxu0 0.0
  %4857 = vmatpush1.msra.mxu0 %v4854
  %4858 = vmatprep.subr.mxu0 0.0
  %4859 = vmatpush1.msra.mxu0 0.0
  %4860 = vmatprep.subr.mxu0 0.0
  %4861 = vmatpush1.msra.mxu0 0.0
  %4862 = vmatprep.subr.mxu0 0.0
  %4863 = vmatpush1.msra.mxu0 0.0
  %4864 = vmatprep.subr.mxu0 0.0
  %4865 = vmatpush1.msra.mxu0 0.0
  %4866 = vmatprep.subr.mxu0 0.0
  %4867 = vmatpush1.msra.mxu0 0.0
  %4868 = vmatprep.subr.mxu0 0.0
  %4869 = vmatpush1.msra.mxu0 0.0
  %4870 = vmatprep.subr.mxu0 0.0
  %4871 = vmatpush1.msra.mxu0 0.0
  %4872 = vmatprep.subr.mxu0 0.0
  %4873 = vmatpush1.msra.mxu0 0.0
  %4874 = vmatprep.subr.mxu0 0.0
  %4875 = vmatpush1.msra.mxu0 0.0
  %4876 = vmatprep.subr.mxu0 0.0
  %4877 = vmatpush1.msra.mxu0 0.0
  %4878 = vmatprep.subr.mxu0 0.0
  %4879 = vmatpush1.msra.mxu0 0.0
  %4880 = vmatprep.subr.mxu0 0.0
  %4881 = vmatpush1.msra.mxu0 0.0
  %4882 = vmatprep.subr.mxu0 0.0
  %4883 = vmatpush1.msra.mxu0 0.0
  %4884 = vmatprep.subr.mxu0 0.0
  %4885 = vmatpush1.msra.mxu0 0.0
  %4886 = vmatprep.subr.mxu0 0.0
  %4887 = vmatpush1.msra.mxu0 0.0
  %4888 = vmatprep.subr.mxu0 0.0
  %4889 = vmatpush1.msra.mxu0 0.0
  %4890 = vmatprep.subr.mxu0 0.0
  %4891 = vmatpush1.msra.mxu0 0.0
  %4892 = vmatprep.subr.mxu0 0.0
  %4893 = vmatpush1.msra.mxu0 0.0
  %4894 = vmatprep.subr.mxu0 0.0
  %4895 = vmatpush1.msra.mxu0 0.0
  %4896 = vmatprep.subr.mxu0 0.0
  %4897 = vmatpush1.msra.mxu0 0.0
  %4898 = vmatprep.subr.mxu0 0.0
  %4899 = vmatpush1.msra.mxu0 0.0
  %4900 = vmatprep.subr.mxu0 0.0
  %4901 = vmatpush1.msra.mxu0 0.0
  %4902 = vmatprep.subr.mxu0 0.0
  %4903 = vmatpush1.msra.mxu0 0.0
  %4904 = vmatprep.subr.mxu0 0.0
  %4905 = vmatpush1.msra.mxu0 0.0
  %4906 = vmatprep.subr.mxu0 0.0
  %4907 = vmatpush1.msra.mxu0 0.0
  %4908 = vmatprep.subr.mxu0 0.0
  %4909 = vmatpush1.msra.mxu0 0.0
  %4910 = vmatprep.subr.mxu0 0.0
  %4911 = vmatpush1.msra.mxu0 0.0
  %4912 = vmatprep.subr.mxu0 0.0
  %4913 = vmatpush1.msra.mxu0 0.0
  %4914 = vmatprep.subr.mxu0 0.0
  %4915 = vmatpush1.msra.mxu0 0.0
  %4916 = vmatprep.subr.mxu0 0.0
  %4917 = vmatpush1.msra.mxu0 0.0
  %4918 = vmatprep.subr.mxu0 0.0
  %4919 = vmatpush1.msra.mxu0 0.0
  %4920 = vmatprep.mubr.f32.mxu0 0.0
  %4921 = vmatmul.mubr.f32.gmra.mrb[0].mxu0 %v4851
  %v4922 = vpop.f32.mrb[0].mxu0
  %v4923 = vadd.f32 0.0, %v4922
  %v4924 = vpop.f32.mrb[0].mxu0
  %4925 = vdwg.mxu0
  %v4927 = vsel %vm3024, %v3017, 0
  %v4930 = vsel %vm3028, %v103, 0
  %4932 = vmatprep.subr.mxu0 0.0
  %4933 = vmatpush1.msra.mxu0 %v4930
  %4934 = vmatprep.subr.mxu0 0.0
  %4935 = vmatpush1.msra.mxu0 0.0
  %4936 = vmatprep.subr.mxu0 0.0
  %4937 = vmatpush1.msra.mxu0 0.0
  %4938 = vmatprep.subr.mxu0 0.0
  %4939 = vmatpush1.msra.mxu0 0.0
  %4940 = vmatprep.subr.mxu0 0.0
  %4941 = vmatpush1.msra.mxu0 0.0
  %4942 = vmatprep.subr.mxu0 0.0
  %4943 = vmatpush1.msra.mxu0 0.0
  %4944 = vmatprep.subr.mxu0 0.0
  %4945 = vmatpush1.msra.mxu0 0.0
  %4946 = vmatprep.subr.mxu0 0.0
  %4947 = vmatpush1.msra.mxu0 0.0
  %4948 = vmatprep.subr.mxu0 0.0
  %4949 = vmatpush1.msra.mxu0 0.0
  %4950 = vmatprep.subr.mxu0 0.0
  %4951 = vmatpush1.msra.mxu0 0.0
  %4952 = vmatprep.subr.mxu0 0.0
  %4953 = vmatpush1.msra.mxu0 0.0
  %4954 = vmatprep.subr.mxu0 0.0
  %4955 = vmatpush1.msra.mxu0 0.0
  %4956 = vmatprep.subr.mxu0 0.0
  %4957 = vmatpush1.msra.mxu0 0.0
  %4958 = vmatprep.subr.mxu0 0.0
  %4959 = vmatpush1.msra.mxu0 0.0
  %4960 = vmatprep.subr.mxu0 0.0
  %4961 = vmatpush1.msra.mxu0 0.0
  %4962 = vmatprep.subr.mxu0 0.0
  %4963 = vmatpush1.msra.mxu0 0.0
  %4964 = vmatprep.subr.mxu0 0.0
  %4965 = vmatpush1.msra.mxu0 0.0
  %4966 = vmatprep.subr.mxu0 0.0
  %4967 = vmatpush1.msra.mxu0 0.0
  %4968 = vmatprep.subr.mxu0 0.0
  %4969 = vmatpush1.msra.mxu0 0.0
  %4970 = vmatprep.subr.mxu0 0.0
  %4971 = vmatpush1.msra.mxu0 0.0
  %4972 = vmatprep.subr.mxu0 0.0
  %4973 = vmatpush1.msra.mxu0 0.0
  %4974 = vmatprep.subr.mxu0 0.0
  %4975 = vmatpush1.msra.mxu0 0.0
  %4976 = vmatprep.subr.mxu0 0.0
  %4977 = vmatpush1.msra.mxu0 0.0
  %4978 = vmatprep.subr.mxu0 0.0
  %4979 = vmatpush1.msra.mxu0 0.0
  %4980 = vmatprep.subr.mxu0 0.0
  %4981 = vmatpush1.msra.mxu0 0.0
  %4982 = vmatprep.subr.mxu0 0.0
  %4983 = vmatpush1.msra.mxu0 0.0
  %4984 = vmatprep.subr.mxu0 0.0
  %4985 = vmatpush1.msra.mxu0 0.0
  %4986 = vmatprep.subr.mxu0 0.0
  %4987 = vmatpush1.msra.mxu0 0.0
  %4988 = vmatprep.subr.mxu0 0.0
  %4989 = vmatpush1.msra.mxu0 0.0
  %4990 = vmatprep.subr.mxu0 0.0
  %4991 = vmatpush1.msra.mxu0 0.0
  %4992 = vmatprep.subr.mxu0 0.0
  %4993 = vmatpush1.msra.mxu0 0.0
  %4994 = vmatprep.subr.mxu0 0.0
  %4995 = vmatpush1.msra.mxu0 0.0
  %4996 = vmatprep.mubr.f32.mxu0 0.0
  %4997 = vmatmul.mubr.f32.gmra.mrb[0].mxu0 %v4927
  %v4998 = vpop.f32.mrb[0].mxu0
  %v4999 = vadd.f32 0.0, %v4998
  %v5000 = vpop.f32.mrb[0].mxu0
  %5001 = vdwg.mxu0
  %v5003 = vsel %vm3024, %v3018, 0
  %v5006 = vsel %vm3028, %v104, 0
  %5008 = vmatprep.subr.mxu0 0.0
  %5009 = vmatpush1.msra.mxu0 %v5006
  %5010 = vmatprep.subr.mxu0 0.0
  %5011 = vmatpush1.msra.mxu0 0.0
  %5012 = vmatprep.subr.mxu0 0.0
  %5013 = vmatpush1.msra.mxu0 0.0
  %5014 = vmatprep.subr.mxu0 0.0
  %5015 = vmatpush1.msra.mxu0 0.0
  %5016 = vmatprep.subr.mxu0 0.0
  %5017 = vmatpush1.msra.mxu0 0.0
  %5018 = vmatprep.subr.mxu0 0.0
  %5019 = vmatpush1.msra.mxu0 0.0
  %5020 = vmatprep.subr.mxu0 0.0
  %5021 = vmatpush1.msra.mxu0 0.0
  %5022 = vmatprep.subr.mxu0 0.0
  %5023 = vmatpush1.msra.mxu0 0.0
  %5024 = vmatprep.subr.mxu0 0.0
  %5025 = vmatpush1.msra.mxu0 0.0
  %5026 = vmatprep.subr.mxu0 0.0
  %5027 = vmatpush1.msra.mxu0 0.0
  %5028 = vmatprep.subr.mxu0 0.0
  %5029 = vmatpush1.msra.mxu0 0.0
  %5030 = vmatprep.subr.mxu0 0.0
  %5031 = vmatpush1.msra.mxu0 0.0
  %5032 = vmatprep.subr.mxu0 0.0
  %5033 = vmatpush1.msra.mxu0 0.0
  %5034 = vmatprep.subr.mxu0 0.0
  %5035 = vmatpush1.msra.mxu0 0.0
  %5036 = vmatprep.subr.mxu0 0.0
  %5037 = vmatpush1.msra.mxu0 0.0
  %5038 = vmatprep.subr.mxu0 0.0
  %5039 = vmatpush1.msra.mxu0 0.0
  %5040 = vmatprep.subr.mxu0 0.0
  %5041 = vmatpush1.msra.mxu0 0.0
  %5042 = vmatprep.subr.mxu0 0.0
  %5043 = vmatpush1.msra.mxu0 0.0
  %5044 = vmatprep.subr.mxu0 0.0
  %5045 = vmatpush1.msra.mxu0 0.0
  %5046 = vmatprep.subr.mxu0 0.0
  %5047 = vmatpush1.msra.mxu0 0.0
  %5048 = vmatprep.subr.mxu0 0.0
  %5049 = vmatpush1.msra.mxu0 0.0
  %5050 = vmatprep.subr.mxu0 0.0
  %5051 = vmatpush1.msra.mxu0 0.0
  %5052 = vmatprep.subr.mxu0 0.0
  %5053 = vmatpush1.msra.mxu0 0.0
  %5054 = vmatprep.subr.mxu0 0.0
  %5055 = vmatpush1.msra.mxu0 0.0
  %5056 = vmatprep.subr.mxu0 0.0
  %5057 = vmatpush1.msra.mxu0 0.0
  %5058 = vmatprep.subr.mxu0 0.0
  %5059 = vmatpush1.msra.mxu0 0.0
  %5060 = vmatprep.subr.mxu0 0.0
  %5061 = vmatpush1.msra.mxu0 0.0
  %5062 = vmatprep.subr.mxu0 0.0
  %5063 = vmatpush1.msra.mxu0 0.0
  %5064 = vmatprep.subr.mxu0 0.0
  %5065 = vmatpush1.msra.mxu0 0.0
  %5066 = vmatprep.subr.mxu0 0.0
  %5067 = vmatpush1.msra.mxu0 0.0
  %5068 = vmatprep.subr.mxu0 0.0
  %5069 = vmatpush1.msra.mxu0 0.0
  %5070 = vmatprep.subr.mxu0 0.0
  %5071 = vmatpush1.msra.mxu0 0.0
  %5072 = vmatprep.mubr.f32.mxu0 0.0
  %5073 = vmatmul.mubr.f32.gmra.mrb[0].mxu0 %v5003
  %v5074 = vpop.f32.mrb[0].mxu0
  %v5075 = vadd.f32 0.0, %v5074
  %v5076 = vpop.f32.mrb[0].mxu0
  %5077 = vdwg.mxu0
  %v5079 = vsel %vm3024, %v3019, 0
  %v5082 = vsel %vm3028, %v105, 0
  %5084 = vmatprep.subr.mxu0 0.0
  %5085 = vmatpush1.msra.mxu0 %v5082
  %5086 = vmatprep.subr.mxu0 0.0
  %5087 = vmatpush1.msra.mxu0 0.0
  %5088 = vmatprep.subr.mxu0 0.0
  %5089 = vmatpush1.msra.mxu0 0.0
  %5090 = vmatprep.subr.mxu0 0.0
  %5091 = vmatpush1.msra.mxu0 0.0
  %5092 = vmatprep.subr.mxu0 0.0
  %5093 = vmatpush1.msra.mxu0 0.0
  %5094 = vmatprep.subr.mxu0 0.0
  %5095 = vmatpush1.msra.mxu0 0.0
  %5096 = vmatprep.subr.mxu0 0.0
  %5097 = vmatpush1.msra.mxu0 0.0
  %5098 = vmatprep.subr.mxu0 0.0
  %5099 = vmatpush1.msra.mxu0 0.0
  %5100 = vmatprep.subr.mxu0 0.0
  %5101 = vmatpush1.msra.mxu0 0.0
  %5102 = vmatprep.subr.mxu0 0.0
  %5103 = vmatpush1.msra.mxu0 0.0
  %5104 = vmatprep.subr.mxu0 0.0
  %5105 = vmatpush1.msra.mxu0 0.0
  %5106 = vmatprep.subr.mxu0 0.0
  %5107 = vmatpush1.msra.mxu0 0.0
  %5108 = vmatprep.subr.mxu0 0.0
  %5109 = vmatpush1.msra.mxu0 0.0
  %5110 = vmatprep.subr.mxu0 0.0
  %5111 = vmatpush1.msra.mxu0 0.0
  %5112 = vmatprep.subr.mxu0 0.0
  %5113 = vmatpush1.msra.mxu0 0.0
  %5114 = vmatprep.subr.mxu0 0.0
  %5115 = vmatpush1.msra.mxu0 0.0
  %5116 = vmatprep.subr.mxu0 0.0
  %5117 = vmatpush1.msra.mxu0 0.0
  %5118 = vmatprep.subr.mxu0 0.0
  %5119 = vmatpush1.msra.mxu0 0.0
  %5120 = vmatprep.subr.mxu0 0.0
  %5121 = vmatpush1.msra.mxu0 0.0
  %5122 = vmatprep.subr.mxu0 0.0
  %5123 = vmatpush1.msra.mxu0 0.0
  %5124 = vmatprep.subr.mxu0 0.0
  %5125 = vmatpush1.msra.mxu0 0.0
  %5126 = vmatprep.subr.mxu0 0.0
  %5127 = vmatpush1.msra.mxu0 0.0
  %5128 = vmatprep.subr.mxu0 0.0
  %5129 = vmatpush1.msra.mxu0 0.0
  %5130 = vmatprep.subr.mxu0 0.0
  %5131 = vmatpush1.msra.mxu0 0.0
  %5132 = vmatprep.subr.mxu0 0.0
  %5133 = vmatpush1.msra.mxu0 0.0
  %5134 = vmatprep.subr.mxu0 0.0
  %5135 = vmatpush1.msra.mxu0 0.0
  %5136 = vmatprep.subr.mxu0 0.0
  %5137 = vmatpush1.msra.mxu0 0.0
  %5138 = vmatprep.subr.mxu0 0.0
  %5139 = vmatpush1.msra.mxu0 0.0
  %5140 = vmatprep.subr.mxu0 0.0
  %5141 = vmatpush1.msra.mxu0 0.0
  %5142 = vmatprep.subr.mxu0 0.0
  %5143 = vmatpush1.msra.mxu0 0.0
  %5144 = vmatprep.subr.mxu0 0.0
  %5145 = vmatpush1.msra.mxu0 0.0
  %5146 = vmatprep.subr.mxu0 0.0
  %5147 = vmatpush1.msra.mxu0 0.0
  %5148 = vmatprep.mubr.f32.mxu0 0.0
  %5149 = vmatmul.mubr.f32.gmra.mrb[0].mxu0 %v5079
  %v5150 = vpop.f32.mrb[0].mxu0
  %v5151 = vadd.f32 0.0, %v5150
  %v5152 = vpop.f32.mrb[0].mxu0
  %5153 = vdwg.mxu0
  %v5155 = vsel %vm3024, %v3020, 0
  %v5158 = vsel %vm3028, %v106, 0
  %5160 = vmatprep.subr.mxu0 0.0
  %5161 = vmatpush1.msra.mxu0 %v5158
  %5162 = vmatprep.subr.mxu0 0.0
  %5163 = vmatpush1.msra.mxu0 0.0
  %5164 = vmatprep.subr.mxu0 0.0
  %5165 = vmatpush1.msra.mxu0 0.0
  %5166 = vmatprep.subr.mxu0 0.0
  %5167 = vmatpush1.msra.mxu0 0.0
  %5168 = vmatprep.subr.mxu0 0.0
  %5169 = vmatpush1.msra.mxu0 0.0
  %5170 = vmatprep.subr.mxu0 0.0
  %5171 = vmatpush1.msra.mxu0 0.0
  %5172 = vmatprep.subr.mxu0 0.0
  %5173 = vmatpush1.msra.mxu0 0.0
  %5174 = vmatprep.subr.mxu0 0.0
  %5175 = vmatpush1.msra.mxu0 0.0
  %5176 = vmatprep.subr.mxu0 0.0
  %5177 = vmatpush1.msra.mxu0 0.0
  %5178 = vmatprep.subr.mxu0 0.0
  %5179 = vmatpush1.msra.mxu0 0.0
  %5180 = vmatprep.subr.mxu0 0.0
  %5181 = vmatpush1.msra.mxu0 0.0
  %5182 = vmatprep.subr.mxu0 0.0
  %5183 = vmatpush1.msra.mxu0 0.0
  %5184 = vmatprep.subr.mxu0 0.0
  %5185 = vmatpush1.msra.mxu0 0.0
  %5186 = vmatprep.subr.mxu0 0.0
  %5187 = vmatpush1.msra.mxu0 0.0
  %5188 = vmatprep.subr.mxu0 0.0
  %5189 = vmatpush1.msra.mxu0 0.0
  %5190 = vmatprep.subr.mxu0 0.0
  %5191 = vmatpush1.msra.mxu0 0.0
  %5192 = vmatprep.subr.mxu0 0.0
  %5193 = vmatpush1.msra.mxu0 0.0
  %5194 = vmatprep.subr.mxu0 0.0
  %5195 = vmatpush1.msra.mxu0 0.0
  %5196 = vmatprep.subr.mxu0 0.0
  %5197 = vmatpush1.msra.mxu0 0.0
  %5198 = vmatprep.subr.mxu0 0.0
  %5199 = vmatpush1.msra.mxu0 0.0
  %5200 = vmatprep.subr.mxu0 0.0
  %5201 = vmatpush1.msra.mxu0 0.0
  %5202 = vmatprep.subr.mxu0 0.0
  %5203 = vmatpush1.msra.mxu0 0.0
  %5204 = vmatprep.subr.mxu0 0.0
  %5205 = vmatpush1.msra.mxu0 0.0
  %5206 = vmatprep.subr.mxu0 0.0
  %5207 = vmatpush1.msra.mxu0 0.0
  %5208 = vmatprep.subr.mxu0 0.0
  %5209 = vmatpush1.msra.mxu0 0.0
  %5210 = vmatprep.subr.mxu0 0.0
  %5211 = vmatpush1.msra.mxu0 0.0
  %5212 = vmatprep.subr.mxu0 0.0
  %5213 = vmatpush1.msra.mxu0 0.0
  %5214 = vmatprep.subr.mxu0 0.0
  %5215 = vmatpush1.msra.mxu0 0.0
  %5216 = vmatprep.subr.mxu0 0.0
  %5217 = vmatpush1.msra.mxu0 0.0
  %5218 = vmatprep.subr.mxu0 0.0
  %5219 = vmatpush1.msra.mxu0 0.0
  %5220 = vmatprep.subr.mxu0 0.0
  %5221 = vmatpush1.msra.mxu0 0.0
  %5222 = vmatprep.subr.mxu0 0.0
  %5223 = vmatpush1.msra.mxu0 0.0
  %5224 = vmatprep.mubr.f32.mxu0 0.0
  %5225 = vmatmul.mubr.f32.gmra.mrb[0].mxu0 %v5155
  %v5226 = vpop.f32.mrb[0].mxu0
  %v5227 = vadd.f32 0.0, %v5226
  %v5228 = vpop.f32.mrb[0].mxu0
  %5229 = vdwg.mxu0
  %v5231 = vsel %vm3024, %v3021, 0
  %v5234 = vsel %vm3028, %v107, 0
  %5236 = vmatprep.subr.mxu0 0.0
  %5237 = vmatpush1.msra.mxu0 %v5234
  %5238 = vmatprep.subr.mxu0 0.0
  %5239 = vmatpush1.msra.mxu0 0.0
  %5240 = vmatprep.subr.mxu0 0.0
  %5241 = vmatpush1.msra.mxu0 0.0
  %5242 = vmatprep.subr.mxu0 0.0
  %5243 = vmatpush1.msra.mxu0 0.0
  %5244 = vmatprep.subr.mxu0 0.0
  %5245 = vmatpush1.msra.mxu0 0.0
  %5246 = vmatprep.subr.mxu0 0.0
  %5247 = vmatpush1.msra.mxu0 0.0
  %5248 = vmatprep.subr.mxu0 0.0
  %5249 = vmatpush1.msra.mxu0 0.0
  %5250 = vmatprep.subr.mxu0 0.0
  %5251 = vmatpush1.msra.mxu0 0.0
  %5252 = vmatprep.subr.mxu0 0.0
  %5253 = vmatpush1.msra.mxu0 0.0
  %5254 = vmatprep.subr.mxu0 0.0
  %5255 = vmatpush1.msra.mxu0 0.0
  %5256 = vmatprep.subr.mxu0 0.0
  %5257 = vmatpush1.msra.mxu0 0.0
  %5258 = vmatprep.subr.mxu0 0.0
  %5259 = vmatpush1.msra.mxu0 0.0
  %5260 = vmatprep.subr.mxu0 0.0
  %5261 = vmatpush1.msra.mxu0 0.0
  %5262 = vmatprep.subr.mxu0 0.0
  %5263 = vmatpush1.msra.mxu0 0.0
  %5264 = vmatprep.subr.mxu0 0.0
  %5265 = vmatpush1.msra.mxu0 0.0
  %5266 = vmatprep.subr.mxu0 0.0
  %5267 = vmatpush1.msra.mxu0 0.0
  %5268 = vmatprep.subr.mxu0 0.0
  %5269 = vmatpush1.msra.mxu0 0.0
  %5270 = vmatprep.subr.mxu0 0.0
  %5271 = vmatpush1.msra.mxu0 0.0
  %5272 = vmatprep.subr.mxu0 0.0
  %5273 = vmatpush1.msra.mxu0 0.0
  %5274 = vmatprep.subr.mxu0 0.0
  %5275 = vmatpush1.msra.mxu0 0.0
  %5276 = vmatprep.subr.mxu0 0.0
  %5277 = vmatpush1.msra.mxu0 0.0
  %5278 = vmatprep.subr.mxu0 0.0
  %5279 = vmatpush1.msra.mxu0 0.0
  %5280 = vmatprep.subr.mxu0 0.0
  %5281 = vmatpush1.msra.mxu0 0.0
  %5282 = vmatprep.subr.mxu0 0.0
  %5283 = vmatpush1.msra.mxu0 0.0
  %5284 = vmatprep.subr.mxu0 0.0
  %5285 = vmatpush1.msra.mxu0 0.0
  %5286 = vmatprep.subr.mxu0 0.0
  %5287 = vmatpush1.msra.mxu0 0.0
  %5288 = vmatprep.subr.mxu0 0.0
  %5289 = vmatpush1.msra.mxu0 0.0
  %5290 = vmatprep.subr.mxu0 0.0
  %5291 = vmatpush1.msra.mxu0 0.0
  %5292 = vmatprep.subr.mxu0 0.0
  %5293 = vmatpush1.msra.mxu0 0.0
  %5294 = vmatprep.subr.mxu0 0.0
  %5295 = vmatpush1.msra.mxu0 0.0
  %5296 = vmatprep.subr.mxu0 0.0
  %5297 = vmatpush1.msra.mxu0 0.0
  %5298 = vmatprep.subr.mxu0 0.0
  %5299 = vmatpush1.msra.mxu0 0.0
  %5300 = vmatprep.mubr.f32.mxu0 0.0
  %5301 = vmatmul.mubr.f32.gmra.mrb[0].mxu0 %v5231
  %v5302 = vpop.f32.mrb[0].mxu0
  %v5303 = vadd.f32 0.0, %v5302
  %v5304 = vpop.f32.mrb[0].mxu0
  %5305 = vdwg.mxu0
  %v5307 = vsel %vm3024, %v3022, 0
  %v5310 = vsel %vm3028, %v108, 0
  %5312 = vmatprep.subr.mxu0 0.0
  %5313 = vmatpush1.msra.mxu0 %v5310
  %5314 = vmatprep.subr.mxu0 0.0
  %5315 = vmatpush1.msra.mxu0 0.0
  %5316 = vmatprep.subr.mxu0 0.0
  %5317 = vmatpush1.msra.mxu0 0.0
  %5318 = vmatprep.subr.mxu0 0.0
  %5319 = vmatpush1.msra.mxu0 0.0
  %5320 = vmatprep.subr.mxu0 0.0
  %5321 = vmatpush1.msra.mxu0 0.0
  %5322 = vmatprep.subr.mxu0 0.0
  %5323 = vmatpush1.msra.mxu0 0.0
  %5324 = vmatprep.subr.mxu0 0.0
  %5325 = vmatpush1.msra.mxu0 0.0
  %5326 = vmatprep.subr.mxu0 0.0
  %5327 = vmatpush1.msra.mxu0 0.0
  %5328 = vmatprep.subr.mxu0 0.0
  %5329 = vmatpush1.msra.mxu0 0.0
  %5330 = vmatprep.subr.mxu0 0.0
  %5331 = vmatpush1.msra.mxu0 0.0
  %5332 = vmatprep.subr.mxu0 0.0
  %5333 = vmatpush1.msra.mxu0 0.0
  %5334 = vmatprep.subr.mxu0 0.0
  %5335 = vmatpush1.msra.mxu0 0.0
  %5336 = vmatprep.subr.mxu0 0.0
  %5337 = vmatpush1.msra.mxu0 0.0
  %5338 = vmatprep.subr.mxu0 0.0
  %5339 = vmatpush1.msra.mxu0 0.0
  %5340 = vmatprep.subr.mxu0 0.0
  %5341 = vmatpush1.msra.mxu0 0.0
  %5342 = vmatprep.subr.mxu0 0.0
  %5343 = vmatpush1.msra.mxu0 0.0
  %5344 = vmatprep.subr.mxu0 0.0
  %5345 = vmatpush1.msra.mxu0 0.0
  %5346 = vmatprep.subr.mxu0 0.0
  %5347 = vmatpush1.msra.mxu0 0.0
  %5348 = vmatprep.subr.mxu0 0.0
  %5349 = vmatpush1.msra.mxu0 0.0
  %5350 = vmatprep.subr.mxu0 0.0
  %5351 = vmatpush1.msra.mxu0 0.0
  %5352 = vmatprep.subr.mxu0 0.0
  %5353 = vmatpush1.msra.mxu0 0.0
  %5354 = vmatprep.subr.mxu0 0.0
  %5355 = vmatpush1.msra.mxu0 0.0
  %5356 = vmatprep.subr.mxu0 0.0
  %5357 = vmatpush1.msra.mxu0 0.0
  %5358 = vmatprep.subr.mxu0 0.0
  %5359 = vmatpush1.msra.mxu0 0.0
  %5360 = vmatprep.subr.mxu0 0.0
  %5361 = vmatpush1.msra.mxu0 0.0
  %5362 = vmatprep.subr.mxu0 0.0
  %5363 = vmatpush1.msra.mxu0 0.0
  %5364 = vmatprep.subr.mxu0 0.0
  %5365 = vmatpush1.msra.mxu0 0.0
  %5366 = vmatprep.subr.mxu0 0.0
  %5367 = vmatpush1.msra.mxu0 0.0
  %5368 = vmatprep.subr.mxu0 0.0
  %5369 = vmatpush1.msra.mxu0 0.0
  %5370 = vmatprep.subr.mxu0 0.0
  %5371 = vmatpush1.msra.mxu0 0.0
  %5372 = vmatprep.subr.mxu0 0.0
  %5373 = vmatpush1.msra.mxu0 0.0
  %5374 = vmatprep.subr.mxu0 0.0
  %5375 = vmatpush1.msra.mxu0 0.0
  %5376 = vmatprep.mubr.f32.mxu0 0.0
  %5377 = vmatmul.mubr.f32.gmra.mrb[0].mxu0 %v5307
  %v5378 = vpop.f32.mrb[0].mxu0
  %v5379 = vadd.f32 0.0, %v5378
  %v5380 = vpop.f32.mrb[0].mxu0
  %5381 = vdwg.mxu0
  %v5383 = vsel %vm3024, %v3023, 0
  %v5386 = vsel %vm3028, %v109, 0
  %5388 = vmatprep.subr.mxu0 0.0
  %5389 = vmatpush1.msra.mxu0 %v5386
  %5390 = vmatprep.subr.mxu0 0.0
  %5391 = vmatpush1.msra.mxu0 0.0
  %5392 = vmatprep.subr.mxu0 0.0
  %5393 = vmatpush1.msra.mxu0 0.0
  %5394 = vmatprep.subr.mxu0 0.0
  %5395 = vmatpush1.msra.mxu0 0.0
  %5396 = vmatprep.subr.mxu0 0.0
  %5397 = vmatpush1.msra.mxu0 0.0
  %5398 = vmatprep.subr.mxu0 0.0
  %5399 = vmatpush1.msra.mxu0 0.0
  %5400 = vmatprep.subr.mxu0 0.0
  %5401 = vmatpush1.msra.mxu0 0.0
  %5402 = vmatprep.subr.mxu0 0.0
  %5403 = vmatpush1.msra.mxu0 0.0
  %5404 = vmatprep.subr.mxu0 0.0
  %5405 = vmatpush1.msra.mxu0 0.0
  %5406 = vmatprep.subr.mxu0 0.0
  %5407 = vmatpush1.msra.mxu0 0.0
  %5408 = vmatprep.subr.mxu0 0.0
  %5409 = vmatpush1.msra.mxu0 0.0
  %5410 = vmatprep.subr.mxu0 0.0
  %5411 = vmatpush1.msra.mxu0 0.0
  %5412 = vmatprep.subr.mxu0 0.0
  %5413 = vmatpush1.msra.mxu0 0.0
  %5414 = vmatprep.subr.mxu0 0.0
  %5415 = vmatpush1.msra.mxu0 0.0
  %5416 = vmatprep.subr.mxu0 0.0
  %5417 = vmatpush1.msra.mxu0 0.0
  %5418 = vmatprep.subr.mxu0 0.0
  %5419 = vmatpush1.msra.mxu0 0.0
  %5420 = vmatprep.subr.mxu0 0.0
  %5421 = vmatpush1.msra.mxu0 0.0
  %5422 = vmatprep.subr.mxu0 0.0
  %5423 = vmatpush1.msra.mxu0 0.0
  %5424 = vmatprep.subr.mxu0 0.0
  %5425 = vmatpush1.msra.mxu0 0.0
  %5426 = vmatprep.subr.mxu0 0.0
  %5427 = vmatpush1.msra.mxu0 0.0
  %5428 = vmatprep.subr.mxu0 0.0
  %5429 = vmatpush1.msra.mxu0 0.0
  %5430 = vmatprep.subr.mxu0 0.0
  %5431 = vmatpush1.msra.mxu0 0.0
  %5432 = vmatprep.subr.mxu0 0.0
  %5433 = vmatpush1.msra.mxu0 0.0
  %5434 = vmatprep.subr.mxu0 0.0
  %5435 = vmatpush1.msra.mxu0 0.0
  %5436 = vmatprep.subr.mxu0 0.0
  %5437 = vmatpush1.msra.mxu0 0.0
  %5438 = vmatprep.subr.mxu0 0.0
  %5439 = vmatpush1.msra.mxu0 0.0
  %5440 = vmatprep.subr.mxu0 0.0
  %5441 = vmatpush1.msra.mxu0 0.0
  %5442 = vmatprep.subr.mxu0 0.0
  %5443 = vmatpush1.msra.mxu0 0.0
  %5444 = vmatprep.subr.mxu0 0.0
  %5445 = vmatpush1.msra.mxu0 0.0
  %5446 = vmatprep.subr.mxu0 0.0
  %5447 = vmatpush1.msra.mxu0 0.0
  %5448 = vmatprep.subr.mxu0 0.0
  %5449 = vmatpush1.msra.mxu0 0.0
  %5450 = vmatprep.subr.mxu0 0.0
  %5451 = vmatpush1.msra.mxu0 0.0
  %5452 = vmatprep.mubr.f32.mxu0 0.0
  %5453 = vmatmul.mubr.f32.gmra.mrb[0].mxu0 %v5383
  %v5454 = vpop.f32.mrb[0].mxu0
  %v5455 = vadd.f32 0.0, %v5454
  %v5456 = vpop.f32.mrb[0].mxu0
  %5457 = vdwg.mxu0
  %vm5458 = vcmask 58368
  %5459 = vst.msk [vmem:[%s3] sm:$0x3] %vm5458, %v3099
  %5460 = vst.msk [vmem:[%s3 + $0x2] sm:$0x3] %vm5458, %v3175
  %5461 = vst.msk [vmem:[%s3 + $0x4] sm:$0x3] %vm5458, %v3251
  %5462 = vst.msk [vmem:[%s3 + $0x6] sm:$0x3] %vm5458, %v3327
  %5463 = vst.msk [vmem:[%s3 + $0x8] sm:$0x3] %vm5458, %v3403
  %5464 = vst.msk [vmem:[%s3 + $0xa] sm:$0x3] %vm5458, %v3479
  %5465 = vst.msk [vmem:[%s3 + $0xc] sm:$0x3] %vm5458, %v3555
  %5466 = vst.msk [vmem:[%s3 + $0xe] sm:$0x3] %vm5458, %v3631
  %5467 = vst.msk [vmem:[%s3 + $0x10] sm:$0x3] %vm5458, %v3707
  %5468 = vst.msk [vmem:[%s3 + $0x12] sm:$0x3] %vm5458, %v3783
  %5469 = vst.msk [vmem:[%s3 + $0x14] sm:$0x3] %vm5458, %v3859
  %5470 = vst.msk [vmem:[%s3 + $0x16] sm:$0x3] %vm5458, %v3935
  %5471 = vst.msk [vmem:[%s3 + $0x18] sm:$0x3] %vm5458, %v4011
  %5472 = vst.msk [vmem:[%s3 + $0x1a] sm:$0x3] %vm5458, %v4087
  %5473 = vst.msk [vmem:[%s3 + $0x1c] sm:$0x3] %vm5458, %v4163
  %5474 = vst.msk [vmem:[%s3 + $0x1e] sm:$0x3] %vm5458, %v4239
  %5475 = vst.msk [vmem:[%s3 + $0x20] sm:$0x3] %vm5458, %v4315
  %5476 = vst.msk [vmem:[%s3 + $0x22] sm:$0x3] %vm5458, %v4391
  %5477 = vst.msk [vmem:[%s3 + $0x24] sm:$0x3] %vm5458, %v4467
  %5478 = vst.msk [vmem:[%s3 + $0x26] sm:$0x3] %vm5458, %v4543
  %5479 = vst.msk [vmem:[%s3 + $0x28] sm:$0x3] %vm5458, %v4619
  %5480 = vst.msk [vmem:[%s3 + $0x2a] sm:$0x3] %vm5458, %v4695
  %5481 = vst.msk [vmem:[%s3 + $0x2c] sm:$0x3] %vm5458, %v4771
  %5482 = vst.msk [vmem:[%s3 + $0x2e] sm:$0x3] %vm5458, %v4847
  %5483 = vst.msk [vmem:[%s3 + $0x30] sm:$0x3] %vm5458, %v4923
  %5484 = vst.msk [vmem:[%s3 + $0x32] sm:$0x3] %vm5458, %v4999
  %5485 = vst.msk [vmem:[%s3 + $0x34] sm:$0x3] %vm5458, %v5075
  %5486 = vst.msk [vmem:[%s3 + $0x36] sm:$0x3] %vm5458, %v5151
  %5487 = vst.msk [vmem:[%s3 + $0x38] sm:$0x3] %vm5458, %v5227
  %5488 = vst.msk [vmem:[%s3 + $0x3a] sm:$0x3] %vm5458, %v5303
  %5489 = vst.msk [vmem:[%s3 + $0x3c] sm:$0x3] %vm5458, %v5379
  %5490 = vst.msk [vmem:[%s3 + $0x3e] sm:$0x3] %vm5458, %v5455
  // Predicated region
  $region14: #{argument_extraction_forward.7} parent=0 // pred_check
    _
  $region15: #{argument_extraction_forward.7} parent=0 // pred_check_branch
    %5492 = sbr.rel (0) target = $region17
  $region16: #{argument_extraction_forward.7} parent=0 // pred_region
    _
  $region17: #{argument_extraction_forward.7} parent=0 // pred_fallthru
    _
  // Predicated region
  $region18: #{argument_extraction_forward.7} parent=0 // pred_check
    _
  $region19: #{argument_extraction_forward.7} parent=0 // pred_check_branch
    %5494 = sbr.rel (0) target = $region21
  $region20: #{argument_extraction_forward.7} parent=0 // pred_region
    _
  $region21: #{argument_extraction_forward.7} parent=0 // pred_fallthru
    _

</llo_original>
